<compile_context>
chip_gen: v6e
topology: v6e:2x2x1
jax: 0.10.0
libtpu: 0.0.40
codegen_flags: <defaults>
</compile_context>

<pallas_src>
import functools

import jax
import jax.numpy as jnp
from jax.experimental import pallas as pl
from jax.experimental.pallas import tpu as pltpu


# ----------------------------------------------------------------------------
# Kernel 1: conv1 -> conv2 -> maxpool -> fc3 -> LSTM layer-0 input projection.
#
# x_ref    : (T, C, st)        segments on lanes.
# w1_ref   : (3*OC, C)  conv1 weights with the conv2 column shift dj in
#                       {-1,0,+1} AND the pool's even/odd channel permutation
#                       folded into the rows (zeroed rows at the borders
#                       reproduce conv2's zero padding; relu(0)=0).
# b1_ref   : (3*OC, 1)  matching conv1 biases.
# wc2_ref  : (OC2*9,)   conv2 weights, flat [oc2, kh, kw] C-order, in SMEM.
# bc2_ref  : (OC2,)     conv2 bias, in SMEM.
# w3t_ref  : (H, D3)    fc3 weight (torch layout), bf16.
# b3_ref   : (H, 1)     fc3 bias.
# wih0_ref : (H, 4H)    LSTM layer-0 W_ih^T, bf16.
# bg0_ref  : (1, 4H)    LSTM layer-0 combined bias (b_ih + b_hh).
# o_ref    : (st, 4H)   layer-0 gate pre-activations (lane dense, 4H >= 128).
# y_sc     : VMEM (T, 3*OC, st) conv1 results (bounded live set).
# flat_sc  : VMEM (D3, st)      pooled features in NCHW flatten order.
# ----------------------------------------------------------------------------
def _conv_pipeline_kernel(x_ref, w1_ref, b1_ref, wc2_ref, bc2_ref,
                          w3t_ref, b3_ref, wih0_ref, bg0_ref, o_ref,
                          y_sc, flat_sc, *, T, OC, OC2, Tp, Fp):
    # conv1 (1x1) + ReLU: one matmul per time row, all 3 shift variants at once.
    w1 = w1_ref[...]                                     # (3*OC, C)
    b1 = b1_ref[...]                                     # (3*OC, 1)
    for t in range(T):
        y = jnp.dot(w1, x_ref[t], preferred_element_type=jnp.float32)
        y_sc[t] = jnp.maximum(y + b1, 0.0)               # (3*OC, st)

    # conv2 (3x3, pad=1): 9-tap scalar MAC (weights from SMEM), then 2x2 pool.
    # Rows = permuted conv1 channels (sublanes), columns = segments (lanes).
    for oc2 in range(OC2):
        bias = bc2_ref[oc2]
        for tp in range(Tp):
            rows = []
            for dt in range(2):                          # the two pooled rows
                tconv = 2 * tp + dt
                acc = None
                for i in range(3):                       # kernel row (kh)
                    tt = tconv + i - 1
                    if tt < 0 or tt >= T:                # zero padding row
                        continue
                    for j in range(3):                   # kernel col (kw)
                        w = wc2_ref[oc2 * 9 + i * 3 + j]
                        term = y_sc[tt, j * OC:(j + 1) * OC, :] * w
                        acc = term if acc is None else acc + term
                rows.append(acc + bias)                  # (OC, st)
            rmax = jnp.maximum(rows[0], rows[1])
            # permuted layout: first half = even original channels, second
            # half = odd -> 2x column pooling is a max of sublane halves.
            piece = jnp.maximum(rmax[:Fp, :], rmax[Fp:2 * Fp, :])   # (Fp, st)
            base = (oc2 * Tp + tp) * Fp                  # NCHW flatten order
            flat_sc[base:base + Fp, :] = piece

    # fc3 (+ReLU) in the transposed layout (bf16 MXU, f32 accumulate).
    featT = jnp.dot(w3t_ref[...], flat_sc[...].astype(jnp.bfloat16),
                    preferred_element_type=jnp.float32)  # (H, st)
    featT = jnp.maximum(featT + b3_ref[...], 0.0)
    # TODO(synk): the PyTorch forward has debug asserts (no-NaN / non-zero sum)
    # on the fc3 output; they are runtime checks, not compute, and are omitted.

    # LSTM layer-0 input projection hoisted off the serial recurrence.
    feat = featT.T                                       # (st, H), small xpose
    gx0 = jnp.dot(feat.astype(jnp.bfloat16), wih0_ref[...],
                  preferred_element_type=jnp.float32)    # (st, 4H) lane dense
    o_ref[...] = gx0 + bg0_ref[...]


# ----------------------------------------------------------------------------
# Kernel 2: fused 2-layer LSTM recurrence + keyless attention + BN(eval)+ReLU.
#
# gx0_ref  : (S, bt, 4H) precomputed layer-0 gate pre-activations (time major).
# whh0_ref : (H, 4H)     layer-0 recurrent weight W_hh^T.
# w1cat_ref: (2H, 4H)    layer-1 stacked [W_ih^T ; W_hh^T].
# bl1_ref  : (1, 4H)     layer-1 combined bias.
# wa_ref   : (1, 1, H)   attention weight; gamma/beta/mean/var: (1, H) BN stats.
# o_ref    : (bt, H)
# hs_sc    : VMEM (S, bt, H) layer-1 hidden states (consumed by the attention).
# ----------------------------------------------------------------------------
def _lstm_atten_kernel(gx0_ref, whh0_ref, w1cat_ref, bl1_ref, wa_ref,
                       gamma_ref, beta_ref, mean_ref, var_ref, o_ref,
                       hs_sc, *, H, S, unroll):
    bt = o_ref.shape[0]
    whh0 = whh0_ref[...]                                 # loop-invariant loads
    w1cat = w1cat_ref[...]
    bl1 = bl1_ref[...]

    def gates(g):                                        # PyTorch order i|f|g|o
        i = jax.nn.sigmoid(g[:, 0 * H:1 * H])
        f = jax.nn.sigmoid(g[:, 1 * H:2 * H])
        c = jnp.tanh(g[:, 2 * H:3 * H])
        o = jax.nn.sigmoid(g[:, 3 * H:4 * H])
        return i, f, c, o

    def step(t, carry):
        h0, c0, h1, c1 = carry
        # layer 0: only the recurrent matmul is on the serial chain.
        g0 = gx0_ref[t] + jnp.dot(h0, whh0, preferred_element_type=jnp.float32)
        i0, f0, cc0, o0 = gates(g0)
        c0 = f0 * c0 + i0 * cc0
        h0 = o0 * jnp.tanh(c0)
        # layer 1: single fused matmul on concat([x_t, h_prev]).
        g1 = jnp.dot(jnp.concatenate([h0, h1], axis=1), w1cat,
                     preferred_element_type=jnp.float32) + bl1
        i1, f1, cc1, o1 = gates(g1)
        c1 = f1 * c1 + i1 * cc1
        h1 = o1 * jnp.tanh(c1)
        hs_sc[t] = h1
        return (h0, c0, h1, c1)

    z = jnp.zeros((bt, H), jnp.float32)
    if unroll:                                           # small static S
        carry = (z, z, z, z)
        for t in range(S):
            carry = step(t, carry)
    else:
        jax.lax.fori_loop(0, S, step, (z, z, z, z))

    # Keyless attention over the segment axis, then BatchNorm1d(eval) + ReLU.
    hs = hs_sc[...]                                      # (S, bt, H)
    scores = jnp.sum(hs * wa_ref[...], axis=-1, keepdims=True)   # (S, bt, 1)
    m = jnp.max(scores, axis=0, keepdims=True)
    e = jnp.exp(scores - m)
    alpha = e / jnp.sum(e, axis=0, keepdims=True)        # softmax over S
    out = jnp.sum(hs * alpha, axis=0)                    # (bt, H)
    eps = 1e-5
    y = (out - mean_ref[...]) * gamma_ref[...] * jax.lax.rsqrt(var_ref[...] + eps)
    o_ref[...] = jnp.maximum(y + beta_ref[...], 0.0)     # ReLU (Dropout = id)


# ----------------------------------------------------------------------------
# Full forward pass.
# ----------------------------------------------------------------------------
def hcn_inertial_enc_forward(x, p, *, out_channel, feature_dim,
                             seg_tile=256, batch_tile=8):
    B, S, T, C = x.shape
    OC, H = out_channel, feature_dim
    OC2, Tp, Fp = OC // 2, T // 2, OC // 2
    D3 = OC2 * Tp * Fp
    BS = S * B

    # Segments on lanes, s-major ordering so the conv output reshapes for free
    # to (S, B, 4H) time-major for the LSTM (no inter-kernel transposes).
    x_t = x.transpose(2, 3, 1, 0).reshape(T, C, BS)      # tiny host transpose
    st = min(seg_tile, BS)

    conv_flops = 2 * BS * (T * 3 * OC * C + 2 * Tp * OC2 * 9 * OC
                           + D3 * H + H * 4 * H)
    conv_bytes = (4 * T * C * BS + 4 * BS * 4 * H
                  + 2 * (H * D3 + H * 4 * H)
                  + 4 * (3 * OC * C + 3 * OC + OC2 * 10 + 5 * H))

    gx0 = pl.pallas_call(
        functools.partial(_conv_pipeline_kernel,
                          T=T, OC=OC, OC2=OC2, Tp=Tp, Fp=Fp),
        out_shape=jax.ShapeDtypeStruct((BS, 4 * H), jnp.float32),
        grid=(pl.cdiv(BS, st),),
        in_specs=[
            pl.BlockSpec((T, C, st), lambda i: (0, 0, i)),
            pl.BlockSpec((3 * OC, C), lambda i: (0, 0)),
            pl.BlockSpec((3 * OC, 1), lambda i: (0, 0)),
            pl.BlockSpec(memory_space=pltpu.MemorySpace.SMEM),
            pl.BlockSpec(memory_space=pltpu.MemorySpace.SMEM),
            pl.BlockSpec((H, D3), lambda i: (0, 0)),
            pl.BlockSpec((H, 1), lambda i: (0, 0)),
            pl.BlockSpec((H, 4 * H), lambda i: (0, 0)),
            pl.BlockSpec((1, 4 * H), lambda i: (0, 0)),
        ],
        out_specs=pl.BlockSpec((st, 4 * H), lambda i: (i, 0)),
        scratch_shapes=[pltpu.VMEM((T, 3 * OC, st), jnp.float32),
                        pltpu.VMEM((D3, st), jnp.float32)],
        compiler_params=pltpu.CompilerParams(
            dimension_semantics=("parallel",)),
        cost_estimate=pl.CostEstimate(flops=conv_flops, transcendentals=0,
                                      bytes_accessed=conv_bytes),
    )(x_t, p["w1"], p["b1"], p["wc2"], p["bc2"],
      p["w3t"], p["b3"], p["wih0"], p["bg0"])

    gx0 = gx0.reshape(S, B, 4 * H)                       # free reshape (s-major)

    bt = min(batch_tile, B)
    lstm_flops = 2 * S * B * (H * 4 * H + 2 * H * 4 * H) + 4 * S * B * H
    lstm_bytes = 4 * (S * B * 4 * H + B * H + 3 * H * 4 * H + 10 * H)

    out = pl.pallas_call(
        functools.partial(_lstm_atten_kernel, H=H, S=S, unroll=(S <= 32)),
        out_shape=jax.ShapeDtypeStruct((B, H), jnp.float32),
        grid=(pl.cdiv(B, bt),),
        in_specs=[
            pl.BlockSpec((S, bt, 4 * H), lambda i: (0, i, 0)),
            pl.BlockSpec((H, 4 * H), lambda i: (0, 0)),
            pl.BlockSpec((2 * H, 4 * H), lambda i: (0, 0)),
            pl.BlockSpec((1, 4 * H), lambda i: (0, 0)),
            pl.BlockSpec((1, 1, H), lambda i: (0, 0, 0)),
            pl.BlockSpec((1, H), lambda i: (0, 0)),
            pl.BlockSpec((1, H), lambda i: (0, 0)),
            pl.BlockSpec((1, H), lambda i: (0, 0)),
            pl.BlockSpec((1, H), lambda i: (0, 0)),
        ],
        out_specs=pl.BlockSpec((bt, H), lambda i: (i, 0)),
        scratch_shapes=[pltpu.VMEM((S, bt, H), jnp.float32)],
        compiler_params=pltpu.CompilerParams(
            dimension_semantics=("parallel",)),
        cost_estimate=pl.CostEstimate(flops=lstm_flops,
                                      transcendentals=10 * S * B * H + S * B,
                                      bytes_accessed=lstm_bytes),
    )(gx0, p["whh0"], p["w1cat"], p["bl1"], p["wa"],
      p["bn_gamma"], p["bn_beta"], p["bn_mean"], p["bn_var"])
    return out


# ----------------------------------------------------------------------------
# Deterministic parameter initialization (shapes from the module __init__;
# bounds follow weights_init; LSTM weights use (semi-)orthogonal init).
# The conv2 column shifts and pool channel permutation are folded into the
# stored conv1 weights here (pure host-side preprocessing of weights only).
# ----------------------------------------------------------------------------
def init_params(key, *, in_channel, window_size, out_channel, feature_dim):
    C, T, OC, H = in_channel, window_size, out_channel, feature_dim
    OC2, Tp, Fp = OC // 2, T // 2, OC // 2
    D3 = OC2 * Tp * Fp

    keys = jax.random.split(key, 8)

    def uniform(k, shape, bound):
        return jax.random.uniform(k, shape, jnp.float32, -bound, bound)

    # conv1: torch weight (OC, C, 1, 1); fan_in=C, fan_out=OC; bias -> 0.
    w1_t = uniform(keys[0], (OC, C), (6.0 / (C + OC)) ** 0.5)        # (OC, C)
    b1_t = jnp.zeros((OC,), jnp.float32)

    # Fold conv2's column shifts (dj in {-1,0,+1}) and the maxpool even/odd
    # channel permutation into three stacked conv1 weight/bias variants.
    # Zeroed boundary rows reproduce conv2's zero padding (relu(0) = 0).
    perm = jnp.concatenate([jnp.arange(0, OC, 2), jnp.arange(1, OC, 2)])
    wrows, brows = [], []
    for dj in (-1, 0, 1):
        src = perm + dj
        valid = ((src >= 0) & (src < OC)).astype(jnp.float32)
        srcc = jnp.clip(src, 0, OC - 1)
        wrows.append(w1_t[srcc, :] * valid[:, None])
        brows.append(b1_t[srcc] * valid)
    w1 = jnp.concatenate(wrows, axis=0)                               # (3OC, C)
    b1 = jnp.concatenate(brows, axis=0).reshape(3 * OC, 1)

    # conv2: torch weight (OC2, 1, 3, 3); fan_in=9, fan_out=9*OC2; bias -> 0.
    wc2 = uniform(keys[1], (OC2, 3, 3),
                  (6.0 / (9 + 9 * OC2)) ** 0.5).reshape(OC2 * 9)
    bc2 = jnp.zeros((OC2,), jnp.float32)

    # fc3: Linear(D3, H); bias -> 0.  Stored in torch layout (H, D3), bf16.
    w3t = uniform(keys[2], (H, D3), (6.0 / (D3 + H)) ** 0.5).astype(jnp.bfloat16)
    b3 = jnp.zeros((H, 1), jnp.float32)

    # LSTM (2 layers), gate order i|f|g|o.  weights_init sets the forget slice
    # of BOTH b_ih and b_hh to 1.0, so the combined bias is 2.0 on that slice.
    def orth(k, rows, cols):
        a = jax.random.normal(k, (rows, cols), jnp.float32)
        q, r = jnp.linalg.qr(a)
        return q * jnp.sign(jnp.diagonal(r))[None, :]

    def lstm_layer(k, h):
        k_ih, k_hh = jax.random.split(k)
        wih = orth(k_ih, 4 * h, h).T                                  # (H, 4H)
        whh = orth(k_hh, 4 * h, h).T                                  # (H, 4H)
        b = jnp.zeros((1, 4 * h), jnp.float32).at[0, h:2 * h].set(2.0)
        return wih, whh, b

    wih0, whh0, bg0 = lstm_layer(keys[3], H)
    wih1, whh1, bl1 = lstm_layer(keys[4], H)
    w1cat = jnp.concatenate([wih1, whh1], axis=0)                     # (2H, 4H)

    # attention: Linear(H, 1, bias=False).
    wa = uniform(keys[5], (1, 1, H), (6.0 / (H + 1)) ** 0.5)

    return dict(
        w1=w1, b1=b1, wc2=wc2, bc2=bc2, w3t=w3t, b3=b3,
        wih0=wih0.astype(jnp.bfloat16), bg0=bg0,
        whh0=whh0, w1cat=w1cat, bl1=bl1,
        wa=wa,
        bn_gamma=jnp.ones((1, H), jnp.float32),
        bn_beta=jnp.zeros((1, H), jnp.float32),
        bn_mean=jnp.zeros((1, H), jnp.float32),
        bn_var=jnp.ones((1, H), jnp.float32),
    )


if __name__ == "__main__":
    B, S = 2, 8                 # batch, number of segments (sequence length)
    in_channel = 3
    window_size = 5             # T
    out_channel = 16            # OC (small for the synthetic run)
    feature_dim = 32            # H

    key = jax.random.PRNGKey(0)
    kx, kp = jax.random.split(key)
    x = jax.random.normal(kx, (B, S, window_size, in_channel), jnp.float32)
    params = init_params(kp, in_channel=in_channel, window_size=window_size,
                         out_channel=out_channel, feature_dim=feature_dim)

    fwd = jax.jit(functools.partial(hcn_inertial_enc_forward,
                                    out_channel=out_channel,
                                    feature_dim=feature_dim))
    out = fwd(x, params)
    jax.block_until_ready(out)
    assert out.shape == (B, feature_dim)
    assert bool(jnp.all(jnp.isfinite(out)))
    print("KERNEL_OK")
</pallas_src>

<mosaic_0001>
module attributes {stable_mosaic.version = 11 : i64} {
  func.func @_conv_pipeline_kernel(%arg0: i32, %arg1: memref<5x3x16xf32, #tpu.memory_space<vmem>>, %arg2: memref<48x3xf32, #tpu.memory_space<vmem>>, %arg3: memref<48x1xf32, #tpu.memory_space<vmem>>, %arg4: memref<72xf32, #tpu.memory_space<smem>>, %arg5: memref<8xf32, #tpu.memory_space<smem>>, %arg6: memref<32x128xbf16, #tpu.memory_space<vmem>>, %arg7: memref<32x1xf32, #tpu.memory_space<vmem>>, %arg8: memref<32x128xbf16, #tpu.memory_space<vmem>>, %arg9: memref<1x128xf32, #tpu.memory_space<vmem>>, %arg10: memref<16x128xf32, #tpu.memory_space<vmem>>, %arg11: memref<5x48x16xf32, #tpu.memory_space<vmem>>, %arg12: memref<128x16xf32, #tpu.memory_space<vmem>>) attributes {dimension_semantics = [#tpu.dimension_semantics<parallel>], iteration_bounds = array<i64: 1>, scalar_prefetch = 0 : i64, scratch_operands = 2 : i64, tpu.core_type = #tpu.core_type<tc>, window_params = [{transform_indices = @transform_0, window_bounds = array<i64: 5, 3, 16>}, {pipeline_mode = #tpu.pipeline_mode<synchronous>, transform_indices = @transform_1, window_bounds = array<i64: 48, 3>}, {pipeline_mode = #tpu.pipeline_mode<synchronous>, transform_indices = @transform_2, window_bounds = array<i64: 48, 1>}, {transform_indices = @transform_3, window_bounds = array<i64: 72>}, {transform_indices = @transform_4, window_bounds = array<i64: 8>}, {pipeline_mode = #tpu.pipeline_mode<synchronous>, transform_indices = @transform_5, window_bounds = array<i64: 32, 128>}, {pipeline_mode = #tpu.pipeline_mode<synchronous>, transform_indices = @transform_6, window_bounds = array<i64: 32, 1>}, {pipeline_mode = #tpu.pipeline_mode<synchronous>, transform_indices = @transform_7, window_bounds = array<i64: 32, 128>}, {pipeline_mode = #tpu.pipeline_mode<synchronous>, transform_indices = @transform_8, window_bounds = array<i64: 1, 128>}, {transform_indices = @transform_9, window_bounds = array<i64: 16, 128>}]} {
    %c0 = arith.constant 0 : index
    %c0_0 = arith.constant 0 : index
    %0 = vector.load %arg2[%c0, %c0_0] : memref<48x3xf32, #tpu.memory_space<vmem>>, vector<48x3xf32>
    %c0_1 = arith.constant 0 : index
    %c0_2 = arith.constant 0 : index
    %1 = vector.load %arg3[%c0_1, %c0_2] : memref<48x1xf32, #tpu.memory_space<vmem>>, vector<48x1xf32>
    %c0_3 = arith.constant 0 : index
    %c0_4 = arith.constant 0 : index
    %c0_5 = arith.constant 0 : index
    %2 = vector.load %arg1[%c0_3, %c0_4, %c0_5] : memref<5x3x16xf32, #tpu.memory_space<vmem>>, vector<1x3x16xf32>
    %3 = vector.shape_cast %2 : vector<1x3x16xf32> to vector<3x16xf32>
    %cst = arith.constant dense<0.000000e+00> : vector<48x16xf32>
    %4 = tpu.matmul %0, %3, %cst {dimension_numbers = #tpu.dot_dimension_numbers<[1], [0], [0], [1], [0, 0, 1, 1], [], []>} : vector<48x3xf32>, vector<3x16xf32>, vector<48x16xf32> -> vector<48x16xf32>
    %5 = vector.broadcast %1 : vector<48x1xf32> to vector<48x16xf32>
    %6 = arith.addf %4, %5 : vector<48x16xf32>
    %cst_6 = arith.constant 0.000000e+00 : f32
    %7 = vector.broadcast %cst_6 : f32 to vector<48x16xf32>
    %8 = arith.maximumf %6, %7 : vector<48x16xf32>
    %c0_7 = arith.constant 0 : index
    %c0_8 = arith.constant 0 : index
    %c0_9 = arith.constant 0 : index
    %9 = vector.load %arg11[%c0_7, %c0_8, %c0_9] : memref<5x48x16xf32, #tpu.memory_space<vmem>>, vector<1x48x16xf32>
    %10 = vector.shape_cast %9 : vector<1x48x16xf32> to vector<48x16xf32>
    %11 = vector.shape_cast %8 : vector<48x16xf32> to vector<1x48x16xf32>
    tpu.vector_store %arg11[%c0_7, %c0_8, %c0_9], %11 {strides = array<i32>} : memref<5x48x16xf32, #tpu.memory_space<vmem>>, vector<1x48x16xf32>,
    %c1 = arith.constant 1 : index
    %c0_10 = arith.constant 0 : index
    %c0_11 = arith.constant 0 : index
    %12 = vector.load %arg1[%c1, %c0_10, %c0_11] : memref<5x3x16xf32, #tpu.memory_space<vmem>>, vector<1x3x16xf32>
    %13 = vector.shape_cast %12 : vector<1x3x16xf32> to vector<3x16xf32>
    %cst_12 = arith.constant dense<0.000000e+00> : vector<48x16xf32>
    %14 = tpu.matmul %0, %13, %cst_12 {dimension_numbers = #tpu.dot_dimension_numbers<[1], [0], [0], [1], [0, 0, 1, 1], [], []>} : vector<48x3xf32>, vector<3x16xf32>, vector<48x16xf32> -> vector<48x16xf32>
    %15 = vector.broadcast %1 : vector<48x1xf32> to vector<48x16xf32>
    %16 = arith.addf %14, %15 : vector<48x16xf32>
    %cst_13 = arith.constant 0.000000e+00 : f32
    %17 = vector.broadcast %cst_13 : f32 to vector<48x16xf32>
    %18 = arith.maximumf %16, %17 : vector<48x16xf32>
    %c1_14 = arith.constant 1 : index
    %c0_15 = arith.constant 0 : index
    %c0_16 = arith.constant 0 : index
    %19 = vector.load %arg11[%c1_14, %c0_15, %c0_16] : memref<5x48x16xf32, #tpu.memory_space<vmem>>, vector<1x48x16xf32>
    %20 = vector.shape_cast %19 : vector<1x48x16xf32> to vector<48x16xf32>
    %21 = vector.shape_cast %18 : vector<48x16xf32> to vector<1x48x16xf32>
    tpu.vector_store %arg11[%c1_14, %c0_15, %c0_16], %21 {strides = array<i32>} : memref<5x48x16xf32, #tpu.memory_space<vmem>>, vector<1x48x16xf32>,
    %c2 = arith.constant 2 : index
    %c0_17 = arith.constant 0 : index
    %c0_18 = arith.constant 0 : index
    %22 = vector.load %arg1[%c2, %c0_17, %c0_18] : memref<5x3x16xf32, #tpu.memory_space<vmem>>, vector<1x3x16xf32>
    %23 = vector.shape_cast %22 : vector<1x3x16xf32> to vector<3x16xf32>
    %cst_19 = arith.constant dense<0.000000e+00> : vector<48x16xf32>
    %24 = tpu.matmul %0, %23, %cst_19 {dimension_numbers = #tpu.dot_dimension_numbers<[1], [0], [0], [1], [0, 0, 1, 1], [], []>} : vector<48x3xf32>, vector<3x16xf32>, vector<48x16xf32> -> vector<48x16xf32>
    %25 = vector.broadcast %1 : vector<48x1xf32> to vector<48x16xf32>
    %26 = arith.addf %24, %25 : vector<48x16xf32>
    %cst_20 = arith.constant 0.000000e+00 : f32
    %27 = vector.broadcast %cst_20 : f32 to vector<48x16xf32>
    %28 = arith.maximumf %26, %27 : vector<48x16xf32>
    %c2_21 = arith.constant 2 : index
    %c0_22 = arith.constant 0 : index
    %c0_23 = arith.constant 0 : index
    %29 = vector.load %arg11[%c2_21, %c0_22, %c0_23] : memref<5x48x16xf32, #tpu.memory_space<vmem>>, vector<1x48x16xf32>
    %30 = vector.shape_cast %29 : vector<1x48x16xf32> to vector<48x16xf32>
    %31 = vector.shape_cast %28 : vector<48x16xf32> to vector<1x48x16xf32>
    tpu.vector_store %arg11[%c2_21, %c0_22, %c0_23], %31 {strides = array<i32>} : memref<5x48x16xf32, #tpu.memory_space<vmem>>, vector<1x48x16xf32>,
    %c3 = arith.constant 3 : index
    %c0_24 = arith.constant 0 : index
    %c0_25 = arith.constant 0 : index
    %32 = vector.load %arg1[%c3, %c0_24, %c0_25] : memref<5x3x16xf32, #tpu.memory_space<vmem>>, vector<1x3x16xf32>
    %33 = vector.shape_cast %32 : vector<1x3x16xf32> to vector<3x16xf32>
    %cst_26 = arith.constant dense<0.000000e+00> : vector<48x16xf32>
    %34 = tpu.matmul %0, %33, %cst_26 {dimension_numbers = #tpu.dot_dimension_numbers<[1], [0], [0], [1], [0, 0, 1, 1], [], []>} : vector<48x3xf32>, vector<3x16xf32>, vector<48x16xf32> -> vector<48x16xf32>
    %35 = vector.broadcast %1 : vector<48x1xf32> to vector<48x16xf32>
    %36 = arith.addf %34, %35 : vector<48x16xf32>
    %cst_27 = arith.constant 0.000000e+00 : f32
    %37 = vector.broadcast %cst_27 : f32 to vector<48x16xf32>
    %38 = arith.maximumf %36, %37 : vector<48x16xf32>
    %c3_28 = arith.constant 3 : index
    %c0_29 = arith.constant 0 : index
    %c0_30 = arith.constant 0 : index
    %39 = vector.load %arg11[%c3_28, %c0_29, %c0_30] : memref<5x48x16xf32, #tpu.memory_space<vmem>>, vector<1x48x16xf32>
    %40 = vector.shape_cast %39 : vector<1x48x16xf32> to vector<48x16xf32>
    %41 = vector.shape_cast %38 : vector<48x16xf32> to vector<1x48x16xf32>
    tpu.vector_store %arg11[%c3_28, %c0_29, %c0_30], %41 {strides = array<i32>} : memref<5x48x16xf32, #tpu.memory_space<vmem>>, vector<1x48x16xf32>,
    %c4 = arith.constant 4 : index
    %c0_31 = arith.constant 0 : index
    %c0_32 = arith.constant 0 : index
    %42 = vector.load %arg1[%c4, %c0_31, %c0_32] : memref<5x3x16xf32, #tpu.memory_space<vmem>>, vector<1x3x16xf32>
    %43 = vector.shape_cast %42 : vector<1x3x16xf32> to vector<3x16xf32>
    %cst_33 = arith.constant dense<0.000000e+00> : vector<48x16xf32>
    %44 = tpu.matmul %0, %43, %cst_33 {dimension_numbers = #tpu.dot_dimension_numbers<[1], [0], [0], [1], [0, 0, 1, 1], [], []>} : vector<48x3xf32>, vector<3x16xf32>, vector<48x16xf32> -> vector<48x16xf32>
    %45 = vector.broadcast %1 : vector<48x1xf32> to vector<48x16xf32>
    %46 = arith.addf %44, %45 : vector<48x16xf32>
    %cst_34 = arith.constant 0.000000e+00 : f32
    %47 = vector.broadcast %cst_34 : f32 to vector<48x16xf32>
    %48 = arith.maximumf %46, %47 : vector<48x16xf32>
    %c4_35 = arith.constant 4 : index
    %c0_36 = arith.constant 0 : index
    %c0_37 = arith.constant 0 : index
    %49 = vector.load %arg11[%c4_35, %c0_36, %c0_37] : memref<5x48x16xf32, #tpu.memory_space<vmem>>, vector<1x48x16xf32>
    %50 = vector.shape_cast %49 : vector<1x48x16xf32> to vector<48x16xf32>
    %51 = vector.shape_cast %48 : vector<48x16xf32> to vector<1x48x16xf32>
    tpu.vector_store %arg11[%c4_35, %c0_36, %c0_37], %51 {strides = array<i32>} : memref<5x48x16xf32, #tpu.memory_space<vmem>>, vector<1x48x16xf32>,
    %c0_38 = arith.constant 0 : index
    %52 = memref.load %arg5[%c0_38] : memref<8xf32, #tpu.memory_space<smem>>
    %c3_39 = arith.constant 3 : index
    %53 = memref.load %arg4[%c3_39] : memref<72xf32, #tpu.memory_space<smem>>
    %c0_40 = arith.constant 0 : index
    %c0_41 = arith.constant 0 : index
    %c0_42 = arith.constant 0 : index
    %54 = vector.load %arg11[%c0_40, %c0_41, %c0_42] : memref<5x48x16xf32, #tpu.memory_space<vmem>>, vector<1x16x16xf32>
    %55 = vector.shape_cast %54 : vector<1x16x16xf32> to vector<16x16xf32>
    %56 = vector.broadcast %53 : f32 to vector<16x16xf32>
    %57 = arith.mulf %55, %56 : vector<16x16xf32>
    %c4_43 = arith.constant 4 : index
    %58 = memref.load %arg4[%c4_43] : memref<72xf32, #tpu.memory_space<smem>>
    %c0_44 = arith.constant 0 : index
    %c16 = arith.constant 16 : index
    %c0_45 = arith.constant 0 : index
    %59 = vector.load %arg11[%c0_44, %c16, %c0_45] : memref<5x48x16xf32, #tpu.memory_space<vmem>>, vector<1x16x16xf32>
    %60 = vector.shape_cast %59 : vector<1x16x16xf32> to vector<16x16xf32>
    %61 = vector.broadcast %58 : f32 to vector<16x16xf32>
    %62 = arith.mulf %60, %61 : vector<16x16xf32>
    %63 = arith.addf %57, %62 : vector<16x16xf32>
    %c5 = arith.constant 5 : index
    %64 = memref.load %arg4[%c5] : memref<72xf32, #tpu.memory_space<smem>>
    %c0_46 = arith.constant 0 : index
    %c32 = arith.constant 32 : index
    %c0_47 = arith.constant 0 : index
    %65 = vector.load %arg11[%c0_46, %c32, %c0_47] : memref<5x48x16xf32, #tpu.memory_space<vmem>>, vector<1x16x16xf32>
    %66 = vector.shape_cast %65 : vector<1x16x16xf32> to vector<16x16xf32>
    %67 = vector.broadcast %64 : f32 to vector<16x16xf32>
    %68 = arith.mulf %66, %67 : vector<16x16xf32>
    %69 = arith.addf %63, %68 : vector<16x16xf32>
    %c6 = arith.constant 6 : index
    %70 = memref.load %arg4[%c6] : memref<72xf32, #tpu.memory_space<smem>>
    %c1_48 = arith.constant 1 : index
    %c0_49 = arith.constant 0 : index
    %c0_50 = arith.constant 0 : index
    %71 = vector.load %arg11[%c1_48, %c0_49, %c0_50] : memref<5x48x16xf32, #tpu.memory_space<vmem>>, vector<1x16x16xf32>
    %72 = vector.shape_cast %71 : vector<1x16x16xf32> to vector<16x16xf32>
    %73 = vector.broadcast %70 : f32 to vector<16x16xf32>
    %74 = arith.mulf %72, %73 : vector<16x16xf32>
    %75 = arith.addf %69, %74 : vector<16x16xf32>
    %c7 = arith.constant 7 : index
    %76 = memref.load %arg4[%c7] : memref<72xf32, #tpu.memory_space<smem>>
    %c1_51 = arith.constant 1 : index
    %c16_52 = arith.constant 16 : index
    %c0_53 = arith.constant 0 : index
    %77 = vector.load %arg11[%c1_51, %c16_52, %c0_53] : memref<5x48x16xf32, #tpu.memory_space<vmem>>, vector<1x16x16xf32>
    %78 = vector.shape_cast %77 : vector<1x16x16xf32> to vector<16x16xf32>
    %79 = vector.broadcast %76 : f32 to vector<16x16xf32>
    %80 = arith.mulf %78, %79 : vector<16x16xf32>
    %81 = arith.addf %75, %80 : vector<16x16xf32>
    %c8 = arith.constant 8 : index
    %82 = memref.load %arg4[%c8] : memref<72xf32, #tpu.memory_space<smem>>
    %c1_54 = arith.constant 1 : index
    %c32_55 = arith.constant 32 : index
    %c0_56 = arith.constant 0 : index
    %83 = vector.load %arg11[%c1_54, %c32_55, %c0_56] : memref<5x48x16xf32, #tpu.memory_space<vmem>>, vector<1x16x16xf32>
    %84 = vector.shape_cast %83 : vector<1x16x16xf32> to vector<16x16xf32>
    %85 = vector.broadcast %82 : f32 to vector<16x16xf32>
    %86 = arith.mulf %84, %85 : vector<16x16xf32>
    %87 = arith.addf %81, %86 : vector<16x16xf32>
    %88 = vector.broadcast %52 : f32 to vector<16x16xf32>
    %89 = arith.addf %87, %88 : vector<16x16xf32>
    %c0_57 = arith.constant 0 : index
    %90 = memref.load %arg4[%c0_57] : memref<72xf32, #tpu.memory_space<smem>>
    %c0_58 = arith.constant 0 : index
    %c0_59 = arith.constant 0 : index
    %c0_60 = arith.constant 0 : index
    %91 = vector.load %arg11[%c0_58, %c0_59, %c0_60] : memref<5x48x16xf32, #tpu.memory_space<vmem>>, vector<1x16x16xf32>
    %92 = vector.shape_cast %91 : vector<1x16x16xf32> to vector<16x16xf32>
    %93 = vector.broadcast %90 : f32 to vector<16x16xf32>
    %94 = arith.mulf %92, %93 : vector<16x16xf32>
    %c1_61 = arith.constant 1 : index
    %95 = memref.load %arg4[%c1_61] : memref<72xf32, #tpu.memory_space<smem>>
    %c0_62 = arith.constant 0 : index
    %c16_63 = arith.constant 16 : index
    %c0_64 = arith.constant 0 : index
    %96 = vector.load %arg11[%c0_62, %c16_63, %c0_64] : memref<5x48x16xf32, #tpu.memory_space<vmem>>, vector<1x16x16xf32>
    %97 = vector.shape_cast %96 : vector<1x16x16xf32> to vector<16x16xf32>
    %98 = vector.broadcast %95 : f32 to vector<16x16xf32>
    %99 = arith.mulf %97, %98 : vector<16x16xf32>
    %100 = arith.addf %94, %99 : vector<16x16xf32>
    %c2_65 = arith.constant 2 : index
    %101 = memref.load %arg4[%c2_65] : memref<72xf32, #tpu.memory_space<smem>>
    %c0_66 = arith.constant 0 : index
    %c32_67 = arith.constant 32 : index
    %c0_68 = arith.constant 0 : index
    %102 = vector.load %arg11[%c0_66, %c32_67, %c0_68] : memref<5x48x16xf32, #tpu.memory_space<vmem>>, vector<1x16x16xf32>
    %103 = vector.shape_cast %102 : vector<1x16x16xf32> to vector<16x16xf32>
    %104 = vector.broadcast %101 : f32 to vector<16x16xf32>
    %105 = arith.mulf %103, %104 : vector<16x16xf32>
    %106 = arith.addf %100, %105 : vector<16x16xf32>
    %c3_69 = arith.constant 3 : index
    %107 = memref.load %arg4[%c3_69] : memref<72xf32, #tpu.memory_space<smem>>
    %c1_70 = arith.constant 1 : index
    %c0_71 = arith.constant 0 : index
    %c0_72 = arith.constant 0 : index
    %108 = vector.load %arg11[%c1_70, %c0_71, %c0_72] : memref<5x48x16xf32, #tpu.memory_space<vmem>>, vector<1x16x16xf32>
    %109 = vector.shape_cast %108 : vector<1x16x16xf32> to vector<16x16xf32>
    %110 = vector.broadcast %107 : f32 to vector<16x16xf32>
    %111 = arith.mulf %109, %110 : vector<16x16xf32>
    %112 = arith.addf %106, %111 : vector<16x16xf32>
    %c4_73 = arith.constant 4 : index
    %113 = memref.load %arg4[%c4_73] : memref<72xf32, #tpu.memory_space<smem>>
    %c1_74 = arith.constant 1 : index
    %c16_75 = arith.constant 16 : index
    %c0_76 = arith.constant 0 : index
    %114 = vector.load %arg11[%c1_74, %c16_75, %c0_76] : memref<5x48x16xf32, #tpu.memory_space<vmem>>, vector<1x16x16xf32>
    %115 = vector.shape_cast %114 : vector<1x16x16xf32> to vector<16x16xf32>
    %116 = vector.broadcast %113 : f32 to vector<16x16xf32>
    %117 = arith.mulf %115, %116 : vector<16x16xf32>
    %118 = arith.addf %112, %117 : vector<16x16xf32>
    %c5_77 = arith.constant 5 : index
    %119 = memref.load %arg4[%c5_77] : memref<72xf32, #tpu.memory_space<smem>>
    %c1_78 = arith.constant 1 : index
    %c32_79 = arith.constant 32 : index
    %c0_80 = arith.constant 0 : index
    %120 = vector.load %arg11[%c1_78, %c32_79, %c0_80] : memref<5x48x16xf32, #tpu.memory_space<vmem>>, vector<1x16x16xf32>
    %121 = vector.shape_cast %120 : vector<1x16x16xf32> to vector<16x16xf32>
    %122 = vector.broadcast %119 : f32 to vector<16x16xf32>
    %123 = arith.mulf %121, %122 : vector<16x16xf32>
    %124 = arith.addf %118, %123 : vector<16x16xf32>
    %c6_81 = arith.constant 6 : index
    %125 = memref.load %arg4[%c6_81] : memref<72xf32, #tpu.memory_space<smem>>
    %c2_82 = arith.constant 2 : index
    %c0_83 = arith.constant 0 : index
    %c0_84 = arith.constant 0 : index
    %126 = vector.load %arg11[%c2_82, %c0_83, %c0_84] : memref<5x48x16xf32, #tpu.memory_space<vmem>>, vector<1x16x16xf32>
    %127 = vector.shape_cast %126 : vector<1x16x16xf32> to vector<16x16xf32>
    %128 = vector.broadcast %125 : f32 to vector<16x16xf32>
    %129 = arith.mulf %127, %128 : vector<16x16xf32>
    %130 = arith.addf %124, %129 : vector<16x16xf32>
    %c7_85 = arith.constant 7 : index
    %131 = memref.load %arg4[%c7_85] : memref<72xf32, #tpu.memory_space<smem>>
    %c2_86 = arith.constant 2 : index
    %c16_87 = arith.constant 16 : index
    %c0_88 = arith.constant 0 : index
    %132 = vector.load %arg11[%c2_86, %c16_87, %c0_88] : memref<5x48x16xf32, #tpu.memory_space<vmem>>, vector<1x16x16xf32>
    %133 = vector.shape_cast %132 : vector<1x16x16xf32> to vector<16x16xf32>
    %134 = vector.broadcast %131 : f32 to vector<16x16xf32>
    %135 = arith.mulf %133, %134 : vector<16x16xf32>
    %136 = arith.addf %130, %135 : vector<16x16xf32>
    %c8_89 = arith.constant 8 : index
    %137 = memref.load %arg4[%c8_89] : memref<72xf32, #tpu.memory_space<smem>>
    %c2_90 = arith.constant 2 : index
    %c32_91 = arith.constant 32 : index
    %c0_92 = arith.constant 0 : index
    %138 = vector.load %arg11[%c2_90, %c32_91, %c0_92] : memref<5x48x16xf32, #tpu.memory_space<vmem>>, vector<1x16x16xf32>
    %139 = vector.shape_cast %138 : vector<1x16x16xf32> to vector<16x16xf32>
    %140 = vector.broadcast %137 : f32 to vector<16x16xf32>
    %141 = arith.mulf %139, %140 : vector<16x16xf32>
    %142 = arith.addf %136, %141 : vector<16x16xf32>
    %143 = vector.broadcast %52 : f32 to vector<16x16xf32>
    %144 = arith.addf %142, %143 : vector<16x16xf32>
    %145 = arith.maximumf %89, %144 : vector<16x16xf32>
    %146 = vector.extract_strided_slice %145 {offsets = [0, 0], sizes = [8, 16], strides = [1, 1]} : vector<16x16xf32> to vector<8x16xf32>
    %147 = vector.extract_strided_slice %145 {offsets = [8, 0], sizes = [8, 16], strides = [1, 1]} : vector<16x16xf32> to vector<8x16xf32>
    %148 = arith.maximumf %146, %147 : vector<8x16xf32>
    %c0_93 = arith.constant 0 : index
    %c0_94 = arith.constant 0 : index
    %149 = vector.load %arg12[%c0_93, %c0_94] : memref<128x16xf32, #tpu.memory_space<vmem>>, vector<8x16xf32>
    tpu.vector_store %arg12[%c0_93, %c0_94], %148 {strides = array<i32>} : memref<128x16xf32, #tpu.memory_space<vmem>>, vector<8x16xf32>,
    %c0_95 = arith.constant 0 : index
    %150 = memref.load %arg4[%c0_95] : memref<72xf32, #tpu.memory_space<smem>>
    %c1_96 = arith.constant 1 : index
    %c0_97 = arith.constant 0 : index
    %c0_98 = arith.constant 0 : index
    %151 = vector.load %arg11[%c1_96, %c0_97, %c0_98] : memref<5x48x16xf32, #tpu.memory_space<vmem>>, vector<1x16x16xf32>
    %152 = vector.shape_cast %151 : vector<1x16x16xf32> to vector<16x16xf32>
    %153 = vector.broadcast %150 : f32 to vector<16x16xf32>
    %154 = arith.mulf %152, %153 : vector<16x16xf32>
    %c1_99 = arith.constant 1 : index
    %155 = memref.load %arg4[%c1_99] : memref<72xf32, #tpu.memory_space<smem>>
    %c1_100 = arith.constant 1 : index
    %c16_101 = arith.constant 16 : index
    %c0_102 = arith.constant 0 : index
    %156 = vector.load %arg11[%c1_100, %c16_101, %c0_102] : memref<5x48x16xf32, #tpu.memory_space<vmem>>, vector<1x16x16xf32>
    %157 = vector.shape_cast %156 : vector<1x16x16xf32> to vector<16x16xf32>
    %158 = vector.broadcast %155 : f32 to vector<16x16xf32>
    %159 = arith.mulf %157, %158 : vector<16x16xf32>
    %160 = arith.addf %154, %159 : vector<16x16xf32>
    %c2_103 = arith.constant 2 : index
    %161 = memref.load %arg4[%c2_103] : memref<72xf32, #tpu.memory_space<smem>>
    %c1_104 = arith.constant 1 : index
    %c32_105 = arith.constant 32 : index
    %c0_106 = arith.constant 0 : index
    %162 = vector.load %arg11[%c1_104, %c32_105, %c0_106] : memref<5x48x16xf32, #tpu.memory_space<vmem>>, vector<1x16x16xf32>
    %163 = vector.shape_cast %162 : vector<1x16x16xf32> to vector<16x16xf32>
    %164 = vector.broadcast %161 : f32 to vector<16x16xf32>
    %165 = arith.mulf %163, %164 : vector<16x16xf32>
    %166 = arith.addf %160, %165 : vector<16x16xf32>
    %c3_107 = arith.constant 3 : index
    %167 = memref.load %arg4[%c3_107] : memref<72xf32, #tpu.memory_space<smem>>
    %c2_108 = arith.constant 2 : index
    %c0_109 = arith.constant 0 : index
    %c0_110 = arith.constant 0 : index
    %168 = vector.load %arg11[%c2_108, %c0_109, %c0_110] : memref<5x48x16xf32, #tpu.memory_space<vmem>>, vector<1x16x16xf32>
    %169 = vector.shape_cast %168 : vector<1x16x16xf32> to vector<16x16xf32>
    %170 = vector.broadcast %167 : f32 to vector<16x16xf32>
    %171 = arith.mulf %169, %170 : vector<16x16xf32>
    %172 = arith.addf %166, %171 : vector<16x16xf32>
    %c4_111 = arith.constant 4 : index
    %173 = memref.load %arg4[%c4_111] : memref<72xf32, #tpu.memory_space<smem>>
    %c2_112 = arith.constant 2 : index
    %c16_113 = arith.constant 16 : index
    %c0_114 = arith.constant 0 : index
    %174 = vector.load %arg11[%c2_112, %c16_113, %c0_114] : memref<5x48x16xf32, #tpu.memory_space<vmem>>, vector<1x16x16xf32>
    %175 = vector.shape_cast %174 : vector<1x16x16xf32> to vector<16x16xf32>
    %176 = vector.broadcast %173 : f32 to vector<16x16xf32>
    %177 = arith.mulf %175, %176 : vector<16x16xf32>
    %178 = arith.addf %172, %177 : vector<16x16xf32>
    %c5_115 = arith.constant 5 : index
    %179 = memref.load %arg4[%c5_115] : memref<72xf32, #tpu.memory_space<smem>>
    %c2_116 = arith.constant 2 : index
    %c32_117 = arith.constant 32 : index
    %c0_118 = arith.constant 0 : index
    %180 = vector.load %arg11[%c2_116, %c32_117, %c0_118] : memref<5x48x16xf32, #tpu.memory_space<vmem>>, vector<1x16x16xf32>
    %181 = vector.shape_cast %180 : vector<1x16x16xf32> to vector<16x16xf32>
    %182 = vector.broadcast %179 : f32 to vector<16x16xf32>
    %183 = arith.mulf %181, %182 : vector<16x16xf32>
    %184 = arith.addf %178, %183 : vector<16x16xf32>
    %c6_119 = arith.constant 6 : index
    %185 = memref.load %arg4[%c6_119] : memref<72xf32, #tpu.memory_space<smem>>
    %c3_120 = arith.constant 3 : index
    %c0_121 = arith.constant 0 : index
    %c0_122 = arith.constant 0 : index
    %186 = vector.load %arg11[%c3_120, %c0_121, %c0_122] : memref<5x48x16xf32, #tpu.memory_space<vmem>>, vector<1x16x16xf32>
    %187 = vector.shape_cast %186 : vector<1x16x16xf32> to vector<16x16xf32>
    %188 = vector.broadcast %185 : f32 to vector<16x16xf32>
    %189 = arith.mulf %187, %188 : vector<16x16xf32>
    %190 = arith.addf %184, %189 : vector<16x16xf32>
    %c7_123 = arith.constant 7 : index
    %191 = memref.load %arg4[%c7_123] : memref<72xf32, #tpu.memory_space<smem>>
    %c3_124 = arith.constant 3 : index
    %c16_125 = arith.constant 16 : index
    %c0_126 = arith.constant 0 : index
    %192 = vector.load %arg11[%c3_124, %c16_125, %c0_126] : memref<5x48x16xf32, #tpu.memory_space<vmem>>, vector<1x16x16xf32>
    %193 = vector.shape_cast %192 : vector<1x16x16xf32> to vector<16x16xf32>
    %194 = vector.broadcast %191 : f32 to vector<16x16xf32>
    %195 = arith.mulf %193, %194 : vector<16x16xf32>
    %196 = arith.addf %190, %195 : vector<16x16xf32>
    %c8_127 = arith.constant 8 : index
    %197 = memref.load %arg4[%c8_127] : memref<72xf32, #tpu.memory_space<smem>>
    %c3_128 = arith.constant 3 : index
    %c32_129 = arith.constant 32 : index
    %c0_130 = arith.constant 0 : index
    %198 = vector.load %arg11[%c3_128, %c32_129, %c0_130] : memref<5x48x16xf32, #tpu.memory_space<vmem>>, vector<1x16x16xf32>
    %199 = vector.shape_cast %198 : vector<1x16x16xf32> to vector<16x16xf32>
    %200 = vector.broadcast %197 : f32 to vector<16x16xf32>
    %201 = arith.mulf %199, %200 : vector<16x16xf32>
    %202 = arith.addf %196, %201 : vector<16x16xf32>
    %203 = vector.broadcast %52 : f32 to vector<16x16xf32>
    %204 = arith.addf %202, %203 : vector<16x16xf32>
    %c0_131 = arith.constant 0 : index
    %205 = memref.load %arg4[%c0_131] : memref<72xf32, #tpu.memory_space<smem>>
    %c2_132 = arith.constant 2 : index
    %c0_133 = arith.constant 0 : index
    %c0_134 = arith.constant 0 : index
    %206 = vector.load %arg11[%c2_132, %c0_133, %c0_134] : memref<5x48x16xf32, #tpu.memory_space<vmem>>, vector<1x16x16xf32>
    %207 = vector.shape_cast %206 : vector<1x16x16xf32> to vector<16x16xf32>
    %208 = vector.broadcast %205 : f32 to vector<16x16xf32>
    %209 = arith.mulf %207, %208 : vector<16x16xf32>
    %c1_135 = arith.constant 1 : index
    %210 = memref.load %arg4[%c1_135] : memref<72xf32, #tpu.memory_space<smem>>
    %c2_136 = arith.constant 2 : index
    %c16_137 = arith.constant 16 : index
    %c0_138 = arith.constant 0 : index
    %211 = vector.load %arg11[%c2_136, %c16_137, %c0_138] : memref<5x48x16xf32, #tpu.memory_space<vmem>>, vector<1x16x16xf32>
    %212 = vector.shape_cast %211 : vector<1x16x16xf32> to vector<16x16xf32>
    %213 = vector.broadcast %210 : f32 to vector<16x16xf32>
    %214 = arith.mulf %212, %213 : vector<16x16xf32>
    %215 = arith.addf %209, %214 : vector<16x16xf32>
    %c2_139 = arith.constant 2 : index
    %216 = memref.load %arg4[%c2_139] : memref<72xf32, #tpu.memory_space<smem>>
    %c2_140 = arith.constant 2 : index
    %c32_141 = arith.constant 32 : index
    %c0_142 = arith.constant 0 : index
    %217 = vector.load %arg11[%c2_140, %c32_141, %c0_142] : memref<5x48x16xf32, #tpu.memory_space<vmem>>, vector<1x16x16xf32>
    %218 = vector.shape_cast %217 : vector<1x16x16xf32> to vector<16x16xf32>
    %219 = vector.broadcast %216 : f32 to vector<16x16xf32>
    %220 = arith.mulf %218, %219 : vector<16x16xf32>
    %221 = arith.addf %215, %220 : vector<16x16xf32>
    %c3_143 = arith.constant 3 : index
    %222 = memref.load %arg4[%c3_143] : memref<72xf32, #tpu.memory_space<smem>>
    %c3_144 = arith.constant 3 : index
    %c0_145 = arith.constant 0 : index
    %c0_146 = arith.constant 0 : index
    %223 = vector.load %arg11[%c3_144, %c0_145, %c0_146] : memref<5x48x16xf32, #tpu.memory_space<vmem>>, vector<1x16x16xf32>
    %224 = vector.shape_cast %223 : vector<1x16x16xf32> to vector<16x16xf32>
    %225 = vector.broadcast %222 : f32 to vector<16x16xf32>
    %226 = arith.mulf %224, %225 : vector<16x16xf32>
    %227 = arith.addf %221, %226 : vector<16x16xf32>
    %c4_147 = arith.constant 4 : index
    %228 = memref.load %arg4[%c4_147] : memref<72xf32, #tpu.memory_space<smem>>
    %c3_148 = arith.constant 3 : index
    %c16_149 = arith.constant 16 : index
    %c0_150 = arith.constant 0 : index
    %229 = vector.load %arg11[%c3_148, %c16_149, %c0_150] : memref<5x48x16xf32, #tpu.memory_space<vmem>>, vector<1x16x16xf32>
    %230 = vector.shape_cast %229 : vector<1x16x16xf32> to vector<16x16xf32>
    %231 = vector.broadcast %228 : f32 to vector<16x16xf32>
    %232 = arith.mulf %230, %231 : vector<16x16xf32>
    %233 = arith.addf %227, %232 : vector<16x16xf32>
    %c5_151 = arith.constant 5 : index
    %234 = memref.load %arg4[%c5_151] : memref<72xf32, #tpu.memory_space<smem>>
    %c3_152 = arith.constant 3 : index
    %c32_153 = arith.constant 32 : index
    %c0_154 = arith.constant 0 : index
    %235 = vector.load %arg11[%c3_152, %c32_153, %c0_154] : memref<5x48x16xf32, #tpu.memory_space<vmem>>, vector<1x16x16xf32>
    %236 = vector.shape_cast %235 : vector<1x16x16xf32> to vector<16x16xf32>
    %237 = vector.broadcast %234 : f32 to vector<16x16xf32>
    %238 = arith.mulf %236, %237 : vector<16x16xf32>
    %239 = arith.addf %233, %238 : vector<16x16xf32>
    %c6_155 = arith.constant 6 : index
    %240 = memref.load %arg4[%c6_155] : memref<72xf32, #tpu.memory_space<smem>>
    %c4_156 = arith.constant 4 : index
    %c0_157 = arith.constant 0 : index
    %c0_158 = arith.constant 0 : index
    %241 = vector.load %arg11[%c4_156, %c0_157, %c0_158] : memref<5x48x16xf32, #tpu.memory_space<vmem>>, vector<1x16x16xf32>
    %242 = vector.shape_cast %241 : vector<1x16x16xf32> to vector<16x16xf32>
    %243 = vector.broadcast %240 : f32 to vector<16x16xf32>
    %244 = arith.mulf %242, %243 : vector<16x16xf32>
    %245 = arith.addf %239, %244 : vector<16x16xf32>
    %c7_159 = arith.constant 7 : index
    %246 = memref.load %arg4[%c7_159] : memref<72xf32, #tpu.memory_space<smem>>
    %c4_160 = arith.constant 4 : index
    %c16_161 = arith.constant 16 : index
    %c0_162 = arith.constant 0 : index
    %247 = vector.load %arg11[%c4_160, %c16_161, %c0_162] : memref<5x48x16xf32, #tpu.memory_space<vmem>>, vector<1x16x16xf32>
    %248 = vector.shape_cast %247 : vector<1x16x16xf32> to vector<16x16xf32>
    %249 = vector.broadcast %246 : f32 to vector<16x16xf32>
    %250 = arith.mulf %248, %249 : vector<16x16xf32>
    %251 = arith.addf %245, %250 : vector<16x16xf32>
    %c8_163 = arith.constant 8 : index
    %252 = memref.load %arg4[%c8_163] : memref<72xf32, #tpu.memory_space<smem>>
    %c4_164 = arith.constant 4 : index
    %c32_165 = arith.constant 32 : index
    %c0_166 = arith.constant 0 : index
    %253 = vector.load %arg11[%c4_164, %c32_165, %c0_166] : memref<5x48x16xf32, #tpu.memory_space<vmem>>, vector<1x16x16xf32>
    %254 = vector.shape_cast %253 : vector<1x16x16xf32> to vector<16x16xf32>
    %255 = vector.broadcast %252 : f32 to vector<16x16xf32>
    %256 = arith.mulf %254, %255 : vector<16x16xf32>
    %257 = arith.addf %251, %256 : vector<16x16xf32>
    %258 = vector.broadcast %52 : f32 to vector<16x16xf32>
    %259 = arith.addf %257, %258 : vector<16x16xf32>
    %260 = arith.maximumf %204, %259 : vector<16x16xf32>
    %261 = vector.extract_strided_slice %260 {offsets = [0, 0], sizes = [8, 16], strides = [1, 1]} : vector<16x16xf32> to vector<8x16xf32>
    %262 = vector.extract_strided_slice %260 {offsets = [8, 0], sizes = [8, 16], strides = [1, 1]} : vector<16x16xf32> to vector<8x16xf32>
    %263 = arith.maximumf %261, %262 : vector<8x16xf32>
    %c8_167 = arith.constant 8 : index
    %c0_168 = arith.constant 0 : index
    %264 = vector.load %arg12[%c8_167, %c0_168] : memref<128x16xf32, #tpu.memory_space<vmem>>, vector<8x16xf32>
    tpu.vector_store %arg12[%c8_167, %c0_168], %263 {strides = array<i32>} : memref<128x16xf32, #tpu.memory_space<vmem>>, vector<8x16xf32>,
    %c1_169 = arith.constant 1 : index
    %265 = memref.load %arg5[%c1_169] : memref<8xf32, #tpu.memory_space<smem>>
    %c12 = arith.constant 12 : index
    %266 = memref.load %arg4[%c12] : memref<72xf32, #tpu.memory_space<smem>>
    %c0_170 = arith.constant 0 : index
    %c0_171 = arith.constant 0 : index
    %c0_172 = arith.constant 0 : index
    %267 = vector.load %arg11[%c0_170, %c0_171, %c0_172] : memref<5x48x16xf32, #tpu.memory_space<vmem>>, vector<1x16x16xf32>
    %268 = vector.shape_cast %267 : vector<1x16x16xf32> to vector<16x16xf32>
    %269 = vector.broadcast %266 : f32 to vector<16x16xf32>
    %270 = arith.mulf %268, %269 : vector<16x16xf32>
    %c13 = arith.constant 13 : index
    %271 = memref.load %arg4[%c13] : memref<72xf32, #tpu.memory_space<smem>>
    %c0_173 = arith.constant 0 : index
    %c16_174 = arith.constant 16 : index
    %c0_175 = arith.constant 0 : index
    %272 = vector.load %arg11[%c0_173, %c16_174, %c0_175] : memref<5x48x16xf32, #tpu.memory_space<vmem>>, vector<1x16x16xf32>
    %273 = vector.shape_cast %272 : vector<1x16x16xf32> to vector<16x16xf32>
    %274 = vector.broadcast %271 : f32 to vector<16x16xf32>
    %275 = arith.mulf %273, %274 : vector<16x16xf32>
    %276 = arith.addf %270, %275 : vector<16x16xf32>
    %c14 = arith.constant 14 : index
    %277 = memref.load %arg4[%c14] : memref<72xf32, #tpu.memory_space<smem>>
    %c0_176 = arith.constant 0 : index
    %c32_177 = arith.constant 32 : index
    %c0_178 = arith.constant 0 : index
    %278 = vector.load %arg11[%c0_176, %c32_177, %c0_178] : memref<5x48x16xf32, #tpu.memory_space<vmem>>, vector<1x16x16xf32>
    %279 = vector.shape_cast %278 : vector<1x16x16xf32> to vector<16x16xf32>
    %280 = vector.broadcast %277 : f32 to vector<16x16xf32>
    %281 = arith.mulf %279, %280 : vector<16x16xf32>
    %282 = arith.addf %276, %281 : vector<16x16xf32>
    %c15 = arith.constant 15 : index
    %283 = memref.load %arg4[%c15] : memref<72xf32, #tpu.memory_space<smem>>
    %c1_179 = arith.constant 1 : index
    %c0_180 = arith.constant 0 : index
    %c0_181 = arith.constant 0 : index
    %284 = vector.load %arg11[%c1_179, %c0_180, %c0_181] : memref<5x48x16xf32, #tpu.memory_space<vmem>>, vector<1x16x16xf32>
    %285 = vector.shape_cast %284 : vector<1x16x16xf32> to vector<16x16xf32>
    %286 = vector.broadcast %283 : f32 to vector<16x16xf32>
    %287 = arith.mulf %285, %286 : vector<16x16xf32>
    %288 = arith.addf %282, %287 : vector<16x16xf32>
    %c16_182 = arith.constant 16 : index
    %289 = memref.load %arg4[%c16_182] : memref<72xf32, #tpu.memory_space<smem>>
    %c1_183 = arith.constant 1 : index
    %c16_184 = arith.constant 16 : index
    %c0_185 = arith.constant 0 : index
    %290 = vector.load %arg11[%c1_183, %c16_184, %c0_185] : memref<5x48x16xf32, #tpu.memory_space<vmem>>, vector<1x16x16xf32>
    %291 = vector.shape_cast %290 : vector<1x16x16xf32> to vector<16x16xf32>
    %292 = vector.broadcast %289 : f32 to vector<16x16xf32>
    %293 = arith.mulf %291, %292 : vector<16x16xf32>
    %294 = arith.addf %288, %293 : vector<16x16xf32>
    %c17 = arith.constant 17 : index
    %295 = memref.load %arg4[%c17] : memref<72xf32, #tpu.memory_space<smem>>
    %c1_186 = arith.constant 1 : index
    %c32_187 = arith.constant 32 : index
    %c0_188 = arith.constant 0 : index
    %296 = vector.load %arg11[%c1_186, %c32_187, %c0_188] : memref<5x48x16xf32, #tpu.memory_space<vmem>>, vector<1x16x16xf32>
    %297 = vector.shape_cast %296 : vector<1x16x16xf32> to vector<16x16xf32>
    %298 = vector.broadcast %295 : f32 to vector<16x16xf32>
    %299 = arith.mulf %297, %298 : vector<16x16xf32>
    %300 = arith.addf %294, %299 : vector<16x16xf32>
    %301 = vector.broadcast %265 : f32 to vector<16x16xf32>
    %302 = arith.addf %300, %301 : vector<16x16xf32>
    %c9 = arith.constant 9 : index
    %303 = memref.load %arg4[%c9] : memref<72xf32, #tpu.memory_space<smem>>
    %c0_189 = arith.constant 0 : index
    %c0_190 = arith.constant 0 : index
    %c0_191 = arith.constant 0 : index
    %304 = vector.load %arg11[%c0_189, %c0_190, %c0_191] : memref<5x48x16xf32, #tpu.memory_space<vmem>>, vector<1x16x16xf32>
    %305 = vector.shape_cast %304 : vector<1x16x16xf32> to vector<16x16xf32>
    %306 = vector.broadcast %303 : f32 to vector<16x16xf32>
    %307 = arith.mulf %305, %306 : vector<16x16xf32>
    %c10 = arith.constant 10 : index
    %308 = memref.load %arg4[%c10] : memref<72xf32, #tpu.memory_space<smem>>
    %c0_192 = arith.constant 0 : index
    %c16_193 = arith.constant 16 : index
    %c0_194 = arith.constant 0 : index
    %309 = vector.load %arg11[%c0_192, %c16_193, %c0_194] : memref<5x48x16xf32, #tpu.memory_space<vmem>>, vector<1x16x16xf32>
    %310 = vector.shape_cast %309 : vector<1x16x16xf32> to vector<16x16xf32>
    %311 = vector.broadcast %308 : f32 to vector<16x16xf32>
    %312 = arith.mulf %310, %311 : vector<16x16xf32>
    %313 = arith.addf %307, %312 : vector<16x16xf32>
    %c11 = arith.constant 11 : index
    %314 = memref.load %arg4[%c11] : memref<72xf32, #tpu.memory_space<smem>>
    %c0_195 = arith.constant 0 : index
    %c32_196 = arith.constant 32 : index
    %c0_197 = arith.constant 0 : index
    %315 = vector.load %arg11[%c0_195, %c32_196, %c0_197] : memref<5x48x16xf32, #tpu.memory_space<vmem>>, vector<1x16x16xf32>
    %316 = vector.shape_cast %315 : vector<1x16x16xf32> to vector<16x16xf32>
    %317 = vector.broadcast %314 : f32 to vector<16x16xf32>
    %318 = arith.mulf %316, %317 : vector<16x16xf32>
    %319 = arith.addf %313, %318 : vector<16x16xf32>
    %c12_198 = arith.constant 12 : index
    %320 = memref.load %arg4[%c12_198] : memref<72xf32, #tpu.memory_space<smem>>
    %c1_199 = arith.constant 1 : index
    %c0_200 = arith.constant 0 : index
    %c0_201 = arith.constant 0 : index
    %321 = vector.load %arg11[%c1_199, %c0_200, %c0_201] : memref<5x48x16xf32, #tpu.memory_space<vmem>>, vector<1x16x16xf32>
    %322 = vector.shape_cast %321 : vector<1x16x16xf32> to vector<16x16xf32>
    %323 = vector.broadcast %320 : f32 to vector<16x16xf32>
    %324 = arith.mulf %322, %323 : vector<16x16xf32>
    %325 = arith.addf %319, %324 : vector<16x16xf32>
    %c13_202 = arith.constant 13 : index
    %326 = memref.load %arg4[%c13_202] : memref<72xf32, #tpu.memory_space<smem>>
    %c1_203 = arith.constant 1 : index
    %c16_204 = arith.constant 16 : index
    %c0_205 = arith.constant 0 : index
    %327 = vector.load %arg11[%c1_203, %c16_204, %c0_205] : memref<5x48x16xf32, #tpu.memory_space<vmem>>, vector<1x16x16xf32>
    %328 = vector.shape_cast %327 : vector<1x16x16xf32> to vector<16x16xf32>
    %329 = vector.broadcast %326 : f32 to vector<16x16xf32>
    %330 = arith.mulf %328, %329 : vector<16x16xf32>
    %331 = arith.addf %325, %330 : vector<16x16xf32>
    %c14_206 = arith.constant 14 : index
    %332 = memref.load %arg4[%c14_206] : memref<72xf32, #tpu.memory_space<smem>>
    %c1_207 = arith.constant 1 : index
    %c32_208 = arith.constant 32 : index
    %c0_209 = arith.constant 0 : index
    %333 = vector.load %arg11[%c1_207, %c32_208, %c0_209] : memref<5x48x16xf32, #tpu.memory_space<vmem>>, vector<1x16x16xf32>
    %334 = vector.shape_cast %333 : vector<1x16x16xf32> to vector<16x16xf32>
    %335 = vector.broadcast %332 : f32 to vector<16x16xf32>
    %336 = arith.mulf %334, %335 : vector<16x16xf32>
    %337 = arith.addf %331, %336 : vector<16x16xf32>
    %c15_210 = arith.constant 15 : index
    %338 = memref.load %arg4[%c15_210] : memref<72xf32, #tpu.memory_space<smem>>
    %c2_211 = arith.constant 2 : index
    %c0_212 = arith.constant 0 : index
    %c0_213 = arith.constant 0 : index
    %339 = vector.load %arg11[%c2_211, %c0_212, %c0_213] : memref<5x48x16xf32, #tpu.memory_space<vmem>>, vector<1x16x16xf32>
    %340 = vector.shape_cast %339 : vector<1x16x16xf32> to vector<16x16xf32>
    %341 = vector.broadcast %338 : f32 to vector<16x16xf32>
    %342 = arith.mulf %340, %341 : vector<16x16xf32>
    %343 = arith.addf %337, %342 : vector<16x16xf32>
    %c16_214 = arith.constant 16 : index
    %344 = memref.load %arg4[%c16_214] : memref<72xf32, #tpu.memory_space<smem>>
    %c2_215 = arith.constant 2 : index
    %c16_216 = arith.constant 16 : index
    %c0_217 = arith.constant 0 : index
    %345 = vector.load %arg11[%c2_215, %c16_216, %c0_217] : memref<5x48x16xf32, #tpu.memory_space<vmem>>, vector<1x16x16xf32>
    %346 = vector.shape_cast %345 : vector<1x16x16xf32> to vector<16x16xf32>
    %347 = vector.broadcast %344 : f32 to vector<16x16xf32>
    %348 = arith.mulf %346, %347 : vector<16x16xf32>
    %349 = arith.addf %343, %348 : vector<16x16xf32>
    %c17_218 = arith.constant 17 : index
    %350 = memref.load %arg4[%c17_218] : memref<72xf32, #tpu.memory_space<smem>>
    %c2_219 = arith.constant 2 : index
    %c32_220 = arith.constant 32 : index
    %c0_221 = arith.constant 0 : index
    %351 = vector.load %arg11[%c2_219, %c32_220, %c0_221] : memref<5x48x16xf32, #tpu.memory_space<vmem>>, vector<1x16x16xf32>
    %352 = vector.shape_cast %351 : vector<1x16x16xf32> to vector<16x16xf32>
    %353 = vector.broadcast %350 : f32 to vector<16x16xf32>
    %354 = arith.mulf %352, %353 : vector<16x16xf32>
    %355 = arith.addf %349, %354 : vector<16x16xf32>
    %356 = vector.broadcast %265 : f32 to vector<16x16xf32>
    %357 = arith.addf %355, %356 : vector<16x16xf32>
    %358 = arith.maximumf %302, %357 : vector<16x16xf32>
    %359 = vector.extract_strided_slice %358 {offsets = [0, 0], sizes = [8, 16], strides = [1, 1]} : vector<16x16xf32> to vector<8x16xf32>
    %360 = vector.extract_strided_slice %358 {offsets = [8, 0], sizes = [8, 16], strides = [1, 1]} : vector<16x16xf32> to vector<8x16xf32>
    %361 = arith.maximumf %359, %360 : vector<8x16xf32>
    %c16_222 = arith.constant 16 : index
    %c0_223 = arith.constant 0 : index
    %362 = vector.load %arg12[%c16_222, %c0_223] : memref<128x16xf32, #tpu.memory_space<vmem>>, vector<8x16xf32>
    tpu.vector_store %arg12[%c16_222, %c0_223], %361 {strides = array<i32>} : memref<128x16xf32, #tpu.memory_space<vmem>>, vector<8x16xf32>,
    %c9_224 = arith.constant 9 : index
    %363 = memref.load %arg4[%c9_224] : memref<72xf32, #tpu.memory_space<smem>>
    %c1_225 = arith.constant 1 : index
    %c0_226 = arith.constant 0 : index
    %c0_227 = arith.constant 0 : index
    %364 = vector.load %arg11[%c1_225, %c0_226, %c0_227] : memref<5x48x16xf32, #tpu.memory_space<vmem>>, vector<1x16x16xf32>
    %365 = vector.shape_cast %364 : vector<1x16x16xf32> to vector<16x16xf32>
    %366 = vector.broadcast %363 : f32 to vector<16x16xf32>
    %367 = arith.mulf %365, %366 : vector<16x16xf32>
    %c10_228 = arith.constant 10 : index
    %368 = memref.load %arg4[%c10_228] : memref<72xf32, #tpu.memory_space<smem>>
    %c1_229 = arith.constant 1 : index
    %c16_230 = arith.constant 16 : index
    %c0_231 = arith.constant 0 : index
    %369 = vector.load %arg11[%c1_229, %c16_230, %c0_231] : memref<5x48x16xf32, #tpu.memory_space<vmem>>, vector<1x16x16xf32>
    %370 = vector.shape_cast %369 : vector<1x16x16xf32> to vector<16x16xf32>
    %371 = vector.broadcast %368 : f32 to vector<16x16xf32>
    %372 = arith.mulf %370, %371 : vector<16x16xf32>
    %373 = arith.addf %367, %372 : vector<16x16xf32>
    %c11_232 = arith.constant 11 : index
    %374 = memref.load %arg4[%c11_232] : memref<72xf32, #tpu.memory_space<smem>>
    %c1_233 = arith.constant 1 : index
    %c32_234 = arith.constant 32 : index
    %c0_235 = arith.constant 0 : index
    %375 = vector.load %arg11[%c1_233, %c32_234, %c0_235] : memref<5x48x16xf32, #tpu.memory_space<vmem>>, vector<1x16x16xf32>
    %376 = vector.shape_cast %375 : vector<1x16x16xf32> to vector<16x16xf32>
    %377 = vector.broadcast %374 : f32 to vector<16x16xf32>
    %378 = arith.mulf %376, %377 : vector<16x16xf32>
    %379 = arith.addf %373, %378 : vector<16x16xf32>
    %c12_236 = arith.constant 12 : index
    %380 = memref.load %arg4[%c12_236] : memref<72xf32, #tpu.memory_space<smem>>
    %c2_237 = arith.constant 2 : index
    %c0_238 = arith.constant 0 : index
    %c0_239 = arith.constant 0 : index
    %381 = vector.load %arg11[%c2_237, %c0_238, %c0_239] : memref<5x48x16xf32, #tpu.memory_space<vmem>>, vector<1x16x16xf32>
    %382 = vector.shape_cast %381 : vector<1x16x16xf32> to vector<16x16xf32>
    %383 = vector.broadcast %380 : f32 to vector<16x16xf32>
    %384 = arith.mulf %382, %383 : vector<16x16xf32>
    %385 = arith.addf %379, %384 : vector<16x16xf32>
    %c13_240 = arith.constant 13 : index
    %386 = memref.load %arg4[%c13_240] : memref<72xf32, #tpu.memory_space<smem>>
    %c2_241 = arith.constant 2 : index
    %c16_242 = arith.constant 16 : index
    %c0_243 = arith.constant 0 : index
    %387 = vector.load %arg11[%c2_241, %c16_242, %c0_243] : memref<5x48x16xf32, #tpu.memory_space<vmem>>, vector<1x16x16xf32>
    %388 = vector.shape_cast %387 : vector<1x16x16xf32> to vector<16x16xf32>
    %389 = vector.broadcast %386 : f32 to vector<16x16xf32>
    %390 = arith.mulf %388, %389 : vector<16x16xf32>
    %391 = arith.addf %385, %390 : vector<16x16xf32>
    %c14_244 = arith.constant 14 : index
    %392 = memref.load %arg4[%c14_244] : memref<72xf32, #tpu.memory_space<smem>>
    %c2_245 = arith.constant 2 : index
    %c32_246 = arith.constant 32 : index
    %c0_247 = arith.constant 0 : index
    %393 = vector.load %arg11[%c2_245, %c32_246, %c0_247] : memref<5x48x16xf32, #tpu.memory_space<vmem>>, vector<1x16x16xf32>
    %394 = vector.shape_cast %393 : vector<1x16x16xf32> to vector<16x16xf32>
    %395 = vector.broadcast %392 : f32 to vector<16x16xf32>
    %396 = arith.mulf %394, %395 : vector<16x16xf32>
    %397 = arith.addf %391, %396 : vector<16x16xf32>
    %c15_248 = arith.constant 15 : index
    %398 = memref.load %arg4[%c15_248] : memref<72xf32, #tpu.memory_space<smem>>
    %c3_249 = arith.constant 3 : index
    %c0_250 = arith.constant 0 : index
    %c0_251 = arith.constant 0 : index
    %399 = vector.load %arg11[%c3_249, %c0_250, %c0_251] : memref<5x48x16xf32, #tpu.memory_space<vmem>>, vector<1x16x16xf32>
    %400 = vector.shape_cast %399 : vector<1x16x16xf32> to vector<16x16xf32>
    %401 = vector.broadcast %398 : f32 to vector<16x16xf32>
    %402 = arith.mulf %400, %401 : vector<16x16xf32>
    %403 = arith.addf %397, %402 : vector<16x16xf32>
    %c16_252 = arith.constant 16 : index
    %404 = memref.load %arg4[%c16_252] : memref<72xf32, #tpu.memory_space<smem>>
    %c3_253 = arith.constant 3 : index
    %c16_254 = arith.constant 16 : index
    %c0_255 = arith.constant 0 : index
    %405 = vector.load %arg11[%c3_253, %c16_254, %c0_255] : memref<5x48x16xf32, #tpu.memory_space<vmem>>, vector<1x16x16xf32>
    %406 = vector.shape_cast %405 : vector<1x16x16xf32> to vector<16x16xf32>
    %407 = vector.broadcast %404 : f32 to vector<16x16xf32>
    %408 = arith.mulf %406, %407 : vector<16x16xf32>
    %409 = arith.addf %403, %408 : vector<16x16xf32>
    %c17_256 = arith.constant 17 : index
    %410 = memref.load %arg4[%c17_256] : memref<72xf32, #tpu.memory_space<smem>>
    %c3_257 = arith.constant 3 : index
    %c32_258 = arith.constant 32 : index
    %c0_259 = arith.constant 0 : index
    %411 = vector.load %arg11[%c3_257, %c32_258, %c0_259] : memref<5x48x16xf32, #tpu.memory_space<vmem>>, vector<1x16x16xf32>
    %412 = vector.shape_cast %411 : vector<1x16x16xf32> to vector<16x16xf32>
    %413 = vector.broadcast %410 : f32 to vector<16x16xf32>
    %414 = arith.mulf %412, %413 : vector<16x16xf32>
    %415 = arith.addf %409, %414 : vector<16x16xf32>
    %416 = vector.broadcast %265 : f32 to vector<16x16xf32>
    %417 = arith.addf %415, %416 : vector<16x16xf32>
    %c9_260 = arith.constant 9 : index
    %418 = memref.load %arg4[%c9_260] : memref<72xf32, #tpu.memory_space<smem>>
    %c2_261 = arith.constant 2 : index
    %c0_262 = arith.constant 0 : index
    %c0_263 = arith.constant 0 : index
    %419 = vector.load %arg11[%c2_261, %c0_262, %c0_263] : memref<5x48x16xf32, #tpu.memory_space<vmem>>, vector<1x16x16xf32>
    %420 = vector.shape_cast %419 : vector<1x16x16xf32> to vector<16x16xf32>
    %421 = vector.broadcast %418 : f32 to vector<16x16xf32>
    %422 = arith.mulf %420, %421 : vector<16x16xf32>
    %c10_264 = arith.constant 10 : index
    %423 = memref.load %arg4[%c10_264] : memref<72xf32, #tpu.memory_space<smem>>
    %c2_265 = arith.constant 2 : index
    %c16_266 = arith.constant 16 : index
    %c0_267 = arith.constant 0 : index
    %424 = vector.load %arg11[%c2_265, %c16_266, %c0_267] : memref<5x48x16xf32, #tpu.memory_space<vmem>>, vector<1x16x16xf32>
    %425 = vector.shape_cast %424 : vector<1x16x16xf32> to vector<16x16xf32>
    %426 = vector.broadcast %423 : f32 to vector<16x16xf32>
    %427 = arith.mulf %425, %426 : vector<16x16xf32>
    %428 = arith.addf %422, %427 : vector<16x16xf32>
    %c11_268 = arith.constant 11 : index
    %429 = memref.load %arg4[%c11_268] : memref<72xf32, #tpu.memory_space<smem>>
    %c2_269 = arith.constant 2 : index
    %c32_270 = arith.constant 32 : index
    %c0_271 = arith.constant 0 : index
    %430 = vector.load %arg11[%c2_269, %c32_270, %c0_271] : memref<5x48x16xf32, #tpu.memory_space<vmem>>, vector<1x16x16xf32>
    %431 = vector.shape_cast %430 : vector<1x16x16xf32> to vector<16x16xf32>
    %432 = vector.broadcast %429 : f32 to vector<16x16xf32>
    %433 = arith.mulf %431, %432 : vector<16x16xf32>
    %434 = arith.addf %428, %433 : vector<16x16xf32>
    %c12_272 = arith.constant 12 : index
    %435 = memref.load %arg4[%c12_272] : memref<72xf32, #tpu.memory_space<smem>>
    %c3_273 = arith.constant 3 : index
    %c0_274 = arith.constant 0 : index
    %c0_275 = arith.constant 0 : index
    %436 = vector.load %arg11[%c3_273, %c0_274, %c0_275] : memref<5x48x16xf32, #tpu.memory_space<vmem>>, vector<1x16x16xf32>
    %437 = vector.shape_cast %436 : vector<1x16x16xf32> to vector<16x16xf32>
    %438 = vector.broadcast %435 : f32 to vector<16x16xf32>
    %439 = arith.mulf %437, %438 : vector<16x16xf32>
    %440 = arith.addf %434, %439 : vector<16x16xf32>
    %c13_276 = arith.constant 13 : index
    %441 = memref.load %arg4[%c13_276] : memref<72xf32, #tpu.memory_space<smem>>
    %c3_277 = arith.constant 3 : index
    %c16_278 = arith.constant 16 : index
    %c0_279 = arith.constant 0 : index
    %442 = vector.load %arg11[%c3_277, %c16_278, %c0_279] : memref<5x48x16xf32, #tpu.memory_space<vmem>>, vector<1x16x16xf32>
    %443 = vector.shape_cast %442 : vector<1x16x16xf32> to vector<16x16xf32>
    %444 = vector.broadcast %441 : f32 to vector<16x16xf32>
    %445 = arith.mulf %443, %444 : vector<16x16xf32>
    %446 = arith.addf %440, %445 : vector<16x16xf32>
    %c14_280 = arith.constant 14 : index
    %447 = memref.load %arg4[%c14_280] : memref<72xf32, #tpu.memory_space<smem>>
    %c3_281 = arith.constant 3 : index
    %c32_282 = arith.constant 32 : index
    %c0_283 = arith.constant 0 : index
    %448 = vector.load %arg11[%c3_281, %c32_282, %c0_283] : memref<5x48x16xf32, #tpu.memory_space<vmem>>, vector<1x16x16xf32>
    %449 = vector.shape_cast %448 : vector<1x16x16xf32> to vector<16x16xf32>
    %450 = vector.broadcast %447 : f32 to vector<16x16xf32>
    %451 = arith.mulf %449, %450 : vector<16x16xf32>
    %452 = arith.addf %446, %451 : vector<16x16xf32>
    %c15_284 = arith.constant 15 : index
    %453 = memref.load %arg4[%c15_284] : memref<72xf32, #tpu.memory_space<smem>>
    %c4_285 = arith.constant 4 : index
    %c0_286 = arith.constant 0 : index
    %c0_287 = arith.constant 0 : index
    %454 = vector.load %arg11[%c4_285, %c0_286, %c0_287] : memref<5x48x16xf32, #tpu.memory_space<vmem>>, vector<1x16x16xf32>
    %455 = vector.shape_cast %454 : vector<1x16x16xf32> to vector<16x16xf32>
    %456 = vector.broadcast %453 : f32 to vector<16x16xf32>
    %457 = arith.mulf %455, %456 : vector<16x16xf32>
    %458 = arith.addf %452, %457 : vector<16x16xf32>
    %c16_288 = arith.constant 16 : index
    %459 = memref.load %arg4[%c16_288] : memref<72xf32, #tpu.memory_space<smem>>
    %c4_289 = arith.constant 4 : index
    %c16_290 = arith.constant 16 : index
    %c0_291 = arith.constant 0 : index
    %460 = vector.load %arg11[%c4_289, %c16_290, %c0_291] : memref<5x48x16xf32, #tpu.memory_space<vmem>>, vector<1x16x16xf32>
    %461 = vector.shape_cast %460 : vector<1x16x16xf32> to vector<16x16xf32>
    %462 = vector.broadcast %459 : f32 to vector<16x16xf32>
    %463 = arith.mulf %461, %462 : vector<16x16xf32>
    %464 = arith.addf %458, %463 : vector<16x16xf32>
    %c17_292 = arith.constant 17 : index
    %465 = memref.load %arg4[%c17_292] : memref<72xf32, #tpu.memory_space<smem>>
    %c4_293 = arith.constant 4 : index
    %c32_294 = arith.constant 32 : index
    %c0_295 = arith.constant 0 : index
    %466 = vector.load %arg11[%c4_293, %c32_294, %c0_295] : memref<5x48x16xf32, #tpu.memory_space<vmem>>, vector<1x16x16xf32>
    %467 = vector.shape_cast %466 : vector<1x16x16xf32> to vector<16x16xf32>
    %468 = vector.broadcast %465 : f32 to vector<16x16xf32>
    %469 = arith.mulf %467, %468 : vector<16x16xf32>
    %470 = arith.addf %464, %469 : vector<16x16xf32>
    %471 = vector.broadcast %265 : f32 to vector<16x16xf32>
    %472 = arith.addf %470, %471 : vector<16x16xf32>
    %473 = arith.maximumf %417, %472 : vector<16x16xf32>
    %474 = vector.extract_strided_slice %473 {offsets = [0, 0], sizes = [8, 16], strides = [1, 1]} : vector<16x16xf32> to vector<8x16xf32>
    %475 = vector.extract_strided_slice %473 {offsets = [8, 0], sizes = [8, 16], strides = [1, 1]} : vector<16x16xf32> to vector<8x16xf32>
    %476 = arith.maximumf %474, %475 : vector<8x16xf32>
    %c24 = arith.constant 24 : index
    %c0_296 = arith.constant 0 : index
    %477 = vector.load %arg12[%c24, %c0_296] : memref<128x16xf32, #tpu.memory_space<vmem>>, vector<8x16xf32>
    tpu.vector_store %arg12[%c24, %c0_296], %476 {strides = array<i32>} : memref<128x16xf32, #tpu.memory_space<vmem>>, vector<8x16xf32>,
    %c2_297 = arith.constant 2 : index
    %478 = memref.load %arg5[%c2_297] : memref<8xf32, #tpu.memory_space<smem>>
    %c21 = arith.constant 21 : index
    %479 = memref.load %arg4[%c21] : memref<72xf32, #tpu.memory_space<smem>>
    %c0_298 = arith.constant 0 : index
    %c0_299 = arith.constant 0 : index
    %c0_300 = arith.constant 0 : index
    %480 = vector.load %arg11[%c0_298, %c0_299, %c0_300] : memref<5x48x16xf32, #tpu.memory_space<vmem>>, vector<1x16x16xf32>
    %481 = vector.shape_cast %480 : vector<1x16x16xf32> to vector<16x16xf32>
    %482 = vector.broadcast %479 : f32 to vector<16x16xf32>
    %483 = arith.mulf %481, %482 : vector<16x16xf32>
    %c22 = arith.constant 22 : index
    %484 = memref.load %arg4[%c22] : memref<72xf32, #tpu.memory_space<smem>>
    %c0_301 = arith.constant 0 : index
    %c16_302 = arith.constant 16 : index
    %c0_303 = arith.constant 0 : index
    %485 = vector.load %arg11[%c0_301, %c16_302, %c0_303] : memref<5x48x16xf32, #tpu.memory_space<vmem>>, vector<1x16x16xf32>
    %486 = vector.shape_cast %485 : vector<1x16x16xf32> to vector<16x16xf32>
    %487 = vector.broadcast %484 : f32 to vector<16x16xf32>
    %488 = arith.mulf %486, %487 : vector<16x16xf32>
    %489 = arith.addf %483, %488 : vector<16x16xf32>
    %c23 = arith.constant 23 : index
    %490 = memref.load %arg4[%c23] : memref<72xf32, #tpu.memory_space<smem>>
    %c0_304 = arith.constant 0 : index
    %c32_305 = arith.constant 32 : index
    %c0_306 = arith.constant 0 : index
    %491 = vector.load %arg11[%c0_304, %c32_305, %c0_306] : memref<5x48x16xf32, #tpu.memory_space<vmem>>, vector<1x16x16xf32>
    %492 = vector.shape_cast %491 : vector<1x16x16xf32> to vector<16x16xf32>
    %493 = vector.broadcast %490 : f32 to vector<16x16xf32>
    %494 = arith.mulf %492, %493 : vector<16x16xf32>
    %495 = arith.addf %489, %494 : vector<16x16xf32>
    %c24_307 = arith.constant 24 : index
    %496 = memref.load %arg4[%c24_307] : memref<72xf32, #tpu.memory_space<smem>>
    %c1_308 = arith.constant 1 : index
    %c0_309 = arith.constant 0 : index
    %c0_310 = arith.constant 0 : index
    %497 = vector.load %arg11[%c1_308, %c0_309, %c0_310] : memref<5x48x16xf32, #tpu.memory_space<vmem>>, vector<1x16x16xf32>
    %498 = vector.shape_cast %497 : vector<1x16x16xf32> to vector<16x16xf32>
    %499 = vector.broadcast %496 : f32 to vector<16x16xf32>
    %500 = arith.mulf %498, %499 : vector<16x16xf32>
    %501 = arith.addf %495, %500 : vector<16x16xf32>
    %c25 = arith.constant 25 : index
    %502 = memref.load %arg4[%c25] : memref<72xf32, #tpu.memory_space<smem>>
    %c1_311 = arith.constant 1 : index
    %c16_312 = arith.constant 16 : index
    %c0_313 = arith.constant 0 : index
    %503 = vector.load %arg11[%c1_311, %c16_312, %c0_313] : memref<5x48x16xf32, #tpu.memory_space<vmem>>, vector<1x16x16xf32>
    %504 = vector.shape_cast %503 : vector<1x16x16xf32> to vector<16x16xf32>
    %505 = vector.broadcast %502 : f32 to vector<16x16xf32>
    %506 = arith.mulf %504, %505 : vector<16x16xf32>
    %507 = arith.addf %501, %506 : vector<16x16xf32>
    %c26 = arith.constant 26 : index
    %508 = memref.load %arg4[%c26] : memref<72xf32, #tpu.memory_space<smem>>
    %c1_314 = arith.constant 1 : index
    %c32_315 = arith.constant 32 : index
    %c0_316 = arith.constant 0 : index
    %509 = vector.load %arg11[%c1_314, %c32_315, %c0_316] : memref<5x48x16xf32, #tpu.memory_space<vmem>>, vector<1x16x16xf32>
    %510 = vector.shape_cast %509 : vector<1x16x16xf32> to vector<16x16xf32>
    %511 = vector.broadcast %508 : f32 to vector<16x16xf32>
    %512 = arith.mulf %510, %511 : vector<16x16xf32>
    %513 = arith.addf %507, %512 : vector<16x16xf32>
    %514 = vector.broadcast %478 : f32 to vector<16x16xf32>
    %515 = arith.addf %513, %514 : vector<16x16xf32>
    %c18 = arith.constant 18 : index
    %516 = memref.load %arg4[%c18] : memref<72xf32, #tpu.memory_space<smem>>
    %c0_317 = arith.constant 0 : index
    %c0_318 = arith.constant 0 : index
    %c0_319 = arith.constant 0 : index
    %517 = vector.load %arg11[%c0_317, %c0_318, %c0_319] : memref<5x48x16xf32, #tpu.memory_space<vmem>>, vector<1x16x16xf32>
    %518 = vector.shape_cast %517 : vector<1x16x16xf32> to vector<16x16xf32>
    %519 = vector.broadcast %516 : f32 to vector<16x16xf32>
    %520 = arith.mulf %518, %519 : vector<16x16xf32>
    %c19 = arith.constant 19 : index
    %521 = memref.load %arg4[%c19] : memref<72xf32, #tpu.memory_space<smem>>
    %c0_320 = arith.constant 0 : index
    %c16_321 = arith.constant 16 : index
    %c0_322 = arith.constant 0 : index
    %522 = vector.load %arg11[%c0_320, %c16_321, %c0_322] : memref<5x48x16xf32, #tpu.memory_space<vmem>>, vector<1x16x16xf32>
    %523 = vector.shape_cast %522 : vector<1x16x16xf32> to vector<16x16xf32>
    %524 = vector.broadcast %521 : f32 to vector<16x16xf32>
    %525 = arith.mulf %523, %524 : vector<16x16xf32>
    %526 = arith.addf %520, %525 : vector<16x16xf32>
    %c20 = arith.constant 20 : index
    %527 = memref.load %arg4[%c20] : memref<72xf32, #tpu.memory_space<smem>>
    %c0_323 = arith.constant 0 : index
    %c32_324 = arith.constant 32 : index
    %c0_325 = arith.constant 0 : index
    %528 = vector.load %arg11[%c0_323, %c32_324, %c0_325] : memref<5x48x16xf32, #tpu.memory_space<vmem>>, vector<1x16x16xf32>
    %529 = vector.shape_cast %528 : vector<1x16x16xf32> to vector<16x16xf32>
    %530 = vector.broadcast %527 : f32 to vector<16x16xf32>
    %531 = arith.mulf %529, %530 : vector<16x16xf32>
    %532 = arith.addf %526, %531 : vector<16x16xf32>
    %c21_326 = arith.constant 21 : index
    %533 = memref.load %arg4[%c21_326] : memref<72xf32, #tpu.memory_space<smem>>
    %c1_327 = arith.constant 1 : index
    %c0_328 = arith.constant 0 : index
    %c0_329 = arith.constant 0 : index
    %534 = vector.load %arg11[%c1_327, %c0_328, %c0_329] : memref<5x48x16xf32, #tpu.memory_space<vmem>>, vector<1x16x16xf32>
    %535 = vector.shape_cast %534 : vector<1x16x16xf32> to vector<16x16xf32>
    %536 = vector.broadcast %533 : f32 to vector<16x16xf32>
    %537 = arith.mulf %535, %536 : vector<16x16xf32>
    %538 = arith.addf %532, %537 : vector<16x16xf32>
    %c22_330 = arith.constant 22 : index
    %539 = memref.load %arg4[%c22_330] : memref<72xf32, #tpu.memory_space<smem>>
    %c1_331 = arith.constant 1 : index
    %c16_332 = arith.constant 16 : index
    %c0_333 = arith.constant 0 : index
    %540 = vector.load %arg11[%c1_331, %c16_332, %c0_333] : memref<5x48x16xf32, #tpu.memory_space<vmem>>, vector<1x16x16xf32>
    %541 = vector.shape_cast %540 : vector<1x16x16xf32> to vector<16x16xf32>
    %542 = vector.broadcast %539 : f32 to vector<16x16xf32>
    %543 = arith.mulf %541, %542 : vector<16x16xf32>
    %544 = arith.addf %538, %543 : vector<16x16xf32>
    %c23_334 = arith.constant 23 : index
    %545 = memref.load %arg4[%c23_334] : memref<72xf32, #tpu.memory_space<smem>>
    %c1_335 = arith.constant 1 : index
    %c32_336 = arith.constant 32 : index
    %c0_337 = arith.constant 0 : index
    %546 = vector.load %arg11[%c1_335, %c32_336, %c0_337] : memref<5x48x16xf32, #tpu.memory_space<vmem>>, vector<1x16x16xf32>
    %547 = vector.shape_cast %546 : vector<1x16x16xf32> to vector<16x16xf32>
    %548 = vector.broadcast %545 : f32 to vector<16x16xf32>
    %549 = arith.mulf %547, %548 : vector<16x16xf32>
    %550 = arith.addf %544, %549 : vector<16x16xf32>
    %c24_338 = arith.constant 24 : index
    %551 = memref.load %arg4[%c24_338] : memref<72xf32, #tpu.memory_space<smem>>
    %c2_339 = arith.constant 2 : index
    %c0_340 = arith.constant 0 : index
    %c0_341 = arith.constant 0 : index
    %552 = vector.load %arg11[%c2_339, %c0_340, %c0_341] : memref<5x48x16xf32, #tpu.memory_space<vmem>>, vector<1x16x16xf32>
    %553 = vector.shape_cast %552 : vector<1x16x16xf32> to vector<16x16xf32>
    %554 = vector.broadcast %551 : f32 to vector<16x16xf32>
    %555 = arith.mulf %553, %554 : vector<16x16xf32>
    %556 = arith.addf %550, %555 : vector<16x16xf32>
    %c25_342 = arith.constant 25 : index
    %557 = memref.load %arg4[%c25_342] : memref<72xf32, #tpu.memory_space<smem>>
    %c2_343 = arith.constant 2 : index
    %c16_344 = arith.constant 16 : index
    %c0_345 = arith.constant 0 : index
    %558 = vector.load %arg11[%c2_343, %c16_344, %c0_345] : memref<5x48x16xf32, #tpu.memory_space<vmem>>, vector<1x16x16xf32>
    %559 = vector.shape_cast %558 : vector<1x16x16xf32> to vector<16x16xf32>
    %560 = vector.broadcast %557 : f32 to vector<16x16xf32>
    %561 = arith.mulf %559, %560 : vector<16x16xf32>
    %562 = arith.addf %556, %561 : vector<16x16xf32>
    %c26_346 = arith.constant 26 : index
    %563 = memref.load %arg4[%c26_346] : memref<72xf32, #tpu.memory_space<smem>>
    %c2_347 = arith.constant 2 : index
    %c32_348 = arith.constant 32 : index
    %c0_349 = arith.constant 0 : index
    %564 = vector.load %arg11[%c2_347, %c32_348, %c0_349] : memref<5x48x16xf32, #tpu.memory_space<vmem>>, vector<1x16x16xf32>
    %565 = vector.shape_cast %564 : vector<1x16x16xf32> to vector<16x16xf32>
    %566 = vector.broadcast %563 : f32 to vector<16x16xf32>
    %567 = arith.mulf %565, %566 : vector<16x16xf32>
    %568 = arith.addf %562, %567 : vector<16x16xf32>
    %569 = vector.broadcast %478 : f32 to vector<16x16xf32>
    %570 = arith.addf %568, %569 : vector<16x16xf32>
    %571 = arith.maximumf %515, %570 : vector<16x16xf32>
    %572 = vector.extract_strided_slice %571 {offsets = [0, 0], sizes = [8, 16], strides = [1, 1]} : vector<16x16xf32> to vector<8x16xf32>
    %573 = vector.extract_strided_slice %571 {offsets = [8, 0], sizes = [8, 16], strides = [1, 1]} : vector<16x16xf32> to vector<8x16xf32>
    %574 = arith.maximumf %572, %573 : vector<8x16xf32>
    %c32_350 = arith.constant 32 : index
    %c0_351 = arith.constant 0 : index
    %575 = vector.load %arg12[%c32_350, %c0_351] : memref<128x16xf32, #tpu.memory_space<vmem>>, vector<8x16xf32>
    tpu.vector_store %arg12[%c32_350, %c0_351], %574 {strides = array<i32>} : memref<128x16xf32, #tpu.memory_space<vmem>>, vector<8x16xf32>,
    %c18_352 = arith.constant 18 : index
    %576 = memref.load %arg4[%c18_352] : memref<72xf32, #tpu.memory_space<smem>>
    %c1_353 = arith.constant 1 : index
    %c0_354 = arith.constant 0 : index
    %c0_355 = arith.constant 0 : index
    %577 = vector.load %arg11[%c1_353, %c0_354, %c0_355] : memref<5x48x16xf32, #tpu.memory_space<vmem>>, vector<1x16x16xf32>
    %578 = vector.shape_cast %577 : vector<1x16x16xf32> to vector<16x16xf32>
    %579 = vector.broadcast %576 : f32 to vector<16x16xf32>
    %580 = arith.mulf %578, %579 : vector<16x16xf32>
    %c19_356 = arith.constant 19 : index
    %581 = memref.load %arg4[%c19_356] : memref<72xf32, #tpu.memory_space<smem>>
    %c1_357 = arith.constant 1 : index
    %c16_358 = arith.constant 16 : index
    %c0_359 = arith.constant 0 : index
    %582 = vector.load %arg11[%c1_357, %c16_358, %c0_359] : memref<5x48x16xf32, #tpu.memory_space<vmem>>, vector<1x16x16xf32>
    %583 = vector.shape_cast %582 : vector<1x16x16xf32> to vector<16x16xf32>
    %584 = vector.broadcast %581 : f32 to vector<16x16xf32>
    %585 = arith.mulf %583, %584 : vector<16x16xf32>
    %586 = arith.addf %580, %585 : vector<16x16xf32>
    %c20_360 = arith.constant 20 : index
    %587 = memref.load %arg4[%c20_360] : memref<72xf32, #tpu.memory_space<smem>>
    %c1_361 = arith.constant 1 : index
    %c32_362 = arith.constant 32 : index
    %c0_363 = arith.constant 0 : index
    %588 = vector.load %arg11[%c1_361, %c32_362, %c0_363] : memref<5x48x16xf32, #tpu.memory_space<vmem>>, vector<1x16x16xf32>
    %589 = vector.shape_cast %588 : vector<1x16x16xf32> to vector<16x16xf32>
    %590 = vector.broadcast %587 : f32 to vector<16x16xf32>
    %591 = arith.mulf %589, %590 : vector<16x16xf32>
    %592 = arith.addf %586, %591 : vector<16x16xf32>
    %c21_364 = arith.constant 21 : index
    %593 = memref.load %arg4[%c21_364] : memref<72xf32, #tpu.memory_space<smem>>
    %c2_365 = arith.constant 2 : index
    %c0_366 = arith.constant 0 : index
    %c0_367 = arith.constant 0 : index
    %594 = vector.load %arg11[%c2_365, %c0_366, %c0_367] : memref<5x48x16xf32, #tpu.memory_space<vmem>>, vector<1x16x16xf32>
    %595 = vector.shape_cast %594 : vector<1x16x16xf32> to vector<16x16xf32>
    %596 = vector.broadcast %593 : f32 to vector<16x16xf32>
    %597 = arith.mulf %595, %596 : vector<16x16xf32>
    %598 = arith.addf %592, %597 : vector<16x16xf32>
    %c22_368 = arith.constant 22 : index
    %599 = memref.load %arg4[%c22_368] : memref<72xf32, #tpu.memory_space<smem>>
    %c2_369 = arith.constant 2 : index
    %c16_370 = arith.constant 16 : index
    %c0_371 = arith.constant 0 : index
    %600 = vector.load %arg11[%c2_369, %c16_370, %c0_371] : memref<5x48x16xf32, #tpu.memory_space<vmem>>, vector<1x16x16xf32>
    %601 = vector.shape_cast %600 : vector<1x16x16xf32> to vector<16x16xf32>
    %602 = vector.broadcast %599 : f32 to vector<16x16xf32>
    %603 = arith.mulf %601, %602 : vector<16x16xf32>
    %604 = arith.addf %598, %603 : vector<16x16xf32>
    %c23_372 = arith.constant 23 : index
    %605 = memref.load %arg4[%c23_372] : memref<72xf32, #tpu.memory_space<smem>>
    %c2_373 = arith.constant 2 : index
    %c32_374 = arith.constant 32 : index
    %c0_375 = arith.constant 0 : index
    %606 = vector.load %arg11[%c2_373, %c32_374, %c0_375] : memref<5x48x16xf32, #tpu.memory_space<vmem>>, vector<1x16x16xf32>
    %607 = vector.shape_cast %606 : vector<1x16x16xf32> to vector<16x16xf32>
    %608 = vector.broadcast %605 : f32 to vector<16x16xf32>
    %609 = arith.mulf %607, %608 : vector<16x16xf32>
    %610 = arith.addf %604, %609 : vector<16x16xf32>
    %c24_376 = arith.constant 24 : index
    %611 = memref.load %arg4[%c24_376] : memref<72xf32, #tpu.memory_space<smem>>
    %c3_377 = arith.constant 3 : index
    %c0_378 = arith.constant 0 : index
    %c0_379 = arith.constant 0 : index
    %612 = vector.load %arg11[%c3_377, %c0_378, %c0_379] : memref<5x48x16xf32, #tpu.memory_space<vmem>>, vector<1x16x16xf32>
    %613 = vector.shape_cast %612 : vector<1x16x16xf32> to vector<16x16xf32>
    %614 = vector.broadcast %611 : f32 to vector<16x16xf32>
    %615 = arith.mulf %613, %614 : vector<16x16xf32>
    %616 = arith.addf %610, %615 : vector<16x16xf32>
    %c25_380 = arith.constant 25 : index
    %617 = memref.load %arg4[%c25_380] : memref<72xf32, #tpu.memory_space<smem>>
    %c3_381 = arith.constant 3 : index
    %c16_382 = arith.constant 16 : index
    %c0_383 = arith.constant 0 : index
    %618 = vector.load %arg11[%c3_381, %c16_382, %c0_383] : memref<5x48x16xf32, #tpu.memory_space<vmem>>, vector<1x16x16xf32>
    %619 = vector.shape_cast %618 : vector<1x16x16xf32> to vector<16x16xf32>
    %620 = vector.broadcast %617 : f32 to vector<16x16xf32>
    %621 = arith.mulf %619, %620 : vector<16x16xf32>
    %622 = arith.addf %616, %621 : vector<16x16xf32>
    %c26_384 = arith.constant 26 : index
    %623 = memref.load %arg4[%c26_384] : memref<72xf32, #tpu.memory_space<smem>>
    %c3_385 = arith.constant 3 : index
    %c32_386 = arith.constant 32 : index
    %c0_387 = arith.constant 0 : index
    %624 = vector.load %arg11[%c3_385, %c32_386, %c0_387] : memref<5x48x16xf32, #tpu.memory_space<vmem>>, vector<1x16x16xf32>
    %625 = vector.shape_cast %624 : vector<1x16x16xf32> to vector<16x16xf32>
    %626 = vector.broadcast %623 : f32 to vector<16x16xf32>
    %627 = arith.mulf %625, %626 : vector<16x16xf32>
    %628 = arith.addf %622, %627 : vector<16x16xf32>
    %629 = vector.broadcast %478 : f32 to vector<16x16xf32>
    %630 = arith.addf %628, %629 : vector<16x16xf32>
    %c18_388 = arith.constant 18 : index
    %631 = memref.load %arg4[%c18_388] : memref<72xf32, #tpu.memory_space<smem>>
    %c2_389 = arith.constant 2 : index
    %c0_390 = arith.constant 0 : index
    %c0_391 = arith.constant 0 : index
    %632 = vector.load %arg11[%c2_389, %c0_390, %c0_391] : memref<5x48x16xf32, #tpu.memory_space<vmem>>, vector<1x16x16xf32>
    %633 = vector.shape_cast %632 : vector<1x16x16xf32> to vector<16x16xf32>
    %634 = vector.broadcast %631 : f32 to vector<16x16xf32>
    %635 = arith.mulf %633, %634 : vector<16x16xf32>
    %c19_392 = arith.constant 19 : index
    %636 = memref.load %arg4[%c19_392] : memref<72xf32, #tpu.memory_space<smem>>
    %c2_393 = arith.constant 2 : index
    %c16_394 = arith.constant 16 : index
    %c0_395 = arith.constant 0 : index
    %637 = vector.load %arg11[%c2_393, %c16_394, %c0_395] : memref<5x48x16xf32, #tpu.memory_space<vmem>>, vector<1x16x16xf32>
    %638 = vector.shape_cast %637 : vector<1x16x16xf32> to vector<16x16xf32>
    %639 = vector.broadcast %636 : f32 to vector<16x16xf32>
    %640 = arith.mulf %638, %639 : vector<16x16xf32>
    %641 = arith.addf %635, %640 : vector<16x16xf32>
    %c20_396 = arith.constant 20 : index
    %642 = memref.load %arg4[%c20_396] : memref<72xf32, #tpu.memory_space<smem>>
    %c2_397 = arith.constant 2 : index
    %c32_398 = arith.constant 32 : index
    %c0_399 = arith.constant 0 : index
    %643 = vector.load %arg11[%c2_397, %c32_398, %c0_399] : memref<5x48x16xf32, #tpu.memory_space<vmem>>, vector<1x16x16xf32>
    %644 = vector.shape_cast %643 : vector<1x16x16xf32> to vector<16x16xf32>
    %645 = vector.broadcast %642 : f32 to vector<16x16xf32>
    %646 = arith.mulf %644, %645 : vector<16x16xf32>
    %647 = arith.addf %641, %646 : vector<16x16xf32>
    %c21_400 = arith.constant 21 : index
    %648 = memref.load %arg4[%c21_400] : memref<72xf32, #tpu.memory_space<smem>>
    %c3_401 = arith.constant 3 : index
    %c0_402 = arith.constant 0 : index
    %c0_403 = arith.constant 0 : index
    %649 = vector.load %arg11[%c3_401, %c0_402, %c0_403] : memref<5x48x16xf32, #tpu.memory_space<vmem>>, vector<1x16x16xf32>
    %650 = vector.shape_cast %649 : vector<1x16x16xf32> to vector<16x16xf32>
    %651 = vector.broadcast %648 : f32 to vector<16x16xf32>
    %652 = arith.mulf %650, %651 : vector<16x16xf32>
    %653 = arith.addf %647, %652 : vector<16x16xf32>
    %c22_404 = arith.constant 22 : index
    %654 = memref.load %arg4[%c22_404] : memref<72xf32, #tpu.memory_space<smem>>
    %c3_405 = arith.constant 3 : index
    %c16_406 = arith.constant 16 : index
    %c0_407 = arith.constant 0 : index
    %655 = vector.load %arg11[%c3_405, %c16_406, %c0_407] : memref<5x48x16xf32, #tpu.memory_space<vmem>>, vector<1x16x16xf32>
    %656 = vector.shape_cast %655 : vector<1x16x16xf32> to vector<16x16xf32>
    %657 = vector.broadcast %654 : f32 to vector<16x16xf32>
    %658 = arith.mulf %656, %657 : vector<16x16xf32>
    %659 = arith.addf %653, %658 : vector<16x16xf32>
    %c23_408 = arith.constant 23 : index
    %660 = memref.load %arg4[%c23_408] : memref<72xf32, #tpu.memory_space<smem>>
    %c3_409 = arith.constant 3 : index
    %c32_410 = arith.constant 32 : index
    %c0_411 = arith.constant 0 : index
    %661 = vector.load %arg11[%c3_409, %c32_410, %c0_411] : memref<5x48x16xf32, #tpu.memory_space<vmem>>, vector<1x16x16xf32>
    %662 = vector.shape_cast %661 : vector<1x16x16xf32> to vector<16x16xf32>
    %663 = vector.broadcast %660 : f32 to vector<16x16xf32>
    %664 = arith.mulf %662, %663 : vector<16x16xf32>
    %665 = arith.addf %659, %664 : vector<16x16xf32>
    %c24_412 = arith.constant 24 : index
    %666 = memref.load %arg4[%c24_412] : memref<72xf32, #tpu.memory_space<smem>>
    %c4_413 = arith.constant 4 : index
    %c0_414 = arith.constant 0 : index
    %c0_415 = arith.constant 0 : index
    %667 = vector.load %arg11[%c4_413, %c0_414, %c0_415] : memref<5x48x16xf32, #tpu.memory_space<vmem>>, vector<1x16x16xf32>
    %668 = vector.shape_cast %667 : vector<1x16x16xf32> to vector<16x16xf32>
    %669 = vector.broadcast %666 : f32 to vector<16x16xf32>
    %670 = arith.mulf %668, %669 : vector<16x16xf32>
    %671 = arith.addf %665, %670 : vector<16x16xf32>
    %c25_416 = arith.constant 25 : index
    %672 = memref.load %arg4[%c25_416] : memref<72xf32, #tpu.memory_space<smem>>
    %c4_417 = arith.constant 4 : index
    %c16_418 = arith.constant 16 : index
    %c0_419 = arith.constant 0 : index
    %673 = vector.load %arg11[%c4_417, %c16_418, %c0_419] : memref<5x48x16xf32, #tpu.memory_space<vmem>>, vector<1x16x16xf32>
    %674 = vector.shape_cast %673 : vector<1x16x16xf32> to vector<16x16xf32>
    %675 = vector.broadcast %672 : f32 to vector<16x16xf32>
    %676 = arith.mulf %674, %675 : vector<16x16xf32>
    %677 = arith.addf %671, %676 : vector<16x16xf32>
    %c26_420 = arith.constant 26 : index
    %678 = memref.load %arg4[%c26_420] : memref<72xf32, #tpu.memory_space<smem>>
    %c4_421 = arith.constant 4 : index
    %c32_422 = arith.constant 32 : index
    %c0_423 = arith.constant 0 : index
    %679 = vector.load %arg11[%c4_421, %c32_422, %c0_423] : memref<5x48x16xf32, #tpu.memory_space<vmem>>, vector<1x16x16xf32>
    %680 = vector.shape_cast %679 : vector<1x16x16xf32> to vector<16x16xf32>
    %681 = vector.broadcast %678 : f32 to vector<16x16xf32>
    %682 = arith.mulf %680, %681 : vector<16x16xf32>
    %683 = arith.addf %677, %682 : vector<16x16xf32>
    %684 = vector.broadcast %478 : f32 to vector<16x16xf32>
    %685 = arith.addf %683, %684 : vector<16x16xf32>
    %686 = arith.maximumf %630, %685 : vector<16x16xf32>
    %687 = vector.extract_strided_slice %686 {offsets = [0, 0], sizes = [8, 16], strides = [1, 1]} : vector<16x16xf32> to vector<8x16xf32>
    %688 = vector.extract_strided_slice %686 {offsets = [8, 0], sizes = [8, 16], strides = [1, 1]} : vector<16x16xf32> to vector<8x16xf32>
    %689 = arith.maximumf %687, %688 : vector<8x16xf32>
    %c40 = arith.constant 40 : index
    %c0_424 = arith.constant 0 : index
    %690 = vector.load %arg12[%c40, %c0_424] : memref<128x16xf32, #tpu.memory_space<vmem>>, vector<8x16xf32>
    tpu.vector_store %arg12[%c40, %c0_424], %689 {strides = array<i32>} : memref<128x16xf32, #tpu.memory_space<vmem>>, vector<8x16xf32>,
    %c3_425 = arith.constant 3 : index
    %691 = memref.load %arg5[%c3_425] : memref<8xf32, #tpu.memory_space<smem>>
    %c30 = arith.constant 30 : index
    %692 = memref.load %arg4[%c30] : memref<72xf32, #tpu.memory_space<smem>>
    %c0_426 = arith.constant 0 : index
    %c0_427 = arith.constant 0 : index
    %c0_428 = arith.constant 0 : index
    %693 = vector.load %arg11[%c0_426, %c0_427, %c0_428] : memref<5x48x16xf32, #tpu.memory_space<vmem>>, vector<1x16x16xf32>
    %694 = vector.shape_cast %693 : vector<1x16x16xf32> to vector<16x16xf32>
    %695 = vector.broadcast %692 : f32 to vector<16x16xf32>
    %696 = arith.mulf %694, %695 : vector<16x16xf32>
    %c31 = arith.constant 31 : index
    %697 = memref.load %arg4[%c31] : memref<72xf32, #tpu.memory_space<smem>>
    %c0_429 = arith.constant 0 : index
    %c16_430 = arith.constant 16 : index
    %c0_431 = arith.constant 0 : index
    %698 = vector.load %arg11[%c0_429, %c16_430, %c0_431] : memref<5x48x16xf32, #tpu.memory_space<vmem>>, vector<1x16x16xf32>
    %699 = vector.shape_cast %698 : vector<1x16x16xf32> to vector<16x16xf32>
    %700 = vector.broadcast %697 : f32 to vector<16x16xf32>
    %701 = arith.mulf %699, %700 : vector<16x16xf32>
    %702 = arith.addf %696, %701 : vector<16x16xf32>
    %c32_432 = arith.constant 32 : index
    %703 = memref.load %arg4[%c32_432] : memref<72xf32, #tpu.memory_space<smem>>
    %c0_433 = arith.constant 0 : index
    %c32_434 = arith.constant 32 : index
    %c0_435 = arith.constant 0 : index
    %704 = vector.load %arg11[%c0_433, %c32_434, %c0_435] : memref<5x48x16xf32, #tpu.memory_space<vmem>>, vector<1x16x16xf32>
    %705 = vector.shape_cast %704 : vector<1x16x16xf32> to vector<16x16xf32>
    %706 = vector.broadcast %703 : f32 to vector<16x16xf32>
    %707 = arith.mulf %705, %706 : vector<16x16xf32>
    %708 = arith.addf %702, %707 : vector<16x16xf32>
    %c33 = arith.constant 33 : index
    %709 = memref.load %arg4[%c33] : memref<72xf32, #tpu.memory_space<smem>>
    %c1_436 = arith.constant 1 : index
    %c0_437 = arith.constant 0 : index
    %c0_438 = arith.constant 0 : index
    %710 = vector.load %arg11[%c1_436, %c0_437, %c0_438] : memref<5x48x16xf32, #tpu.memory_space<vmem>>, vector<1x16x16xf32>
    %711 = vector.shape_cast %710 : vector<1x16x16xf32> to vector<16x16xf32>
    %712 = vector.broadcast %709 : f32 to vector<16x16xf32>
    %713 = arith.mulf %711, %712 : vector<16x16xf32>
    %714 = arith.addf %708, %713 : vector<16x16xf32>
    %c34 = arith.constant 34 : index
    %715 = memref.load %arg4[%c34] : memref<72xf32, #tpu.memory_space<smem>>
    %c1_439 = arith.constant 1 : index
    %c16_440 = arith.constant 16 : index
    %c0_441 = arith.constant 0 : index
    %716 = vector.load %arg11[%c1_439, %c16_440, %c0_441] : memref<5x48x16xf32, #tpu.memory_space<vmem>>, vector<1x16x16xf32>
    %717 = vector.shape_cast %716 : vector<1x16x16xf32> to vector<16x16xf32>
    %718 = vector.broadcast %715 : f32 to vector<16x16xf32>
    %719 = arith.mulf %717, %718 : vector<16x16xf32>
    %720 = arith.addf %714, %719 : vector<16x16xf32>
    %c35 = arith.constant 35 : index
    %721 = memref.load %arg4[%c35] : memref<72xf32, #tpu.memory_space<smem>>
    %c1_442 = arith.constant 1 : index
    %c32_443 = arith.constant 32 : index
    %c0_444 = arith.constant 0 : index
    %722 = vector.load %arg11[%c1_442, %c32_443, %c0_444] : memref<5x48x16xf32, #tpu.memory_space<vmem>>, vector<1x16x16xf32>
    %723 = vector.shape_cast %722 : vector<1x16x16xf32> to vector<16x16xf32>
    %724 = vector.broadcast %721 : f32 to vector<16x16xf32>
    %725 = arith.mulf %723, %724 : vector<16x16xf32>
    %726 = arith.addf %720, %725 : vector<16x16xf32>
    %727 = vector.broadcast %691 : f32 to vector<16x16xf32>
    %728 = arith.addf %726, %727 : vector<16x16xf32>
    %c27 = arith.constant 27 : index
    %729 = memref.load %arg4[%c27] : memref<72xf32, #tpu.memory_space<smem>>
    %c0_445 = arith.constant 0 : index
    %c0_446 = arith.constant 0 : index
    %c0_447 = arith.constant 0 : index
    %730 = vector.load %arg11[%c0_445, %c0_446, %c0_447] : memref<5x48x16xf32, #tpu.memory_space<vmem>>, vector<1x16x16xf32>
    %731 = vector.shape_cast %730 : vector<1x16x16xf32> to vector<16x16xf32>
    %732 = vector.broadcast %729 : f32 to vector<16x16xf32>
    %733 = arith.mulf %731, %732 : vector<16x16xf32>
    %c28 = arith.constant 28 : index
    %734 = memref.load %arg4[%c28] : memref<72xf32, #tpu.memory_space<smem>>
    %c0_448 = arith.constant 0 : index
    %c16_449 = arith.constant 16 : index
    %c0_450 = arith.constant 0 : index
    %735 = vector.load %arg11[%c0_448, %c16_449, %c0_450] : memref<5x48x16xf32, #tpu.memory_space<vmem>>, vector<1x16x16xf32>
    %736 = vector.shape_cast %735 : vector<1x16x16xf32> to vector<16x16xf32>
    %737 = vector.broadcast %734 : f32 to vector<16x16xf32>
    %738 = arith.mulf %736, %737 : vector<16x16xf32>
    %739 = arith.addf %733, %738 : vector<16x16xf32>
    %c29 = arith.constant 29 : index
    %740 = memref.load %arg4[%c29] : memref<72xf32, #tpu.memory_space<smem>>
    %c0_451 = arith.constant 0 : index
    %c32_452 = arith.constant 32 : index
    %c0_453 = arith.constant 0 : index
    %741 = vector.load %arg11[%c0_451, %c32_452, %c0_453] : memref<5x48x16xf32, #tpu.memory_space<vmem>>, vector<1x16x16xf32>
    %742 = vector.shape_cast %741 : vector<1x16x16xf32> to vector<16x16xf32>
    %743 = vector.broadcast %740 : f32 to vector<16x16xf32>
    %744 = arith.mulf %742, %743 : vector<16x16xf32>
    %745 = arith.addf %739, %744 : vector<16x16xf32>
    %c30_454 = arith.constant 30 : index
    %746 = memref.load %arg4[%c30_454] : memref<72xf32, #tpu.memory_space<smem>>
    %c1_455 = arith.constant 1 : index
    %c0_456 = arith.constant 0 : index
    %c0_457 = arith.constant 0 : index
    %747 = vector.load %arg11[%c1_455, %c0_456, %c0_457] : memref<5x48x16xf32, #tpu.memory_space<vmem>>, vector<1x16x16xf32>
    %748 = vector.shape_cast %747 : vector<1x16x16xf32> to vector<16x16xf32>
    %749 = vector.broadcast %746 : f32 to vector<16x16xf32>
    %750 = arith.mulf %748, %749 : vector<16x16xf32>
    %751 = arith.addf %745, %750 : vector<16x16xf32>
    %c31_458 = arith.constant 31 : index
    %752 = memref.load %arg4[%c31_458] : memref<72xf32, #tpu.memory_space<smem>>
    %c1_459 = arith.constant 1 : index
    %c16_460 = arith.constant 16 : index
    %c0_461 = arith.constant 0 : index
    %753 = vector.load %arg11[%c1_459, %c16_460, %c0_461] : memref<5x48x16xf32, #tpu.memory_space<vmem>>, vector<1x16x16xf32>
    %754 = vector.shape_cast %753 : vector<1x16x16xf32> to vector<16x16xf32>
    %755 = vector.broadcast %752 : f32 to vector<16x16xf32>
    %756 = arith.mulf %754, %755 : vector<16x16xf32>
    %757 = arith.addf %751, %756 : vector<16x16xf32>
    %c32_462 = arith.constant 32 : index
    %758 = memref.load %arg4[%c32_462] : memref<72xf32, #tpu.memory_space<smem>>
    %c1_463 = arith.constant 1 : index
    %c32_464 = arith.constant 32 : index
    %c0_465 = arith.constant 0 : index
    %759 = vector.load %arg11[%c1_463, %c32_464, %c0_465] : memref<5x48x16xf32, #tpu.memory_space<vmem>>, vector<1x16x16xf32>
    %760 = vector.shape_cast %759 : vector<1x16x16xf32> to vector<16x16xf32>
    %761 = vector.broadcast %758 : f32 to vector<16x16xf32>
    %762 = arith.mulf %760, %761 : vector<16x16xf32>
    %763 = arith.addf %757, %762 : vector<16x16xf32>
    %c33_466 = arith.constant 33 : index
    %764 = memref.load %arg4[%c33_466] : memref<72xf32, #tpu.memory_space<smem>>
    %c2_467 = arith.constant 2 : index
    %c0_468 = arith.constant 0 : index
    %c0_469 = arith.constant 0 : index
    %765 = vector.load %arg11[%c2_467, %c0_468, %c0_469] : memref<5x48x16xf32, #tpu.memory_space<vmem>>, vector<1x16x16xf32>
    %766 = vector.shape_cast %765 : vector<1x16x16xf32> to vector<16x16xf32>
    %767 = vector.broadcast %764 : f32 to vector<16x16xf32>
    %768 = arith.mulf %766, %767 : vector<16x16xf32>
    %769 = arith.addf %763, %768 : vector<16x16xf32>
    %c34_470 = arith.constant 34 : index
    %770 = memref.load %arg4[%c34_470] : memref<72xf32, #tpu.memory_space<smem>>
    %c2_471 = arith.constant 2 : index
    %c16_472 = arith.constant 16 : index
    %c0_473 = arith.constant 0 : index
    %771 = vector.load %arg11[%c2_471, %c16_472, %c0_473] : memref<5x48x16xf32, #tpu.memory_space<vmem>>, vector<1x16x16xf32>
    %772 = vector.shape_cast %771 : vector<1x16x16xf32> to vector<16x16xf32>
    %773 = vector.broadcast %770 : f32 to vector<16x16xf32>
    %774 = arith.mulf %772, %773 : vector<16x16xf32>
    %775 = arith.addf %769, %774 : vector<16x16xf32>
    %c35_474 = arith.constant 35 : index
    %776 = memref.load %arg4[%c35_474] : memref<72xf32, #tpu.memory_space<smem>>
    %c2_475 = arith.constant 2 : index
    %c32_476 = arith.constant 32 : index
    %c0_477 = arith.constant 0 : index
    %777 = vector.load %arg11[%c2_475, %c32_476, %c0_477] : memref<5x48x16xf32, #tpu.memory_space<vmem>>, vector<1x16x16xf32>
    %778 = vector.shape_cast %777 : vector<1x16x16xf32> to vector<16x16xf32>
    %779 = vector.broadcast %776 : f32 to vector<16x16xf32>
    %780 = arith.mulf %778, %779 : vector<16x16xf32>
    %781 = arith.addf %775, %780 : vector<16x16xf32>
    %782 = vector.broadcast %691 : f32 to vector<16x16xf32>
    %783 = arith.addf %781, %782 : vector<16x16xf32>
    %784 = arith.maximumf %728, %783 : vector<16x16xf32>
    %785 = vector.extract_strided_slice %784 {offsets = [0, 0], sizes = [8, 16], strides = [1, 1]} : vector<16x16xf32> to vector<8x16xf32>
    %786 = vector.extract_strided_slice %784 {offsets = [8, 0], sizes = [8, 16], strides = [1, 1]} : vector<16x16xf32> to vector<8x16xf32>
    %787 = arith.maximumf %785, %786 : vector<8x16xf32>
    %c48 = arith.constant 48 : index
    %c0_478 = arith.constant 0 : index
    %788 = vector.load %arg12[%c48, %c0_478] : memref<128x16xf32, #tpu.memory_space<vmem>>, vector<8x16xf32>
    tpu.vector_store %arg12[%c48, %c0_478], %787 {strides = array<i32>} : memref<128x16xf32, #tpu.memory_space<vmem>>, vector<8x16xf32>,
    %c27_479 = arith.constant 27 : index
    %789 = memref.load %arg4[%c27_479] : memref<72xf32, #tpu.memory_space<smem>>
    %c1_480 = arith.constant 1 : index
    %c0_481 = arith.constant 0 : index
    %c0_482 = arith.constant 0 : index
    %790 = vector.load %arg11[%c1_480, %c0_481, %c0_482] : memref<5x48x16xf32, #tpu.memory_space<vmem>>, vector<1x16x16xf32>
    %791 = vector.shape_cast %790 : vector<1x16x16xf32> to vector<16x16xf32>
    %792 = vector.broadcast %789 : f32 to vector<16x16xf32>
    %793 = arith.mulf %791, %792 : vector<16x16xf32>
    %c28_483 = arith.constant 28 : index
    %794 = memref.load %arg4[%c28_483] : memref<72xf32, #tpu.memory_space<smem>>
    %c1_484 = arith.constant 1 : index
    %c16_485 = arith.constant 16 : index
    %c0_486 = arith.constant 0 : index
    %795 = vector.load %arg11[%c1_484, %c16_485, %c0_486] : memref<5x48x16xf32, #tpu.memory_space<vmem>>, vector<1x16x16xf32>
    %796 = vector.shape_cast %795 : vector<1x16x16xf32> to vector<16x16xf32>
    %797 = vector.broadcast %794 : f32 to vector<16x16xf32>
    %798 = arith.mulf %796, %797 : vector<16x16xf32>
    %799 = arith.addf %793, %798 : vector<16x16xf32>
    %c29_487 = arith.constant 29 : index
    %800 = memref.load %arg4[%c29_487] : memref<72xf32, #tpu.memory_space<smem>>
    %c1_488 = arith.constant 1 : index
    %c32_489 = arith.constant 32 : index
    %c0_490 = arith.constant 0 : index
    %801 = vector.load %arg11[%c1_488, %c32_489, %c0_490] : memref<5x48x16xf32, #tpu.memory_space<vmem>>, vector<1x16x16xf32>
    %802 = vector.shape_cast %801 : vector<1x16x16xf32> to vector<16x16xf32>
    %803 = vector.broadcast %800 : f32 to vector<16x16xf32>
    %804 = arith.mulf %802, %803 : vector<16x16xf32>
    %805 = arith.addf %799, %804 : vector<16x16xf32>
    %c30_491 = arith.constant 30 : index
    %806 = memref.load %arg4[%c30_491] : memref<72xf32, #tpu.memory_space<smem>>
    %c2_492 = arith.constant 2 : index
    %c0_493 = arith.constant 0 : index
    %c0_494 = arith.constant 0 : index
    %807 = vector.load %arg11[%c2_492, %c0_493, %c0_494] : memref<5x48x16xf32, #tpu.memory_space<vmem>>, vector<1x16x16xf32>
    %808 = vector.shape_cast %807 : vector<1x16x16xf32> to vector<16x16xf32>
    %809 = vector.broadcast %806 : f32 to vector<16x16xf32>
    %810 = arith.mulf %808, %809 : vector<16x16xf32>
    %811 = arith.addf %805, %810 : vector<16x16xf32>
    %c31_495 = arith.constant 31 : index
    %812 = memref.load %arg4[%c31_495] : memref<72xf32, #tpu.memory_space<smem>>
    %c2_496 = arith.constant 2 : index
    %c16_497 = arith.constant 16 : index
    %c0_498 = arith.constant 0 : index
    %813 = vector.load %arg11[%c2_496, %c16_497, %c0_498] : memref<5x48x16xf32, #tpu.memory_space<vmem>>, vector<1x16x16xf32>
    %814 = vector.shape_cast %813 : vector<1x16x16xf32> to vector<16x16xf32>
    %815 = vector.broadcast %812 : f32 to vector<16x16xf32>
    %816 = arith.mulf %814, %815 : vector<16x16xf32>
    %817 = arith.addf %811, %816 : vector<16x16xf32>
    %c32_499 = arith.constant 32 : index
    %818 = memref.load %arg4[%c32_499] : memref<72xf32, #tpu.memory_space<smem>>
    %c2_500 = arith.constant 2 : index
    %c32_501 = arith.constant 32 : index
    %c0_502 = arith.constant 0 : index
    %819 = vector.load %arg11[%c2_500, %c32_501, %c0_502] : memref<5x48x16xf32, #tpu.memory_space<vmem>>, vector<1x16x16xf32>
    %820 = vector.shape_cast %819 : vector<1x16x16xf32> to vector<16x16xf32>
    %821 = vector.broadcast %818 : f32 to vector<16x16xf32>
    %822 = arith.mulf %820, %821 : vector<16x16xf32>
    %823 = arith.addf %817, %822 : vector<16x16xf32>
    %c33_503 = arith.constant 33 : index
    %824 = memref.load %arg4[%c33_503] : memref<72xf32, #tpu.memory_space<smem>>
    %c3_504 = arith.constant 3 : index
    %c0_505 = arith.constant 0 : index
    %c0_506 = arith.constant 0 : index
    %825 = vector.load %arg11[%c3_504, %c0_505, %c0_506] : memref<5x48x16xf32, #tpu.memory_space<vmem>>, vector<1x16x16xf32>
    %826 = vector.shape_cast %825 : vector<1x16x16xf32> to vector<16x16xf32>
    %827 = vector.broadcast %824 : f32 to vector<16x16xf32>
    %828 = arith.mulf %826, %827 : vector<16x16xf32>
    %829 = arith.addf %823, %828 : vector<16x16xf32>
    %c34_507 = arith.constant 34 : index
    %830 = memref.load %arg4[%c34_507] : memref<72xf32, #tpu.memory_space<smem>>
    %c3_508 = arith.constant 3 : index
    %c16_509 = arith.constant 16 : index
    %c0_510 = arith.constant 0 : index
    %831 = vector.load %arg11[%c3_508, %c16_509, %c0_510] : memref<5x48x16xf32, #tpu.memory_space<vmem>>, vector<1x16x16xf32>
    %832 = vector.shape_cast %831 : vector<1x16x16xf32> to vector<16x16xf32>
    %833 = vector.broadcast %830 : f32 to vector<16x16xf32>
    %834 = arith.mulf %832, %833 : vector<16x16xf32>
    %835 = arith.addf %829, %834 : vector<16x16xf32>
    %c35_511 = arith.constant 35 : index
    %836 = memref.load %arg4[%c35_511] : memref<72xf32, #tpu.memory_space<smem>>
    %c3_512 = arith.constant 3 : index
    %c32_513 = arith.constant 32 : index
    %c0_514 = arith.constant 0 : index
    %837 = vector.load %arg11[%c3_512, %c32_513, %c0_514] : memref<5x48x16xf32, #tpu.memory_space<vmem>>, vector<1x16x16xf32>
    %838 = vector.shape_cast %837 : vector<1x16x16xf32> to vector<16x16xf32>
    %839 = vector.broadcast %836 : f32 to vector<16x16xf32>
    %840 = arith.mulf %838, %839 : vector<16x16xf32>
    %841 = arith.addf %835, %840 : vector<16x16xf32>
    %842 = vector.broadcast %691 : f32 to vector<16x16xf32>
    %843 = arith.addf %841, %842 : vector<16x16xf32>
    %c27_515 = arith.constant 27 : index
    %844 = memref.load %arg4[%c27_515] : memref<72xf32, #tpu.memory_space<smem>>
    %c2_516 = arith.constant 2 : index
    %c0_517 = arith.constant 0 : index
    %c0_518 = arith.constant 0 : index
    %845 = vector.load %arg11[%c2_516, %c0_517, %c0_518] : memref<5x48x16xf32, #tpu.memory_space<vmem>>, vector<1x16x16xf32>
    %846 = vector.shape_cast %845 : vector<1x16x16xf32> to vector<16x16xf32>
    %847 = vector.broadcast %844 : f32 to vector<16x16xf32>
    %848 = arith.mulf %846, %847 : vector<16x16xf32>
    %c28_519 = arith.constant 28 : index
    %849 = memref.load %arg4[%c28_519] : memref<72xf32, #tpu.memory_space<smem>>
    %c2_520 = arith.constant 2 : index
    %c16_521 = arith.constant 16 : index
    %c0_522 = arith.constant 0 : index
    %850 = vector.load %arg11[%c2_520, %c16_521, %c0_522] : memref<5x48x16xf32, #tpu.memory_space<vmem>>, vector<1x16x16xf32>
    %851 = vector.shape_cast %850 : vector<1x16x16xf32> to vector<16x16xf32>
    %852 = vector.broadcast %849 : f32 to vector<16x16xf32>
    %853 = arith.mulf %851, %852 : vector<16x16xf32>
    %854 = arith.addf %848, %853 : vector<16x16xf32>
    %c29_523 = arith.constant 29 : index
    %855 = memref.load %arg4[%c29_523] : memref<72xf32, #tpu.memory_space<smem>>
    %c2_524 = arith.constant 2 : index
    %c32_525 = arith.constant 32 : index
    %c0_526 = arith.constant 0 : index
    %856 = vector.load %arg11[%c2_524, %c32_525, %c0_526] : memref<5x48x16xf32, #tpu.memory_space<vmem>>, vector<1x16x16xf32>
    %857 = vector.shape_cast %856 : vector<1x16x16xf32> to vector<16x16xf32>
    %858 = vector.broadcast %855 : f32 to vector<16x16xf32>
    %859 = arith.mulf %857, %858 : vector<16x16xf32>
    %860 = arith.addf %854, %859 : vector<16x16xf32>
    %c30_527 = arith.constant 30 : index
    %861 = memref.load %arg4[%c30_527] : memref<72xf32, #tpu.memory_space<smem>>
    %c3_528 = arith.constant 3 : index
    %c0_529 = arith.constant 0 : index
    %c0_530 = arith.constant 0 : index
    %862 = vector.load %arg11[%c3_528, %c0_529, %c0_530] : memref<5x48x16xf32, #tpu.memory_space<vmem>>, vector<1x16x16xf32>
    %863 = vector.shape_cast %862 : vector<1x16x16xf32> to vector<16x16xf32>
    %864 = vector.broadcast %861 : f32 to vector<16x16xf32>
    %865 = arith.mulf %863, %864 : vector<16x16xf32>
    %866 = arith.addf %860, %865 : vector<16x16xf32>
    %c31_531 = arith.constant 31 : index
    %867 = memref.load %arg4[%c31_531] : memref<72xf32, #tpu.memory_space<smem>>
    %c3_532 = arith.constant 3 : index
    %c16_533 = arith.constant 16 : index
    %c0_534 = arith.constant 0 : index
    %868 = vector.load %arg11[%c3_532, %c16_533, %c0_534] : memref<5x48x16xf32, #tpu.memory_space<vmem>>, vector<1x16x16xf32>
    %869 = vector.shape_cast %868 : vector<1x16x16xf32> to vector<16x16xf32>
    %870 = vector.broadcast %867 : f32 to vector<16x16xf32>
    %871 = arith.mulf %869, %870 : vector<16x16xf32>
    %872 = arith.addf %866, %871 : vector<16x16xf32>
    %c32_535 = arith.constant 32 : index
    %873 = memref.load %arg4[%c32_535] : memref<72xf32, #tpu.memory_space<smem>>
    %c3_536 = arith.constant 3 : index
    %c32_537 = arith.constant 32 : index
    %c0_538 = arith.constant 0 : index
    %874 = vector.load %arg11[%c3_536, %c32_537, %c0_538] : memref<5x48x16xf32, #tpu.memory_space<vmem>>, vector<1x16x16xf32>
    %875 = vector.shape_cast %874 : vector<1x16x16xf32> to vector<16x16xf32>
    %876 = vector.broadcast %873 : f32 to vector<16x16xf32>
    %877 = arith.mulf %875, %876 : vector<16x16xf32>
    %878 = arith.addf %872, %877 : vector<16x16xf32>
    %c33_539 = arith.constant 33 : index
    %879 = memref.load %arg4[%c33_539] : memref<72xf32, #tpu.memory_space<smem>>
    %c4_540 = arith.constant 4 : index
    %c0_541 = arith.constant 0 : index
    %c0_542 = arith.constant 0 : index
    %880 = vector.load %arg11[%c4_540, %c0_541, %c0_542] : memref<5x48x16xf32, #tpu.memory_space<vmem>>, vector<1x16x16xf32>
    %881 = vector.shape_cast %880 : vector<1x16x16xf32> to vector<16x16xf32>
    %882 = vector.broadcast %879 : f32 to vector<16x16xf32>
    %883 = arith.mulf %881, %882 : vector<16x16xf32>
    %884 = arith.addf %878, %883 : vector<16x16xf32>
    %c34_543 = arith.constant 34 : index
    %885 = memref.load %arg4[%c34_543] : memref<72xf32, #tpu.memory_space<smem>>
    %c4_544 = arith.constant 4 : index
    %c16_545 = arith.constant 16 : index
    %c0_546 = arith.constant 0 : index
    %886 = vector.load %arg11[%c4_544, %c16_545, %c0_546] : memref<5x48x16xf32, #tpu.memory_space<vmem>>, vector<1x16x16xf32>
    %887 = vector.shape_cast %886 : vector<1x16x16xf32> to vector<16x16xf32>
    %888 = vector.broadcast %885 : f32 to vector<16x16xf32>
    %889 = arith.mulf %887, %888 : vector<16x16xf32>
    %890 = arith.addf %884, %889 : vector<16x16xf32>
    %c35_547 = arith.constant 35 : index
    %891 = memref.load %arg4[%c35_547] : memref<72xf32, #tpu.memory_space<smem>>
    %c4_548 = arith.constant 4 : index
    %c32_549 = arith.constant 32 : index
    %c0_550 = arith.constant 0 : index
    %892 = vector.load %arg11[%c4_548, %c32_549, %c0_550] : memref<5x48x16xf32, #tpu.memory_space<vmem>>, vector<1x16x16xf32>
    %893 = vector.shape_cast %892 : vector<1x16x16xf32> to vector<16x16xf32>
    %894 = vector.broadcast %891 : f32 to vector<16x16xf32>
    %895 = arith.mulf %893, %894 : vector<16x16xf32>
    %896 = arith.addf %890, %895 : vector<16x16xf32>
    %897 = vector.broadcast %691 : f32 to vector<16x16xf32>
    %898 = arith.addf %896, %897 : vector<16x16xf32>
    %899 = arith.maximumf %843, %898 : vector<16x16xf32>
    %900 = vector.extract_strided_slice %899 {offsets = [0, 0], sizes = [8, 16], strides = [1, 1]} : vector<16x16xf32> to vector<8x16xf32>
    %901 = vector.extract_strided_slice %899 {offsets = [8, 0], sizes = [8, 16], strides = [1, 1]} : vector<16x16xf32> to vector<8x16xf32>
    %902 = arith.maximumf %900, %901 : vector<8x16xf32>
    %c56 = arith.constant 56 : index
    %c0_551 = arith.constant 0 : index
    %903 = vector.load %arg12[%c56, %c0_551] : memref<128x16xf32, #tpu.memory_space<vmem>>, vector<8x16xf32>
    tpu.vector_store %arg12[%c56, %c0_551], %902 {strides = array<i32>} : memref<128x16xf32, #tpu.memory_space<vmem>>, vector<8x16xf32>,
    %c4_552 = arith.constant 4 : index
    %904 = memref.load %arg5[%c4_552] : memref<8xf32, #tpu.memory_space<smem>>
    %c39 = arith.constant 39 : index
    %905 = memref.load %arg4[%c39] : memref<72xf32, #tpu.memory_space<smem>>
    %c0_553 = arith.constant 0 : index
    %c0_554 = arith.constant 0 : index
    %c0_555 = arith.constant 0 : index
    %906 = vector.load %arg11[%c0_553, %c0_554, %c0_555] : memref<5x48x16xf32, #tpu.memory_space<vmem>>, vector<1x16x16xf32>
    %907 = vector.shape_cast %906 : vector<1x16x16xf32> to vector<16x16xf32>
    %908 = vector.broadcast %905 : f32 to vector<16x16xf32>
    %909 = arith.mulf %907, %908 : vector<16x16xf32>
    %c40_556 = arith.constant 40 : index
    %910 = memref.load %arg4[%c40_556] : memref<72xf32, #tpu.memory_space<smem>>
    %c0_557 = arith.constant 0 : index
    %c16_558 = arith.constant 16 : index
    %c0_559 = arith.constant 0 : index
    %911 = vector.load %arg11[%c0_557, %c16_558, %c0_559] : memref<5x48x16xf32, #tpu.memory_space<vmem>>, vector<1x16x16xf32>
    %912 = vector.shape_cast %911 : vector<1x16x16xf32> to vector<16x16xf32>
    %913 = vector.broadcast %910 : f32 to vector<16x16xf32>
    %914 = arith.mulf %912, %913 : vector<16x16xf32>
    %915 = arith.addf %909, %914 : vector<16x16xf32>
    %c41 = arith.constant 41 : index
    %916 = memref.load %arg4[%c41] : memref<72xf32, #tpu.memory_space<smem>>
    %c0_560 = arith.constant 0 : index
    %c32_561 = arith.constant 32 : index
    %c0_562 = arith.constant 0 : index
    %917 = vector.load %arg11[%c0_560, %c32_561, %c0_562] : memref<5x48x16xf32, #tpu.memory_space<vmem>>, vector<1x16x16xf32>
    %918 = vector.shape_cast %917 : vector<1x16x16xf32> to vector<16x16xf32>
    %919 = vector.broadcast %916 : f32 to vector<16x16xf32>
    %920 = arith.mulf %918, %919 : vector<16x16xf32>
    %921 = arith.addf %915, %920 : vector<16x16xf32>
    %c42 = arith.constant 42 : index
    %922 = memref.load %arg4[%c42] : memref<72xf32, #tpu.memory_space<smem>>
    %c1_563 = arith.constant 1 : index
    %c0_564 = arith.constant 0 : index
    %c0_565 = arith.constant 0 : index
    %923 = vector.load %arg11[%c1_563, %c0_564, %c0_565] : memref<5x48x16xf32, #tpu.memory_space<vmem>>, vector<1x16x16xf32>
    %924 = vector.shape_cast %923 : vector<1x16x16xf32> to vector<16x16xf32>
    %925 = vector.broadcast %922 : f32 to vector<16x16xf32>
    %926 = arith.mulf %924, %925 : vector<16x16xf32>
    %927 = arith.addf %921, %926 : vector<16x16xf32>
    %c43 = arith.constant 43 : index
    %928 = memref.load %arg4[%c43] : memref<72xf32, #tpu.memory_space<smem>>
    %c1_566 = arith.constant 1 : index
    %c16_567 = arith.constant 16 : index
    %c0_568 = arith.constant 0 : index
    %929 = vector.load %arg11[%c1_566, %c16_567, %c0_568] : memref<5x48x16xf32, #tpu.memory_space<vmem>>, vector<1x16x16xf32>
    %930 = vector.shape_cast %929 : vector<1x16x16xf32> to vector<16x16xf32>
    %931 = vector.broadcast %928 : f32 to vector<16x16xf32>
    %932 = arith.mulf %930, %931 : vector<16x16xf32>
    %933 = arith.addf %927, %932 : vector<16x16xf32>
    %c44 = arith.constant 44 : index
    %934 = memref.load %arg4[%c44] : memref<72xf32, #tpu.memory_space<smem>>
    %c1_569 = arith.constant 1 : index
    %c32_570 = arith.constant 32 : index
    %c0_571 = arith.constant 0 : index
    %935 = vector.load %arg11[%c1_569, %c32_570, %c0_571] : memref<5x48x16xf32, #tpu.memory_space<vmem>>, vector<1x16x16xf32>
    %936 = vector.shape_cast %935 : vector<1x16x16xf32> to vector<16x16xf32>
    %937 = vector.broadcast %934 : f32 to vector<16x16xf32>
    %938 = arith.mulf %936, %937 : vector<16x16xf32>
    %939 = arith.addf %933, %938 : vector<16x16xf32>
    %940 = vector.broadcast %904 : f32 to vector<16x16xf32>
    %941 = arith.addf %939, %940 : vector<16x16xf32>
    %c36 = arith.constant 36 : index
    %942 = memref.load %arg4[%c36] : memref<72xf32, #tpu.memory_space<smem>>
    %c0_572 = arith.constant 0 : index
    %c0_573 = arith.constant 0 : index
    %c0_574 = arith.constant 0 : index
    %943 = vector.load %arg11[%c0_572, %c0_573, %c0_574] : memref<5x48x16xf32, #tpu.memory_space<vmem>>, vector<1x16x16xf32>
    %944 = vector.shape_cast %943 : vector<1x16x16xf32> to vector<16x16xf32>
    %945 = vector.broadcast %942 : f32 to vector<16x16xf32>
    %946 = arith.mulf %944, %945 : vector<16x16xf32>
    %c37 = arith.constant 37 : index
    %947 = memref.load %arg4[%c37] : memref<72xf32, #tpu.memory_space<smem>>
    %c0_575 = arith.constant 0 : index
    %c16_576 = arith.constant 16 : index
    %c0_577 = arith.constant 0 : index
    %948 = vector.load %arg11[%c0_575, %c16_576, %c0_577] : memref<5x48x16xf32, #tpu.memory_space<vmem>>, vector<1x16x16xf32>
    %949 = vector.shape_cast %948 : vector<1x16x16xf32> to vector<16x16xf32>
    %950 = vector.broadcast %947 : f32 to vector<16x16xf32>
    %951 = arith.mulf %949, %950 : vector<16x16xf32>
    %952 = arith.addf %946, %951 : vector<16x16xf32>
    %c38 = arith.constant 38 : index
    %953 = memref.load %arg4[%c38] : memref<72xf32, #tpu.memory_space<smem>>
    %c0_578 = arith.constant 0 : index
    %c32_579 = arith.constant 32 : index
    %c0_580 = arith.constant 0 : index
    %954 = vector.load %arg11[%c0_578, %c32_579, %c0_580] : memref<5x48x16xf32, #tpu.memory_space<vmem>>, vector<1x16x16xf32>
    %955 = vector.shape_cast %954 : vector<1x16x16xf32> to vector<16x16xf32>
    %956 = vector.broadcast %953 : f32 to vector<16x16xf32>
    %957 = arith.mulf %955, %956 : vector<16x16xf32>
    %958 = arith.addf %952, %957 : vector<16x16xf32>
    %c39_581 = arith.constant 39 : index
    %959 = memref.load %arg4[%c39_581] : memref<72xf32, #tpu.memory_space<smem>>
    %c1_582 = arith.constant 1 : index
    %c0_583 = arith.constant 0 : index
    %c0_584 = arith.constant 0 : index
    %960 = vector.load %arg11[%c1_582, %c0_583, %c0_584] : memref<5x48x16xf32, #tpu.memory_space<vmem>>, vector<1x16x16xf32>
    %961 = vector.shape_cast %960 : vector<1x16x16xf32> to vector<16x16xf32>
    %962 = vector.broadcast %959 : f32 to vector<16x16xf32>
    %963 = arith.mulf %961, %962 : vector<16x16xf32>
    %964 = arith.addf %958, %963 : vector<16x16xf32>
    %c40_585 = arith.constant 40 : index
    %965 = memref.load %arg4[%c40_585] : memref<72xf32, #tpu.memory_space<smem>>
    %c1_586 = arith.constant 1 : index
    %c16_587 = arith.constant 16 : index
    %c0_588 = arith.constant 0 : index
    %966 = vector.load %arg11[%c1_586, %c16_587, %c0_588] : memref<5x48x16xf32, #tpu.memory_space<vmem>>, vector<1x16x16xf32>
    %967 = vector.shape_cast %966 : vector<1x16x16xf32> to vector<16x16xf32>
    %968 = vector.broadcast %965 : f32 to vector<16x16xf32>
    %969 = arith.mulf %967, %968 : vector<16x16xf32>
    %970 = arith.addf %964, %969 : vector<16x16xf32>
    %c41_589 = arith.constant 41 : index
    %971 = memref.load %arg4[%c41_589] : memref<72xf32, #tpu.memory_space<smem>>
    %c1_590 = arith.constant 1 : index
    %c32_591 = arith.constant 32 : index
    %c0_592 = arith.constant 0 : index
    %972 = vector.load %arg11[%c1_590, %c32_591, %c0_592] : memref<5x48x16xf32, #tpu.memory_space<vmem>>, vector<1x16x16xf32>
    %973 = vector.shape_cast %972 : vector<1x16x16xf32> to vector<16x16xf32>
    %974 = vector.broadcast %971 : f32 to vector<16x16xf32>
    %975 = arith.mulf %973, %974 : vector<16x16xf32>
    %976 = arith.addf %970, %975 : vector<16x16xf32>
    %c42_593 = arith.constant 42 : index
    %977 = memref.load %arg4[%c42_593] : memref<72xf32, #tpu.memory_space<smem>>
    %c2_594 = arith.constant 2 : index
    %c0_595 = arith.constant 0 : index
    %c0_596 = arith.constant 0 : index
    %978 = vector.load %arg11[%c2_594, %c0_595, %c0_596] : memref<5x48x16xf32, #tpu.memory_space<vmem>>, vector<1x16x16xf32>
    %979 = vector.shape_cast %978 : vector<1x16x16xf32> to vector<16x16xf32>
    %980 = vector.broadcast %977 : f32 to vector<16x16xf32>
    %981 = arith.mulf %979, %980 : vector<16x16xf32>
    %982 = arith.addf %976, %981 : vector<16x16xf32>
    %c43_597 = arith.constant 43 : index
    %983 = memref.load %arg4[%c43_597] : memref<72xf32, #tpu.memory_space<smem>>
    %c2_598 = arith.constant 2 : index
    %c16_599 = arith.constant 16 : index
    %c0_600 = arith.constant 0 : index
    %984 = vector.load %arg11[%c2_598, %c16_599, %c0_600] : memref<5x48x16xf32, #tpu.memory_space<vmem>>, vector<1x16x16xf32>
    %985 = vector.shape_cast %984 : vector<1x16x16xf32> to vector<16x16xf32>
    %986 = vector.broadcast %983 : f32 to vector<16x16xf32>
    %987 = arith.mulf %985, %986 : vector<16x16xf32>
    %988 = arith.addf %982, %987 : vector<16x16xf32>
    %c44_601 = arith.constant 44 : index
    %989 = memref.load %arg4[%c44_601] : memref<72xf32, #tpu.memory_space<smem>>
    %c2_602 = arith.constant 2 : index
    %c32_603 = arith.constant 32 : index
    %c0_604 = arith.constant 0 : index
    %990 = vector.load %arg11[%c2_602, %c32_603, %c0_604] : memref<5x48x16xf32, #tpu.memory_space<vmem>>, vector<1x16x16xf32>
    %991 = vector.shape_cast %990 : vector<1x16x16xf32> to vector<16x16xf32>
    %992 = vector.broadcast %989 : f32 to vector<16x16xf32>
    %993 = arith.mulf %991, %992 : vector<16x16xf32>
    %994 = arith.addf %988, %993 : vector<16x16xf32>
    %995 = vector.broadcast %904 : f32 to vector<16x16xf32>
    %996 = arith.addf %994, %995 : vector<16x16xf32>
    %997 = arith.maximumf %941, %996 : vector<16x16xf32>
    %998 = vector.extract_strided_slice %997 {offsets = [0, 0], sizes = [8, 16], strides = [1, 1]} : vector<16x16xf32> to vector<8x16xf32>
    %999 = vector.extract_strided_slice %997 {offsets = [8, 0], sizes = [8, 16], strides = [1, 1]} : vector<16x16xf32> to vector<8x16xf32>
    %1000 = arith.maximumf %998, %999 : vector<8x16xf32>
    %c64 = arith.constant 64 : index
    %c0_605 = arith.constant 0 : index
    %1001 = vector.load %arg12[%c64, %c0_605] : memref<128x16xf32, #tpu.memory_space<vmem>>, vector<8x16xf32>
    tpu.vector_store %arg12[%c64, %c0_605], %1000 {strides = array<i32>} : memref<128x16xf32, #tpu.memory_space<vmem>>, vector<8x16xf32>,
    %c36_606 = arith.constant 36 : index
    %1002 = memref.load %arg4[%c36_606] : memref<72xf32, #tpu.memory_space<smem>>
    %c1_607 = arith.constant 1 : index
    %c0_608 = arith.constant 0 : index
    %c0_609 = arith.constant 0 : index
    %1003 = vector.load %arg11[%c1_607, %c0_608, %c0_609] : memref<5x48x16xf32, #tpu.memory_space<vmem>>, vector<1x16x16xf32>
    %1004 = vector.shape_cast %1003 : vector<1x16x16xf32> to vector<16x16xf32>
    %1005 = vector.broadcast %1002 : f32 to vector<16x16xf32>
    %1006 = arith.mulf %1004, %1005 : vector<16x16xf32>
    %c37_610 = arith.constant 37 : index
    %1007 = memref.load %arg4[%c37_610] : memref<72xf32, #tpu.memory_space<smem>>
    %c1_611 = arith.constant 1 : index
    %c16_612 = arith.constant 16 : index
    %c0_613 = arith.constant 0 : index
    %1008 = vector.load %arg11[%c1_611, %c16_612, %c0_613] : memref<5x48x16xf32, #tpu.memory_space<vmem>>, vector<1x16x16xf32>
    %1009 = vector.shape_cast %1008 : vector<1x16x16xf32> to vector<16x16xf32>
    %1010 = vector.broadcast %1007 : f32 to vector<16x16xf32>
    %1011 = arith.mulf %1009, %1010 : vector<16x16xf32>
    %1012 = arith.addf %1006, %1011 : vector<16x16xf32>
    %c38_614 = arith.constant 38 : index
    %1013 = memref.load %arg4[%c38_614] : memref<72xf32, #tpu.memory_space<smem>>
    %c1_615 = arith.constant 1 : index
    %c32_616 = arith.constant 32 : index
    %c0_617 = arith.constant 0 : index
    %1014 = vector.load %arg11[%c1_615, %c32_616, %c0_617] : memref<5x48x16xf32, #tpu.memory_space<vmem>>, vector<1x16x16xf32>
    %1015 = vector.shape_cast %1014 : vector<1x16x16xf32> to vector<16x16xf32>
    %1016 = vector.broadcast %1013 : f32 to vector<16x16xf32>
    %1017 = arith.mulf %1015, %1016 : vector<16x16xf32>
    %1018 = arith.addf %1012, %1017 : vector<16x16xf32>
    %c39_618 = arith.constant 39 : index
    %1019 = memref.load %arg4[%c39_618] : memref<72xf32, #tpu.memory_space<smem>>
    %c2_619 = arith.constant 2 : index
    %c0_620 = arith.constant 0 : index
    %c0_621 = arith.constant 0 : index
    %1020 = vector.load %arg11[%c2_619, %c0_620, %c0_621] : memref<5x48x16xf32, #tpu.memory_space<vmem>>, vector<1x16x16xf32>
    %1021 = vector.shape_cast %1020 : vector<1x16x16xf32> to vector<16x16xf32>
    %1022 = vector.broadcast %1019 : f32 to vector<16x16xf32>
    %1023 = arith.mulf %1021, %1022 : vector<16x16xf32>
    %1024 = arith.addf %1018, %1023 : vector<16x16xf32>
    %c40_622 = arith.constant 40 : index
    %1025 = memref.load %arg4[%c40_622] : memref<72xf32, #tpu.memory_space<smem>>
    %c2_623 = arith.constant 2 : index
    %c16_624 = arith.constant 16 : index
    %c0_625 = arith.constant 0 : index
    %1026 = vector.load %arg11[%c2_623, %c16_624, %c0_625] : memref<5x48x16xf32, #tpu.memory_space<vmem>>, vector<1x16x16xf32>
    %1027 = vector.shape_cast %1026 : vector<1x16x16xf32> to vector<16x16xf32>
    %1028 = vector.broadcast %1025 : f32 to vector<16x16xf32>
    %1029 = arith.mulf %1027, %1028 : vector<16x16xf32>
    %1030 = arith.addf %1024, %1029 : vector<16x16xf32>
    %c41_626 = arith.constant 41 : index
    %1031 = memref.load %arg4[%c41_626] : memref<72xf32, #tpu.memory_space<smem>>
    %c2_627 = arith.constant 2 : index
    %c32_628 = arith.constant 32 : index
    %c0_629 = arith.constant 0 : index
    %1032 = vector.load %arg11[%c2_627, %c32_628, %c0_629] : memref<5x48x16xf32, #tpu.memory_space<vmem>>, vector<1x16x16xf32>
    %1033 = vector.shape_cast %1032 : vector<1x16x16xf32> to vector<16x16xf32>
    %1034 = vector.broadcast %1031 : f32 to vector<16x16xf32>
    %1035 = arith.mulf %1033, %1034 : vector<16x16xf32>
    %1036 = arith.addf %1030, %1035 : vector<16x16xf32>
    %c42_630 = arith.constant 42 : index
    %1037 = memref.load %arg4[%c42_630] : memref<72xf32, #tpu.memory_space<smem>>
    %c3_631 = arith.constant 3 : index
    %c0_632 = arith.constant 0 : index
    %c0_633 = arith.constant 0 : index
    %1038 = vector.load %arg11[%c3_631, %c0_632, %c0_633] : memref<5x48x16xf32, #tpu.memory_space<vmem>>, vector<1x16x16xf32>
    %1039 = vector.shape_cast %1038 : vector<1x16x16xf32> to vector<16x16xf32>
    %1040 = vector.broadcast %1037 : f32 to vector<16x16xf32>
    %1041 = arith.mulf %1039, %1040 : vector<16x16xf32>
    %1042 = arith.addf %1036, %1041 : vector<16x16xf32>
    %c43_634 = arith.constant 43 : index
    %1043 = memref.load %arg4[%c43_634] : memref<72xf32, #tpu.memory_space<smem>>
    %c3_635 = arith.constant 3 : index
    %c16_636 = arith.constant 16 : index
    %c0_637 = arith.constant 0 : index
    %1044 = vector.load %arg11[%c3_635, %c16_636, %c0_637] : memref<5x48x16xf32, #tpu.memory_space<vmem>>, vector<1x16x16xf32>
    %1045 = vector.shape_cast %1044 : vector<1x16x16xf32> to vector<16x16xf32>
    %1046 = vector.broadcast %1043 : f32 to vector<16x16xf32>
    %1047 = arith.mulf %1045, %1046 : vector<16x16xf32>
    %1048 = arith.addf %1042, %1047 : vector<16x16xf32>
    %c44_638 = arith.constant 44 : index
    %1049 = memref.load %arg4[%c44_638] : memref<72xf32, #tpu.memory_space<smem>>
    %c3_639 = arith.constant 3 : index
    %c32_640 = arith.constant 32 : index
    %c0_641 = arith.constant 0 : index
    %1050 = vector.load %arg11[%c3_639, %c32_640, %c0_641] : memref<5x48x16xf32, #tpu.memory_space<vmem>>, vector<1x16x16xf32>
    %1051 = vector.shape_cast %1050 : vector<1x16x16xf32> to vector<16x16xf32>
    %1052 = vector.broadcast %1049 : f32 to vector<16x16xf32>
    %1053 = arith.mulf %1051, %1052 : vector<16x16xf32>
    %1054 = arith.addf %1048, %1053 : vector<16x16xf32>
    %1055 = vector.broadcast %904 : f32 to vector<16x16xf32>
    %1056 = arith.addf %1054, %1055 : vector<16x16xf32>
    %c36_642 = arith.constant 36 : index
    %1057 = memref.load %arg4[%c36_642] : memref<72xf32, #tpu.memory_space<smem>>
    %c2_643 = arith.constant 2 : index
    %c0_644 = arith.constant 0 : index
    %c0_645 = arith.constant 0 : index
    %1058 = vector.load %arg11[%c2_643, %c0_644, %c0_645] : memref<5x48x16xf32, #tpu.memory_space<vmem>>, vector<1x16x16xf32>
    %1059 = vector.shape_cast %1058 : vector<1x16x16xf32> to vector<16x16xf32>
    %1060 = vector.broadcast %1057 : f32 to vector<16x16xf32>
    %1061 = arith.mulf %1059, %1060 : vector<16x16xf32>
    %c37_646 = arith.constant 37 : index
    %1062 = memref.load %arg4[%c37_646] : memref<72xf32, #tpu.memory_space<smem>>
    %c2_647 = arith.constant 2 : index
    %c16_648 = arith.constant 16 : index
    %c0_649 = arith.constant 0 : index
    %1063 = vector.load %arg11[%c2_647, %c16_648, %c0_649] : memref<5x48x16xf32, #tpu.memory_space<vmem>>, vector<1x16x16xf32>
    %1064 = vector.shape_cast %1063 : vector<1x16x16xf32> to vector<16x16xf32>
    %1065 = vector.broadcast %1062 : f32 to vector<16x16xf32>
    %1066 = arith.mulf %1064, %1065 : vector<16x16xf32>
    %1067 = arith.addf %1061, %1066 : vector<16x16xf32>
    %c38_650 = arith.constant 38 : index
    %1068 = memref.load %arg4[%c38_650] : memref<72xf32, #tpu.memory_space<smem>>
    %c2_651 = arith.constant 2 : index
    %c32_652 = arith.constant 32 : index
    %c0_653 = arith.constant 0 : index
    %1069 = vector.load %arg11[%c2_651, %c32_652, %c0_653] : memref<5x48x16xf32, #tpu.memory_space<vmem>>, vector<1x16x16xf32>
    %1070 = vector.shape_cast %1069 : vector<1x16x16xf32> to vector<16x16xf32>
    %1071 = vector.broadcast %1068 : f32 to vector<16x16xf32>
    %1072 = arith.mulf %1070, %1071 : vector<16x16xf32>
    %1073 = arith.addf %1067, %1072 : vector<16x16xf32>
    %c39_654 = arith.constant 39 : index
    %1074 = memref.load %arg4[%c39_654] : memref<72xf32, #tpu.memory_space<smem>>
    %c3_655 = arith.constant 3 : index
    %c0_656 = arith.constant 0 : index
    %c0_657 = arith.constant 0 : index
    %1075 = vector.load %arg11[%c3_655, %c0_656, %c0_657] : memref<5x48x16xf32, #tpu.memory_space<vmem>>, vector<1x16x16xf32>
    %1076 = vector.shape_cast %1075 : vector<1x16x16xf32> to vector<16x16xf32>
    %1077 = vector.broadcast %1074 : f32 to vector<16x16xf32>
    %1078 = arith.mulf %1076, %1077 : vector<16x16xf32>
    %1079 = arith.addf %1073, %1078 : vector<16x16xf32>
    %c40_658 = arith.constant 40 : index
    %1080 = memref.load %arg4[%c40_658] : memref<72xf32, #tpu.memory_space<smem>>
    %c3_659 = arith.constant 3 : index
    %c16_660 = arith.constant 16 : index
    %c0_661 = arith.constant 0 : index
    %1081 = vector.load %arg11[%c3_659, %c16_660, %c0_661] : memref<5x48x16xf32, #tpu.memory_space<vmem>>, vector<1x16x16xf32>
    %1082 = vector.shape_cast %1081 : vector<1x16x16xf32> to vector<16x16xf32>
    %1083 = vector.broadcast %1080 : f32 to vector<16x16xf32>
    %1084 = arith.mulf %1082, %1083 : vector<16x16xf32>
    %1085 = arith.addf %1079, %1084 : vector<16x16xf32>
    %c41_662 = arith.constant 41 : index
    %1086 = memref.load %arg4[%c41_662] : memref<72xf32, #tpu.memory_space<smem>>
    %c3_663 = arith.constant 3 : index
    %c32_664 = arith.constant 32 : index
    %c0_665 = arith.constant 0 : index
    %1087 = vector.load %arg11[%c3_663, %c32_664, %c0_665] : memref<5x48x16xf32, #tpu.memory_space<vmem>>, vector<1x16x16xf32>
    %1088 = vector.shape_cast %1087 : vector<1x16x16xf32> to vector<16x16xf32>
    %1089 = vector.broadcast %1086 : f32 to vector<16x16xf32>
    %1090 = arith.mulf %1088, %1089 : vector<16x16xf32>
    %1091 = arith.addf %1085, %1090 : vector<16x16xf32>
    %c42_666 = arith.constant 42 : index
    %1092 = memref.load %arg4[%c42_666] : memref<72xf32, #tpu.memory_space<smem>>
    %c4_667 = arith.constant 4 : index
    %c0_668 = arith.constant 0 : index
    %c0_669 = arith.constant 0 : index
    %1093 = vector.load %arg11[%c4_667, %c0_668, %c0_669] : memref<5x48x16xf32, #tpu.memory_space<vmem>>, vector<1x16x16xf32>
    %1094 = vector.shape_cast %1093 : vector<1x16x16xf32> to vector<16x16xf32>
    %1095 = vector.broadcast %1092 : f32 to vector<16x16xf32>
    %1096 = arith.mulf %1094, %1095 : vector<16x16xf32>
    %1097 = arith.addf %1091, %1096 : vector<16x16xf32>
    %c43_670 = arith.constant 43 : index
    %1098 = memref.load %arg4[%c43_670] : memref<72xf32, #tpu.memory_space<smem>>
    %c4_671 = arith.constant 4 : index
    %c16_672 = arith.constant 16 : index
    %c0_673 = arith.constant 0 : index
    %1099 = vector.load %arg11[%c4_671, %c16_672, %c0_673] : memref<5x48x16xf32, #tpu.memory_space<vmem>>, vector<1x16x16xf32>
    %1100 = vector.shape_cast %1099 : vector<1x16x16xf32> to vector<16x16xf32>
    %1101 = vector.broadcast %1098 : f32 to vector<16x16xf32>
    %1102 = arith.mulf %1100, %1101 : vector<16x16xf32>
    %1103 = arith.addf %1097, %1102 : vector<16x16xf32>
    %c44_674 = arith.constant 44 : index
    %1104 = memref.load %arg4[%c44_674] : memref<72xf32, #tpu.memory_space<smem>>
    %c4_675 = arith.constant 4 : index
    %c32_676 = arith.constant 32 : index
    %c0_677 = arith.constant 0 : index
    %1105 = vector.load %arg11[%c4_675, %c32_676, %c0_677] : memref<5x48x16xf32, #tpu.memory_space<vmem>>, vector<1x16x16xf32>
    %1106 = vector.shape_cast %1105 : vector<1x16x16xf32> to vector<16x16xf32>
    %1107 = vector.broadcast %1104 : f32 to vector<16x16xf32>
    %1108 = arith.mulf %1106, %1107 : vector<16x16xf32>
    %1109 = arith.addf %1103, %1108 : vector<16x16xf32>
    %1110 = vector.broadcast %904 : f32 to vector<16x16xf32>
    %1111 = arith.addf %1109, %1110 : vector<16x16xf32>
    %1112 = arith.maximumf %1056, %1111 : vector<16x16xf32>
    %1113 = vector.extract_strided_slice %1112 {offsets = [0, 0], sizes = [8, 16], strides = [1, 1]} : vector<16x16xf32> to vector<8x16xf32>
    %1114 = vector.extract_strided_slice %1112 {offsets = [8, 0], sizes = [8, 16], strides = [1, 1]} : vector<16x16xf32> to vector<8x16xf32>
    %1115 = arith.maximumf %1113, %1114 : vector<8x16xf32>
    %c72 = arith.constant 72 : index
    %c0_678 = arith.constant 0 : index
    %1116 = vector.load %arg12[%c72, %c0_678] : memref<128x16xf32, #tpu.memory_space<vmem>>, vector<8x16xf32>
    tpu.vector_store %arg12[%c72, %c0_678], %1115 {strides = array<i32>} : memref<128x16xf32, #tpu.memory_space<vmem>>, vector<8x16xf32>,
    %c5_679 = arith.constant 5 : index
    %1117 = memref.load %arg5[%c5_679] : memref<8xf32, #tpu.memory_space<smem>>
    %c48_680 = arith.constant 48 : index
    %1118 = memref.load %arg4[%c48_680] : memref<72xf32, #tpu.memory_space<smem>>
    %c0_681 = arith.constant 0 : index
    %c0_682 = arith.constant 0 : index
    %c0_683 = arith.constant 0 : index
    %1119 = vector.load %arg11[%c0_681, %c0_682, %c0_683] : memref<5x48x16xf32, #tpu.memory_space<vmem>>, vector<1x16x16xf32>
    %1120 = vector.shape_cast %1119 : vector<1x16x16xf32> to vector<16x16xf32>
    %1121 = vector.broadcast %1118 : f32 to vector<16x16xf32>
    %1122 = arith.mulf %1120, %1121 : vector<16x16xf32>
    %c49 = arith.constant 49 : index
    %1123 = memref.load %arg4[%c49] : memref<72xf32, #tpu.memory_space<smem>>
    %c0_684 = arith.constant 0 : index
    %c16_685 = arith.constant 16 : index
    %c0_686 = arith.constant 0 : index
    %1124 = vector.load %arg11[%c0_684, %c16_685, %c0_686] : memref<5x48x16xf32, #tpu.memory_space<vmem>>, vector<1x16x16xf32>
    %1125 = vector.shape_cast %1124 : vector<1x16x16xf32> to vector<16x16xf32>
    %1126 = vector.broadcast %1123 : f32 to vector<16x16xf32>
    %1127 = arith.mulf %1125, %1126 : vector<16x16xf32>
    %1128 = arith.addf %1122, %1127 : vector<16x16xf32>
    %c50 = arith.constant 50 : index
    %1129 = memref.load %arg4[%c50] : memref<72xf32, #tpu.memory_space<smem>>
    %c0_687 = arith.constant 0 : index
    %c32_688 = arith.constant 32 : index
    %c0_689 = arith.constant 0 : index
    %1130 = vector.load %arg11[%c0_687, %c32_688, %c0_689] : memref<5x48x16xf32, #tpu.memory_space<vmem>>, vector<1x16x16xf32>
    %1131 = vector.shape_cast %1130 : vector<1x16x16xf32> to vector<16x16xf32>
    %1132 = vector.broadcast %1129 : f32 to vector<16x16xf32>
    %1133 = arith.mulf %1131, %1132 : vector<16x16xf32>
    %1134 = arith.addf %1128, %1133 : vector<16x16xf32>
    %c51 = arith.constant 51 : index
    %1135 = memref.load %arg4[%c51] : memref<72xf32, #tpu.memory_space<smem>>
    %c1_690 = arith.constant 1 : index
    %c0_691 = arith.constant 0 : index
    %c0_692 = arith.constant 0 : index
    %1136 = vector.load %arg11[%c1_690, %c0_691, %c0_692] : memref<5x48x16xf32, #tpu.memory_space<vmem>>, vector<1x16x16xf32>
    %1137 = vector.shape_cast %1136 : vector<1x16x16xf32> to vector<16x16xf32>
    %1138 = vector.broadcast %1135 : f32 to vector<16x16xf32>
    %1139 = arith.mulf %1137, %1138 : vector<16x16xf32>
    %1140 = arith.addf %1134, %1139 : vector<16x16xf32>
    %c52 = arith.constant 52 : index
    %1141 = memref.load %arg4[%c52] : memref<72xf32, #tpu.memory_space<smem>>
    %c1_693 = arith.constant 1 : index
    %c16_694 = arith.constant 16 : index
    %c0_695 = arith.constant 0 : index
    %1142 = vector.load %arg11[%c1_693, %c16_694, %c0_695] : memref<5x48x16xf32, #tpu.memory_space<vmem>>, vector<1x16x16xf32>
    %1143 = vector.shape_cast %1142 : vector<1x16x16xf32> to vector<16x16xf32>
    %1144 = vector.broadcast %1141 : f32 to vector<16x16xf32>
    %1145 = arith.mulf %1143, %1144 : vector<16x16xf32>
    %1146 = arith.addf %1140, %1145 : vector<16x16xf32>
    %c53 = arith.constant 53 : index
    %1147 = memref.load %arg4[%c53] : memref<72xf32, #tpu.memory_space<smem>>
    %c1_696 = arith.constant 1 : index
    %c32_697 = arith.constant 32 : index
    %c0_698 = arith.constant 0 : index
    %1148 = vector.load %arg11[%c1_696, %c32_697, %c0_698] : memref<5x48x16xf32, #tpu.memory_space<vmem>>, vector<1x16x16xf32>
    %1149 = vector.shape_cast %1148 : vector<1x16x16xf32> to vector<16x16xf32>
    %1150 = vector.broadcast %1147 : f32 to vector<16x16xf32>
    %1151 = arith.mulf %1149, %1150 : vector<16x16xf32>
    %1152 = arith.addf %1146, %1151 : vector<16x16xf32>
    %1153 = vector.broadcast %1117 : f32 to vector<16x16xf32>
    %1154 = arith.addf %1152, %1153 : vector<16x16xf32>
    %c45 = arith.constant 45 : index
    %1155 = memref.load %arg4[%c45] : memref<72xf32, #tpu.memory_space<smem>>
    %c0_699 = arith.constant 0 : index
    %c0_700 = arith.constant 0 : index
    %c0_701 = arith.constant 0 : index
    %1156 = vector.load %arg11[%c0_699, %c0_700, %c0_701] : memref<5x48x16xf32, #tpu.memory_space<vmem>>, vector<1x16x16xf32>
    %1157 = vector.shape_cast %1156 : vector<1x16x16xf32> to vector<16x16xf32>
    %1158 = vector.broadcast %1155 : f32 to vector<16x16xf32>
    %1159 = arith.mulf %1157, %1158 : vector<16x16xf32>
    %c46 = arith.constant 46 : index
    %1160 = memref.load %arg4[%c46] : memref<72xf32, #tpu.memory_space<smem>>
    %c0_702 = arith.constant 0 : index
    %c16_703 = arith.constant 16 : index
    %c0_704 = arith.constant 0 : index
    %1161 = vector.load %arg11[%c0_702, %c16_703, %c0_704] : memref<5x48x16xf32, #tpu.memory_space<vmem>>, vector<1x16x16xf32>
    %1162 = vector.shape_cast %1161 : vector<1x16x16xf32> to vector<16x16xf32>
    %1163 = vector.broadcast %1160 : f32 to vector<16x16xf32>
    %1164 = arith.mulf %1162, %1163 : vector<16x16xf32>
    %1165 = arith.addf %1159, %1164 : vector<16x16xf32>
    %c47 = arith.constant 47 : index
    %1166 = memref.load %arg4[%c47] : memref<72xf32, #tpu.memory_space<smem>>
    %c0_705 = arith.constant 0 : index
    %c32_706 = arith.constant 32 : index
    %c0_707 = arith.constant 0 : index
    %1167 = vector.load %arg11[%c0_705, %c32_706, %c0_707] : memref<5x48x16xf32, #tpu.memory_space<vmem>>, vector<1x16x16xf32>
    %1168 = vector.shape_cast %1167 : vector<1x16x16xf32> to vector<16x16xf32>
    %1169 = vector.broadcast %1166 : f32 to vector<16x16xf32>
    %1170 = arith.mulf %1168, %1169 : vector<16x16xf32>
    %1171 = arith.addf %1165, %1170 : vector<16x16xf32>
    %c48_708 = arith.constant 48 : index
    %1172 = memref.load %arg4[%c48_708] : memref<72xf32, #tpu.memory_space<smem>>
    %c1_709 = arith.constant 1 : index
    %c0_710 = arith.constant 0 : index
    %c0_711 = arith.constant 0 : index
    %1173 = vector.load %arg11[%c1_709, %c0_710, %c0_711] : memref<5x48x16xf32, #tpu.memory_space<vmem>>, vector<1x16x16xf32>
    %1174 = vector.shape_cast %1173 : vector<1x16x16xf32> to vector<16x16xf32>
    %1175 = vector.broadcast %1172 : f32 to vector<16x16xf32>
    %1176 = arith.mulf %1174, %1175 : vector<16x16xf32>
    %1177 = arith.addf %1171, %1176 : vector<16x16xf32>
    %c49_712 = arith.constant 49 : index
    %1178 = memref.load %arg4[%c49_712] : memref<72xf32, #tpu.memory_space<smem>>
    %c1_713 = arith.constant 1 : index
    %c16_714 = arith.constant 16 : index
    %c0_715 = arith.constant 0 : index
    %1179 = vector.load %arg11[%c1_713, %c16_714, %c0_715] : memref<5x48x16xf32, #tpu.memory_space<vmem>>, vector<1x16x16xf32>
    %1180 = vector.shape_cast %1179 : vector<1x16x16xf32> to vector<16x16xf32>
    %1181 = vector.broadcast %1178 : f32 to vector<16x16xf32>
    %1182 = arith.mulf %1180, %1181 : vector<16x16xf32>
    %1183 = arith.addf %1177, %1182 : vector<16x16xf32>
    %c50_716 = arith.constant 50 : index
    %1184 = memref.load %arg4[%c50_716] : memref<72xf32, #tpu.memory_space<smem>>
    %c1_717 = arith.constant 1 : index
    %c32_718 = arith.constant 32 : index
    %c0_719 = arith.constant 0 : index
    %1185 = vector.load %arg11[%c1_717, %c32_718, %c0_719] : memref<5x48x16xf32, #tpu.memory_space<vmem>>, vector<1x16x16xf32>
    %1186 = vector.shape_cast %1185 : vector<1x16x16xf32> to vector<16x16xf32>
    %1187 = vector.broadcast %1184 : f32 to vector<16x16xf32>
    %1188 = arith.mulf %1186, %1187 : vector<16x16xf32>
    %1189 = arith.addf %1183, %1188 : vector<16x16xf32>
    %c51_720 = arith.constant 51 : index
    %1190 = memref.load %arg4[%c51_720] : memref<72xf32, #tpu.memory_space<smem>>
    %c2_721 = arith.constant 2 : index
    %c0_722 = arith.constant 0 : index
    %c0_723 = arith.constant 0 : index
    %1191 = vector.load %arg11[%c2_721, %c0_722, %c0_723] : memref<5x48x16xf32, #tpu.memory_space<vmem>>, vector<1x16x16xf32>
    %1192 = vector.shape_cast %1191 : vector<1x16x16xf32> to vector<16x16xf32>
    %1193 = vector.broadcast %1190 : f32 to vector<16x16xf32>
    %1194 = arith.mulf %1192, %1193 : vector<16x16xf32>
    %1195 = arith.addf %1189, %1194 : vector<16x16xf32>
    %c52_724 = arith.constant 52 : index
    %1196 = memref.load %arg4[%c52_724] : memref<72xf32, #tpu.memory_space<smem>>
    %c2_725 = arith.constant 2 : index
    %c16_726 = arith.constant 16 : index
    %c0_727 = arith.constant 0 : index
    %1197 = vector.load %arg11[%c2_725, %c16_726, %c0_727] : memref<5x48x16xf32, #tpu.memory_space<vmem>>, vector<1x16x16xf32>
    %1198 = vector.shape_cast %1197 : vector<1x16x16xf32> to vector<16x16xf32>
    %1199 = vector.broadcast %1196 : f32 to vector<16x16xf32>
    %1200 = arith.mulf %1198, %1199 : vector<16x16xf32>
    %1201 = arith.addf %1195, %1200 : vector<16x16xf32>
    %c53_728 = arith.constant 53 : index
    %1202 = memref.load %arg4[%c53_728] : memref<72xf32, #tpu.memory_space<smem>>
    %c2_729 = arith.constant 2 : index
    %c32_730 = arith.constant 32 : index
    %c0_731 = arith.constant 0 : index
    %1203 = vector.load %arg11[%c2_729, %c32_730, %c0_731] : memref<5x48x16xf32, #tpu.memory_space<vmem>>, vector<1x16x16xf32>
    %1204 = vector.shape_cast %1203 : vector<1x16x16xf32> to vector<16x16xf32>
    %1205 = vector.broadcast %1202 : f32 to vector<16x16xf32>
    %1206 = arith.mulf %1204, %1205 : vector<16x16xf32>
    %1207 = arith.addf %1201, %1206 : vector<16x16xf32>
    %1208 = vector.broadcast %1117 : f32 to vector<16x16xf32>
    %1209 = arith.addf %1207, %1208 : vector<16x16xf32>
    %1210 = arith.maximumf %1154, %1209 : vector<16x16xf32>
    %1211 = vector.extract_strided_slice %1210 {offsets = [0, 0], sizes = [8, 16], strides = [1, 1]} : vector<16x16xf32> to vector<8x16xf32>
    %1212 = vector.extract_strided_slice %1210 {offsets = [8, 0], sizes = [8, 16], strides = [1, 1]} : vector<16x16xf32> to vector<8x16xf32>
    %1213 = arith.maximumf %1211, %1212 : vector<8x16xf32>
    %c80 = arith.constant 80 : index
    %c0_732 = arith.constant 0 : index
    %1214 = vector.load %arg12[%c80, %c0_732] : memref<128x16xf32, #tpu.memory_space<vmem>>, vector<8x16xf32>
    tpu.vector_store %arg12[%c80, %c0_732], %1213 {strides = array<i32>} : memref<128x16xf32, #tpu.memory_space<vmem>>, vector<8x16xf32>,
    %c45_733 = arith.constant 45 : index
    %1215 = memref.load %arg4[%c45_733] : memref<72xf32, #tpu.memory_space<smem>>
    %c1_734 = arith.constant 1 : index
    %c0_735 = arith.constant 0 : index
    %c0_736 = arith.constant 0 : index
    %1216 = vector.load %arg11[%c1_734, %c0_735, %c0_736] : memref<5x48x16xf32, #tpu.memory_space<vmem>>, vector<1x16x16xf32>
    %1217 = vector.shape_cast %1216 : vector<1x16x16xf32> to vector<16x16xf32>
    %1218 = vector.broadcast %1215 : f32 to vector<16x16xf32>
    %1219 = arith.mulf %1217, %1218 : vector<16x16xf32>
    %c46_737 = arith.constant 46 : index
    %1220 = memref.load %arg4[%c46_737] : memref<72xf32, #tpu.memory_space<smem>>
    %c1_738 = arith.constant 1 : index
    %c16_739 = arith.constant 16 : index
    %c0_740 = arith.constant 0 : index
    %1221 = vector.load %arg11[%c1_738, %c16_739, %c0_740] : memref<5x48x16xf32, #tpu.memory_space<vmem>>, vector<1x16x16xf32>
    %1222 = vector.shape_cast %1221 : vector<1x16x16xf32> to vector<16x16xf32>
    %1223 = vector.broadcast %1220 : f32 to vector<16x16xf32>
    %1224 = arith.mulf %1222, %1223 : vector<16x16xf32>
    %1225 = arith.addf %1219, %1224 : vector<16x16xf32>
    %c47_741 = arith.constant 47 : index
    %1226 = memref.load %arg4[%c47_741] : memref<72xf32, #tpu.memory_space<smem>>
    %c1_742 = arith.constant 1 : index
    %c32_743 = arith.constant 32 : index
    %c0_744 = arith.constant 0 : index
    %1227 = vector.load %arg11[%c1_742, %c32_743, %c0_744] : memref<5x48x16xf32, #tpu.memory_space<vmem>>, vector<1x16x16xf32>
    %1228 = vector.shape_cast %1227 : vector<1x16x16xf32> to vector<16x16xf32>
    %1229 = vector.broadcast %1226 : f32 to vector<16x16xf32>
    %1230 = arith.mulf %1228, %1229 : vector<16x16xf32>
    %1231 = arith.addf %1225, %1230 : vector<16x16xf32>
    %c48_745 = arith.constant 48 : index
    %1232 = memref.load %arg4[%c48_745] : memref<72xf32, #tpu.memory_space<smem>>
    %c2_746 = arith.constant 2 : index
    %c0_747 = arith.constant 0 : index
    %c0_748 = arith.constant 0 : index
    %1233 = vector.load %arg11[%c2_746, %c0_747, %c0_748] : memref<5x48x16xf32, #tpu.memory_space<vmem>>, vector<1x16x16xf32>
    %1234 = vector.shape_cast %1233 : vector<1x16x16xf32> to vector<16x16xf32>
    %1235 = vector.broadcast %1232 : f32 to vector<16x16xf32>
    %1236 = arith.mulf %1234, %1235 : vector<16x16xf32>
    %1237 = arith.addf %1231, %1236 : vector<16x16xf32>
    %c49_749 = arith.constant 49 : index
    %1238 = memref.load %arg4[%c49_749] : memref<72xf32, #tpu.memory_space<smem>>
    %c2_750 = arith.constant 2 : index
    %c16_751 = arith.constant 16 : index
    %c0_752 = arith.constant 0 : index
    %1239 = vector.load %arg11[%c2_750, %c16_751, %c0_752] : memref<5x48x16xf32, #tpu.memory_space<vmem>>, vector<1x16x16xf32>
    %1240 = vector.shape_cast %1239 : vector<1x16x16xf32> to vector<16x16xf32>
    %1241 = vector.broadcast %1238 : f32 to vector<16x16xf32>
    %1242 = arith.mulf %1240, %1241 : vector<16x16xf32>
    %1243 = arith.addf %1237, %1242 : vector<16x16xf32>
    %c50_753 = arith.constant 50 : index
    %1244 = memref.load %arg4[%c50_753] : memref<72xf32, #tpu.memory_space<smem>>
    %c2_754 = arith.constant 2 : index
    %c32_755 = arith.constant 32 : index
    %c0_756 = arith.constant 0 : index
    %1245 = vector.load %arg11[%c2_754, %c32_755, %c0_756] : memref<5x48x16xf32, #tpu.memory_space<vmem>>, vector<1x16x16xf32>
    %1246 = vector.shape_cast %1245 : vector<1x16x16xf32> to vector<16x16xf32>
    %1247 = vector.broadcast %1244 : f32 to vector<16x16xf32>
    %1248 = arith.mulf %1246, %1247 : vector<16x16xf32>
    %1249 = arith.addf %1243, %1248 : vector<16x16xf32>
    %c51_757 = arith.constant 51 : index
    %1250 = memref.load %arg4[%c51_757] : memref<72xf32, #tpu.memory_space<smem>>
    %c3_758 = arith.constant 3 : index
    %c0_759 = arith.constant 0 : index
    %c0_760 = arith.constant 0 : index
    %1251 = vector.load %arg11[%c3_758, %c0_759, %c0_760] : memref<5x48x16xf32, #tpu.memory_space<vmem>>, vector<1x16x16xf32>
    %1252 = vector.shape_cast %1251 : vector<1x16x16xf32> to vector<16x16xf32>
    %1253 = vector.broadcast %1250 : f32 to vector<16x16xf32>
    %1254 = arith.mulf %1252, %1253 : vector<16x16xf32>
    %1255 = arith.addf %1249, %1254 : vector<16x16xf32>
    %c52_761 = arith.constant 52 : index
    %1256 = memref.load %arg4[%c52_761] : memref<72xf32, #tpu.memory_space<smem>>
    %c3_762 = arith.constant 3 : index
    %c16_763 = arith.constant 16 : index
    %c0_764 = arith.constant 0 : index
    %1257 = vector.load %arg11[%c3_762, %c16_763, %c0_764] : memref<5x48x16xf32, #tpu.memory_space<vmem>>, vector<1x16x16xf32>
    %1258 = vector.shape_cast %1257 : vector<1x16x16xf32> to vector<16x16xf32>
    %1259 = vector.broadcast %1256 : f32 to vector<16x16xf32>
    %1260 = arith.mulf %1258, %1259 : vector<16x16xf32>
    %1261 = arith.addf %1255, %1260 : vector<16x16xf32>
    %c53_765 = arith.constant 53 : index
    %1262 = memref.load %arg4[%c53_765] : memref<72xf32, #tpu.memory_space<smem>>
    %c3_766 = arith.constant 3 : index
    %c32_767 = arith.constant 32 : index
    %c0_768 = arith.constant 0 : index
    %1263 = vector.load %arg11[%c3_766, %c32_767, %c0_768] : memref<5x48x16xf32, #tpu.memory_space<vmem>>, vector<1x16x16xf32>
    %1264 = vector.shape_cast %1263 : vector<1x16x16xf32> to vector<16x16xf32>
    %1265 = vector.broadcast %1262 : f32 to vector<16x16xf32>
    %1266 = arith.mulf %1264, %1265 : vector<16x16xf32>
    %1267 = arith.addf %1261, %1266 : vector<16x16xf32>
    %1268 = vector.broadcast %1117 : f32 to vector<16x16xf32>
    %1269 = arith.addf %1267, %1268 : vector<16x16xf32>
    %c45_769 = arith.constant 45 : index
    %1270 = memref.load %arg4[%c45_769] : memref<72xf32, #tpu.memory_space<smem>>
    %c2_770 = arith.constant 2 : index
    %c0_771 = arith.constant 0 : index
    %c0_772 = arith.constant 0 : index
    %1271 = vector.load %arg11[%c2_770, %c0_771, %c0_772] : memref<5x48x16xf32, #tpu.memory_space<vmem>>, vector<1x16x16xf32>
    %1272 = vector.shape_cast %1271 : vector<1x16x16xf32> to vector<16x16xf32>
    %1273 = vector.broadcast %1270 : f32 to vector<16x16xf32>
    %1274 = arith.mulf %1272, %1273 : vector<16x16xf32>
    %c46_773 = arith.constant 46 : index
    %1275 = memref.load %arg4[%c46_773] : memref<72xf32, #tpu.memory_space<smem>>
    %c2_774 = arith.constant 2 : index
    %c16_775 = arith.constant 16 : index
    %c0_776 = arith.constant 0 : index
    %1276 = vector.load %arg11[%c2_774, %c16_775, %c0_776] : memref<5x48x16xf32, #tpu.memory_space<vmem>>, vector<1x16x16xf32>
    %1277 = vector.shape_cast %1276 : vector<1x16x16xf32> to vector<16x16xf32>
    %1278 = vector.broadcast %1275 : f32 to vector<16x16xf32>
    %1279 = arith.mulf %1277, %1278 : vector<16x16xf32>
    %1280 = arith.addf %1274, %1279 : vector<16x16xf32>
    %c47_777 = arith.constant 47 : index
    %1281 = memref.load %arg4[%c47_777] : memref<72xf32, #tpu.memory_space<smem>>
    %c2_778 = arith.constant 2 : index
    %c32_779 = arith.constant 32 : index
    %c0_780 = arith.constant 0 : index
    %1282 = vector.load %arg11[%c2_778, %c32_779, %c0_780] : memref<5x48x16xf32, #tpu.memory_space<vmem>>, vector<1x16x16xf32>
    %1283 = vector.shape_cast %1282 : vector<1x16x16xf32> to vector<16x16xf32>
    %1284 = vector.broadcast %1281 : f32 to vector<16x16xf32>
    %1285 = arith.mulf %1283, %1284 : vector<16x16xf32>
    %1286 = arith.addf %1280, %1285 : vector<16x16xf32>
    %c48_781 = arith.constant 48 : index
    %1287 = memref.load %arg4[%c48_781] : memref<72xf32, #tpu.memory_space<smem>>
    %c3_782 = arith.constant 3 : index
    %c0_783 = arith.constant 0 : index
    %c0_784 = arith.constant 0 : index
    %1288 = vector.load %arg11[%c3_782, %c0_783, %c0_784] : memref<5x48x16xf32, #tpu.memory_space<vmem>>, vector<1x16x16xf32>
    %1289 = vector.shape_cast %1288 : vector<1x16x16xf32> to vector<16x16xf32>
    %1290 = vector.broadcast %1287 : f32 to vector<16x16xf32>
    %1291 = arith.mulf %1289, %1290 : vector<16x16xf32>
    %1292 = arith.addf %1286, %1291 : vector<16x16xf32>
    %c49_785 = arith.constant 49 : index
    %1293 = memref.load %arg4[%c49_785] : memref<72xf32, #tpu.memory_space<smem>>
    %c3_786 = arith.constant 3 : index
    %c16_787 = arith.constant 16 : index
    %c0_788 = arith.constant 0 : index
    %1294 = vector.load %arg11[%c3_786, %c16_787, %c0_788] : memref<5x48x16xf32, #tpu.memory_space<vmem>>, vector<1x16x16xf32>
    %1295 = vector.shape_cast %1294 : vector<1x16x16xf32> to vector<16x16xf32>
    %1296 = vector.broadcast %1293 : f32 to vector<16x16xf32>
    %1297 = arith.mulf %1295, %1296 : vector<16x16xf32>
    %1298 = arith.addf %1292, %1297 : vector<16x16xf32>
    %c50_789 = arith.constant 50 : index
    %1299 = memref.load %arg4[%c50_789] : memref<72xf32, #tpu.memory_space<smem>>
    %c3_790 = arith.constant 3 : index
    %c32_791 = arith.constant 32 : index
    %c0_792 = arith.constant 0 : index
    %1300 = vector.load %arg11[%c3_790, %c32_791, %c0_792] : memref<5x48x16xf32, #tpu.memory_space<vmem>>, vector<1x16x16xf32>
    %1301 = vector.shape_cast %1300 : vector<1x16x16xf32> to vector<16x16xf32>
    %1302 = vector.broadcast %1299 : f32 to vector<16x16xf32>
    %1303 = arith.mulf %1301, %1302 : vector<16x16xf32>
    %1304 = arith.addf %1298, %1303 : vector<16x16xf32>
    %c51_793 = arith.constant 51 : index
    %1305 = memref.load %arg4[%c51_793] : memref<72xf32, #tpu.memory_space<smem>>
    %c4_794 = arith.constant 4 : index
    %c0_795 = arith.constant 0 : index
    %c0_796 = arith.constant 0 : index
    %1306 = vector.load %arg11[%c4_794, %c0_795, %c0_796] : memref<5x48x16xf32, #tpu.memory_space<vmem>>, vector<1x16x16xf32>
    %1307 = vector.shape_cast %1306 : vector<1x16x16xf32> to vector<16x16xf32>
    %1308 = vector.broadcast %1305 : f32 to vector<16x16xf32>
    %1309 = arith.mulf %1307, %1308 : vector<16x16xf32>
    %1310 = arith.addf %1304, %1309 : vector<16x16xf32>
    %c52_797 = arith.constant 52 : index
    %1311 = memref.load %arg4[%c52_797] : memref<72xf32, #tpu.memory_space<smem>>
    %c4_798 = arith.constant 4 : index
    %c16_799 = arith.constant 16 : index
    %c0_800 = arith.constant 0 : index
    %1312 = vector.load %arg11[%c4_798, %c16_799, %c0_800] : memref<5x48x16xf32, #tpu.memory_space<vmem>>, vector<1x16x16xf32>
    %1313 = vector.shape_cast %1312 : vector<1x16x16xf32> to vector<16x16xf32>
    %1314 = vector.broadcast %1311 : f32 to vector<16x16xf32>
    %1315 = arith.mulf %1313, %1314 : vector<16x16xf32>
    %1316 = arith.addf %1310, %1315 : vector<16x16xf32>
    %c53_801 = arith.constant 53 : index
    %1317 = memref.load %arg4[%c53_801] : memref<72xf32, #tpu.memory_space<smem>>
    %c4_802 = arith.constant 4 : index
    %c32_803 = arith.constant 32 : index
    %c0_804 = arith.constant 0 : index
    %1318 = vector.load %arg11[%c4_802, %c32_803, %c0_804] : memref<5x48x16xf32, #tpu.memory_space<vmem>>, vector<1x16x16xf32>
    %1319 = vector.shape_cast %1318 : vector<1x16x16xf32> to vector<16x16xf32>
    %1320 = vector.broadcast %1317 : f32 to vector<16x16xf32>
    %1321 = arith.mulf %1319, %1320 : vector<16x16xf32>
    %1322 = arith.addf %1316, %1321 : vector<16x16xf32>
    %1323 = vector.broadcast %1117 : f32 to vector<16x16xf32>
    %1324 = arith.addf %1322, %1323 : vector<16x16xf32>
    %1325 = arith.maximumf %1269, %1324 : vector<16x16xf32>
    %1326 = vector.extract_strided_slice %1325 {offsets = [0, 0], sizes = [8, 16], strides = [1, 1]} : vector<16x16xf32> to vector<8x16xf32>
    %1327 = vector.extract_strided_slice %1325 {offsets = [8, 0], sizes = [8, 16], strides = [1, 1]} : vector<16x16xf32> to vector<8x16xf32>
    %1328 = arith.maximumf %1326, %1327 : vector<8x16xf32>
    %c88 = arith.constant 88 : index
    %c0_805 = arith.constant 0 : index
    %1329 = vector.load %arg12[%c88, %c0_805] : memref<128x16xf32, #tpu.memory_space<vmem>>, vector<8x16xf32>
    tpu.vector_store %arg12[%c88, %c0_805], %1328 {strides = array<i32>} : memref<128x16xf32, #tpu.memory_space<vmem>>, vector<8x16xf32>,
    %c6_806 = arith.constant 6 : index
    %1330 = memref.load %arg5[%c6_806] : memref<8xf32, #tpu.memory_space<smem>>
    %c57 = arith.constant 57 : index
    %1331 = memref.load %arg4[%c57] : memref<72xf32, #tpu.memory_space<smem>>
    %c0_807 = arith.constant 0 : index
    %c0_808 = arith.constant 0 : index
    %c0_809 = arith.constant 0 : index
    %1332 = vector.load %arg11[%c0_807, %c0_808, %c0_809] : memref<5x48x16xf32, #tpu.memory_space<vmem>>, vector<1x16x16xf32>
    %1333 = vector.shape_cast %1332 : vector<1x16x16xf32> to vector<16x16xf32>
    %1334 = vector.broadcast %1331 : f32 to vector<16x16xf32>
    %1335 = arith.mulf %1333, %1334 : vector<16x16xf32>
    %c58 = arith.constant 58 : index
    %1336 = memref.load %arg4[%c58] : memref<72xf32, #tpu.memory_space<smem>>
    %c0_810 = arith.constant 0 : index
    %c16_811 = arith.constant 16 : index
    %c0_812 = arith.constant 0 : index
    %1337 = vector.load %arg11[%c0_810, %c16_811, %c0_812] : memref<5x48x16xf32, #tpu.memory_space<vmem>>, vector<1x16x16xf32>
    %1338 = vector.shape_cast %1337 : vector<1x16x16xf32> to vector<16x16xf32>
    %1339 = vector.broadcast %1336 : f32 to vector<16x16xf32>
    %1340 = arith.mulf %1338, %1339 : vector<16x16xf32>
    %1341 = arith.addf %1335, %1340 : vector<16x16xf32>
    %c59 = arith.constant 59 : index
    %1342 = memref.load %arg4[%c59] : memref<72xf32, #tpu.memory_space<smem>>
    %c0_813 = arith.constant 0 : index
    %c32_814 = arith.constant 32 : index
    %c0_815 = arith.constant 0 : index
    %1343 = vector.load %arg11[%c0_813, %c32_814, %c0_815] : memref<5x48x16xf32, #tpu.memory_space<vmem>>, vector<1x16x16xf32>
    %1344 = vector.shape_cast %1343 : vector<1x16x16xf32> to vector<16x16xf32>
    %1345 = vector.broadcast %1342 : f32 to vector<16x16xf32>
    %1346 = arith.mulf %1344, %1345 : vector<16x16xf32>
    %1347 = arith.addf %1341, %1346 : vector<16x16xf32>
    %c60 = arith.constant 60 : index
    %1348 = memref.load %arg4[%c60] : memref<72xf32, #tpu.memory_space<smem>>
    %c1_816 = arith.constant 1 : index
    %c0_817 = arith.constant 0 : index
    %c0_818 = arith.constant 0 : index
    %1349 = vector.load %arg11[%c1_816, %c0_817, %c0_818] : memref<5x48x16xf32, #tpu.memory_space<vmem>>, vector<1x16x16xf32>
    %1350 = vector.shape_cast %1349 : vector<1x16x16xf32> to vector<16x16xf32>
    %1351 = vector.broadcast %1348 : f32 to vector<16x16xf32>
    %1352 = arith.mulf %1350, %1351 : vector<16x16xf32>
    %1353 = arith.addf %1347, %1352 : vector<16x16xf32>
    %c61 = arith.constant 61 : index
    %1354 = memref.load %arg4[%c61] : memref<72xf32, #tpu.memory_space<smem>>
    %c1_819 = arith.constant 1 : index
    %c16_820 = arith.constant 16 : index
    %c0_821 = arith.constant 0 : index
    %1355 = vector.load %arg11[%c1_819, %c16_820, %c0_821] : memref<5x48x16xf32, #tpu.memory_space<vmem>>, vector<1x16x16xf32>
    %1356 = vector.shape_cast %1355 : vector<1x16x16xf32> to vector<16x16xf32>
    %1357 = vector.broadcast %1354 : f32 to vector<16x16xf32>
    %1358 = arith.mulf %1356, %1357 : vector<16x16xf32>
    %1359 = arith.addf %1353, %1358 : vector<16x16xf32>
    %c62 = arith.constant 62 : index
    %1360 = memref.load %arg4[%c62] : memref<72xf32, #tpu.memory_space<smem>>
    %c1_822 = arith.constant 1 : index
    %c32_823 = arith.constant 32 : index
    %c0_824 = arith.constant 0 : index
    %1361 = vector.load %arg11[%c1_822, %c32_823, %c0_824] : memref<5x48x16xf32, #tpu.memory_space<vmem>>, vector<1x16x16xf32>
    %1362 = vector.shape_cast %1361 : vector<1x16x16xf32> to vector<16x16xf32>
    %1363 = vector.broadcast %1360 : f32 to vector<16x16xf32>
    %1364 = arith.mulf %1362, %1363 : vector<16x16xf32>
    %1365 = arith.addf %1359, %1364 : vector<16x16xf32>
    %1366 = vector.broadcast %1330 : f32 to vector<16x16xf32>
    %1367 = arith.addf %1365, %1366 : vector<16x16xf32>
    %c54 = arith.constant 54 : index
    %1368 = memref.load %arg4[%c54] : memref<72xf32, #tpu.memory_space<smem>>
    %c0_825 = arith.constant 0 : index
    %c0_826 = arith.constant 0 : index
    %c0_827 = arith.constant 0 : index
    %1369 = vector.load %arg11[%c0_825, %c0_826, %c0_827] : memref<5x48x16xf32, #tpu.memory_space<vmem>>, vector<1x16x16xf32>
    %1370 = vector.shape_cast %1369 : vector<1x16x16xf32> to vector<16x16xf32>
    %1371 = vector.broadcast %1368 : f32 to vector<16x16xf32>
    %1372 = arith.mulf %1370, %1371 : vector<16x16xf32>
    %c55 = arith.constant 55 : index
    %1373 = memref.load %arg4[%c55] : memref<72xf32, #tpu.memory_space<smem>>
    %c0_828 = arith.constant 0 : index
    %c16_829 = arith.constant 16 : index
    %c0_830 = arith.constant 0 : index
    %1374 = vector.load %arg11[%c0_828, %c16_829, %c0_830] : memref<5x48x16xf32, #tpu.memory_space<vmem>>, vector<1x16x16xf32>
    %1375 = vector.shape_cast %1374 : vector<1x16x16xf32> to vector<16x16xf32>
    %1376 = vector.broadcast %1373 : f32 to vector<16x16xf32>
    %1377 = arith.mulf %1375, %1376 : vector<16x16xf32>
    %1378 = arith.addf %1372, %1377 : vector<16x16xf32>
    %c56_831 = arith.constant 56 : index
    %1379 = memref.load %arg4[%c56_831] : memref<72xf32, #tpu.memory_space<smem>>
    %c0_832 = arith.constant 0 : index
    %c32_833 = arith.constant 32 : index
    %c0_834 = arith.constant 0 : index
    %1380 = vector.load %arg11[%c0_832, %c32_833, %c0_834] : memref<5x48x16xf32, #tpu.memory_space<vmem>>, vector<1x16x16xf32>
    %1381 = vector.shape_cast %1380 : vector<1x16x16xf32> to vector<16x16xf32>
    %1382 = vector.broadcast %1379 : f32 to vector<16x16xf32>
    %1383 = arith.mulf %1381, %1382 : vector<16x16xf32>
    %1384 = arith.addf %1378, %1383 : vector<16x16xf32>
    %c57_835 = arith.constant 57 : index
    %1385 = memref.load %arg4[%c57_835] : memref<72xf32, #tpu.memory_space<smem>>
    %c1_836 = arith.constant 1 : index
    %c0_837 = arith.constant 0 : index
    %c0_838 = arith.constant 0 : index
    %1386 = vector.load %arg11[%c1_836, %c0_837, %c0_838] : memref<5x48x16xf32, #tpu.memory_space<vmem>>, vector<1x16x16xf32>
    %1387 = vector.shape_cast %1386 : vector<1x16x16xf32> to vector<16x16xf32>
    %1388 = vector.broadcast %1385 : f32 to vector<16x16xf32>
    %1389 = arith.mulf %1387, %1388 : vector<16x16xf32>
    %1390 = arith.addf %1384, %1389 : vector<16x16xf32>
    %c58_839 = arith.constant 58 : index
    %1391 = memref.load %arg4[%c58_839] : memref<72xf32, #tpu.memory_space<smem>>
    %c1_840 = arith.constant 1 : index
    %c16_841 = arith.constant 16 : index
    %c0_842 = arith.constant 0 : index
    %1392 = vector.load %arg11[%c1_840, %c16_841, %c0_842] : memref<5x48x16xf32, #tpu.memory_space<vmem>>, vector<1x16x16xf32>
    %1393 = vector.shape_cast %1392 : vector<1x16x16xf32> to vector<16x16xf32>
    %1394 = vector.broadcast %1391 : f32 to vector<16x16xf32>
    %1395 = arith.mulf %1393, %1394 : vector<16x16xf32>
    %1396 = arith.addf %1390, %1395 : vector<16x16xf32>
    %c59_843 = arith.constant 59 : index
    %1397 = memref.load %arg4[%c59_843] : memref<72xf32, #tpu.memory_space<smem>>
    %c1_844 = arith.constant 1 : index
    %c32_845 = arith.constant 32 : index
    %c0_846 = arith.constant 0 : index
    %1398 = vector.load %arg11[%c1_844, %c32_845, %c0_846] : memref<5x48x16xf32, #tpu.memory_space<vmem>>, vector<1x16x16xf32>
    %1399 = vector.shape_cast %1398 : vector<1x16x16xf32> to vector<16x16xf32>
    %1400 = vector.broadcast %1397 : f32 to vector<16x16xf32>
    %1401 = arith.mulf %1399, %1400 : vector<16x16xf32>
    %1402 = arith.addf %1396, %1401 : vector<16x16xf32>
    %c60_847 = arith.constant 60 : index
    %1403 = memref.load %arg4[%c60_847] : memref<72xf32, #tpu.memory_space<smem>>
    %c2_848 = arith.constant 2 : index
    %c0_849 = arith.constant 0 : index
    %c0_850 = arith.constant 0 : index
    %1404 = vector.load %arg11[%c2_848, %c0_849, %c0_850] : memref<5x48x16xf32, #tpu.memory_space<vmem>>, vector<1x16x16xf32>
    %1405 = vector.shape_cast %1404 : vector<1x16x16xf32> to vector<16x16xf32>
    %1406 = vector.broadcast %1403 : f32 to vector<16x16xf32>
    %1407 = arith.mulf %1405, %1406 : vector<16x16xf32>
    %1408 = arith.addf %1402, %1407 : vector<16x16xf32>
    %c61_851 = arith.constant 61 : index
    %1409 = memref.load %arg4[%c61_851] : memref<72xf32, #tpu.memory_space<smem>>
    %c2_852 = arith.constant 2 : index
    %c16_853 = arith.constant 16 : index
    %c0_854 = arith.constant 0 : index
    %1410 = vector.load %arg11[%c2_852, %c16_853, %c0_854] : memref<5x48x16xf32, #tpu.memory_space<vmem>>, vector<1x16x16xf32>
    %1411 = vector.shape_cast %1410 : vector<1x16x16xf32> to vector<16x16xf32>
    %1412 = vector.broadcast %1409 : f32 to vector<16x16xf32>
    %1413 = arith.mulf %1411, %1412 : vector<16x16xf32>
    %1414 = arith.addf %1408, %1413 : vector<16x16xf32>
    %c62_855 = arith.constant 62 : index
    %1415 = memref.load %arg4[%c62_855] : memref<72xf32, #tpu.memory_space<smem>>
    %c2_856 = arith.constant 2 : index
    %c32_857 = arith.constant 32 : index
    %c0_858 = arith.constant 0 : index
    %1416 = vector.load %arg11[%c2_856, %c32_857, %c0_858] : memref<5x48x16xf32, #tpu.memory_space<vmem>>, vector<1x16x16xf32>
    %1417 = vector.shape_cast %1416 : vector<1x16x16xf32> to vector<16x16xf32>
    %1418 = vector.broadcast %1415 : f32 to vector<16x16xf32>
    %1419 = arith.mulf %1417, %1418 : vector<16x16xf32>
    %1420 = arith.addf %1414, %1419 : vector<16x16xf32>
    %1421 = vector.broadcast %1330 : f32 to vector<16x16xf32>
    %1422 = arith.addf %1420, %1421 : vector<16x16xf32>
    %1423 = arith.maximumf %1367, %1422 : vector<16x16xf32>
    %1424 = vector.extract_strided_slice %1423 {offsets = [0, 0], sizes = [8, 16], strides = [1, 1]} : vector<16x16xf32> to vector<8x16xf32>
    %1425 = vector.extract_strided_slice %1423 {offsets = [8, 0], sizes = [8, 16], strides = [1, 1]} : vector<16x16xf32> to vector<8x16xf32>
    %1426 = arith.maximumf %1424, %1425 : vector<8x16xf32>
    %c96 = arith.constant 96 : index
    %c0_859 = arith.constant 0 : index
    %1427 = vector.load %arg12[%c96, %c0_859] : memref<128x16xf32, #tpu.memory_space<vmem>>, vector<8x16xf32>
    tpu.vector_store %arg12[%c96, %c0_859], %1426 {strides = array<i32>} : memref<128x16xf32, #tpu.memory_space<vmem>>, vector<8x16xf32>,
    %c54_860 = arith.constant 54 : index
    %1428 = memref.load %arg4[%c54_860] : memref<72xf32, #tpu.memory_space<smem>>
    %c1_861 = arith.constant 1 : index
    %c0_862 = arith.constant 0 : index
    %c0_863 = arith.constant 0 : index
    %1429 = vector.load %arg11[%c1_861, %c0_862, %c0_863] : memref<5x48x16xf32, #tpu.memory_space<vmem>>, vector<1x16x16xf32>
    %1430 = vector.shape_cast %1429 : vector<1x16x16xf32> to vector<16x16xf32>
    %1431 = vector.broadcast %1428 : f32 to vector<16x16xf32>
    %1432 = arith.mulf %1430, %1431 : vector<16x16xf32>
    %c55_864 = arith.constant 55 : index
    %1433 = memref.load %arg4[%c55_864] : memref<72xf32, #tpu.memory_space<smem>>
    %c1_865 = arith.constant 1 : index
    %c16_866 = arith.constant 16 : index
    %c0_867 = arith.constant 0 : index
    %1434 = vector.load %arg11[%c1_865, %c16_866, %c0_867] : memref<5x48x16xf32, #tpu.memory_space<vmem>>, vector<1x16x16xf32>
    %1435 = vector.shape_cast %1434 : vector<1x16x16xf32> to vector<16x16xf32>
    %1436 = vector.broadcast %1433 : f32 to vector<16x16xf32>
    %1437 = arith.mulf %1435, %1436 : vector<16x16xf32>
    %1438 = arith.addf %1432, %1437 : vector<16x16xf32>
    %c56_868 = arith.constant 56 : index
    %1439 = memref.load %arg4[%c56_868] : memref<72xf32, #tpu.memory_space<smem>>
    %c1_869 = arith.constant 1 : index
    %c32_870 = arith.constant 32 : index
    %c0_871 = arith.constant 0 : index
    %1440 = vector.load %arg11[%c1_869, %c32_870, %c0_871] : memref<5x48x16xf32, #tpu.memory_space<vmem>>, vector<1x16x16xf32>
    %1441 = vector.shape_cast %1440 : vector<1x16x16xf32> to vector<16x16xf32>
    %1442 = vector.broadcast %1439 : f32 to vector<16x16xf32>
    %1443 = arith.mulf %1441, %1442 : vector<16x16xf32>
    %1444 = arith.addf %1438, %1443 : vector<16x16xf32>
    %c57_872 = arith.constant 57 : index
    %1445 = memref.load %arg4[%c57_872] : memref<72xf32, #tpu.memory_space<smem>>
    %c2_873 = arith.constant 2 : index
    %c0_874 = arith.constant 0 : index
    %c0_875 = arith.constant 0 : index
    %1446 = vector.load %arg11[%c2_873, %c0_874, %c0_875] : memref<5x48x16xf32, #tpu.memory_space<vmem>>, vector<1x16x16xf32>
    %1447 = vector.shape_cast %1446 : vector<1x16x16xf32> to vector<16x16xf32>
    %1448 = vector.broadcast %1445 : f32 to vector<16x16xf32>
    %1449 = arith.mulf %1447, %1448 : vector<16x16xf32>
    %1450 = arith.addf %1444, %1449 : vector<16x16xf32>
    %c58_876 = arith.constant 58 : index
    %1451 = memref.load %arg4[%c58_876] : memref<72xf32, #tpu.memory_space<smem>>
    %c2_877 = arith.constant 2 : index
    %c16_878 = arith.constant 16 : index
    %c0_879 = arith.constant 0 : index
    %1452 = vector.load %arg11[%c2_877, %c16_878, %c0_879] : memref<5x48x16xf32, #tpu.memory_space<vmem>>, vector<1x16x16xf32>
    %1453 = vector.shape_cast %1452 : vector<1x16x16xf32> to vector<16x16xf32>
    %1454 = vector.broadcast %1451 : f32 to vector<16x16xf32>
    %1455 = arith.mulf %1453, %1454 : vector<16x16xf32>
    %1456 = arith.addf %1450, %1455 : vector<16x16xf32>
    %c59_880 = arith.constant 59 : index
    %1457 = memref.load %arg4[%c59_880] : memref<72xf32, #tpu.memory_space<smem>>
    %c2_881 = arith.constant 2 : index
    %c32_882 = arith.constant 32 : index
    %c0_883 = arith.constant 0 : index
    %1458 = vector.load %arg11[%c2_881, %c32_882, %c0_883] : memref<5x48x16xf32, #tpu.memory_space<vmem>>, vector<1x16x16xf32>
    %1459 = vector.shape_cast %1458 : vector<1x16x16xf32> to vector<16x16xf32>
    %1460 = vector.broadcast %1457 : f32 to vector<16x16xf32>
    %1461 = arith.mulf %1459, %1460 : vector<16x16xf32>
    %1462 = arith.addf %1456, %1461 : vector<16x16xf32>
    %c60_884 = arith.constant 60 : index
    %1463 = memref.load %arg4[%c60_884] : memref<72xf32, #tpu.memory_space<smem>>
    %c3_885 = arith.constant 3 : index
    %c0_886 = arith.constant 0 : index
    %c0_887 = arith.constant 0 : index
    %1464 = vector.load %arg11[%c3_885, %c0_886, %c0_887] : memref<5x48x16xf32, #tpu.memory_space<vmem>>, vector<1x16x16xf32>
    %1465 = vector.shape_cast %1464 : vector<1x16x16xf32> to vector<16x16xf32>
    %1466 = vector.broadcast %1463 : f32 to vector<16x16xf32>
    %1467 = arith.mulf %1465, %1466 : vector<16x16xf32>
    %1468 = arith.addf %1462, %1467 : vector<16x16xf32>
    %c61_888 = arith.constant 61 : index
    %1469 = memref.load %arg4[%c61_888] : memref<72xf32, #tpu.memory_space<smem>>
    %c3_889 = arith.constant 3 : index
    %c16_890 = arith.constant 16 : index
    %c0_891 = arith.constant 0 : index
    %1470 = vector.load %arg11[%c3_889, %c16_890, %c0_891] : memref<5x48x16xf32, #tpu.memory_space<vmem>>, vector<1x16x16xf32>
    %1471 = vector.shape_cast %1470 : vector<1x16x16xf32> to vector<16x16xf32>
    %1472 = vector.broadcast %1469 : f32 to vector<16x16xf32>
    %1473 = arith.mulf %1471, %1472 : vector<16x16xf32>
    %1474 = arith.addf %1468, %1473 : vector<16x16xf32>
    %c62_892 = arith.constant 62 : index
    %1475 = memref.load %arg4[%c62_892] : memref<72xf32, #tpu.memory_space<smem>>
    %c3_893 = arith.constant 3 : index
    %c32_894 = arith.constant 32 : index
    %c0_895 = arith.constant 0 : index
    %1476 = vector.load %arg11[%c3_893, %c32_894, %c0_895] : memref<5x48x16xf32, #tpu.memory_space<vmem>>, vector<1x16x16xf32>
    %1477 = vector.shape_cast %1476 : vector<1x16x16xf32> to vector<16x16xf32>
    %1478 = vector.broadcast %1475 : f32 to vector<16x16xf32>
    %1479 = arith.mulf %1477, %1478 : vector<16x16xf32>
    %1480 = arith.addf %1474, %1479 : vector<16x16xf32>
    %1481 = vector.broadcast %1330 : f32 to vector<16x16xf32>
    %1482 = arith.addf %1480, %1481 : vector<16x16xf32>
    %c54_896 = arith.constant 54 : index
    %1483 = memref.load %arg4[%c54_896] : memref<72xf32, #tpu.memory_space<smem>>
    %c2_897 = arith.constant 2 : index
    %c0_898 = arith.constant 0 : index
    %c0_899 = arith.constant 0 : index
    %1484 = vector.load %arg11[%c2_897, %c0_898, %c0_899] : memref<5x48x16xf32, #tpu.memory_space<vmem>>, vector<1x16x16xf32>
    %1485 = vector.shape_cast %1484 : vector<1x16x16xf32> to vector<16x16xf32>
    %1486 = vector.broadcast %1483 : f32 to vector<16x16xf32>
    %1487 = arith.mulf %1485, %1486 : vector<16x16xf32>
    %c55_900 = arith.constant 55 : index
    %1488 = memref.load %arg4[%c55_900] : memref<72xf32, #tpu.memory_space<smem>>
    %c2_901 = arith.constant 2 : index
    %c16_902 = arith.constant 16 : index
    %c0_903 = arith.constant 0 : index
    %1489 = vector.load %arg11[%c2_901, %c16_902, %c0_903] : memref<5x48x16xf32, #tpu.memory_space<vmem>>, vector<1x16x16xf32>
    %1490 = vector.shape_cast %1489 : vector<1x16x16xf32> to vector<16x16xf32>
    %1491 = vector.broadcast %1488 : f32 to vector<16x16xf32>
    %1492 = arith.mulf %1490, %1491 : vector<16x16xf32>
    %1493 = arith.addf %1487, %1492 : vector<16x16xf32>
    %c56_904 = arith.constant 56 : index
    %1494 = memref.load %arg4[%c56_904] : memref<72xf32, #tpu.memory_space<smem>>
    %c2_905 = arith.constant 2 : index
    %c32_906 = arith.constant 32 : index
    %c0_907 = arith.constant 0 : index
    %1495 = vector.load %arg11[%c2_905, %c32_906, %c0_907] : memref<5x48x16xf32, #tpu.memory_space<vmem>>, vector<1x16x16xf32>
    %1496 = vector.shape_cast %1495 : vector<1x16x16xf32> to vector<16x16xf32>
    %1497 = vector.broadcast %1494 : f32 to vector<16x16xf32>
    %1498 = arith.mulf %1496, %1497 : vector<16x16xf32>
    %1499 = arith.addf %1493, %1498 : vector<16x16xf32>
    %c57_908 = arith.constant 57 : index
    %1500 = memref.load %arg4[%c57_908] : memref<72xf32, #tpu.memory_space<smem>>
    %c3_909 = arith.constant 3 : index
    %c0_910 = arith.constant 0 : index
    %c0_911 = arith.constant 0 : index
    %1501 = vector.load %arg11[%c3_909, %c0_910, %c0_911] : memref<5x48x16xf32, #tpu.memory_space<vmem>>, vector<1x16x16xf32>
    %1502 = vector.shape_cast %1501 : vector<1x16x16xf32> to vector<16x16xf32>
    %1503 = vector.broadcast %1500 : f32 to vector<16x16xf32>
    %1504 = arith.mulf %1502, %1503 : vector<16x16xf32>
    %1505 = arith.addf %1499, %1504 : vector<16x16xf32>
    %c58_912 = arith.constant 58 : index
    %1506 = memref.load %arg4[%c58_912] : memref<72xf32, #tpu.memory_space<smem>>
    %c3_913 = arith.constant 3 : index
    %c16_914 = arith.constant 16 : index
    %c0_915 = arith.constant 0 : index
    %1507 = vector.load %arg11[%c3_913, %c16_914, %c0_915] : memref<5x48x16xf32, #tpu.memory_space<vmem>>, vector<1x16x16xf32>
    %1508 = vector.shape_cast %1507 : vector<1x16x16xf32> to vector<16x16xf32>
    %1509 = vector.broadcast %1506 : f32 to vector<16x16xf32>
    %1510 = arith.mulf %1508, %1509 : vector<16x16xf32>
    %1511 = arith.addf %1505, %1510 : vector<16x16xf32>
    %c59_916 = arith.constant 59 : index
    %1512 = memref.load %arg4[%c59_916] : memref<72xf32, #tpu.memory_space<smem>>
    %c3_917 = arith.constant 3 : index
    %c32_918 = arith.constant 32 : index
    %c0_919 = arith.constant 0 : index
    %1513 = vector.load %arg11[%c3_917, %c32_918, %c0_919] : memref<5x48x16xf32, #tpu.memory_space<vmem>>, vector<1x16x16xf32>
    %1514 = vector.shape_cast %1513 : vector<1x16x16xf32> to vector<16x16xf32>
    %1515 = vector.broadcast %1512 : f32 to vector<16x16xf32>
    %1516 = arith.mulf %1514, %1515 : vector<16x16xf32>
    %1517 = arith.addf %1511, %1516 : vector<16x16xf32>
    %c60_920 = arith.constant 60 : index
    %1518 = memref.load %arg4[%c60_920] : memref<72xf32, #tpu.memory_space<smem>>
    %c4_921 = arith.constant 4 : index
    %c0_922 = arith.constant 0 : index
    %c0_923 = arith.constant 0 : index
    %1519 = vector.load %arg11[%c4_921, %c0_922, %c0_923] : memref<5x48x16xf32, #tpu.memory_space<vmem>>, vector<1x16x16xf32>
    %1520 = vector.shape_cast %1519 : vector<1x16x16xf32> to vector<16x16xf32>
    %1521 = vector.broadcast %1518 : f32 to vector<16x16xf32>
    %1522 = arith.mulf %1520, %1521 : vector<16x16xf32>
    %1523 = arith.addf %1517, %1522 : vector<16x16xf32>
    %c61_924 = arith.constant 61 : index
    %1524 = memref.load %arg4[%c61_924] : memref<72xf32, #tpu.memory_space<smem>>
    %c4_925 = arith.constant 4 : index
    %c16_926 = arith.constant 16 : index
    %c0_927 = arith.constant 0 : index
    %1525 = vector.load %arg11[%c4_925, %c16_926, %c0_927] : memref<5x48x16xf32, #tpu.memory_space<vmem>>, vector<1x16x16xf32>
    %1526 = vector.shape_cast %1525 : vector<1x16x16xf32> to vector<16x16xf32>
    %1527 = vector.broadcast %1524 : f32 to vector<16x16xf32>
    %1528 = arith.mulf %1526, %1527 : vector<16x16xf32>
    %1529 = arith.addf %1523, %1528 : vector<16x16xf32>
    %c62_928 = arith.constant 62 : index
    %1530 = memref.load %arg4[%c62_928] : memref<72xf32, #tpu.memory_space<smem>>
    %c4_929 = arith.constant 4 : index
    %c32_930 = arith.constant 32 : index
    %c0_931 = arith.constant 0 : index
    %1531 = vector.load %arg11[%c4_929, %c32_930, %c0_931] : memref<5x48x16xf32, #tpu.memory_space<vmem>>, vector<1x16x16xf32>
    %1532 = vector.shape_cast %1531 : vector<1x16x16xf32> to vector<16x16xf32>
    %1533 = vector.broadcast %1530 : f32 to vector<16x16xf32>
    %1534 = arith.mulf %1532, %1533 : vector<16x16xf32>
    %1535 = arith.addf %1529, %1534 : vector<16x16xf32>
    %1536 = vector.broadcast %1330 : f32 to vector<16x16xf32>
    %1537 = arith.addf %1535, %1536 : vector<16x16xf32>
    %1538 = arith.maximumf %1482, %1537 : vector<16x16xf32>
    %1539 = vector.extract_strided_slice %1538 {offsets = [0, 0], sizes = [8, 16], strides = [1, 1]} : vector<16x16xf32> to vector<8x16xf32>
    %1540 = vector.extract_strided_slice %1538 {offsets = [8, 0], sizes = [8, 16], strides = [1, 1]} : vector<16x16xf32> to vector<8x16xf32>
    %1541 = arith.maximumf %1539, %1540 : vector<8x16xf32>
    %c104 = arith.constant 104 : index
    %c0_932 = arith.constant 0 : index
    %1542 = vector.load %arg12[%c104, %c0_932] : memref<128x16xf32, #tpu.memory_space<vmem>>, vector<8x16xf32>
    tpu.vector_store %arg12[%c104, %c0_932], %1541 {strides = array<i32>} : memref<128x16xf32, #tpu.memory_space<vmem>>, vector<8x16xf32>,
    %c7_933 = arith.constant 7 : index
    %1543 = memref.load %arg5[%c7_933] : memref<8xf32, #tpu.memory_space<smem>>
    %c66 = arith.constant 66 : index
    %1544 = memref.load %arg4[%c66] : memref<72xf32, #tpu.memory_space<smem>>
    %c0_934 = arith.constant 0 : index
    %c0_935 = arith.constant 0 : index
    %c0_936 = arith.constant 0 : index
    %1545 = vector.load %arg11[%c0_934, %c0_935, %c0_936] : memref<5x48x16xf32, #tpu.memory_space<vmem>>, vector<1x16x16xf32>
    %1546 = vector.shape_cast %1545 : vector<1x16x16xf32> to vector<16x16xf32>
    %1547 = vector.broadcast %1544 : f32 to vector<16x16xf32>
    %1548 = arith.mulf %1546, %1547 : vector<16x16xf32>
    %c67 = arith.constant 67 : index
    %1549 = memref.load %arg4[%c67] : memref<72xf32, #tpu.memory_space<smem>>
    %c0_937 = arith.constant 0 : index
    %c16_938 = arith.constant 16 : index
    %c0_939 = arith.constant 0 : index
    %1550 = vector.load %arg11[%c0_937, %c16_938, %c0_939] : memref<5x48x16xf32, #tpu.memory_space<vmem>>, vector<1x16x16xf32>
    %1551 = vector.shape_cast %1550 : vector<1x16x16xf32> to vector<16x16xf32>
    %1552 = vector.broadcast %1549 : f32 to vector<16x16xf32>
    %1553 = arith.mulf %1551, %1552 : vector<16x16xf32>
    %1554 = arith.addf %1548, %1553 : vector<16x16xf32>
    %c68 = arith.constant 68 : index
    %1555 = memref.load %arg4[%c68] : memref<72xf32, #tpu.memory_space<smem>>
    %c0_940 = arith.constant 0 : index
    %c32_941 = arith.constant 32 : index
    %c0_942 = arith.constant 0 : index
    %1556 = vector.load %arg11[%c0_940, %c32_941, %c0_942] : memref<5x48x16xf32, #tpu.memory_space<vmem>>, vector<1x16x16xf32>
    %1557 = vector.shape_cast %1556 : vector<1x16x16xf32> to vector<16x16xf32>
    %1558 = vector.broadcast %1555 : f32 to vector<16x16xf32>
    %1559 = arith.mulf %1557, %1558 : vector<16x16xf32>
    %1560 = arith.addf %1554, %1559 : vector<16x16xf32>
    %c69 = arith.constant 69 : index
    %1561 = memref.load %arg4[%c69] : memref<72xf32, #tpu.memory_space<smem>>
    %c1_943 = arith.constant 1 : index
    %c0_944 = arith.constant 0 : index
    %c0_945 = arith.constant 0 : index
    %1562 = vector.load %arg11[%c1_943, %c0_944, %c0_945] : memref<5x48x16xf32, #tpu.memory_space<vmem>>, vector<1x16x16xf32>
    %1563 = vector.shape_cast %1562 : vector<1x16x16xf32> to vector<16x16xf32>
    %1564 = vector.broadcast %1561 : f32 to vector<16x16xf32>
    %1565 = arith.mulf %1563, %1564 : vector<16x16xf32>
    %1566 = arith.addf %1560, %1565 : vector<16x16xf32>
    %c70 = arith.constant 70 : index
    %1567 = memref.load %arg4[%c70] : memref<72xf32, #tpu.memory_space<smem>>
    %c1_946 = arith.constant 1 : index
    %c16_947 = arith.constant 16 : index
    %c0_948 = arith.constant 0 : index
    %1568 = vector.load %arg11[%c1_946, %c16_947, %c0_948] : memref<5x48x16xf32, #tpu.memory_space<vmem>>, vector<1x16x16xf32>
    %1569 = vector.shape_cast %1568 : vector<1x16x16xf32> to vector<16x16xf32>
    %1570 = vector.broadcast %1567 : f32 to vector<16x16xf32>
    %1571 = arith.mulf %1569, %1570 : vector<16x16xf32>
    %1572 = arith.addf %1566, %1571 : vector<16x16xf32>
    %c71 = arith.constant 71 : index
    %1573 = memref.load %arg4[%c71] : memref<72xf32, #tpu.memory_space<smem>>
    %c1_949 = arith.constant 1 : index
    %c32_950 = arith.constant 32 : index
    %c0_951 = arith.constant 0 : index
    %1574 = vector.load %arg11[%c1_949, %c32_950, %c0_951] : memref<5x48x16xf32, #tpu.memory_space<vmem>>, vector<1x16x16xf32>
    %1575 = vector.shape_cast %1574 : vector<1x16x16xf32> to vector<16x16xf32>
    %1576 = vector.broadcast %1573 : f32 to vector<16x16xf32>
    %1577 = arith.mulf %1575, %1576 : vector<16x16xf32>
    %1578 = arith.addf %1572, %1577 : vector<16x16xf32>
    %1579 = vector.broadcast %1543 : f32 to vector<16x16xf32>
    %1580 = arith.addf %1578, %1579 : vector<16x16xf32>
    %c63 = arith.constant 63 : index
    %1581 = memref.load %arg4[%c63] : memref<72xf32, #tpu.memory_space<smem>>
    %c0_952 = arith.constant 0 : index
    %c0_953 = arith.constant 0 : index
    %c0_954 = arith.constant 0 : index
    %1582 = vector.load %arg11[%c0_952, %c0_953, %c0_954] : memref<5x48x16xf32, #tpu.memory_space<vmem>>, vector<1x16x16xf32>
    %1583 = vector.shape_cast %1582 : vector<1x16x16xf32> to vector<16x16xf32>
    %1584 = vector.broadcast %1581 : f32 to vector<16x16xf32>
    %1585 = arith.mulf %1583, %1584 : vector<16x16xf32>
    %c64_955 = arith.constant 64 : index
    %1586 = memref.load %arg4[%c64_955] : memref<72xf32, #tpu.memory_space<smem>>
    %c0_956 = arith.constant 0 : index
    %c16_957 = arith.constant 16 : index
    %c0_958 = arith.constant 0 : index
    %1587 = vector.load %arg11[%c0_956, %c16_957, %c0_958] : memref<5x48x16xf32, #tpu.memory_space<vmem>>, vector<1x16x16xf32>
    %1588 = vector.shape_cast %1587 : vector<1x16x16xf32> to vector<16x16xf32>
    %1589 = vector.broadcast %1586 : f32 to vector<16x16xf32>
    %1590 = arith.mulf %1588, %1589 : vector<16x16xf32>
    %1591 = arith.addf %1585, %1590 : vector<16x16xf32>
    %c65 = arith.constant 65 : index
    %1592 = memref.load %arg4[%c65] : memref<72xf32, #tpu.memory_space<smem>>
    %c0_959 = arith.constant 0 : index
    %c32_960 = arith.constant 32 : index
    %c0_961 = arith.constant 0 : index
    %1593 = vector.load %arg11[%c0_959, %c32_960, %c0_961] : memref<5x48x16xf32, #tpu.memory_space<vmem>>, vector<1x16x16xf32>
    %1594 = vector.shape_cast %1593 : vector<1x16x16xf32> to vector<16x16xf32>
    %1595 = vector.broadcast %1592 : f32 to vector<16x16xf32>
    %1596 = arith.mulf %1594, %1595 : vector<16x16xf32>
    %1597 = arith.addf %1591, %1596 : vector<16x16xf32>
    %c66_962 = arith.constant 66 : index
    %1598 = memref.load %arg4[%c66_962] : memref<72xf32, #tpu.memory_space<smem>>
    %c1_963 = arith.constant 1 : index
    %c0_964 = arith.constant 0 : index
    %c0_965 = arith.constant 0 : index
    %1599 = vector.load %arg11[%c1_963, %c0_964, %c0_965] : memref<5x48x16xf32, #tpu.memory_space<vmem>>, vector<1x16x16xf32>
    %1600 = vector.shape_cast %1599 : vector<1x16x16xf32> to vector<16x16xf32>
    %1601 = vector.broadcast %1598 : f32 to vector<16x16xf32>
    %1602 = arith.mulf %1600, %1601 : vector<16x16xf32>
    %1603 = arith.addf %1597, %1602 : vector<16x16xf32>
    %c67_966 = arith.constant 67 : index
    %1604 = memref.load %arg4[%c67_966] : memref<72xf32, #tpu.memory_space<smem>>
    %c1_967 = arith.constant 1 : index
    %c16_968 = arith.constant 16 : index
    %c0_969 = arith.constant 0 : index
    %1605 = vector.load %arg11[%c1_967, %c16_968, %c0_969] : memref<5x48x16xf32, #tpu.memory_space<vmem>>, vector<1x16x16xf32>
    %1606 = vector.shape_cast %1605 : vector<1x16x16xf32> to vector<16x16xf32>
    %1607 = vector.broadcast %1604 : f32 to vector<16x16xf32>
    %1608 = arith.mulf %1606, %1607 : vector<16x16xf32>
    %1609 = arith.addf %1603, %1608 : vector<16x16xf32>
    %c68_970 = arith.constant 68 : index
    %1610 = memref.load %arg4[%c68_970] : memref<72xf32, #tpu.memory_space<smem>>
    %c1_971 = arith.constant 1 : index
    %c32_972 = arith.constant 32 : index
    %c0_973 = arith.constant 0 : index
    %1611 = vector.load %arg11[%c1_971, %c32_972, %c0_973] : memref<5x48x16xf32, #tpu.memory_space<vmem>>, vector<1x16x16xf32>
    %1612 = vector.shape_cast %1611 : vector<1x16x16xf32> to vector<16x16xf32>
    %1613 = vector.broadcast %1610 : f32 to vector<16x16xf32>
    %1614 = arith.mulf %1612, %1613 : vector<16x16xf32>
    %1615 = arith.addf %1609, %1614 : vector<16x16xf32>
    %c69_974 = arith.constant 69 : index
    %1616 = memref.load %arg4[%c69_974] : memref<72xf32, #tpu.memory_space<smem>>
    %c2_975 = arith.constant 2 : index
    %c0_976 = arith.constant 0 : index
    %c0_977 = arith.constant 0 : index
    %1617 = vector.load %arg11[%c2_975, %c0_976, %c0_977] : memref<5x48x16xf32, #tpu.memory_space<vmem>>, vector<1x16x16xf32>
    %1618 = vector.shape_cast %1617 : vector<1x16x16xf32> to vector<16x16xf32>
    %1619 = vector.broadcast %1616 : f32 to vector<16x16xf32>
    %1620 = arith.mulf %1618, %1619 : vector<16x16xf32>
    %1621 = arith.addf %1615, %1620 : vector<16x16xf32>
    %c70_978 = arith.constant 70 : index
    %1622 = memref.load %arg4[%c70_978] : memref<72xf32, #tpu.memory_space<smem>>
    %c2_979 = arith.constant 2 : index
    %c16_980 = arith.constant 16 : index
    %c0_981 = arith.constant 0 : index
    %1623 = vector.load %arg11[%c2_979, %c16_980, %c0_981] : memref<5x48x16xf32, #tpu.memory_space<vmem>>, vector<1x16x16xf32>
    %1624 = vector.shape_cast %1623 : vector<1x16x16xf32> to vector<16x16xf32>
    %1625 = vector.broadcast %1622 : f32 to vector<16x16xf32>
    %1626 = arith.mulf %1624, %1625 : vector<16x16xf32>
    %1627 = arith.addf %1621, %1626 : vector<16x16xf32>
    %c71_982 = arith.constant 71 : index
    %1628 = memref.load %arg4[%c71_982] : memref<72xf32, #tpu.memory_space<smem>>
    %c2_983 = arith.constant 2 : index
    %c32_984 = arith.constant 32 : index
    %c0_985 = arith.constant 0 : index
    %1629 = vector.load %arg11[%c2_983, %c32_984, %c0_985] : memref<5x48x16xf32, #tpu.memory_space<vmem>>, vector<1x16x16xf32>
    %1630 = vector.shape_cast %1629 : vector<1x16x16xf32> to vector<16x16xf32>
    %1631 = vector.broadcast %1628 : f32 to vector<16x16xf32>
    %1632 = arith.mulf %1630, %1631 : vector<16x16xf32>
    %1633 = arith.addf %1627, %1632 : vector<16x16xf32>
    %1634 = vector.broadcast %1543 : f32 to vector<16x16xf32>
    %1635 = arith.addf %1633, %1634 : vector<16x16xf32>
    %1636 = arith.maximumf %1580, %1635 : vector<16x16xf32>
    %1637 = vector.extract_strided_slice %1636 {offsets = [0, 0], sizes = [8, 16], strides = [1, 1]} : vector<16x16xf32> to vector<8x16xf32>
    %1638 = vector.extract_strided_slice %1636 {offsets = [8, 0], sizes = [8, 16], strides = [1, 1]} : vector<16x16xf32> to vector<8x16xf32>
    %1639 = arith.maximumf %1637, %1638 : vector<8x16xf32>
    %c112 = arith.constant 112 : index
    %c0_986 = arith.constant 0 : index
    %1640 = vector.load %arg12[%c112, %c0_986] : memref<128x16xf32, #tpu.memory_space<vmem>>, vector<8x16xf32>
    tpu.vector_store %arg12[%c112, %c0_986], %1639 {strides = array<i32>} : memref<128x16xf32, #tpu.memory_space<vmem>>, vector<8x16xf32>,
    %c63_987 = arith.constant 63 : index
    %1641 = memref.load %arg4[%c63_987] : memref<72xf32, #tpu.memory_space<smem>>
    %c1_988 = arith.constant 1 : index
    %c0_989 = arith.constant 0 : index
    %c0_990 = arith.constant 0 : index
    %1642 = vector.load %arg11[%c1_988, %c0_989, %c0_990] : memref<5x48x16xf32, #tpu.memory_space<vmem>>, vector<1x16x16xf32>
    %1643 = vector.shape_cast %1642 : vector<1x16x16xf32> to vector<16x16xf32>
    %1644 = vector.broadcast %1641 : f32 to vector<16x16xf32>
    %1645 = arith.mulf %1643, %1644 : vector<16x16xf32>
    %c64_991 = arith.constant 64 : index
    %1646 = memref.load %arg4[%c64_991] : memref<72xf32, #tpu.memory_space<smem>>
    %c1_992 = arith.constant 1 : index
    %c16_993 = arith.constant 16 : index
    %c0_994 = arith.constant 0 : index
    %1647 = vector.load %arg11[%c1_992, %c16_993, %c0_994] : memref<5x48x16xf32, #tpu.memory_space<vmem>>, vector<1x16x16xf32>
    %1648 = vector.shape_cast %1647 : vector<1x16x16xf32> to vector<16x16xf32>
    %1649 = vector.broadcast %1646 : f32 to vector<16x16xf32>
    %1650 = arith.mulf %1648, %1649 : vector<16x16xf32>
    %1651 = arith.addf %1645, %1650 : vector<16x16xf32>
    %c65_995 = arith.constant 65 : index
    %1652 = memref.load %arg4[%c65_995] : memref<72xf32, #tpu.memory_space<smem>>
    %c1_996 = arith.constant 1 : index
    %c32_997 = arith.constant 32 : index
    %c0_998 = arith.constant 0 : index
    %1653 = vector.load %arg11[%c1_996, %c32_997, %c0_998] : memref<5x48x16xf32, #tpu.memory_space<vmem>>, vector<1x16x16xf32>
    %1654 = vector.shape_cast %1653 : vector<1x16x16xf32> to vector<16x16xf32>
    %1655 = vector.broadcast %1652 : f32 to vector<16x16xf32>
    %1656 = arith.mulf %1654, %1655 : vector<16x16xf32>
    %1657 = arith.addf %1651, %1656 : vector<16x16xf32>
    %c66_999 = arith.constant 66 : index
    %1658 = memref.load %arg4[%c66_999] : memref<72xf32, #tpu.memory_space<smem>>
    %c2_1000 = arith.constant 2 : index
    %c0_1001 = arith.constant 0 : index
    %c0_1002 = arith.constant 0 : index
    %1659 = vector.load %arg11[%c2_1000, %c0_1001, %c0_1002] : memref<5x48x16xf32, #tpu.memory_space<vmem>>, vector<1x16x16xf32>
    %1660 = vector.shape_cast %1659 : vector<1x16x16xf32> to vector<16x16xf32>
    %1661 = vector.broadcast %1658 : f32 to vector<16x16xf32>
    %1662 = arith.mulf %1660, %1661 : vector<16x16xf32>
    %1663 = arith.addf %1657, %1662 : vector<16x16xf32>
    %c67_1003 = arith.constant 67 : index
    %1664 = memref.load %arg4[%c67_1003] : memref<72xf32, #tpu.memory_space<smem>>
    %c2_1004 = arith.constant 2 : index
    %c16_1005 = arith.constant 16 : index
    %c0_1006 = arith.constant 0 : index
    %1665 = vector.load %arg11[%c2_1004, %c16_1005, %c0_1006] : memref<5x48x16xf32, #tpu.memory_space<vmem>>, vector<1x16x16xf32>
    %1666 = vector.shape_cast %1665 : vector<1x16x16xf32> to vector<16x16xf32>
    %1667 = vector.broadcast %1664 : f32 to vector<16x16xf32>
    %1668 = arith.mulf %1666, %1667 : vector<16x16xf32>
    %1669 = arith.addf %1663, %1668 : vector<16x16xf32>
    %c68_1007 = arith.constant 68 : index
    %1670 = memref.load %arg4[%c68_1007] : memref<72xf32, #tpu.memory_space<smem>>
    %c2_1008 = arith.constant 2 : index
    %c32_1009 = arith.constant 32 : index
    %c0_1010 = arith.constant 0 : index
    %1671 = vector.load %arg11[%c2_1008, %c32_1009, %c0_1010] : memref<5x48x16xf32, #tpu.memory_space<vmem>>, vector<1x16x16xf32>
    %1672 = vector.shape_cast %1671 : vector<1x16x16xf32> to vector<16x16xf32>
    %1673 = vector.broadcast %1670 : f32 to vector<16x16xf32>
    %1674 = arith.mulf %1672, %1673 : vector<16x16xf32>
    %1675 = arith.addf %1669, %1674 : vector<16x16xf32>
    %c69_1011 = arith.constant 69 : index
    %1676 = memref.load %arg4[%c69_1011] : memref<72xf32, #tpu.memory_space<smem>>
    %c3_1012 = arith.constant 3 : index
    %c0_1013 = arith.constant 0 : index
    %c0_1014 = arith.constant 0 : index
    %1677 = vector.load %arg11[%c3_1012, %c0_1013, %c0_1014] : memref<5x48x16xf32, #tpu.memory_space<vmem>>, vector<1x16x16xf32>
    %1678 = vector.shape_cast %1677 : vector<1x16x16xf32> to vector<16x16xf32>
    %1679 = vector.broadcast %1676 : f32 to vector<16x16xf32>
    %1680 = arith.mulf %1678, %1679 : vector<16x16xf32>
    %1681 = arith.addf %1675, %1680 : vector<16x16xf32>
    %c70_1015 = arith.constant 70 : index
    %1682 = memref.load %arg4[%c70_1015] : memref<72xf32, #tpu.memory_space<smem>>
    %c3_1016 = arith.constant 3 : index
    %c16_1017 = arith.constant 16 : index
    %c0_1018 = arith.constant 0 : index
    %1683 = vector.load %arg11[%c3_1016, %c16_1017, %c0_1018] : memref<5x48x16xf32, #tpu.memory_space<vmem>>, vector<1x16x16xf32>
    %1684 = vector.shape_cast %1683 : vector<1x16x16xf32> to vector<16x16xf32>
    %1685 = vector.broadcast %1682 : f32 to vector<16x16xf32>
    %1686 = arith.mulf %1684, %1685 : vector<16x16xf32>
    %1687 = arith.addf %1681, %1686 : vector<16x16xf32>
    %c71_1019 = arith.constant 71 : index
    %1688 = memref.load %arg4[%c71_1019] : memref<72xf32, #tpu.memory_space<smem>>
    %c3_1020 = arith.constant 3 : index
    %c32_1021 = arith.constant 32 : index
    %c0_1022 = arith.constant 0 : index
    %1689 = vector.load %arg11[%c3_1020, %c32_1021, %c0_1022] : memref<5x48x16xf32, #tpu.memory_space<vmem>>, vector<1x16x16xf32>
    %1690 = vector.shape_cast %1689 : vector<1x16x16xf32> to vector<16x16xf32>
    %1691 = vector.broadcast %1688 : f32 to vector<16x16xf32>
    %1692 = arith.mulf %1690, %1691 : vector<16x16xf32>
    %1693 = arith.addf %1687, %1692 : vector<16x16xf32>
    %1694 = vector.broadcast %1543 : f32 to vector<16x16xf32>
    %1695 = arith.addf %1693, %1694 : vector<16x16xf32>
    %c63_1023 = arith.constant 63 : index
    %1696 = memref.load %arg4[%c63_1023] : memref<72xf32, #tpu.memory_space<smem>>
    %c2_1024 = arith.constant 2 : index
    %c0_1025 = arith.constant 0 : index
    %c0_1026 = arith.constant 0 : index
    %1697 = vector.load %arg11[%c2_1024, %c0_1025, %c0_1026] : memref<5x48x16xf32, #tpu.memory_space<vmem>>, vector<1x16x16xf32>
    %1698 = vector.shape_cast %1697 : vector<1x16x16xf32> to vector<16x16xf32>
    %1699 = vector.broadcast %1696 : f32 to vector<16x16xf32>
    %1700 = arith.mulf %1698, %1699 : vector<16x16xf32>
    %c64_1027 = arith.constant 64 : index
    %1701 = memref.load %arg4[%c64_1027] : memref<72xf32, #tpu.memory_space<smem>>
    %c2_1028 = arith.constant 2 : index
    %c16_1029 = arith.constant 16 : index
    %c0_1030 = arith.constant 0 : index
    %1702 = vector.load %arg11[%c2_1028, %c16_1029, %c0_1030] : memref<5x48x16xf32, #tpu.memory_space<vmem>>, vector<1x16x16xf32>
    %1703 = vector.shape_cast %1702 : vector<1x16x16xf32> to vector<16x16xf32>
    %1704 = vector.broadcast %1701 : f32 to vector<16x16xf32>
    %1705 = arith.mulf %1703, %1704 : vector<16x16xf32>
    %1706 = arith.addf %1700, %1705 : vector<16x16xf32>
    %c65_1031 = arith.constant 65 : index
    %1707 = memref.load %arg4[%c65_1031] : memref<72xf32, #tpu.memory_space<smem>>
    %c2_1032 = arith.constant 2 : index
    %c32_1033 = arith.constant 32 : index
    %c0_1034 = arith.constant 0 : index
    %1708 = vector.load %arg11[%c2_1032, %c32_1033, %c0_1034] : memref<5x48x16xf32, #tpu.memory_space<vmem>>, vector<1x16x16xf32>
    %1709 = vector.shape_cast %1708 : vector<1x16x16xf32> to vector<16x16xf32>
    %1710 = vector.broadcast %1707 : f32 to vector<16x16xf32>
    %1711 = arith.mulf %1709, %1710 : vector<16x16xf32>
    %1712 = arith.addf %1706, %1711 : vector<16x16xf32>
    %c66_1035 = arith.constant 66 : index
    %1713 = memref.load %arg4[%c66_1035] : memref<72xf32, #tpu.memory_space<smem>>
    %c3_1036 = arith.constant 3 : index
    %c0_1037 = arith.constant 0 : index
    %c0_1038 = arith.constant 0 : index
    %1714 = vector.load %arg11[%c3_1036, %c0_1037, %c0_1038] : memref<5x48x16xf32, #tpu.memory_space<vmem>>, vector<1x16x16xf32>
    %1715 = vector.shape_cast %1714 : vector<1x16x16xf32> to vector<16x16xf32>
    %1716 = vector.broadcast %1713 : f32 to vector<16x16xf32>
    %1717 = arith.mulf %1715, %1716 : vector<16x16xf32>
    %1718 = arith.addf %1712, %1717 : vector<16x16xf32>
    %c67_1039 = arith.constant 67 : index
    %1719 = memref.load %arg4[%c67_1039] : memref<72xf32, #tpu.memory_space<smem>>
    %c3_1040 = arith.constant 3 : index
    %c16_1041 = arith.constant 16 : index
    %c0_1042 = arith.constant 0 : index
    %1720 = vector.load %arg11[%c3_1040, %c16_1041, %c0_1042] : memref<5x48x16xf32, #tpu.memory_space<vmem>>, vector<1x16x16xf32>
    %1721 = vector.shape_cast %1720 : vector<1x16x16xf32> to vector<16x16xf32>
    %1722 = vector.broadcast %1719 : f32 to vector<16x16xf32>
    %1723 = arith.mulf %1721, %1722 : vector<16x16xf32>
    %1724 = arith.addf %1718, %1723 : vector<16x16xf32>
    %c68_1043 = arith.constant 68 : index
    %1725 = memref.load %arg4[%c68_1043] : memref<72xf32, #tpu.memory_space<smem>>
    %c3_1044 = arith.constant 3 : index
    %c32_1045 = arith.constant 32 : index
    %c0_1046 = arith.constant 0 : index
    %1726 = vector.load %arg11[%c3_1044, %c32_1045, %c0_1046] : memref<5x48x16xf32, #tpu.memory_space<vmem>>, vector<1x16x16xf32>
    %1727 = vector.shape_cast %1726 : vector<1x16x16xf32> to vector<16x16xf32>
    %1728 = vector.broadcast %1725 : f32 to vector<16x16xf32>
    %1729 = arith.mulf %1727, %1728 : vector<16x16xf32>
    %1730 = arith.addf %1724, %1729 : vector<16x16xf32>
    %c69_1047 = arith.constant 69 : index
    %1731 = memref.load %arg4[%c69_1047] : memref<72xf32, #tpu.memory_space<smem>>
    %c4_1048 = arith.constant 4 : index
    %c0_1049 = arith.constant 0 : index
    %c0_1050 = arith.constant 0 : index
    %1732 = vector.load %arg11[%c4_1048, %c0_1049, %c0_1050] : memref<5x48x16xf32, #tpu.memory_space<vmem>>, vector<1x16x16xf32>
    %1733 = vector.shape_cast %1732 : vector<1x16x16xf32> to vector<16x16xf32>
    %1734 = vector.broadcast %1731 : f32 to vector<16x16xf32>
    %1735 = arith.mulf %1733, %1734 : vector<16x16xf32>
    %1736 = arith.addf %1730, %1735 : vector<16x16xf32>
    %c70_1051 = arith.constant 70 : index
    %1737 = memref.load %arg4[%c70_1051] : memref<72xf32, #tpu.memory_space<smem>>
    %c4_1052 = arith.constant 4 : index
    %c16_1053 = arith.constant 16 : index
    %c0_1054 = arith.constant 0 : index
    %1738 = vector.load %arg11[%c4_1052, %c16_1053, %c0_1054] : memref<5x48x16xf32, #tpu.memory_space<vmem>>, vector<1x16x16xf32>
    %1739 = vector.shape_cast %1738 : vector<1x16x16xf32> to vector<16x16xf32>
    %1740 = vector.broadcast %1737 : f32 to vector<16x16xf32>
    %1741 = arith.mulf %1739, %1740 : vector<16x16xf32>
    %1742 = arith.addf %1736, %1741 : vector<16x16xf32>
    %c71_1055 = arith.constant 71 : index
    %1743 = memref.load %arg4[%c71_1055] : memref<72xf32, #tpu.memory_space<smem>>
    %c4_1056 = arith.constant 4 : index
    %c32_1057 = arith.constant 32 : index
    %c0_1058 = arith.constant 0 : index
    %1744 = vector.load %arg11[%c4_1056, %c32_1057, %c0_1058] : memref<5x48x16xf32, #tpu.memory_space<vmem>>, vector<1x16x16xf32>
    %1745 = vector.shape_cast %1744 : vector<1x16x16xf32> to vector<16x16xf32>
    %1746 = vector.broadcast %1743 : f32 to vector<16x16xf32>
    %1747 = arith.mulf %1745, %1746 : vector<16x16xf32>
    %1748 = arith.addf %1742, %1747 : vector<16x16xf32>
    %1749 = vector.broadcast %1543 : f32 to vector<16x16xf32>
    %1750 = arith.addf %1748, %1749 : vector<16x16xf32>
    %1751 = arith.maximumf %1695, %1750 : vector<16x16xf32>
    %1752 = vector.extract_strided_slice %1751 {offsets = [0, 0], sizes = [8, 16], strides = [1, 1]} : vector<16x16xf32> to vector<8x16xf32>
    %1753 = vector.extract_strided_slice %1751 {offsets = [8, 0], sizes = [8, 16], strides = [1, 1]} : vector<16x16xf32> to vector<8x16xf32>
    %1754 = arith.maximumf %1752, %1753 : vector<8x16xf32>
    %c120 = arith.constant 120 : index
    %c0_1059 = arith.constant 0 : index
    %1755 = vector.load %arg12[%c120, %c0_1059] : memref<128x16xf32, #tpu.memory_space<vmem>>, vector<8x16xf32>
    tpu.vector_store %arg12[%c120, %c0_1059], %1754 {strides = array<i32>} : memref<128x16xf32, #tpu.memory_space<vmem>>, vector<8x16xf32>,
    %c0_1060 = arith.constant 0 : index
    %c0_1061 = arith.constant 0 : index
    %1756 = vector.load %arg6[%c0_1060, %c0_1061] : memref<32x128xbf16, #tpu.memory_space<vmem>>, vector<32x128xbf16>
    %c0_1062 = arith.constant 0 : index
    %c0_1063 = arith.constant 0 : index
    %1757 = vector.load %arg12[%c0_1062, %c0_1063] : memref<128x16xf32, #tpu.memory_space<vmem>>, vector<128x16xf32>
    %1758 = arith.truncf %1757 : vector<128x16xf32> to vector<128x16xbf16>
    %cst_1064 = arith.constant dense<0.000000e+00> : vector<32x16xf32>
    %1759 = tpu.matmul %1756, %1758, %cst_1064 {dimension_numbers = #tpu.dot_dimension_numbers<[1], [0], [0], [1], [0, 0, 1, 1], [], []>} : vector<32x128xbf16>, vector<128x16xbf16>, vector<32x16xf32> -> vector<32x16xf32>
    %c0_1065 = arith.constant 0 : index
    %c0_1066 = arith.constant 0 : index
    %1760 = vector.load %arg7[%c0_1065, %c0_1066] : memref<32x1xf32, #tpu.memory_space<vmem>>, vector<32x1xf32>
    %1761 = vector.broadcast %1760 : vector<32x1xf32> to vector<32x16xf32>
    %1762 = arith.addf %1759, %1761 : vector<32x16xf32>
    %cst_1067 = arith.constant 0.000000e+00 : f32
    %1763 = vector.broadcast %cst_1067 : f32 to vector<32x16xf32>
    %1764 = arith.maximumf %1762, %1763 : vector<32x16xf32>
    %1765 = tpu.transpose %1764, [1, 0] : vector<32x16xf32> -> vector<16x32xf32>
    %1766 = arith.truncf %1765 : vector<16x32xf32> to vector<16x32xbf16>
    %c0_1068 = arith.constant 0 : index
    %c0_1069 = arith.constant 0 : index
    %1767 = vector.load %arg8[%c0_1068, %c0_1069] : memref<32x128xbf16, #tpu.memory_space<vmem>>, vector<32x128xbf16>
    %cst_1070 = arith.constant dense<0.000000e+00> : vector<16x128xf32>
    %1768 = tpu.matmul %1766, %1767, %cst_1070 {dimension_numbers = #tpu.dot_dimension_numbers<[1], [0], [0], [1], [0, 0, 1, 1], [], []>} : vector<16x32xbf16>, vector<32x128xbf16>, vector<16x128xf32> -> vector<16x128xf32>
    %c0_1071 = arith.constant 0 : index
    %c0_1072 = arith.constant 0 : index
    %1769 = vector.load %arg9[%c0_1071, %c0_1072] : memref<1x128xf32, #tpu.memory_space<vmem>>, vector<1x128xf32>
    %1770 = vector.broadcast %1769 : vector<1x128xf32> to vector<16x128xf32>
    %1771 = arith.addf %1768, %1770 : vector<16x128xf32>
    %c0_1073 = arith.constant 0 : index
    %c0_1074 = arith.constant 0 : index
    %1772 = vector.load %arg10[%c0_1073, %c0_1074] : memref<16x128xf32, #tpu.memory_space<vmem>>, vector<16x128xf32>
    tpu.vector_store %arg10[%c0_1073, %c0_1074], %1771 {strides = array<i32>} : memref<16x128xf32, #tpu.memory_space<vmem>>, vector<16x128xf32>,
    return
  }
  func.func @transform_0(%arg0: i32) -> (i32, i32, i32) {
    %c0_i32 = arith.constant 0 : i32
    %c0_i32_0 = arith.constant 0 : i32
    %c0_i32_1 = arith.constant 0 : i32
    return %c0_i32, %c0_i32_0, %arg0 : i32, i32, i32
  }
  func.func @transform_1(%arg0: i32) -> (i32, i32) {
    %c0_i32 = arith.constant 0 : i32
    %c0_i32_0 = arith.constant 0 : i32
    %c0_i32_1 = arith.constant 0 : i32
    return %c0_i32, %c0_i32_0 : i32, i32
  }
  func.func @transform_2(%arg0: i32) -> (i32, i32) {
    %c0_i32 = arith.constant 0 : i32
    %c0_i32_0 = arith.constant 0 : i32
    %c0_i32_1 = arith.constant 0 : i32
    return %c0_i32, %c0_i32_0 : i32, i32
  }
  func.func @transform_3(%arg0: i32) -> i32 {
    %c0_i32 = arith.constant 0 : i32
    %c0_i32_0 = arith.constant 0 : i32
    return %c0_i32 : i32
  }
  func.func @transform_4(%arg0: i32) -> i32 {
    %c0_i32 = arith.constant 0 : i32
    %c0_i32_0 = arith.constant 0 : i32
    return %c0_i32 : i32
  }
  func.func @transform_5(%arg0: i32) -> (i32, i32) {
    %c0_i32 = arith.constant 0 : i32
    %c0_i32_0 = arith.constant 0 : i32
    %c0_i32_1 = arith.constant 0 : i32
    return %c0_i32, %c0_i32_0 : i32, i32
  }
  func.func @transform_6(%arg0: i32) -> (i32, i32) {
    %c0_i32 = arith.constant 0 : i32
    %c0_i32_0 = arith.constant 0 : i32
    %c0_i32_1 = arith.constant 0 : i32
    return %c0_i32, %c0_i32_0 : i32, i32
  }
  func.func @transform_7(%arg0: i32) -> (i32, i32) {
    %c0_i32 = arith.constant 0 : i32
    %c0_i32_0 = arith.constant 0 : i32
    %c0_i32_1 = arith.constant 0 : i32
    return %c0_i32, %c0_i32_0 : i32, i32
  }
  func.func @transform_8(%arg0: i32) -> (i32, i32) {
    %c0_i32 = arith.constant 0 : i32
    %c0_i32_0 = arith.constant 0 : i32
    %c0_i32_1 = arith.constant 0 : i32
    return %c0_i32, %c0_i32_0 : i32, i32
  }
  func.func @transform_9(%arg0: i32) -> (i32, i32) {
    %c0_i32 = arith.constant 0 : i32
    %c0_i32_0 = arith.constant 0 : i32
    return %arg0, %c0_i32 : i32, i32
  }
}

module attributes {stable_mosaic.version = 11 : i64} {
  func.func @_lstm_atten_kernel(%arg0: i32, %arg1: memref<8x2x128xf32, #tpu.memory_space<vmem>>, %arg2: memref<32x128xf32, #tpu.memory_space<vmem>>, %arg3: memref<64x128xf32, #tpu.memory_space<vmem>>, %arg4: memref<1x128xf32, #tpu.memory_space<vmem>>, %arg5: memref<1x1x32xf32, #tpu.memory_space<vmem>>, %arg6: memref<1x32xf32, #tpu.memory_space<vmem>>, %arg7: memref<1x32xf32, #tpu.memory_space<vmem>>, %arg8: memref<1x32xf32, #tpu.memory_space<vmem>>, %arg9: memref<1x32xf32, #tpu.memory_space<vmem>>, %arg10: memref<2x32xf32, #tpu.memory_space<vmem>>, %arg11: memref<8x2x32xf32, #tpu.memory_space<vmem>>) attributes {dimension_semantics = [#tpu.dimension_semantics<parallel>], iteration_bounds = array<i64: 1>, scalar_prefetch = 0 : i64, scratch_operands = 1 : i64, tpu.core_type = #tpu.core_type<tc>, window_params = [{transform_indices = @transform_0, window_bounds = array<i64: 8, 2, 128>}, {pipeline_mode = #tpu.pipeline_mode<synchronous>, transform_indices = @transform_1, window_bounds = array<i64: 32, 128>}, {pipeline_mode = #tpu.pipeline_mode<synchronous>, transform_indices = @transform_2, window_bounds = array<i64: 64, 128>}, {pipeline_mode = #tpu.pipeline_mode<synchronous>, transform_indices = @transform_3, window_bounds = array<i64: 1, 128>}, {pipeline_mode = #tpu.pipeline_mode<synchronous>, transform_indices = @transform_4, window_bounds = array<i64: 1, 1, 32>}, {pipeline_mode = #tpu.pipeline_mode<synchronous>, transform_indices = @transform_5, window_bounds = array<i64: 1, 32>}, {pipeline_mode = #tpu.pipeline_mode<synchronous>, transform_indices = @transform_6, window_bounds = array<i64: 1, 32>}, {pipeline_mode = #tpu.pipeline_mode<synchronous>, transform_indices = @transform_7, window_bounds = array<i64: 1, 32>}, {pipeline_mode = #tpu.pipeline_mode<synchronous>, transform_indices = @transform_8, window_bounds = array<i64: 1, 32>}, {transform_indices = @transform_9, window_bounds = array<i64: 2, 32>}]} {
    %c0 = arith.constant 0 : index
    %c0_0 = arith.constant 0 : index
    %0 = vector.load %arg2[%c0, %c0_0] : memref<32x128xf32, #tpu.memory_space<vmem>>, vector<32x128xf32>
    %c0_1 = arith.constant 0 : index
    %c0_2 = arith.constant 0 : index
    %1 = vector.load %arg3[%c0_1, %c0_2] : memref<64x128xf32, #tpu.memory_space<vmem>>, vector<64x128xf32>
    %c0_3 = arith.constant 0 : index
    %c0_4 = arith.constant 0 : index
    %2 = vector.load %arg4[%c0_3, %c0_4] : memref<1x128xf32, #tpu.memory_space<vmem>>, vector<1x128xf32>
    %cst = arith.constant 0.000000e+00 : f32
    %3 = vector.broadcast %cst : f32 to vector<2x32xf32>
    %c0_5 = arith.constant 0 : index
    %c0_6 = arith.constant 0 : index
    %c0_7 = arith.constant 0 : index
    %4 = vector.load %arg1[%c0_5, %c0_6, %c0_7] : memref<8x2x128xf32, #tpu.memory_space<vmem>>, vector<1x2x128xf32>
    %5 = vector.shape_cast %4 : vector<1x2x128xf32> to vector<2x128xf32>
    %cst_8 = arith.constant dense<0.000000e+00> : vector<2x128xf32>
    %6 = tpu.matmul %3, %0, %cst_8 {dimension_numbers = #tpu.dot_dimension_numbers<[1], [0], [0], [1], [0, 0, 1, 1], [], []>} : vector<2x32xf32>, vector<32x128xf32>, vector<2x128xf32> -> vector<2x128xf32>
    %7 = arith.addf %5, %6 : vector<2x128xf32>
    %8 = vector.extract_strided_slice %7 {offsets = [0, 0], sizes = [2, 32], strides = [1, 1]} : vector<2x128xf32> to vector<2x32xf32>
    %9 = arith.negf %8 : vector<2x32xf32>
    %10 = math.exp %9 : vector<2x32xf32>
    %cst_9 = arith.constant 1.000000e+00 : f32
    %11 = vector.broadcast %cst_9 : f32 to vector<2x32xf32>
    %12 = arith.addf %11, %10 : vector<2x32xf32>
    %13 = arith.divf %11, %12 : vector<2x32xf32>
    %14 = vector.extract_strided_slice %7 {offsets = [0, 32], sizes = [2, 32], strides = [1, 1]} : vector<2x128xf32> to vector<2x32xf32>
    %15 = arith.negf %14 : vector<2x32xf32>
    %16 = math.exp %15 : vector<2x32xf32>
    %cst_10 = arith.constant 1.000000e+00 : f32
    %17 = vector.broadcast %cst_10 : f32 to vector<2x32xf32>
    %18 = arith.addf %17, %16 : vector<2x32xf32>
    %19 = arith.divf %17, %18 : vector<2x32xf32>
    %20 = vector.extract_strided_slice %7 {offsets = [0, 64], sizes = [2, 32], strides = [1, 1]} : vector<2x128xf32> to vector<2x32xf32>
    %21 = math.tanh %20 : vector<2x32xf32>
    %22 = vector.extract_strided_slice %7 {offsets = [0, 96], sizes = [2, 32], strides = [1, 1]} : vector<2x128xf32> to vector<2x32xf32>
    %23 = arith.negf %22 : vector<2x32xf32>
    %24 = math.exp %23 : vector<2x32xf32>
    %cst_11 = arith.constant 1.000000e+00 : f32
    %25 = vector.broadcast %cst_11 : f32 to vector<2x32xf32>
    %26 = arith.addf %25, %24 : vector<2x32xf32>
    %27 = arith.divf %25, %26 : vector<2x32xf32>
    %28 = arith.mulf %19, %3 : vector<2x32xf32>
    %29 = arith.mulf %13, %21 : vector<2x32xf32>
    %30 = arith.addf %28, %29 : vector<2x32xf32>
    %31 = math.tanh %30 : vector<2x32xf32>
    %32 = arith.mulf %27, %31 : vector<2x32xf32>
    %33 = tpu.concatenate %32, %3 in 1 : vector<2x32xf32>, vector<2x32xf32> -> vector<2x64xf32>
    %cst_12 = arith.constant dense<0.000000e+00> : vector<2x128xf32>
    %34 = tpu.matmul %33, %1, %cst_12 {dimension_numbers = #tpu.dot_dimension_numbers<[1], [0], [0], [1], [0, 0, 1, 1], [], []>} : vector<2x64xf32>, vector<64x128xf32>, vector<2x128xf32> -> vector<2x128xf32>
    %35 = vector.broadcast %2 : vector<1x128xf32> to vector<2x128xf32>
    %36 = arith.addf %34, %35 : vector<2x128xf32>
    %37 = vector.extract_strided_slice %36 {offsets = [0, 0], sizes = [2, 32], strides = [1, 1]} : vector<2x128xf32> to vector<2x32xf32>
    %38 = arith.negf %37 : vector<2x32xf32>
    %39 = math.exp %38 : vector<2x32xf32>
    %cst_13 = arith.constant 1.000000e+00 : f32
    %40 = vector.broadcast %cst_13 : f32 to vector<2x32xf32>
    %41 = arith.addf %40, %39 : vector<2x32xf32>
    %42 = arith.divf %40, %41 : vector<2x32xf32>
    %43 = vector.extract_strided_slice %36 {offsets = [0, 32], sizes = [2, 32], strides = [1, 1]} : vector<2x128xf32> to vector<2x32xf32>
    %44 = arith.negf %43 : vector<2x32xf32>
    %45 = math.exp %44 : vector<2x32xf32>
    %cst_14 = arith.constant 1.000000e+00 : f32
    %46 = vector.broadcast %cst_14 : f32 to vector<2x32xf32>
    %47 = arith.addf %46, %45 : vector<2x32xf32>
    %48 = arith.divf %46, %47 : vector<2x32xf32>
    %49 = vector.extract_strided_slice %36 {offsets = [0, 64], sizes = [2, 32], strides = [1, 1]} : vector<2x128xf32> to vector<2x32xf32>
    %50 = math.tanh %49 : vector<2x32xf32>
    %51 = vector.extract_strided_slice %36 {offsets = [0, 96], sizes = [2, 32], strides = [1, 1]} : vector<2x128xf32> to vector<2x32xf32>
    %52 = arith.negf %51 : vector<2x32xf32>
    %53 = math.exp %52 : vector<2x32xf32>
    %cst_15 = arith.constant 1.000000e+00 : f32
    %54 = vector.broadcast %cst_15 : f32 to vector<2x32xf32>
    %55 = arith.addf %54, %53 : vector<2x32xf32>
    %56 = arith.divf %54, %55 : vector<2x32xf32>
    %57 = arith.mulf %48, %3 : vector<2x32xf32>
    %58 = arith.mulf %42, %50 : vector<2x32xf32>
    %59 = arith.addf %57, %58 : vector<2x32xf32>
    %60 = math.tanh %59 : vector<2x32xf32>
    %61 = arith.mulf %56, %60 : vector<2x32xf32>
    %c0_16 = arith.constant 0 : index
    %c0_17 = arith.constant 0 : index
    %c0_18 = arith.constant 0 : index
    %62 = vector.load %arg11[%c0_16, %c0_17, %c0_18] : memref<8x2x32xf32, #tpu.memory_space<vmem>>, vector<1x2x32xf32>
    %63 = vector.shape_cast %62 : vector<1x2x32xf32> to vector<2x32xf32>
    %64 = vector.shape_cast %61 : vector<2x32xf32> to vector<1x2x32xf32>
    tpu.vector_store %arg11[%c0_16, %c0_17, %c0_18], %64 {strides = array<i32>} : memref<8x2x32xf32, #tpu.memory_space<vmem>>, vector<1x2x32xf32>,
    %c1 = arith.constant 1 : index
    %c0_19 = arith.constant 0 : index
    %c0_20 = arith.constant 0 : index
    %65 = vector.load %arg1[%c1, %c0_19, %c0_20] : memref<8x2x128xf32, #tpu.memory_space<vmem>>, vector<1x2x128xf32>
    %66 = vector.shape_cast %65 : vector<1x2x128xf32> to vector<2x128xf32>
    %cst_21 = arith.constant dense<0.000000e+00> : vector<2x128xf32>
    %67 = tpu.matmul %32, %0, %cst_21 {dimension_numbers = #tpu.dot_dimension_numbers<[1], [0], [0], [1], [0, 0, 1, 1], [], []>} : vector<2x32xf32>, vector<32x128xf32>, vector<2x128xf32> -> vector<2x128xf32>
    %68 = arith.addf %66, %67 : vector<2x128xf32>
    %69 = vector.extract_strided_slice %68 {offsets = [0, 0], sizes = [2, 32], strides = [1, 1]} : vector<2x128xf32> to vector<2x32xf32>
    %70 = arith.negf %69 : vector<2x32xf32>
    %71 = math.exp %70 : vector<2x32xf32>
    %cst_22 = arith.constant 1.000000e+00 : f32
    %72 = vector.broadcast %cst_22 : f32 to vector<2x32xf32>
    %73 = arith.addf %72, %71 : vector<2x32xf32>
    %74 = arith.divf %72, %73 : vector<2x32xf32>
    %75 = vector.extract_strided_slice %68 {offsets = [0, 32], sizes = [2, 32], strides = [1, 1]} : vector<2x128xf32> to vector<2x32xf32>
    %76 = arith.negf %75 : vector<2x32xf32>
    %77 = math.exp %76 : vector<2x32xf32>
    %cst_23 = arith.constant 1.000000e+00 : f32
    %78 = vector.broadcast %cst_23 : f32 to vector<2x32xf32>
    %79 = arith.addf %78, %77 : vector<2x32xf32>
    %80 = arith.divf %78, %79 : vector<2x32xf32>
    %81 = vector.extract_strided_slice %68 {offsets = [0, 64], sizes = [2, 32], strides = [1, 1]} : vector<2x128xf32> to vector<2x32xf32>
    %82 = math.tanh %81 : vector<2x32xf32>
    %83 = vector.extract_strided_slice %68 {offsets = [0, 96], sizes = [2, 32], strides = [1, 1]} : vector<2x128xf32> to vector<2x32xf32>
    %84 = arith.negf %83 : vector<2x32xf32>
    %85 = math.exp %84 : vector<2x32xf32>
    %cst_24 = arith.constant 1.000000e+00 : f32
    %86 = vector.broadcast %cst_24 : f32 to vector<2x32xf32>
    %87 = arith.addf %86, %85 : vector<2x32xf32>
    %88 = arith.divf %86, %87 : vector<2x32xf32>
    %89 = arith.mulf %80, %30 : vector<2x32xf32>
    %90 = arith.mulf %74, %82 : vector<2x32xf32>
    %91 = arith.addf %89, %90 : vector<2x32xf32>
    %92 = math.tanh %91 : vector<2x32xf32>
    %93 = arith.mulf %88, %92 : vector<2x32xf32>
    %94 = tpu.concatenate %93, %61 in 1 : vector<2x32xf32>, vector<2x32xf32> -> vector<2x64xf32>
    %cst_25 = arith.constant dense<0.000000e+00> : vector<2x128xf32>
    %95 = tpu.matmul %94, %1, %cst_25 {dimension_numbers = #tpu.dot_dimension_numbers<[1], [0], [0], [1], [0, 0, 1, 1], [], []>} : vector<2x64xf32>, vector<64x128xf32>, vector<2x128xf32> -> vector<2x128xf32>
    %96 = vector.broadcast %2 : vector<1x128xf32> to vector<2x128xf32>
    %97 = arith.addf %95, %96 : vector<2x128xf32>
    %98 = vector.extract_strided_slice %97 {offsets = [0, 0], sizes = [2, 32], strides = [1, 1]} : vector<2x128xf32> to vector<2x32xf32>
    %99 = arith.negf %98 : vector<2x32xf32>
    %100 = math.exp %99 : vector<2x32xf32>
    %cst_26 = arith.constant 1.000000e+00 : f32
    %101 = vector.broadcast %cst_26 : f32 to vector<2x32xf32>
    %102 = arith.addf %101, %100 : vector<2x32xf32>
    %103 = arith.divf %101, %102 : vector<2x32xf32>
    %104 = vector.extract_strided_slice %97 {offsets = [0, 32], sizes = [2, 32], strides = [1, 1]} : vector<2x128xf32> to vector<2x32xf32>
    %105 = arith.negf %104 : vector<2x32xf32>
    %106 = math.exp %105 : vector<2x32xf32>
    %cst_27 = arith.constant 1.000000e+00 : f32
    %107 = vector.broadcast %cst_27 : f32 to vector<2x32xf32>
    %108 = arith.addf %107, %106 : vector<2x32xf32>
    %109 = arith.divf %107, %108 : vector<2x32xf32>
    %110 = vector.extract_strided_slice %97 {offsets = [0, 64], sizes = [2, 32], strides = [1, 1]} : vector<2x128xf32> to vector<2x32xf32>
    %111 = math.tanh %110 : vector<2x32xf32>
    %112 = vector.extract_strided_slice %97 {offsets = [0, 96], sizes = [2, 32], strides = [1, 1]} : vector<2x128xf32> to vector<2x32xf32>
    %113 = arith.negf %112 : vector<2x32xf32>
    %114 = math.exp %113 : vector<2x32xf32>
    %cst_28 = arith.constant 1.000000e+00 : f32
    %115 = vector.broadcast %cst_28 : f32 to vector<2x32xf32>
    %116 = arith.addf %115, %114 : vector<2x32xf32>
    %117 = arith.divf %115, %116 : vector<2x32xf32>
    %118 = arith.mulf %109, %59 : vector<2x32xf32>
    %119 = arith.mulf %103, %111 : vector<2x32xf32>
    %120 = arith.addf %118, %119 : vector<2x32xf32>
    %121 = math.tanh %120 : vector<2x32xf32>
    %122 = arith.mulf %117, %121 : vector<2x32xf32>
    %c1_29 = arith.constant 1 : index
    %c0_30 = arith.constant 0 : index
    %c0_31 = arith.constant 0 : index
    %123 = vector.load %arg11[%c1_29, %c0_30, %c0_31] : memref<8x2x32xf32, #tpu.memory_space<vmem>>, vector<1x2x32xf32>
    %124 = vector.shape_cast %123 : vector<1x2x32xf32> to vector<2x32xf32>
    %125 = vector.shape_cast %122 : vector<2x32xf32> to vector<1x2x32xf32>
    tpu.vector_store %arg11[%c1_29, %c0_30, %c0_31], %125 {strides = array<i32>} : memref<8x2x32xf32, #tpu.memory_space<vmem>>, vector<1x2x32xf32>,
    %c2 = arith.constant 2 : index
    %c0_32 = arith.constant 0 : index
    %c0_33 = arith.constant 0 : index
    %126 = vector.load %arg1[%c2, %c0_32, %c0_33] : memref<8x2x128xf32, #tpu.memory_space<vmem>>, vector<1x2x128xf32>
    %127 = vector.shape_cast %126 : vector<1x2x128xf32> to vector<2x128xf32>
    %cst_34 = arith.constant dense<0.000000e+00> : vector<2x128xf32>
    %128 = tpu.matmul %93, %0, %cst_34 {dimension_numbers = #tpu.dot_dimension_numbers<[1], [0], [0], [1], [0, 0, 1, 1], [], []>} : vector<2x32xf32>, vector<32x128xf32>, vector<2x128xf32> -> vector<2x128xf32>
    %129 = arith.addf %127, %128 : vector<2x128xf32>
    %130 = vector.extract_strided_slice %129 {offsets = [0, 0], sizes = [2, 32], strides = [1, 1]} : vector<2x128xf32> to vector<2x32xf32>
    %131 = arith.negf %130 : vector<2x32xf32>
    %132 = math.exp %131 : vector<2x32xf32>
    %cst_35 = arith.constant 1.000000e+00 : f32
    %133 = vector.broadcast %cst_35 : f32 to vector<2x32xf32>
    %134 = arith.addf %133, %132 : vector<2x32xf32>
    %135 = arith.divf %133, %134 : vector<2x32xf32>
    %136 = vector.extract_strided_slice %129 {offsets = [0, 32], sizes = [2, 32], strides = [1, 1]} : vector<2x128xf32> to vector<2x32xf32>
    %137 = arith.negf %136 : vector<2x32xf32>
    %138 = math.exp %137 : vector<2x32xf32>
    %cst_36 = arith.constant 1.000000e+00 : f32
    %139 = vector.broadcast %cst_36 : f32 to vector<2x32xf32>
    %140 = arith.addf %139, %138 : vector<2x32xf32>
    %141 = arith.divf %139, %140 : vector<2x32xf32>
    %142 = vector.extract_strided_slice %129 {offsets = [0, 64], sizes = [2, 32], strides = [1, 1]} : vector<2x128xf32> to vector<2x32xf32>
    %143 = math.tanh %142 : vector<2x32xf32>
    %144 = vector.extract_strided_slice %129 {offsets = [0, 96], sizes = [2, 32], strides = [1, 1]} : vector<2x128xf32> to vector<2x32xf32>
    %145 = arith.negf %144 : vector<2x32xf32>
    %146 = math.exp %145 : vector<2x32xf32>
    %cst_37 = arith.constant 1.000000e+00 : f32
    %147 = vector.broadcast %cst_37 : f32 to vector<2x32xf32>
    %148 = arith.addf %147, %146 : vector<2x32xf32>
    %149 = arith.divf %147, %148 : vector<2x32xf32>
    %150 = arith.mulf %141, %91 : vector<2x32xf32>
    %151 = arith.mulf %135, %143 : vector<2x32xf32>
    %152 = arith.addf %150, %151 : vector<2x32xf32>
    %153 = math.tanh %152 : vector<2x32xf32>
    %154 = arith.mulf %149, %153 : vector<2x32xf32>
    %155 = tpu.concatenate %154, %122 in 1 : vector<2x32xf32>, vector<2x32xf32> -> vector<2x64xf32>
    %cst_38 = arith.constant dense<0.000000e+00> : vector<2x128xf32>
    %156 = tpu.matmul %155, %1, %cst_38 {dimension_numbers = #tpu.dot_dimension_numbers<[1], [0], [0], [1], [0, 0, 1, 1], [], []>} : vector<2x64xf32>, vector<64x128xf32>, vector<2x128xf32> -> vector<2x128xf32>
    %157 = vector.broadcast %2 : vector<1x128xf32> to vector<2x128xf32>
    %158 = arith.addf %156, %157 : vector<2x128xf32>
    %159 = vector.extract_strided_slice %158 {offsets = [0, 0], sizes = [2, 32], strides = [1, 1]} : vector<2x128xf32> to vector<2x32xf32>
    %160 = arith.negf %159 : vector<2x32xf32>
    %161 = math.exp %160 : vector<2x32xf32>
    %cst_39 = arith.constant 1.000000e+00 : f32
    %162 = vector.broadcast %cst_39 : f32 to vector<2x32xf32>
    %163 = arith.addf %162, %161 : vector<2x32xf32>
    %164 = arith.divf %162, %163 : vector<2x32xf32>
    %165 = vector.extract_strided_slice %158 {offsets = [0, 32], sizes = [2, 32], strides = [1, 1]} : vector<2x128xf32> to vector<2x32xf32>
    %166 = arith.negf %165 : vector<2x32xf32>
    %167 = math.exp %166 : vector<2x32xf32>
    %cst_40 = arith.constant 1.000000e+00 : f32
    %168 = vector.broadcast %cst_40 : f32 to vector<2x32xf32>
    %169 = arith.addf %168, %167 : vector<2x32xf32>
    %170 = arith.divf %168, %169 : vector<2x32xf32>
    %171 = vector.extract_strided_slice %158 {offsets = [0, 64], sizes = [2, 32], strides = [1, 1]} : vector<2x128xf32> to vector<2x32xf32>
    %172 = math.tanh %171 : vector<2x32xf32>
    %173 = vector.extract_strided_slice %158 {offsets = [0, 96], sizes = [2, 32], strides = [1, 1]} : vector<2x128xf32> to vector<2x32xf32>
    %174 = arith.negf %173 : vector<2x32xf32>
    %175 = math.exp %174 : vector<2x32xf32>
    %cst_41 = arith.constant 1.000000e+00 : f32
    %176 = vector.broadcast %cst_41 : f32 to vector<2x32xf32>
    %177 = arith.addf %176, %175 : vector<2x32xf32>
    %178 = arith.divf %176, %177 : vector<2x32xf32>
    %179 = arith.mulf %170, %120 : vector<2x32xf32>
    %180 = arith.mulf %164, %172 : vector<2x32xf32>
    %181 = arith.addf %179, %180 : vector<2x32xf32>
    %182 = math.tanh %181 : vector<2x32xf32>
    %183 = arith.mulf %178, %182 : vector<2x32xf32>
    %c2_42 = arith.constant 2 : index
    %c0_43 = arith.constant 0 : index
    %c0_44 = arith.constant 0 : index
    %184 = vector.load %arg11[%c2_42, %c0_43, %c0_44] : memref<8x2x32xf32, #tpu.memory_space<vmem>>, vector<1x2x32xf32>
    %185 = vector.shape_cast %184 : vector<1x2x32xf32> to vector<2x32xf32>
    %186 = vector.shape_cast %183 : vector<2x32xf32> to vector<1x2x32xf32>
    tpu.vector_store %arg11[%c2_42, %c0_43, %c0_44], %186 {strides = array<i32>} : memref<8x2x32xf32, #tpu.memory_space<vmem>>, vector<1x2x32xf32>,
    %c3 = arith.constant 3 : index
    %c0_45 = arith.constant 0 : index
    %c0_46 = arith.constant 0 : index
    %187 = vector.load %arg1[%c3, %c0_45, %c0_46] : memref<8x2x128xf32, #tpu.memory_space<vmem>>, vector<1x2x128xf32>
    %188 = vector.shape_cast %187 : vector<1x2x128xf32> to vector<2x128xf32>
    %cst_47 = arith.constant dense<0.000000e+00> : vector<2x128xf32>
    %189 = tpu.matmul %154, %0, %cst_47 {dimension_numbers = #tpu.dot_dimension_numbers<[1], [0], [0], [1], [0, 0, 1, 1], [], []>} : vector<2x32xf32>, vector<32x128xf32>, vector<2x128xf32> -> vector<2x128xf32>
    %190 = arith.addf %188, %189 : vector<2x128xf32>
    %191 = vector.extract_strided_slice %190 {offsets = [0, 0], sizes = [2, 32], strides = [1, 1]} : vector<2x128xf32> to vector<2x32xf32>
    %192 = arith.negf %191 : vector<2x32xf32>
    %193 = math.exp %192 : vector<2x32xf32>
    %cst_48 = arith.constant 1.000000e+00 : f32
    %194 = vector.broadcast %cst_48 : f32 to vector<2x32xf32>
    %195 = arith.addf %194, %193 : vector<2x32xf32>
    %196 = arith.divf %194, %195 : vector<2x32xf32>
    %197 = vector.extract_strided_slice %190 {offsets = [0, 32], sizes = [2, 32], strides = [1, 1]} : vector<2x128xf32> to vector<2x32xf32>
    %198 = arith.negf %197 : vector<2x32xf32>
    %199 = math.exp %198 : vector<2x32xf32>
    %cst_49 = arith.constant 1.000000e+00 : f32
    %200 = vector.broadcast %cst_49 : f32 to vector<2x32xf32>
    %201 = arith.addf %200, %199 : vector<2x32xf32>
    %202 = arith.divf %200, %201 : vector<2x32xf32>
    %203 = vector.extract_strided_slice %190 {offsets = [0, 64], sizes = [2, 32], strides = [1, 1]} : vector<2x128xf32> to vector<2x32xf32>
    %204 = math.tanh %203 : vector<2x32xf32>
    %205 = vector.extract_strided_slice %190 {offsets = [0, 96], sizes = [2, 32], strides = [1, 1]} : vector<2x128xf32> to vector<2x32xf32>
    %206 = arith.negf %205 : vector<2x32xf32>
    %207 = math.exp %206 : vector<2x32xf32>
    %cst_50 = arith.constant 1.000000e+00 : f32
    %208 = vector.broadcast %cst_50 : f32 to vector<2x32xf32>
    %209 = arith.addf %208, %207 : vector<2x32xf32>
    %210 = arith.divf %208, %209 : vector<2x32xf32>
    %211 = arith.mulf %202, %152 : vector<2x32xf32>
    %212 = arith.mulf %196, %204 : vector<2x32xf32>
    %213 = arith.addf %211, %212 : vector<2x32xf32>
    %214 = math.tanh %213 : vector<2x32xf32>
    %215 = arith.mulf %210, %214 : vector<2x32xf32>
    %216 = tpu.concatenate %215, %183 in 1 : vector<2x32xf32>, vector<2x32xf32> -> vector<2x64xf32>
    %cst_51 = arith.constant dense<0.000000e+00> : vector<2x128xf32>
    %217 = tpu.matmul %216, %1, %cst_51 {dimension_numbers = #tpu.dot_dimension_numbers<[1], [0], [0], [1], [0, 0, 1, 1], [], []>} : vector<2x64xf32>, vector<64x128xf32>, vector<2x128xf32> -> vector<2x128xf32>
    %218 = vector.broadcast %2 : vector<1x128xf32> to vector<2x128xf32>
    %219 = arith.addf %217, %218 : vector<2x128xf32>
    %220 = vector.extract_strided_slice %219 {offsets = [0, 0], sizes = [2, 32], strides = [1, 1]} : vector<2x128xf32> to vector<2x32xf32>
    %221 = arith.negf %220 : vector<2x32xf32>
    %222 = math.exp %221 : vector<2x32xf32>
    %cst_52 = arith.constant 1.000000e+00 : f32
    %223 = vector.broadcast %cst_52 : f32 to vector<2x32xf32>
    %224 = arith.addf %223, %222 : vector<2x32xf32>
    %225 = arith.divf %223, %224 : vector<2x32xf32>
    %226 = vector.extract_strided_slice %219 {offsets = [0, 32], sizes = [2, 32], strides = [1, 1]} : vector<2x128xf32> to vector<2x32xf32>
    %227 = arith.negf %226 : vector<2x32xf32>
    %228 = math.exp %227 : vector<2x32xf32>
    %cst_53 = arith.constant 1.000000e+00 : f32
    %229 = vector.broadcast %cst_53 : f32 to vector<2x32xf32>
    %230 = arith.addf %229, %228 : vector<2x32xf32>
    %231 = arith.divf %229, %230 : vector<2x32xf32>
    %232 = vector.extract_strided_slice %219 {offsets = [0, 64], sizes = [2, 32], strides = [1, 1]} : vector<2x128xf32> to vector<2x32xf32>
    %233 = math.tanh %232 : vector<2x32xf32>
    %234 = vector.extract_strided_slice %219 {offsets = [0, 96], sizes = [2, 32], strides = [1, 1]} : vector<2x128xf32> to vector<2x32xf32>
    %235 = arith.negf %234 : vector<2x32xf32>
    %236 = math.exp %235 : vector<2x32xf32>
    %cst_54 = arith.constant 1.000000e+00 : f32
    %237 = vector.broadcast %cst_54 : f32 to vector<2x32xf32>
    %238 = arith.addf %237, %236 : vector<2x32xf32>
    %239 = arith.divf %237, %238 : vector<2x32xf32>
    %240 = arith.mulf %231, %181 : vector<2x32xf32>
    %241 = arith.mulf %225, %233 : vector<2x32xf32>
    %242 = arith.addf %240, %241 : vector<2x32xf32>
    %243 = math.tanh %242 : vector<2x32xf32>
    %244 = arith.mulf %239, %243 : vector<2x32xf32>
    %c3_55 = arith.constant 3 : index
    %c0_56 = arith.constant 0 : index
    %c0_57 = arith.constant 0 : index
    %245 = vector.load %arg11[%c3_55, %c0_56, %c0_57] : memref<8x2x32xf32, #tpu.memory_space<vmem>>, vector<1x2x32xf32>
    %246 = vector.shape_cast %245 : vector<1x2x32xf32> to vector<2x32xf32>
    %247 = vector.shape_cast %244 : vector<2x32xf32> to vector<1x2x32xf32>
    tpu.vector_store %arg11[%c3_55, %c0_56, %c0_57], %247 {strides = array<i32>} : memref<8x2x32xf32, #tpu.memory_space<vmem>>, vector<1x2x32xf32>,
    %c4 = arith.constant 4 : index
    %c0_58 = arith.constant 0 : index
    %c0_59 = arith.constant 0 : index
    %248 = vector.load %arg1[%c4, %c0_58, %c0_59] : memref<8x2x128xf32, #tpu.memory_space<vmem>>, vector<1x2x128xf32>
    %249 = vector.shape_cast %248 : vector<1x2x128xf32> to vector<2x128xf32>
    %cst_60 = arith.constant dense<0.000000e+00> : vector<2x128xf32>
    %250 = tpu.matmul %215, %0, %cst_60 {dimension_numbers = #tpu.dot_dimension_numbers<[1], [0], [0], [1], [0, 0, 1, 1], [], []>} : vector<2x32xf32>, vector<32x128xf32>, vector<2x128xf32> -> vector<2x128xf32>
    %251 = arith.addf %249, %250 : vector<2x128xf32>
    %252 = vector.extract_strided_slice %251 {offsets = [0, 0], sizes = [2, 32], strides = [1, 1]} : vector<2x128xf32> to vector<2x32xf32>
    %253 = arith.negf %252 : vector<2x32xf32>
    %254 = math.exp %253 : vector<2x32xf32>
    %cst_61 = arith.constant 1.000000e+00 : f32
    %255 = vector.broadcast %cst_61 : f32 to vector<2x32xf32>
    %256 = arith.addf %255, %254 : vector<2x32xf32>
    %257 = arith.divf %255, %256 : vector<2x32xf32>
    %258 = vector.extract_strided_slice %251 {offsets = [0, 32], sizes = [2, 32], strides = [1, 1]} : vector<2x128xf32> to vector<2x32xf32>
    %259 = arith.negf %258 : vector<2x32xf32>
    %260 = math.exp %259 : vector<2x32xf32>
    %cst_62 = arith.constant 1.000000e+00 : f32
    %261 = vector.broadcast %cst_62 : f32 to vector<2x32xf32>
    %262 = arith.addf %261, %260 : vector<2x32xf32>
    %263 = arith.divf %261, %262 : vector<2x32xf32>
    %264 = vector.extract_strided_slice %251 {offsets = [0, 64], sizes = [2, 32], strides = [1, 1]} : vector<2x128xf32> to vector<2x32xf32>
    %265 = math.tanh %264 : vector<2x32xf32>
    %266 = vector.extract_strided_slice %251 {offsets = [0, 96], sizes = [2, 32], strides = [1, 1]} : vector<2x128xf32> to vector<2x32xf32>
    %267 = arith.negf %266 : vector<2x32xf32>
    %268 = math.exp %267 : vector<2x32xf32>
    %cst_63 = arith.constant 1.000000e+00 : f32
    %269 = vector.broadcast %cst_63 : f32 to vector<2x32xf32>
    %270 = arith.addf %269, %268 : vector<2x32xf32>
    %271 = arith.divf %269, %270 : vector<2x32xf32>
    %272 = arith.mulf %263, %213 : vector<2x32xf32>
    %273 = arith.mulf %257, %265 : vector<2x32xf32>
    %274 = arith.addf %272, %273 : vector<2x32xf32>
    %275 = math.tanh %274 : vector<2x32xf32>
    %276 = arith.mulf %271, %275 : vector<2x32xf32>
    %277 = tpu.concatenate %276, %244 in 1 : vector<2x32xf32>, vector<2x32xf32> -> vector<2x64xf32>
    %cst_64 = arith.constant dense<0.000000e+00> : vector<2x128xf32>
    %278 = tpu.matmul %277, %1, %cst_64 {dimension_numbers = #tpu.dot_dimension_numbers<[1], [0], [0], [1], [0, 0, 1, 1], [], []>} : vector<2x64xf32>, vector<64x128xf32>, vector<2x128xf32> -> vector<2x128xf32>
    %279 = vector.broadcast %2 : vector<1x128xf32> to vector<2x128xf32>
    %280 = arith.addf %278, %279 : vector<2x128xf32>
    %281 = vector.extract_strided_slice %280 {offsets = [0, 0], sizes = [2, 32], strides = [1, 1]} : vector<2x128xf32> to vector<2x32xf32>
    %282 = arith.negf %281 : vector<2x32xf32>
    %283 = math.exp %282 : vector<2x32xf32>
    %cst_65 = arith.constant 1.000000e+00 : f32
    %284 = vector.broadcast %cst_65 : f32 to vector<2x32xf32>
    %285 = arith.addf %284, %283 : vector<2x32xf32>
    %286 = arith.divf %284, %285 : vector<2x32xf32>
    %287 = vector.extract_strided_slice %280 {offsets = [0, 32], sizes = [2, 32], strides = [1, 1]} : vector<2x128xf32> to vector<2x32xf32>
    %288 = arith.negf %287 : vector<2x32xf32>
    %289 = math.exp %288 : vector<2x32xf32>
    %cst_66 = arith.constant 1.000000e+00 : f32
    %290 = vector.broadcast %cst_66 : f32 to vector<2x32xf32>
    %291 = arith.addf %290, %289 : vector<2x32xf32>
    %292 = arith.divf %290, %291 : vector<2x32xf32>
    %293 = vector.extract_strided_slice %280 {offsets = [0, 64], sizes = [2, 32], strides = [1, 1]} : vector<2x128xf32> to vector<2x32xf32>
    %294 = math.tanh %293 : vector<2x32xf32>
    %295 = vector.extract_strided_slice %280 {offsets = [0, 96], sizes = [2, 32], strides = [1, 1]} : vector<2x128xf32> to vector<2x32xf32>
    %296 = arith.negf %295 : vector<2x32xf32>
    %297 = math.exp %296 : vector<2x32xf32>
    %cst_67 = arith.constant 1.000000e+00 : f32
    %298 = vector.broadcast %cst_67 : f32 to vector<2x32xf32>
    %299 = arith.addf %298, %297 : vector<2x32xf32>
    %300 = arith.divf %298, %299 : vector<2x32xf32>
    %301 = arith.mulf %292, %242 : vector<2x32xf32>
    %302 = arith.mulf %286, %294 : vector<2x32xf32>
    %303 = arith.addf %301, %302 : vector<2x32xf32>
    %304 = math.tanh %303 : vector<2x32xf32>
    %305 = arith.mulf %300, %304 : vector<2x32xf32>
    %c4_68 = arith.constant 4 : index
    %c0_69 = arith.constant 0 : index
    %c0_70 = arith.constant 0 : index
    %306 = vector.load %arg11[%c4_68, %c0_69, %c0_70] : memref<8x2x32xf32, #tpu.memory_space<vmem>>, vector<1x2x32xf32>
    %307 = vector.shape_cast %306 : vector<1x2x32xf32> to vector<2x32xf32>
    %308 = vector.shape_cast %305 : vector<2x32xf32> to vector<1x2x32xf32>
    tpu.vector_store %arg11[%c4_68, %c0_69, %c0_70], %308 {strides = array<i32>} : memref<8x2x32xf32, #tpu.memory_space<vmem>>, vector<1x2x32xf32>,
    %c5 = arith.constant 5 : index
    %c0_71 = arith.constant 0 : index
    %c0_72 = arith.constant 0 : index
    %309 = vector.load %arg1[%c5, %c0_71, %c0_72] : memref<8x2x128xf32, #tpu.memory_space<vmem>>, vector<1x2x128xf32>
    %310 = vector.shape_cast %309 : vector<1x2x128xf32> to vector<2x128xf32>
    %cst_73 = arith.constant dense<0.000000e+00> : vector<2x128xf32>
    %311 = tpu.matmul %276, %0, %cst_73 {dimension_numbers = #tpu.dot_dimension_numbers<[1], [0], [0], [1], [0, 0, 1, 1], [], []>} : vector<2x32xf32>, vector<32x128xf32>, vector<2x128xf32> -> vector<2x128xf32>
    %312 = arith.addf %310, %311 : vector<2x128xf32>
    %313 = vector.extract_strided_slice %312 {offsets = [0, 0], sizes = [2, 32], strides = [1, 1]} : vector<2x128xf32> to vector<2x32xf32>
    %314 = arith.negf %313 : vector<2x32xf32>
    %315 = math.exp %314 : vector<2x32xf32>
    %cst_74 = arith.constant 1.000000e+00 : f32
    %316 = vector.broadcast %cst_74 : f32 to vector<2x32xf32>
    %317 = arith.addf %316, %315 : vector<2x32xf32>
    %318 = arith.divf %316, %317 : vector<2x32xf32>
    %319 = vector.extract_strided_slice %312 {offsets = [0, 32], sizes = [2, 32], strides = [1, 1]} : vector<2x128xf32> to vector<2x32xf32>
    %320 = arith.negf %319 : vector<2x32xf32>
    %321 = math.exp %320 : vector<2x32xf32>
    %cst_75 = arith.constant 1.000000e+00 : f32
    %322 = vector.broadcast %cst_75 : f32 to vector<2x32xf32>
    %323 = arith.addf %322, %321 : vector<2x32xf32>
    %324 = arith.divf %322, %323 : vector<2x32xf32>
    %325 = vector.extract_strided_slice %312 {offsets = [0, 64], sizes = [2, 32], strides = [1, 1]} : vector<2x128xf32> to vector<2x32xf32>
    %326 = math.tanh %325 : vector<2x32xf32>
    %327 = vector.extract_strided_slice %312 {offsets = [0, 96], sizes = [2, 32], strides = [1, 1]} : vector<2x128xf32> to vector<2x32xf32>
    %328 = arith.negf %327 : vector<2x32xf32>
    %329 = math.exp %328 : vector<2x32xf32>
    %cst_76 = arith.constant 1.000000e+00 : f32
    %330 = vector.broadcast %cst_76 : f32 to vector<2x32xf32>
    %331 = arith.addf %330, %329 : vector<2x32xf32>
    %332 = arith.divf %330, %331 : vector<2x32xf32>
    %333 = arith.mulf %324, %274 : vector<2x32xf32>
    %334 = arith.mulf %318, %326 : vector<2x32xf32>
    %335 = arith.addf %333, %334 : vector<2x32xf32>
    %336 = math.tanh %335 : vector<2x32xf32>
    %337 = arith.mulf %332, %336 : vector<2x32xf32>
    %338 = tpu.concatenate %337, %305 in 1 : vector<2x32xf32>, vector<2x32xf32> -> vector<2x64xf32>
    %cst_77 = arith.constant dense<0.000000e+00> : vector<2x128xf32>
    %339 = tpu.matmul %338, %1, %cst_77 {dimension_numbers = #tpu.dot_dimension_numbers<[1], [0], [0], [1], [0, 0, 1, 1], [], []>} : vector<2x64xf32>, vector<64x128xf32>, vector<2x128xf32> -> vector<2x128xf32>
    %340 = vector.broadcast %2 : vector<1x128xf32> to vector<2x128xf32>
    %341 = arith.addf %339, %340 : vector<2x128xf32>
    %342 = vector.extract_strided_slice %341 {offsets = [0, 0], sizes = [2, 32], strides = [1, 1]} : vector<2x128xf32> to vector<2x32xf32>
    %343 = arith.negf %342 : vector<2x32xf32>
    %344 = math.exp %343 : vector<2x32xf32>
    %cst_78 = arith.constant 1.000000e+00 : f32
    %345 = vector.broadcast %cst_78 : f32 to vector<2x32xf32>
    %346 = arith.addf %345, %344 : vector<2x32xf32>
    %347 = arith.divf %345, %346 : vector<2x32xf32>
    %348 = vector.extract_strided_slice %341 {offsets = [0, 32], sizes = [2, 32], strides = [1, 1]} : vector<2x128xf32> to vector<2x32xf32>
    %349 = arith.negf %348 : vector<2x32xf32>
    %350 = math.exp %349 : vector<2x32xf32>
    %cst_79 = arith.constant 1.000000e+00 : f32
    %351 = vector.broadcast %cst_79 : f32 to vector<2x32xf32>
    %352 = arith.addf %351, %350 : vector<2x32xf32>
    %353 = arith.divf %351, %352 : vector<2x32xf32>
    %354 = vector.extract_strided_slice %341 {offsets = [0, 64], sizes = [2, 32], strides = [1, 1]} : vector<2x128xf32> to vector<2x32xf32>
    %355 = math.tanh %354 : vector<2x32xf32>
    %356 = vector.extract_strided_slice %341 {offsets = [0, 96], sizes = [2, 32], strides = [1, 1]} : vector<2x128xf32> to vector<2x32xf32>
    %357 = arith.negf %356 : vector<2x32xf32>
    %358 = math.exp %357 : vector<2x32xf32>
    %cst_80 = arith.constant 1.000000e+00 : f32
    %359 = vector.broadcast %cst_80 : f32 to vector<2x32xf32>
    %360 = arith.addf %359, %358 : vector<2x32xf32>
    %361 = arith.divf %359, %360 : vector<2x32xf32>
    %362 = arith.mulf %353, %303 : vector<2x32xf32>
    %363 = arith.mulf %347, %355 : vector<2x32xf32>
    %364 = arith.addf %362, %363 : vector<2x32xf32>
    %365 = math.tanh %364 : vector<2x32xf32>
    %366 = arith.mulf %361, %365 : vector<2x32xf32>
    %c5_81 = arith.constant 5 : index
    %c0_82 = arith.constant 0 : index
    %c0_83 = arith.constant 0 : index
    %367 = vector.load %arg11[%c5_81, %c0_82, %c0_83] : memref<8x2x32xf32, #tpu.memory_space<vmem>>, vector<1x2x32xf32>
    %368 = vector.shape_cast %367 : vector<1x2x32xf32> to vector<2x32xf32>
    %369 = vector.shape_cast %366 : vector<2x32xf32> to vector<1x2x32xf32>
    tpu.vector_store %arg11[%c5_81, %c0_82, %c0_83], %369 {strides = array<i32>} : memref<8x2x32xf32, #tpu.memory_space<vmem>>, vector<1x2x32xf32>,
    %c6 = arith.constant 6 : index
    %c0_84 = arith.constant 0 : index
    %c0_85 = arith.constant 0 : index
    %370 = vector.load %arg1[%c6, %c0_84, %c0_85] : memref<8x2x128xf32, #tpu.memory_space<vmem>>, vector<1x2x128xf32>
    %371 = vector.shape_cast %370 : vector<1x2x128xf32> to vector<2x128xf32>
    %cst_86 = arith.constant dense<0.000000e+00> : vector<2x128xf32>
    %372 = tpu.matmul %337, %0, %cst_86 {dimension_numbers = #tpu.dot_dimension_numbers<[1], [0], [0], [1], [0, 0, 1, 1], [], []>} : vector<2x32xf32>, vector<32x128xf32>, vector<2x128xf32> -> vector<2x128xf32>
    %373 = arith.addf %371, %372 : vector<2x128xf32>
    %374 = vector.extract_strided_slice %373 {offsets = [0, 0], sizes = [2, 32], strides = [1, 1]} : vector<2x128xf32> to vector<2x32xf32>
    %375 = arith.negf %374 : vector<2x32xf32>
    %376 = math.exp %375 : vector<2x32xf32>
    %cst_87 = arith.constant 1.000000e+00 : f32
    %377 = vector.broadcast %cst_87 : f32 to vector<2x32xf32>
    %378 = arith.addf %377, %376 : vector<2x32xf32>
    %379 = arith.divf %377, %378 : vector<2x32xf32>
    %380 = vector.extract_strided_slice %373 {offsets = [0, 32], sizes = [2, 32], strides = [1, 1]} : vector<2x128xf32> to vector<2x32xf32>
    %381 = arith.negf %380 : vector<2x32xf32>
    %382 = math.exp %381 : vector<2x32xf32>
    %cst_88 = arith.constant 1.000000e+00 : f32
    %383 = vector.broadcast %cst_88 : f32 to vector<2x32xf32>
    %384 = arith.addf %383, %382 : vector<2x32xf32>
    %385 = arith.divf %383, %384 : vector<2x32xf32>
    %386 = vector.extract_strided_slice %373 {offsets = [0, 64], sizes = [2, 32], strides = [1, 1]} : vector<2x128xf32> to vector<2x32xf32>
    %387 = math.tanh %386 : vector<2x32xf32>
    %388 = vector.extract_strided_slice %373 {offsets = [0, 96], sizes = [2, 32], strides = [1, 1]} : vector<2x128xf32> to vector<2x32xf32>
    %389 = arith.negf %388 : vector<2x32xf32>
    %390 = math.exp %389 : vector<2x32xf32>
    %cst_89 = arith.constant 1.000000e+00 : f32
    %391 = vector.broadcast %cst_89 : f32 to vector<2x32xf32>
    %392 = arith.addf %391, %390 : vector<2x32xf32>
    %393 = arith.divf %391, %392 : vector<2x32xf32>
    %394 = arith.mulf %385, %335 : vector<2x32xf32>
    %395 = arith.mulf %379, %387 : vector<2x32xf32>
    %396 = arith.addf %394, %395 : vector<2x32xf32>
    %397 = math.tanh %396 : vector<2x32xf32>
    %398 = arith.mulf %393, %397 : vector<2x32xf32>
    %399 = tpu.concatenate %398, %366 in 1 : vector<2x32xf32>, vector<2x32xf32> -> vector<2x64xf32>
    %cst_90 = arith.constant dense<0.000000e+00> : vector<2x128xf32>
    %400 = tpu.matmul %399, %1, %cst_90 {dimension_numbers = #tpu.dot_dimension_numbers<[1], [0], [0], [1], [0, 0, 1, 1], [], []>} : vector<2x64xf32>, vector<64x128xf32>, vector<2x128xf32> -> vector<2x128xf32>
    %401 = vector.broadcast %2 : vector<1x128xf32> to vector<2x128xf32>
    %402 = arith.addf %400, %401 : vector<2x128xf32>
    %403 = vector.extract_strided_slice %402 {offsets = [0, 0], sizes = [2, 32], strides = [1, 1]} : vector<2x128xf32> to vector<2x32xf32>
    %404 = arith.negf %403 : vector<2x32xf32>
    %405 = math.exp %404 : vector<2x32xf32>
    %cst_91 = arith.constant 1.000000e+00 : f32
    %406 = vector.broadcast %cst_91 : f32 to vector<2x32xf32>
    %407 = arith.addf %406, %405 : vector<2x32xf32>
    %408 = arith.divf %406, %407 : vector<2x32xf32>
    %409 = vector.extract_strided_slice %402 {offsets = [0, 32], sizes = [2, 32], strides = [1, 1]} : vector<2x128xf32> to vector<2x32xf32>
    %410 = arith.negf %409 : vector<2x32xf32>
    %411 = math.exp %410 : vector<2x32xf32>
    %cst_92 = arith.constant 1.000000e+00 : f32
    %412 = vector.broadcast %cst_92 : f32 to vector<2x32xf32>
    %413 = arith.addf %412, %411 : vector<2x32xf32>
    %414 = arith.divf %412, %413 : vector<2x32xf32>
    %415 = vector.extract_strided_slice %402 {offsets = [0, 64], sizes = [2, 32], strides = [1, 1]} : vector<2x128xf32> to vector<2x32xf32>
    %416 = math.tanh %415 : vector<2x32xf32>
    %417 = vector.extract_strided_slice %402 {offsets = [0, 96], sizes = [2, 32], strides = [1, 1]} : vector<2x128xf32> to vector<2x32xf32>
    %418 = arith.negf %417 : vector<2x32xf32>
    %419 = math.exp %418 : vector<2x32xf32>
    %cst_93 = arith.constant 1.000000e+00 : f32
    %420 = vector.broadcast %cst_93 : f32 to vector<2x32xf32>
    %421 = arith.addf %420, %419 : vector<2x32xf32>
    %422 = arith.divf %420, %421 : vector<2x32xf32>
    %423 = arith.mulf %414, %364 : vector<2x32xf32>
    %424 = arith.mulf %408, %416 : vector<2x32xf32>
    %425 = arith.addf %423, %424 : vector<2x32xf32>
    %426 = math.tanh %425 : vector<2x32xf32>
    %427 = arith.mulf %422, %426 : vector<2x32xf32>
    %c6_94 = arith.constant 6 : index
    %c0_95 = arith.constant 0 : index
    %c0_96 = arith.constant 0 : index
    %428 = vector.load %arg11[%c6_94, %c0_95, %c0_96] : memref<8x2x32xf32, #tpu.memory_space<vmem>>, vector<1x2x32xf32>
    %429 = vector.shape_cast %428 : vector<1x2x32xf32> to vector<2x32xf32>
    %430 = vector.shape_cast %427 : vector<2x32xf32> to vector<1x2x32xf32>
    tpu.vector_store %arg11[%c6_94, %c0_95, %c0_96], %430 {strides = array<i32>} : memref<8x2x32xf32, #tpu.memory_space<vmem>>, vector<1x2x32xf32>,
    %c7 = arith.constant 7 : index
    %c0_97 = arith.constant 0 : index
    %c0_98 = arith.constant 0 : index
    %431 = vector.load %arg1[%c7, %c0_97, %c0_98] : memref<8x2x128xf32, #tpu.memory_space<vmem>>, vector<1x2x128xf32>
    %432 = vector.shape_cast %431 : vector<1x2x128xf32> to vector<2x128xf32>
    %cst_99 = arith.constant dense<0.000000e+00> : vector<2x128xf32>
    %433 = tpu.matmul %398, %0, %cst_99 {dimension_numbers = #tpu.dot_dimension_numbers<[1], [0], [0], [1], [0, 0, 1, 1], [], []>} : vector<2x32xf32>, vector<32x128xf32>, vector<2x128xf32> -> vector<2x128xf32>
    %434 = arith.addf %432, %433 : vector<2x128xf32>
    %435 = vector.extract_strided_slice %434 {offsets = [0, 0], sizes = [2, 32], strides = [1, 1]} : vector<2x128xf32> to vector<2x32xf32>
    %436 = arith.negf %435 : vector<2x32xf32>
    %437 = math.exp %436 : vector<2x32xf32>
    %cst_100 = arith.constant 1.000000e+00 : f32
    %438 = vector.broadcast %cst_100 : f32 to vector<2x32xf32>
    %439 = arith.addf %438, %437 : vector<2x32xf32>
    %440 = arith.divf %438, %439 : vector<2x32xf32>
    %441 = vector.extract_strided_slice %434 {offsets = [0, 32], sizes = [2, 32], strides = [1, 1]} : vector<2x128xf32> to vector<2x32xf32>
    %442 = arith.negf %441 : vector<2x32xf32>
    %443 = math.exp %442 : vector<2x32xf32>
    %cst_101 = arith.constant 1.000000e+00 : f32
    %444 = vector.broadcast %cst_101 : f32 to vector<2x32xf32>
    %445 = arith.addf %444, %443 : vector<2x32xf32>
    %446 = arith.divf %444, %445 : vector<2x32xf32>
    %447 = vector.extract_strided_slice %434 {offsets = [0, 64], sizes = [2, 32], strides = [1, 1]} : vector<2x128xf32> to vector<2x32xf32>
    %448 = math.tanh %447 : vector<2x32xf32>
    %449 = vector.extract_strided_slice %434 {offsets = [0, 96], sizes = [2, 32], strides = [1, 1]} : vector<2x128xf32> to vector<2x32xf32>
    %450 = arith.negf %449 : vector<2x32xf32>
    %451 = math.exp %450 : vector<2x32xf32>
    %cst_102 = arith.constant 1.000000e+00 : f32
    %452 = vector.broadcast %cst_102 : f32 to vector<2x32xf32>
    %453 = arith.addf %452, %451 : vector<2x32xf32>
    %454 = arith.divf %452, %453 : vector<2x32xf32>
    %455 = arith.mulf %446, %396 : vector<2x32xf32>
    %456 = arith.mulf %440, %448 : vector<2x32xf32>
    %457 = arith.addf %455, %456 : vector<2x32xf32>
    %458 = math.tanh %457 : vector<2x32xf32>
    %459 = arith.mulf %454, %458 : vector<2x32xf32>
    %460 = tpu.concatenate %459, %427 in 1 : vector<2x32xf32>, vector<2x32xf32> -> vector<2x64xf32>
    %cst_103 = arith.constant dense<0.000000e+00> : vector<2x128xf32>
    %461 = tpu.matmul %460, %1, %cst_103 {dimension_numbers = #tpu.dot_dimension_numbers<[1], [0], [0], [1], [0, 0, 1, 1], [], []>} : vector<2x64xf32>, vector<64x128xf32>, vector<2x128xf32> -> vector<2x128xf32>
    %462 = vector.broadcast %2 : vector<1x128xf32> to vector<2x128xf32>
    %463 = arith.addf %461, %462 : vector<2x128xf32>
    %464 = vector.extract_strided_slice %463 {offsets = [0, 0], sizes = [2, 32], strides = [1, 1]} : vector<2x128xf32> to vector<2x32xf32>
    %465 = arith.negf %464 : vector<2x32xf32>
    %466 = math.exp %465 : vector<2x32xf32>
    %cst_104 = arith.constant 1.000000e+00 : f32
    %467 = vector.broadcast %cst_104 : f32 to vector<2x32xf32>
    %468 = arith.addf %467, %466 : vector<2x32xf32>
    %469 = arith.divf %467, %468 : vector<2x32xf32>
    %470 = vector.extract_strided_slice %463 {offsets = [0, 32], sizes = [2, 32], strides = [1, 1]} : vector<2x128xf32> to vector<2x32xf32>
    %471 = arith.negf %470 : vector<2x32xf32>
    %472 = math.exp %471 : vector<2x32xf32>
    %cst_105 = arith.constant 1.000000e+00 : f32
    %473 = vector.broadcast %cst_105 : f32 to vector<2x32xf32>
    %474 = arith.addf %473, %472 : vector<2x32xf32>
    %475 = arith.divf %473, %474 : vector<2x32xf32>
    %476 = vector.extract_strided_slice %463 {offsets = [0, 64], sizes = [2, 32], strides = [1, 1]} : vector<2x128xf32> to vector<2x32xf32>
    %477 = math.tanh %476 : vector<2x32xf32>
    %478 = vector.extract_strided_slice %463 {offsets = [0, 96], sizes = [2, 32], strides = [1, 1]} : vector<2x128xf32> to vector<2x32xf32>
    %479 = arith.negf %478 : vector<2x32xf32>
    %480 = math.exp %479 : vector<2x32xf32>
    %cst_106 = arith.constant 1.000000e+00 : f32
    %481 = vector.broadcast %cst_106 : f32 to vector<2x32xf32>
    %482 = arith.addf %481, %480 : vector<2x32xf32>
    %483 = arith.divf %481, %482 : vector<2x32xf32>
    %484 = arith.mulf %475, %425 : vector<2x32xf32>
    %485 = arith.mulf %469, %477 : vector<2x32xf32>
    %486 = arith.addf %484, %485 : vector<2x32xf32>
    %487 = math.tanh %486 : vector<2x32xf32>
    %488 = arith.mulf %483, %487 : vector<2x32xf32>
    %c7_107 = arith.constant 7 : index
    %c0_108 = arith.constant 0 : index
    %c0_109 = arith.constant 0 : index
    %489 = vector.load %arg11[%c7_107, %c0_108, %c0_109] : memref<8x2x32xf32, #tpu.memory_space<vmem>>, vector<1x2x32xf32>
    %490 = vector.shape_cast %489 : vector<1x2x32xf32> to vector<2x32xf32>
    %491 = vector.shape_cast %488 : vector<2x32xf32> to vector<1x2x32xf32>
    tpu.vector_store %arg11[%c7_107, %c0_108, %c0_109], %491 {strides = array<i32>} : memref<8x2x32xf32, #tpu.memory_space<vmem>>, vector<1x2x32xf32>,
    %c0_110 = arith.constant 0 : index
    %c0_111 = arith.constant 0 : index
    %c0_112 = arith.constant 0 : index
    %492 = vector.load %arg11[%c0_110, %c0_111, %c0_112] : memref<8x2x32xf32, #tpu.memory_space<vmem>>, vector<8x2x32xf32>
    %c0_113 = arith.constant 0 : index
    %c0_114 = arith.constant 0 : index
    %c0_115 = arith.constant 0 : index
    %493 = vector.load %arg5[%c0_113, %c0_114, %c0_115] : memref<1x1x32xf32, #tpu.memory_space<vmem>>, vector<1x1x32xf32>
    %494 = vector.broadcast %493 : vector<1x1x32xf32> to vector<8x2x32xf32>
    %495 = arith.mulf %492, %494 : vector<8x2x32xf32>
    %cst_116 = arith.constant dense<0.000000e+00> : vector<8x2xf32>
    %496 = vector.multi_reduction <add>, %495, %cst_116 [2] : vector<8x2x32xf32> to vector<8x2xf32>
    %497 = vector.shape_cast %496 : vector<8x2xf32> to vector<8x2x1xf32>
    %cst_117 = arith.constant dense<0xFF800000> : vector<2x1xf32>
    %498 = vector.multi_reduction <maximumf>, %497, %cst_117 [0] : vector<8x2x1xf32> to vector<2x1xf32>
    %499 = vector.shape_cast %498 : vector<2x1xf32> to vector<1x2x1xf32>
    %500 = vector.broadcast %499 : vector<1x2x1xf32> to vector<8x2x1xf32>
    %501 = arith.subf %497, %500 : vector<8x2x1xf32>
    %502 = math.exp %501 : vector<8x2x1xf32>
    %cst_118 = arith.constant dense<0.000000e+00> : vector<2x1xf32>
    %503 = vector.multi_reduction <add>, %502, %cst_118 [0] : vector<8x2x1xf32> to vector<2x1xf32>
    %504 = vector.shape_cast %503 : vector<2x1xf32> to vector<1x2x1xf32>
    %505 = vector.broadcast %504 : vector<1x2x1xf32> to vector<8x2x1xf32>
    %506 = arith.divf %502, %505 : vector<8x2x1xf32>
    %507 = vector.broadcast %506 : vector<8x2x1xf32> to vector<8x2x32xf32>
    %508 = arith.mulf %492, %507 : vector<8x2x32xf32>
    %cst_119 = arith.constant dense<0.000000e+00> : vector<2x32xf32>
    %509 = vector.multi_reduction <add>, %508, %cst_119 [0] : vector<8x2x32xf32> to vector<2x32xf32>
    %c0_120 = arith.constant 0 : index
    %c0_121 = arith.constant 0 : index
    %510 = vector.load %arg8[%c0_120, %c0_121] : memref<1x32xf32, #tpu.memory_space<vmem>>, vector<1x32xf32>
    %511 = vector.broadcast %510 : vector<1x32xf32> to vector<2x32xf32>
    %512 = arith.subf %509, %511 : vector<2x32xf32>
    %c0_122 = arith.constant 0 : index
    %c0_123 = arith.constant 0 : index
    %513 = vector.load %arg6[%c0_122, %c0_123] : memref<1x32xf32, #tpu.memory_space<vmem>>, vector<1x32xf32>
    %514 = vector.broadcast %513 : vector<1x32xf32> to vector<2x32xf32>
    %515 = arith.mulf %512, %514 : vector<2x32xf32>
    %c0_124 = arith.constant 0 : index
    %c0_125 = arith.constant 0 : index
    %516 = vector.load %arg9[%c0_124, %c0_125] : memref<1x32xf32, #tpu.memory_space<vmem>>, vector<1x32xf32>
    %cst_126 = arith.constant 9.99999974E-6 : f32
    %517 = vector.broadcast %cst_126 : f32 to vector<1x32xf32>
    %518 = arith.addf %516, %517 : vector<1x32xf32>
    %519 = math.rsqrt %518 : vector<1x32xf32>
    %520 = vector.broadcast %519 : vector<1x32xf32> to vector<2x32xf32>
    %521 = arith.mulf %515, %520 : vector<2x32xf32>
    %c0_127 = arith.constant 0 : index
    %c0_128 = arith.constant 0 : index
    %522 = vector.load %arg7[%c0_127, %c0_128] : memref<1x32xf32, #tpu.memory_space<vmem>>, vector<1x32xf32>
    %523 = vector.broadcast %522 : vector<1x32xf32> to vector<2x32xf32>
    %524 = arith.addf %521, %523 : vector<2x32xf32>
    %cst_129 = arith.constant 0.000000e+00 : f32
    %525 = vector.broadcast %cst_129 : f32 to vector<2x32xf32>
    %526 = arith.maximumf %524, %525 : vector<2x32xf32>
    %c0_130 = arith.constant 0 : index
    %c0_131 = arith.constant 0 : index
    %527 = vector.load %arg10[%c0_130, %c0_131] : memref<2x32xf32, #tpu.memory_space<vmem>>, vector<2x32xf32>
    tpu.vector_store %arg10[%c0_130, %c0_131], %526 {strides = array<i32>} : memref<2x32xf32, #tpu.memory_space<vmem>>, vector<2x32xf32>,
    return
  }
  func.func @transform_0(%arg0: i32) -> (i32, i32, i32) {
    %c0_i32 = arith.constant 0 : i32
    %c0_i32_0 = arith.constant 0 : i32
    %c0_i32_1 = arith.constant 0 : i32
    return %c0_i32, %arg0, %c0_i32_0 : i32, i32, i32
  }
  func.func @transform_1(%arg0: i32) -> (i32, i32) {
    %c0_i32 = arith.constant 0 : i32
    %c0_i32_0 = arith.constant 0 : i32
    %c0_i32_1 = arith.constant 0 : i32
    return %c0_i32, %c0_i32_0 : i32, i32
  }
  func.func @transform_2(%arg0: i32) -> (i32, i32) {
    %c0_i32 = arith.constant 0 : i32
    %c0_i32_0 = arith.constant 0 : i32
    %c0_i32_1 = arith.constant 0 : i32
    return %c0_i32, %c0_i32_0 : i32, i32
  }
  func.func @transform_3(%arg0: i32) -> (i32, i32) {
    %c0_i32 = arith.constant 0 : i32
    %c0_i32_0 = arith.constant 0 : i32
    %c0_i32_1 = arith.constant 0 : i32
    return %c0_i32, %c0_i32_0 : i32, i32
  }
  func.func @transform_4(%arg0: i32) -> (i32, i32, i32) {
    %c0_i32 = arith.constant 0 : i32
    %c0_i32_0 = arith.constant 0 : i32
    %c0_i32_1 = arith.constant 0 : i32
    %c0_i32_2 = arith.constant 0 : i32
    return %c0_i32, %c0_i32_0, %c0_i32_1 : i32, i32, i32
  }
  func.func @transform_5(%arg0: i32) -> (i32, i32) {
    %c0_i32 = arith.constant 0 : i32
    %c0_i32_0 = arith.constant 0 : i32
    %c0_i32_1 = arith.constant 0 : i32
    return %c0_i32, %c0_i32_0 : i32, i32
  }
  func.func @transform_6(%arg0: i32) -> (i32, i32) {
    %c0_i32 = arith.constant 0 : i32
    %c0_i32_0 = arith.constant 0 : i32
    %c0_i32_1 = arith.constant 0 : i32
    return %c0_i32, %c0_i32_0 : i32, i32
  }
  func.func @transform_7(%arg0: i32) -> (i32, i32) {
    %c0_i32 = arith.constant 0 : i32
    %c0_i32_0 = arith.constant 0 : i32
    %c0_i32_1 = arith.constant 0 : i32
    return %c0_i32, %c0_i32_0 : i32, i32
  }
  func.func @transform_8(%arg0: i32) -> (i32, i32) {
    %c0_i32 = arith.constant 0 : i32
    %c0_i32_0 = arith.constant 0 : i32
    %c0_i32_1 = arith.constant 0 : i32
    return %c0_i32, %c0_i32_0 : i32, i32
  }
  func.func @transform_9(%arg0: i32) -> (i32, i32) {
    %c0_i32 = arith.constant 0 : i32
    %c0_i32_0 = arith.constant 0 : i32
    return %arg0, %c0_i32 : i32, i32
  }
}

</mosaic_0001>

<llo_original>
// kernel: hcn_inertial_enc_forward.3
$region0: #{hcn_inertial_enc_forward.3}
  #allocation0 [shape = 'u32[]', space=smem, size = 0x4, offset = 0x4, fixed_abs, tag = 'smem constant byte address 0x4 - core index']
  #allocation1 [shape = 'u32[144,128]{1,0:T(1,128)}', space=vmem, size = 0x12000, scoped, tag = 'internal scratch']
  #allocation2 [shape = 'f32[8,2,32]{2,1,0:T(2,128)}', space=vmem, size = 0x2000, scoped, tag = 'scratch operand']
  %s0 = inlined_call_operand.vmem [shape: f32[8,2,128], index: 0, kind: input, shape index: {}]
  %s1 = inlined_call_operand.vmem [shape: f32[32,128], index: 1, kind: input, shape index: {}]
  %s2 = inlined_call_operand.vmem [shape: f32[64,128], index: 2, kind: input, shape index: {}]
  %s3 = inlined_call_operand.vmem [shape: f32[1,128], index: 3, kind: input, shape index: {}]
  %s4 = inlined_call_operand.vmem [shape: f32[1,1,32], index: 4, kind: input, shape index: {}]
  %s5 = inlined_call_operand.vmem [shape: f32[1,32], index: 5, kind: input, shape index: {}]
  %s6 = inlined_call_operand.vmem [shape: f32[1,32], index: 6, kind: input, shape index: {}]
  %s7 = inlined_call_operand.vmem [shape: f32[1,32], index: 7, kind: input, shape index: {}]
  %s8 = inlined_call_operand.vmem [shape: f32[1,32], index: 8, kind: input, shape index: {}]
  %s9 = inlined_call_operand.hbm [shape: f32[2,32], index: 9, kind: output, shape index: {}]
  %s10 = sld [smem:[#allocation0]]
  $region46: #{hcn_inertial_enc_forward.3} parent=0
    _
  %s12 = ssub.s32 1, %s10
  %s13 = scalar_select 0, %s12, %s10
  $region1: #{hcn_inertial_enc_forward.3} parent=0
    #allocation3 [shape = 'u8[1024]{0}', space=vmem, size = 0x400, scoped, tag = 'output window, operand 0, single buffered']
    #allocation4 [shape = 's32[1]{0}', space=sflag, size = 0x4, scoped, tag = 'scoped memory for hcn_inertial_enc_forward.3']
    %14 = vsyncpa [#allocation4], 0
    // Predicated region
    $region2: #{hcn_inertial_enc_forward.3} parent=1 // pred_check
      _
    $region3: #{hcn_inertial_enc_forward.3} parent=1 // pred_check_branch
      %16 = sbr.rel (0) target = $region5
    $region4: #{hcn_inertial_enc_forward.3} parent=1 // pred_region
      _
    $region5: #{hcn_inertial_enc_forward.3} parent=1 // pred_fallthru
      _
    // Predicated region
    $region6: #{hcn_inertial_enc_forward.3} parent=1 // pred_check
      _
    $region7: #{hcn_inertial_enc_forward.3} parent=1 // pred_check_branch
      %18 = sbr.rel (0) target = $region9
    $region8: #{hcn_inertial_enc_forward.3} parent=1 // pred_region
      _
    $region9: #{hcn_inertial_enc_forward.3} parent=1 // pred_fallthru
      _
    // Predicated region
    $region10: #{hcn_inertial_enc_forward.3} parent=1 // pred_check
      _
    $region11: #{hcn_inertial_enc_forward.3} parent=1 // pred_check_branch
      %20 = sbr.rel (0) target = $region13
    $region12: #{hcn_inertial_enc_forward.3} parent=1 // pred_region
      _
    $region13: #{hcn_inertial_enc_forward.3} parent=1 // pred_fallthru
      _
    // Predicated region
    $region14: #{hcn_inertial_enc_forward.3} parent=1 // pred_check
      _
    $region15: #{hcn_inertial_enc_forward.3} parent=1 // pred_check_branch
      %22 = sbr.rel (0) target = $region17
    $region16: #{hcn_inertial_enc_forward.3} parent=1 // pred_region
      _
    $region17: #{hcn_inertial_enc_forward.3} parent=1 // pred_fallthru
      _
    // Predicated region
    $region18: #{hcn_inertial_enc_forward.3} parent=1 // pred_check
      _
    $region19: #{hcn_inertial_enc_forward.3} parent=1 // pred_check_branch
      %24 = sbr.rel (0) target = $region21
    $region20: #{hcn_inertial_enc_forward.3} parent=1 // pred_region
      _
    $region21: #{hcn_inertial_enc_forward.3} parent=1 // pred_fallthru
      _
    // Predicated region
    $region22: #{hcn_inertial_enc_forward.3} parent=1 // pred_check
      _
    $region23: #{hcn_inertial_enc_forward.3} parent=1 // pred_check_branch
      %26 = sbr.rel (0) target = $region25
    $region24: #{hcn_inertial_enc_forward.3} parent=1 // pred_region
      _
    $region25: #{hcn_inertial_enc_forward.3} parent=1 // pred_fallthru
      _
    // Predicated region
    $region26: #{hcn_inertial_enc_forward.3} parent=1 // pred_check
      _
    $region27: #{hcn_inertial_enc_forward.3} parent=1 // pred_check_branch
      %28 = sbr.rel (0) target = $region29
    $region28: #{hcn_inertial_enc_forward.3} parent=1 // pred_region
      _
    $region29: #{hcn_inertial_enc_forward.3} parent=1 // pred_fallthru
      _
    // Predicated region
    $region30: #{hcn_inertial_enc_forward.3} parent=1 // pred_check
      _
    $region31: #{hcn_inertial_enc_forward.3} parent=1 // pred_check_branch
      %30 = sbr.rel (0) target = $region33
    $region32: #{hcn_inertial_enc_forward.3} parent=1 // pred_region
      _
    $region33: #{hcn_inertial_enc_forward.3} parent=1 // pred_fallthru
      _
    // Predicated region
    $region34: #{hcn_inertial_enc_forward.3} parent=1 // pred_check
      _
    $region35: #{hcn_inertial_enc_forward.3} parent=1 // pred_check_branch
      %32 = sbr.rel (0) target = $region37
    $region36: #{hcn_inertial_enc_forward.3} parent=1 // pred_region
      _
    $region37: #{hcn_inertial_enc_forward.3} parent=1 // pred_fallthru
      _
    %v33 = vld [vmem:[%s1] sm:$0xff]
    %v34 = vld [vmem:[%s1 + $0x8] sm:$0xff]
    %v35 = vld [vmem:[%s1 + $0x10] sm:$0xff]
    %v36 = vld [vmem:[%s1 + $0x18] sm:$0xff]
    %v37 = vld [vmem:[%s2] sm:$0xff]
    %v38 = vld [vmem:[%s2 + $0x8] sm:$0xff]
    %v39 = vld [vmem:[%s2 + $0x10] sm:$0xff]
    %v40 = vld [vmem:[%s2 + $0x18] sm:$0xff]
    %v41 = vld [vmem:[%s2 + $0x20] sm:$0xff]
    %v42 = vld [vmem:[%s2 + $0x28] sm:$0xff]
    %v43 = vld [vmem:[%s2 + $0x30] sm:$0xff]
    %v44 = vld [vmem:[%s2 + $0x38] sm:$0xff]
    %v45 = vld [vmem:[%s3] sm:$0x1]
    %v46 = vld [vmem:[%s0] sm:$0x3]
    %vm47 = vcmask 261120
    %v49 = vsel %vm47, 0.0, 0
    %51 = vmatprep.subr.mxu0 0.0
    %52 = vmatpush1.msra.mxu0 0.0
    %53 = vmatprep.subr.mxu0 0.0
    %54 = vmatpush1.msra.mxu0 0.0
    %55 = vmatprep.subr.mxu0 0.0
    %56 = vmatpush1.msra.mxu0 0.0
    %57 = vmatprep.subr.mxu0 0.0
    %58 = vmatpush1.msra.mxu0 0.0
    %59 = vmatprep.subr.mxu0 0.0
    %60 = vmatpush1.msra.mxu0 0.0
    %61 = vmatprep.subr.mxu0 0.0
    %62 = vmatpush1.msra.mxu0 0.0
    %63 = vmatprep.subr.mxu0 0.0
    %64 = vmatpush1.msra.mxu0 0.0
    %65 = vmatprep.subr.mxu0 0.0
    %66 = vmatpush1.msra.mxu0 0.0
    %67 = vmatprep.subr.mxu0 0.0
    %68 = vmatpush1.msra.mxu0 0.0
    %69 = vmatprep.subr.mxu0 0.0
    %70 = vmatpush1.msra.mxu0 0.0
    %71 = vmatprep.subr.mxu0 0.0
    %72 = vmatpush1.msra.mxu0 0.0
    %73 = vmatprep.subr.mxu0 0.0
    %74 = vmatpush1.msra.mxu0 0.0
    %75 = vmatprep.subr.mxu0 0.0
    %76 = vmatpush1.msra.mxu0 %v36
    %77 = vmatprep.subr.mxu0 0.0
    %78 = vmatpush1.msra.mxu0 %v35
    %79 = vmatprep.subr.mxu0 0.0
    %80 = vmatpush1.msra.mxu0 %v34
    %81 = vmatprep.subr.mxu0 0.0
    %82 = vmatpush1.msra.mxu0 %v33
    %83 = vmatprep.subr.mxu0 0.0
    %84 = vmatpush2.msra.mxu0 0.0
    %85 = vmatprep.subr.mxu0 0.0
    %86 = vmatpush2.msra.mxu0 0.0
    %87 = vmatprep.subr.mxu0 0.0
    %88 = vmatpush2.msra.mxu0 0.0
    %89 = vmatprep.subr.mxu0 0.0
    %90 = vmatpush2.msra.mxu0 0.0
    %91 = vmatprep.subr.mxu0 0.0
    %92 = vmatpush2.msra.mxu0 0.0
    %93 = vmatprep.subr.mxu0 0.0
    %94 = vmatpush2.msra.mxu0 0.0
    %95 = vmatprep.subr.mxu0 0.0
    %96 = vmatpush2.msra.mxu0 0.0
    %97 = vmatprep.subr.mxu0 0.0
    %98 = vmatpush2.msra.mxu0 0.0
    %99 = vmatprep.subr.mxu0 0.0
    %100 = vmatpush2.msra.mxu0 0.0
    %101 = vmatprep.subr.mxu0 0.0
    %102 = vmatpush2.msra.mxu0 0.0
    %103 = vmatprep.subr.mxu0 0.0
    %104 = vmatpush2.msra.mxu0 0.0
    %105 = vmatprep.subr.mxu0 0.0
    %106 = vmatpush2.msra.mxu0 0.0
    %107 = vmatprep.subr.mxu0 0.0
    %108 = vmatpush2.msra.mxu0 0.0
    %109 = vmatprep.subr.mxu0 0.0
    %110 = vmatpush2.msra.mxu0 0.0
    %111 = vmatprep.subr.mxu0 0.0
    %112 = vmatpush2.msra.mxu0 0.0
    %113 = vmatprep.subr.mxu0 0.0
    %114 = vmatpush2.msra.mxu0 0.0
    %115 = vmatprep.mubr.f32.mxu0 0.0
    %116 = vmatmul.mubr.f32.gmra.mxu0 %v49
    %v117 = vpop.f32.mrf.mxu0
    %v118 = vadd.f32 0.0, %v117
    %v119 = vpop.f32.mrf.mxu0
    %120 = vdwg.mxu0
    %v121 = vadd.f32 %v46, %v118
    %v122 = vxor.u32 %v121, 2147483648
    %v123 = vmul.f32 %v122, 1.442695
    %v124 = vpow.pop %v123
    %v125 = vadd.f32 %v124, 1.0
    %v126 = vrcp.pop %v125
    %v127 = vmul.f32 1.0, %v126
    %v128 = vtanh.pop %v121
    %v129 = vmul.f32 %v127, 0.0
    %131 = vrot.lane.b32.xlu0 %v128, 64
    %v132 = vpop.permute.xlu0 %131
    %v134 = vmul.f32 %v127, %v132
    %136 = vrot.lane.b32.xlu0 %v134, 32
    %v137 = vpop.permute.xlu0 %136
    %v139 = vadd.f32 %v129, %v137
    %v140 = vtanh.pop %v139
    %142 = vrot.lane.b32.xlu0 %v140, 64
    %v143 = vpop.permute.xlu0 %142
    %v145 = vmul.f32 %v127, %v143
    %147 = vrot.lane.b32.xlu0 %v145, 32
    %v148 = vpop.permute.xlu0 %147
    %v150 = vsel %vm47, %v148, 0.0
    %v152 = vlaneseq
    %v153 = vshrl.u32 %v152, 7
    %v154 = vsub.s32 0, %v153
    %v155 = vrot.slane %v45, %v154
    %vm157 = vcmask 523264
    %v159 = vsel %vm157, %v150, 0
    %161 = vmatprep.subr.mxu0 0.0
    %162 = vmatpush1.msra.mxu0 0.0
    %163 = vmatprep.subr.mxu0 0.0
    %164 = vmatpush1.msra.mxu0 0.0
    %165 = vmatprep.subr.mxu0 0.0
    %166 = vmatpush1.msra.mxu0 0.0
    %167 = vmatprep.subr.mxu0 0.0
    %168 = vmatpush1.msra.mxu0 0.0
    %169 = vmatprep.subr.mxu0 0.0
    %170 = vmatpush1.msra.mxu0 0.0
    %171 = vmatprep.subr.mxu0 0.0
    %172 = vmatpush1.msra.mxu0 0.0
    %173 = vmatprep.subr.mxu0 0.0
    %174 = vmatpush1.msra.mxu0 0.0
    %175 = vmatprep.subr.mxu0 0.0
    %176 = vmatpush1.msra.mxu0 0.0
    %177 = vmatprep.subr.mxu0 0.0
    %178 = vmatpush1.msra.mxu0 %v44
    %179 = vmatprep.subr.mxu0 0.0
    %180 = vmatpush1.msra.mxu0 %v43
    %181 = vmatprep.subr.mxu0 0.0
    %182 = vmatpush1.msra.mxu0 %v42
    %183 = vmatprep.subr.mxu0 0.0
    %184 = vmatpush1.msra.mxu0 %v41
    %185 = vmatprep.subr.mxu0 0.0
    %186 = vmatpush1.msra.mxu0 %v40
    %187 = vmatprep.subr.mxu0 0.0
    %188 = vmatpush1.msra.mxu0 %v39
    %189 = vmatprep.subr.mxu0 0.0
    %190 = vmatpush1.msra.mxu0 %v38
    %191 = vmatprep.subr.mxu0 0.0
    %192 = vmatpush1.msra.mxu0 %v37
    %193 = vmatprep.subr.mxu0 0.0
    %194 = vmatpush2.msra.mxu0 0.0
    %195 = vmatprep.subr.mxu0 0.0
    %196 = vmatpush2.msra.mxu0 0.0
    %197 = vmatprep.subr.mxu0 0.0
    %198 = vmatpush2.msra.mxu0 0.0
    %199 = vmatprep.subr.mxu0 0.0
    %200 = vmatpush2.msra.mxu0 0.0
    %201 = vmatprep.subr.mxu0 0.0
    %202 = vmatpush2.msra.mxu0 0.0
    %203 = vmatprep.subr.mxu0 0.0
    %204 = vmatpush2.msra.mxu0 0.0
    %205 = vmatprep.subr.mxu0 0.0
    %206 = vmatpush2.msra.mxu0 0.0
    %207 = vmatprep.subr.mxu0 0.0
    %208 = vmatpush2.msra.mxu0 0.0
    %209 = vmatprep.subr.mxu0 0.0
    %210 = vmatpush2.msra.mxu0 0.0
    %211 = vmatprep.subr.mxu0 0.0
    %212 = vmatpush2.msra.mxu0 0.0
    %213 = vmatprep.subr.mxu0 0.0
    %214 = vmatpush2.msra.mxu0 0.0
    %215 = vmatprep.subr.mxu0 0.0
    %216 = vmatpush2.msra.mxu0 0.0
    %217 = vmatprep.subr.mxu0 0.0
    %218 = vmatpush2.msra.mxu0 0.0
    %219 = vmatprep.subr.mxu0 0.0
    %220 = vmatpush2.msra.mxu0 0.0
    %221 = vmatprep.subr.mxu0 0.0
    %222 = vmatpush2.msra.mxu0 0.0
    %223 = vmatprep.subr.mxu0 0.0
    %224 = vmatpush2.msra.mxu0 0.0
    %225 = vmatprep.mubr.f32.mxu0 0.0
    %226 = vmatmul.mubr.f32.gmra.mxu0 %v159
    %v227 = vpop.f32.mrf.mxu0
    %v228 = vadd.f32 %v155, %v227
    %v229 = vpop.f32.mrf.mxu0
    %230 = vdwg.mxu0
    %v231 = vxor.u32 %v228, 2147483648
    %v232 = vmul.f32 %v231, 1.442695
    %v233 = vpow.pop %v232
    %v234 = vadd.f32 %v233, 1.0
    %v235 = vrcp.pop %v234
    %v236 = vmul.f32 1.0, %v235
    %v237 = vtanh.pop %v228
    %v238 = vmul.f32 %v236, 0.0
    %240 = vrot.lane.b32.xlu0 %v237, 64
    %v241 = vpop.permute.xlu0 %240
    %v243 = vmul.f32 %v236, %v241
    %245 = vrot.lane.b32.xlu0 %v243, 32
    %v246 = vpop.permute.xlu0 %245
    %v248 = vadd.f32 %v238, %v246
    %v249 = vtanh.pop %v248
    %251 = vrot.lane.b32.xlu0 %v249, 64
    %v252 = vpop.permute.xlu0 %251
    %v254 = vmul.f32 %v236, %v252
    %256 = vrot.lane.b32.xlu0 %v254, 32
    %v257 = vpop.permute.xlu0 %256
    %vm259 = vcmask 254976
    %260 = vst.msk [vmem:[#allocation2] sm:$0x3] %vm259, %v257
    %s261 = scalar_lea.vmem %s0, 2
    %v262 = vld [vmem:[%s261] sm:$0x3]
    %v263 = vsel %vm47, %v148, 0
    %265 = vmatprep.subr.mxu0 0.0
    %266 = vmatpush1.msra.mxu0 0.0
    %267 = vmatprep.subr.mxu0 0.0
    %268 = vmatpush1.msra.mxu0 0.0
    %269 = vmatprep.subr.mxu0 0.0
    %270 = vmatpush1.msra.mxu0 0.0
    %271 = vmatprep.subr.mxu0 0.0
    %272 = vmatpush1.msra.mxu0 0.0
    %273 = vmatprep.subr.mxu0 0.0
    %274 = vmatpush1.msra.mxu0 0.0
    %275 = vmatprep.subr.mxu0 0.0
    %276 = vmatpush1.msra.mxu0 0.0
    %277 = vmatprep.subr.mxu0 0.0
    %278 = vmatpush1.msra.mxu0 0.0
    %279 = vmatprep.subr.mxu0 0.0
    %280 = vmatpush1.msra.mxu0 0.0
    %281 = vmatprep.subr.mxu0 0.0
    %282 = vmatpush1.msra.mxu0 0.0
    %283 = vmatprep.subr.mxu0 0.0
    %284 = vmatpush1.msra.mxu0 0.0
    %285 = vmatprep.subr.mxu0 0.0
    %286 = vmatpush1.msra.mxu0 0.0
    %287 = vmatprep.subr.mxu0 0.0
    %288 = vmatpush1.msra.mxu0 0.0
    %289 = vmatprep.subr.mxu0 0.0
    %290 = vmatpush1.msra.mxu0 %v36
    %291 = vmatprep.subr.mxu0 0.0
    %292 = vmatpush1.msra.mxu0 %v35
    %293 = vmatprep.subr.mxu0 0.0
    %294 = vmatpush1.msra.mxu0 %v34
    %295 = vmatprep.subr.mxu0 0.0
    %296 = vmatpush1.msra.mxu0 %v33
    %297 = vmatprep.subr.mxu0 0.0
    %298 = vmatpush2.msra.mxu0 0.0
    %299 = vmatprep.subr.mxu0 0.0
    %300 = vmatpush2.msra.mxu0 0.0
    %301 = vmatprep.subr.mxu0 0.0
    %302 = vmatpush2.msra.mxu0 0.0
    %303 = vmatprep.subr.mxu0 0.0
    %304 = vmatpush2.msra.mxu0 0.0
    %305 = vmatprep.subr.mxu0 0.0
    %306 = vmatpush2.msra.mxu0 0.0
    %307 = vmatprep.subr.mxu0 0.0
    %308 = vmatpush2.msra.mxu0 0.0
    %309 = vmatprep.subr.mxu0 0.0
    %310 = vmatpush2.msra.mxu0 0.0
    %311 = vmatprep.subr.mxu0 0.0
    %312 = vmatpush2.msra.mxu0 0.0
    %313 = vmatprep.subr.mxu0 0.0
    %314 = vmatpush2.msra.mxu0 0.0
    %315 = vmatprep.subr.mxu0 0.0
    %316 = vmatpush2.msra.mxu0 0.0
    %317 = vmatprep.subr.mxu0 0.0
    %318 = vmatpush2.msra.mxu0 0.0
    %319 = vmatprep.subr.mxu0 0.0
    %320 = vmatpush2.msra.mxu0 0.0
    %321 = vmatprep.subr.mxu0 0.0
    %322 = vmatpush2.msra.mxu0 0.0
    %323 = vmatprep.subr.mxu0 0.0
    %324 = vmatpush2.msra.mxu0 0.0
    %325 = vmatprep.subr.mxu0 0.0
    %326 = vmatpush2.msra.mxu0 0.0
    %327 = vmatprep.subr.mxu0 0.0
    %328 = vmatpush2.msra.mxu0 0.0
    %329 = vmatprep.mubr.f32.mxu0 0.0
    %330 = vmatmul.mubr.f32.gmra.mxu0 %v263
    %v331 = vpop.f32.mrf.mxu0
    %v332 = vadd.f32 0.0, %v331
    %v333 = vpop.f32.mrf.mxu0
    %334 = vdwg.mxu0
    %v335 = vadd.f32 %v262, %v332
    %v336 = vxor.u32 %v335, 2147483648
    %v337 = vmul.f32 %v336, 1.442695
    %v338 = vpow.pop %v337
    %v339 = vadd.f32 %v338, 1.0
    %v340 = vrcp.pop %v339
    %v341 = vmul.f32 1.0, %v340
    %v342 = vtanh.pop %v335
    %v343 = vmul.f32 %v341, %v139
    %345 = vrot.lane.b32.xlu0 %v342, 64
    %v346 = vpop.permute.xlu0 %345
    %v348 = vmul.f32 %v341, %v346
    %350 = vrot.lane.b32.xlu0 %v348, 32
    %v351 = vpop.permute.xlu0 %350
    %v353 = vadd.f32 %v343, %v351
    %v354 = vtanh.pop %v353
    %356 = vrot.lane.b32.xlu0 %v354, 64
    %v357 = vpop.permute.xlu0 %356
    %v359 = vmul.f32 %v341, %v357
    %361 = vrot.lane.b32.xlu0 %v359, 32
    %v362 = vpop.permute.xlu0 %361
    %364 = vrot.lane.b32.xlu0 %v254, 64
    %v365 = vpop.permute.xlu0 %364
    %v367 = vsel %vm47, %v362, %v365
    %v369 = vsel %vm157, %v367, 0
    %371 = vmatprep.subr.mxu0 0.0
    %372 = vmatpush1.msra.mxu0 0.0
    %373 = vmatprep.subr.mxu0 0.0
    %374 = vmatpush1.msra.mxu0 0.0
    %375 = vmatprep.subr.mxu0 0.0
    %376 = vmatpush1.msra.mxu0 0.0
    %377 = vmatprep.subr.mxu0 0.0
    %378 = vmatpush1.msra.mxu0 0.0
    %379 = vmatprep.subr.mxu0 0.0
    %380 = vmatpush1.msra.mxu0 0.0
    %381 = vmatprep.subr.mxu0 0.0
    %382 = vmatpush1.msra.mxu0 0.0
    %383 = vmatprep.subr.mxu0 0.0
    %384 = vmatpush1.msra.mxu0 0.0
    %385 = vmatprep.subr.mxu0 0.0
    %386 = vmatpush1.msra.mxu0 0.0
    %387 = vmatprep.subr.mxu0 0.0
    %388 = vmatpush1.msra.mxu0 %v44
    %389 = vmatprep.subr.mxu0 0.0
    %390 = vmatpush1.msra.mxu0 %v43
    %391 = vmatprep.subr.mxu0 0.0
    %392 = vmatpush1.msra.mxu0 %v42
    %393 = vmatprep.subr.mxu0 0.0
    %394 = vmatpush1.msra.mxu0 %v41
    %395 = vmatprep.subr.mxu0 0.0
    %396 = vmatpush1.msra.mxu0 %v40
    %397 = vmatprep.subr.mxu0 0.0
    %398 = vmatpush1.msra.mxu0 %v39
    %399 = vmatprep.subr.mxu0 0.0
    %400 = vmatpush1.msra.mxu0 %v38
    %401 = vmatprep.subr.mxu0 0.0
    %402 = vmatpush1.msra.mxu0 %v37
    %403 = vmatprep.subr.mxu0 0.0
    %404 = vmatpush2.msra.mxu0 0.0
    %405 = vmatprep.subr.mxu0 0.0
    %406 = vmatpush2.msra.mxu0 0.0
    %407 = vmatprep.subr.mxu0 0.0
    %408 = vmatpush2.msra.mxu0 0.0
    %409 = vmatprep.subr.mxu0 0.0
    %410 = vmatpush2.msra.mxu0 0.0
    %411 = vmatprep.subr.mxu0 0.0
    %412 = vmatpush2.msra.mxu0 0.0
    %413 = vmatprep.subr.mxu0 0.0
    %414 = vmatpush2.msra.mxu0 0.0
    %415 = vmatprep.subr.mxu0 0.0
    %416 = vmatpush2.msra.mxu0 0.0
    %417 = vmatprep.subr.mxu0 0.0
    %418 = vmatpush2.msra.mxu0 0.0
    %419 = vmatprep.subr.mxu0 0.0
    %420 = vmatpush2.msra.mxu0 0.0
    %421 = vmatprep.subr.mxu0 0.0
    %422 = vmatpush2.msra.mxu0 0.0
    %423 = vmatprep.subr.mxu0 0.0
    %424 = vmatpush2.msra.mxu0 0.0
    %425 = vmatprep.subr.mxu0 0.0
    %426 = vmatpush2.msra.mxu0 0.0
    %427 = vmatprep.subr.mxu0 0.0
    %428 = vmatpush2.msra.mxu0 0.0
    %429 = vmatprep.subr.mxu0 0.0
    %430 = vmatpush2.msra.mxu0 0.0
    %431 = vmatprep.subr.mxu0 0.0
    %432 = vmatpush2.msra.mxu0 0.0
    %433 = vmatprep.subr.mxu0 0.0
    %434 = vmatpush2.msra.mxu0 0.0
    %435 = vmatprep.mubr.f32.mxu0 0.0
    %436 = vmatmul.mubr.f32.gmra.mxu0 %v369
    %v437 = vpop.f32.mrf.mxu0
    %v438 = vadd.f32 %v155, %v437
    %v439 = vpop.f32.mrf.mxu0
    %440 = vdwg.mxu0
    %v441 = vxor.u32 %v438, 2147483648
    %v442 = vmul.f32 %v441, 1.442695
    %v443 = vpow.pop %v442
    %v444 = vadd.f32 %v443, 1.0
    %v445 = vrcp.pop %v444
    %v446 = vmul.f32 1.0, %v445
    %v447 = vtanh.pop %v438
    %v448 = vmul.f32 %v446, %v248
    %450 = vrot.lane.b32.xlu0 %v447, 64
    %v451 = vpop.permute.xlu0 %450
    %v453 = vmul.f32 %v446, %v451
    %455 = vrot.lane.b32.xlu0 %v453, 32
    %v456 = vpop.permute.xlu0 %455
    %v458 = vadd.f32 %v448, %v456
    %v459 = vtanh.pop %v458
    %461 = vrot.lane.b32.xlu0 %v459, 64
    %v462 = vpop.permute.xlu0 %461
    %v464 = vmul.f32 %v446, %v462
    %466 = vrot.lane.b32.xlu0 %v464, 32
    %v467 = vpop.permute.xlu0 %466
    %s469 = scalar_lea.vmem [#allocation2], 2
    %470 = vst.msk [vmem:[%s469] sm:$0x3] %vm259, %v467
    %s471 = scalar_lea.vmem %s0, 4
    %v472 = vld [vmem:[%s471] sm:$0x3]
    %v473 = vsel %vm47, %v362, 0
    %475 = vmatprep.subr.mxu0 0.0
    %476 = vmatpush1.msra.mxu0 0.0
    %477 = vmatprep.subr.mxu0 0.0
    %478 = vmatpush1.msra.mxu0 0.0
    %479 = vmatprep.subr.mxu0 0.0
    %480 = vmatpush1.msra.mxu0 0.0
    %481 = vmatprep.subr.mxu0 0.0
    %482 = vmatpush1.msra.mxu0 0.0
    %483 = vmatprep.subr.mxu0 0.0
    %484 = vmatpush1.msra.mxu0 0.0
    %485 = vmatprep.subr.mxu0 0.0
    %486 = vmatpush1.msra.mxu0 0.0
    %487 = vmatprep.subr.mxu0 0.0
    %488 = vmatpush1.msra.mxu0 0.0
    %489 = vmatprep.subr.mxu0 0.0
    %490 = vmatpush1.msra.mxu0 0.0
    %491 = vmatprep.subr.mxu0 0.0
    %492 = vmatpush1.msra.mxu0 0.0
    %493 = vmatprep.subr.mxu0 0.0
    %494 = vmatpush1.msra.mxu0 0.0
    %495 = vmatprep.subr.mxu0 0.0
    %496 = vmatpush1.msra.mxu0 0.0
    %497 = vmatprep.subr.mxu0 0.0
    %498 = vmatpush1.msra.mxu0 0.0
    %499 = vmatprep.subr.mxu0 0.0
    %500 = vmatpush1.msra.mxu0 %v36
    %501 = vmatprep.subr.mxu0 0.0
    %502 = vmatpush1.msra.mxu0 %v35
    %503 = vmatprep.subr.mxu0 0.0
    %504 = vmatpush1.msra.mxu0 %v34
    %505 = vmatprep.subr.mxu0 0.0
    %506 = vmatpush1.msra.mxu0 %v33
    %507 = vmatprep.subr.mxu0 0.0
    %508 = vmatpush2.msra.mxu0 0.0
    %509 = vmatprep.subr.mxu0 0.0
    %510 = vmatpush2.msra.mxu0 0.0
    %511 = vmatprep.subr.mxu0 0.0
    %512 = vmatpush2.msra.mxu0 0.0
    %513 = vmatprep.subr.mxu0 0.0
    %514 = vmatpush2.msra.mxu0 0.0
    %515 = vmatprep.subr.mxu0 0.0
    %516 = vmatpush2.msra.mxu0 0.0
    %517 = vmatprep.subr.mxu0 0.0
    %518 = vmatpush2.msra.mxu0 0.0
    %519 = vmatprep.subr.mxu0 0.0
    %520 = vmatpush2.msra.mxu0 0.0
    %521 = vmatprep.subr.mxu0 0.0
    %522 = vmatpush2.msra.mxu0 0.0
    %523 = vmatprep.subr.mxu0 0.0
    %524 = vmatpush2.msra.mxu0 0.0
    %525 = vmatprep.subr.mxu0 0.0
    %526 = vmatpush2.msra.mxu0 0.0
    %527 = vmatprep.subr.mxu0 0.0
    %528 = vmatpush2.msra.mxu0 0.0
    %529 = vmatprep.subr.mxu0 0.0
    %530 = vmatpush2.msra.mxu0 0.0
    %531 = vmatprep.subr.mxu0 0.0
    %532 = vmatpush2.msra.mxu0 0.0
    %533 = vmatprep.subr.mxu0 0.0
    %534 = vmatpush2.msra.mxu0 0.0
    %535 = vmatprep.subr.mxu0 0.0
    %536 = vmatpush2.msra.mxu0 0.0
    %537 = vmatprep.subr.mxu0 0.0
    %538 = vmatpush2.msra.mxu0 0.0
    %539 = vmatprep.mubr.f32.mxu0 0.0
    %540 = vmatmul.mubr.f32.gmra.mxu0 %v473
    %v541 = vpop.f32.mrf.mxu0
    %v542 = vadd.f32 0.0, %v541
    %v543 = vpop.f32.mrf.mxu0
    %544 = vdwg.mxu0
    %v545 = vadd.f32 %v472, %v542
    %v546 = vxor.u32 %v545, 2147483648
    %v547 = vmul.f32 %v546, 1.442695
    %v548 = vpow.pop %v547
    %v549 = vadd.f32 %v548, 1.0
    %v550 = vrcp.pop %v549
    %v551 = vmul.f32 1.0, %v550
    %v552 = vtanh.pop %v545
    %v553 = vmul.f32 %v551, %v353
    %555 = vrot.lane.b32.xlu0 %v552, 64
    %v556 = vpop.permute.xlu0 %555
    %v558 = vmul.f32 %v551, %v556
    %560 = vrot.lane.b32.xlu0 %v558, 32
    %v561 = vpop.permute.xlu0 %560
    %v563 = vadd.f32 %v553, %v561
    %v564 = vtanh.pop %v563
    %566 = vrot.lane.b32.xlu0 %v564, 64
    %v567 = vpop.permute.xlu0 %566
    %v569 = vmul.f32 %v551, %v567
    %571 = vrot.lane.b32.xlu0 %v569, 32
    %v572 = vpop.permute.xlu0 %571
    %574 = vrot.lane.b32.xlu0 %v464, 64
    %v575 = vpop.permute.xlu0 %574
    %v577 = vsel %vm47, %v572, %v575
    %v579 = vsel %vm157, %v577, 0
    %581 = vmatprep.subr.mxu0 0.0
    %582 = vmatpush1.msra.mxu0 0.0
    %583 = vmatprep.subr.mxu0 0.0
    %584 = vmatpush1.msra.mxu0 0.0
    %585 = vmatprep.subr.mxu0 0.0
    %586 = vmatpush1.msra.mxu0 0.0
    %587 = vmatprep.subr.mxu0 0.0
    %588 = vmatpush1.msra.mxu0 0.0
    %589 = vmatprep.subr.mxu0 0.0
    %590 = vmatpush1.msra.mxu0 0.0
    %591 = vmatprep.subr.mxu0 0.0
    %592 = vmatpush1.msra.mxu0 0.0
    %593 = vmatprep.subr.mxu0 0.0
    %594 = vmatpush1.msra.mxu0 0.0
    %595 = vmatprep.subr.mxu0 0.0
    %596 = vmatpush1.msra.mxu0 0.0
    %597 = vmatprep.subr.mxu0 0.0
    %598 = vmatpush1.msra.mxu0 %v44
    %599 = vmatprep.subr.mxu0 0.0
    %600 = vmatpush1.msra.mxu0 %v43
    %601 = vmatprep.subr.mxu0 0.0
    %602 = vmatpush1.msra.mxu0 %v42
    %603 = vmatprep.subr.mxu0 0.0
    %604 = vmatpush1.msra.mxu0 %v41
    %605 = vmatprep.subr.mxu0 0.0
    %606 = vmatpush1.msra.mxu0 %v40
    %607 = vmatprep.subr.mxu0 0.0
    %608 = vmatpush1.msra.mxu0 %v39
    %609 = vmatprep.subr.mxu0 0.0
    %610 = vmatpush1.msra.mxu0 %v38
    %611 = vmatprep.subr.mxu0 0.0
    %612 = vmatpush1.msra.mxu0 %v37
    %613 = vmatprep.subr.mxu0 0.0
    %614 = vmatpush2.msra.mxu0 0.0
    %615 = vmatprep.subr.mxu0 0.0
    %616 = vmatpush2.msra.mxu0 0.0
    %617 = vmatprep.subr.mxu0 0.0
    %618 = vmatpush2.msra.mxu0 0.0
    %619 = vmatprep.subr.mxu0 0.0
    %620 = vmatpush2.msra.mxu0 0.0
    %621 = vmatprep.subr.mxu0 0.0
    %622 = vmatpush2.msra.mxu0 0.0
    %623 = vmatprep.subr.mxu0 0.0
    %624 = vmatpush2.msra.mxu0 0.0
    %625 = vmatprep.subr.mxu0 0.0
    %626 = vmatpush2.msra.mxu0 0.0
    %627 = vmatprep.subr.mxu0 0.0
    %628 = vmatpush2.msra.mxu0 0.0
    %629 = vmatprep.subr.mxu0 0.0
    %630 = vmatpush2.msra.mxu0 0.0
    %631 = vmatprep.subr.mxu0 0.0
    %632 = vmatpush2.msra.mxu0 0.0
    %633 = vmatprep.subr.mxu0 0.0
    %634 = vmatpush2.msra.mxu0 0.0
    %635 = vmatprep.subr.mxu0 0.0
    %636 = vmatpush2.msra.mxu0 0.0
    %637 = vmatprep.subr.mxu0 0.0
    %638 = vmatpush2.msra.mxu0 0.0
    %639 = vmatprep.subr.mxu0 0.0
    %640 = vmatpush2.msra.mxu0 0.0
    %641 = vmatprep.subr.mxu0 0.0
    %642 = vmatpush2.msra.mxu0 0.0
    %643 = vmatprep.subr.mxu0 0.0
    %644 = vmatpush2.msra.mxu0 0.0
    %645 = vmatprep.mubr.f32.mxu0 0.0
    %646 = vmatmul.mubr.f32.gmra.mxu0 %v579
    %v647 = vpop.f32.mrf.mxu0
    %v648 = vadd.f32 %v155, %v647
    %v649 = vpop.f32.mrf.mxu0
    %650 = vdwg.mxu0
    %v651 = vxor.u32 %v648, 2147483648
    %v652 = vmul.f32 %v651, 1.442695
    %v653 = vpow.pop %v652
    %v654 = vadd.f32 %v653, 1.0
    %v655 = vrcp.pop %v654
    %v656 = vmul.f32 1.0, %v655
    %v657 = vtanh.pop %v648
    %v658 = vmul.f32 %v656, %v458
    %660 = vrot.lane.b32.xlu0 %v657, 64
    %v661 = vpop.permute.xlu0 %660
    %v663 = vmul.f32 %v656, %v661
    %665 = vrot.lane.b32.xlu0 %v663, 32
    %v666 = vpop.permute.xlu0 %665
    %v668 = vadd.f32 %v658, %v666
    %v669 = vtanh.pop %v668
    %671 = vrot.lane.b32.xlu0 %v669, 64
    %v672 = vpop.permute.xlu0 %671
    %v674 = vmul.f32 %v656, %v672
    %676 = vrot.lane.b32.xlu0 %v674, 32
    %v677 = vpop.permute.xlu0 %676
    %s679 = scalar_lea.vmem [#allocation2], 4
    %680 = vst.msk [vmem:[%s679] sm:$0x3] %vm259, %v677
    %s681 = scalar_lea.vmem %s0, 6
    %v682 = vld [vmem:[%s681] sm:$0x3]
    %v683 = vsel %vm47, %v572, 0
    %685 = vmatprep.subr.mxu0 0.0
    %686 = vmatpush1.msra.mxu0 0.0
    %687 = vmatprep.subr.mxu0 0.0
    %688 = vmatpush1.msra.mxu0 0.0
    %689 = vmatprep.subr.mxu0 0.0
    %690 = vmatpush1.msra.mxu0 0.0
    %691 = vmatprep.subr.mxu0 0.0
    %692 = vmatpush1.msra.mxu0 0.0
    %693 = vmatprep.subr.mxu0 0.0
    %694 = vmatpush1.msra.mxu0 0.0
    %695 = vmatprep.subr.mxu0 0.0
    %696 = vmatpush1.msra.mxu0 0.0
    %697 = vmatprep.subr.mxu0 0.0
    %698 = vmatpush1.msra.mxu0 0.0
    %699 = vmatprep.subr.mxu0 0.0
    %700 = vmatpush1.msra.mxu0 0.0
    %701 = vmatprep.subr.mxu0 0.0
    %702 = vmatpush1.msra.mxu0 0.0
    %703 = vmatprep.subr.mxu0 0.0
    %704 = vmatpush1.msra.mxu0 0.0
    %705 = vmatprep.subr.mxu0 0.0
    %706 = vmatpush1.msra.mxu0 0.0
    %707 = vmatprep.subr.mxu0 0.0
    %708 = vmatpush1.msra.mxu0 0.0
    %709 = vmatprep.subr.mxu0 0.0
    %710 = vmatpush1.msra.mxu0 %v36
    %711 = vmatprep.subr.mxu0 0.0
    %712 = vmatpush1.msra.mxu0 %v35
    %713 = vmatprep.subr.mxu0 0.0
    %714 = vmatpush1.msra.mxu0 %v34
    %715 = vmatprep.subr.mxu0 0.0
    %716 = vmatpush1.msra.mxu0 %v33
    %717 = vmatprep.subr.mxu0 0.0
    %718 = vmatpush2.msra.mxu0 0.0
    %719 = vmatprep.subr.mxu0 0.0
    %720 = vmatpush2.msra.mxu0 0.0
    %721 = vmatprep.subr.mxu0 0.0
    %722 = vmatpush2.msra.mxu0 0.0
    %723 = vmatprep.subr.mxu0 0.0
    %724 = vmatpush2.msra.mxu0 0.0
    %725 = vmatprep.subr.mxu0 0.0
    %726 = vmatpush2.msra.mxu0 0.0
    %727 = vmatprep.subr.mxu0 0.0
    %728 = vmatpush2.msra.mxu0 0.0
    %729 = vmatprep.subr.mxu0 0.0
    %730 = vmatpush2.msra.mxu0 0.0
    %731 = vmatprep.subr.mxu0 0.0
    %732 = vmatpush2.msra.mxu0 0.0
    %733 = vmatprep.subr.mxu0 0.0
    %734 = vmatpush2.msra.mxu0 0.0
    %735 = vmatprep.subr.mxu0 0.0
    %736 = vmatpush2.msra.mxu0 0.0
    %737 = vmatprep.subr.mxu0 0.0
    %738 = vmatpush2.msra.mxu0 0.0
    %739 = vmatprep.subr.mxu0 0.0
    %740 = vmatpush2.msra.mxu0 0.0
    %741 = vmatprep.subr.mxu0 0.0
    %742 = vmatpush2.msra.mxu0 0.0
    %743 = vmatprep.subr.mxu0 0.0
    %744 = vmatpush2.msra.mxu0 0.0
    %745 = vmatprep.subr.mxu0 0.0
    %746 = vmatpush2.msra.mxu0 0.0
    %747 = vmatprep.subr.mxu0 0.0
    %748 = vmatpush2.msra.mxu0 0.0
    %749 = vmatprep.mubr.f32.mxu0 0.0
    %750 = vmatmul.mubr.f32.gmra.mxu0 %v683
    %v751 = vpop.f32.mrf.mxu0
    %v752 = vadd.f32 0.0, %v751
    %v753 = vpop.f32.mrf.mxu0
    %754 = vdwg.mxu0
    %v755 = vadd.f32 %v682, %v752
    %v756 = vxor.u32 %v755, 2147483648
    %v757 = vmul.f32 %v756, 1.442695
    %v758 = vpow.pop %v757
    %v759 = vadd.f32 %v758, 1.0
    %v760 = vrcp.pop %v759
    %v761 = vmul.f32 1.0, %v760
    %v762 = vtanh.pop %v755
    %v763 = vmul.f32 %v761, %v563
    %765 = vrot.lane.b32.xlu0 %v762, 64
    %v766 = vpop.permute.xlu0 %765
    %v768 = vmul.f32 %v761, %v766
    %770 = vrot.lane.b32.xlu0 %v768, 32
    %v771 = vpop.permute.xlu0 %770
    %v773 = vadd.f32 %v763, %v771
    %v774 = vtanh.pop %v773
    %776 = vrot.lane.b32.xlu0 %v774, 64
    %v777 = vpop.permute.xlu0 %776
    %v779 = vmul.f32 %v761, %v777
    %781 = vrot.lane.b32.xlu0 %v779, 32
    %v782 = vpop.permute.xlu0 %781
    %784 = vrot.lane.b32.xlu0 %v674, 64
    %v785 = vpop.permute.xlu0 %784
    %v787 = vsel %vm47, %v782, %v785
    %v789 = vsel %vm157, %v787, 0
    %791 = vmatprep.subr.mxu0 0.0
    %792 = vmatpush1.msra.mxu0 0.0
    %793 = vmatprep.subr.mxu0 0.0
    %794 = vmatpush1.msra.mxu0 0.0
    %795 = vmatprep.subr.mxu0 0.0
    %796 = vmatpush1.msra.mxu0 0.0
    %797 = vmatprep.subr.mxu0 0.0
    %798 = vmatpush1.msra.mxu0 0.0
    %799 = vmatprep.subr.mxu0 0.0
    %800 = vmatpush1.msra.mxu0 0.0
    %801 = vmatprep.subr.mxu0 0.0
    %802 = vmatpush1.msra.mxu0 0.0
    %803 = vmatprep.subr.mxu0 0.0
    %804 = vmatpush1.msra.mxu0 0.0
    %805 = vmatprep.subr.mxu0 0.0
    %806 = vmatpush1.msra.mxu0 0.0
    %807 = vmatprep.subr.mxu0 0.0
    %808 = vmatpush1.msra.mxu0 %v44
    %809 = vmatprep.subr.mxu0 0.0
    %810 = vmatpush1.msra.mxu0 %v43
    %811 = vmatprep.subr.mxu0 0.0
    %812 = vmatpush1.msra.mxu0 %v42
    %813 = vmatprep.subr.mxu0 0.0
    %814 = vmatpush1.msra.mxu0 %v41
    %815 = vmatprep.subr.mxu0 0.0
    %816 = vmatpush1.msra.mxu0 %v40
    %817 = vmatprep.subr.mxu0 0.0
    %818 = vmatpush1.msra.mxu0 %v39
    %819 = vmatprep.subr.mxu0 0.0
    %820 = vmatpush1.msra.mxu0 %v38
    %821 = vmatprep.subr.mxu0 0.0
    %822 = vmatpush1.msra.mxu0 %v37
    %823 = vmatprep.subr.mxu0 0.0
    %824 = vmatpush2.msra.mxu0 0.0
    %825 = vmatprep.subr.mxu0 0.0
    %826 = vmatpush2.msra.mxu0 0.0
    %827 = vmatprep.subr.mxu0 0.0
    %828 = vmatpush2.msra.mxu0 0.0
    %829 = vmatprep.subr.mxu0 0.0
    %830 = vmatpush2.msra.mxu0 0.0
    %831 = vmatprep.subr.mxu0 0.0
    %832 = vmatpush2.msra.mxu0 0.0
    %833 = vmatprep.subr.mxu0 0.0
    %834 = vmatpush2.msra.mxu0 0.0
    %835 = vmatprep.subr.mxu0 0.0
    %836 = vmatpush2.msra.mxu0 0.0
    %837 = vmatprep.subr.mxu0 0.0
    %838 = vmatpush2.msra.mxu0 0.0
    %839 = vmatprep.subr.mxu0 0.0
    %840 = vmatpush2.msra.mxu0 0.0
    %841 = vmatprep.subr.mxu0 0.0
    %842 = vmatpush2.msra.mxu0 0.0
    %843 = vmatprep.subr.mxu0 0.0
    %844 = vmatpush2.msra.mxu0 0.0
    %845 = vmatprep.subr.mxu0 0.0
    %846 = vmatpush2.msra.mxu0 0.0
    %847 = vmatprep.subr.mxu0 0.0
    %848 = vmatpush2.msra.mxu0 0.0
    %849 = vmatprep.subr.mxu0 0.0
    %850 = vmatpush2.msra.mxu0 0.0
    %851 = vmatprep.subr.mxu0 0.0
    %852 = vmatpush2.msra.mxu0 0.0
    %853 = vmatprep.subr.mxu0 0.0
    %854 = vmatpush2.msra.mxu0 0.0
    %855 = vmatprep.mubr.f32.mxu0 0.0
    %856 = vmatmul.mubr.f32.gmra.mxu0 %v789
    %v857 = vpop.f32.mrf.mxu0
    %v858 = vadd.f32 %v155, %v857
    %v859 = vpop.f32.mrf.mxu0
    %860 = vdwg.mxu0
    %v861 = vxor.u32 %v858, 2147483648
    %v862 = vmul.f32 %v861, 1.442695
    %v863 = vpow.pop %v862
    %v864 = vadd.f32 %v863, 1.0
    %v865 = vrcp.pop %v864
    %v866 = vmul.f32 1.0, %v865
    %v867 = vtanh.pop %v858
    %v868 = vmul.f32 %v866, %v668
    %870 = vrot.lane.b32.xlu0 %v867, 64
    %v871 = vpop.permute.xlu0 %870
    %v873 = vmul.f32 %v866, %v871
    %875 = vrot.lane.b32.xlu0 %v873, 32
    %v876 = vpop.permute.xlu0 %875
    %v878 = vadd.f32 %v868, %v876
    %v879 = vtanh.pop %v878
    %881 = vrot.lane.b32.xlu0 %v879, 64
    %v882 = vpop.permute.xlu0 %881
    %v884 = vmul.f32 %v866, %v882
    %886 = vrot.lane.b32.xlu0 %v884, 32
    %v887 = vpop.permute.xlu0 %886
    %s889 = scalar_lea.vmem [#allocation2], 6
    %890 = vst.msk [vmem:[%s889] sm:$0x3] %vm259, %v887
    %s891 = scalar_lea.vmem %s0, 8
    %v892 = vld [vmem:[%s891] sm:$0x3]
    %v893 = vsel %vm47, %v782, 0
    %895 = vmatprep.subr.mxu0 0.0
    %896 = vmatpush1.msra.mxu0 0.0
    %897 = vmatprep.subr.mxu0 0.0
    %898 = vmatpush1.msra.mxu0 0.0
    %899 = vmatprep.subr.mxu0 0.0
    %900 = vmatpush1.msra.mxu0 0.0
    %901 = vmatprep.subr.mxu0 0.0
    %902 = vmatpush1.msra.mxu0 0.0
    %903 = vmatprep.subr.mxu0 0.0
    %904 = vmatpush1.msra.mxu0 0.0
    %905 = vmatprep.subr.mxu0 0.0
    %906 = vmatpush1.msra.mxu0 0.0
    %907 = vmatprep.subr.mxu0 0.0
    %908 = vmatpush1.msra.mxu0 0.0
    %909 = vmatprep.subr.mxu0 0.0
    %910 = vmatpush1.msra.mxu0 0.0
    %911 = vmatprep.subr.mxu0 0.0
    %912 = vmatpush1.msra.mxu0 0.0
    %913 = vmatprep.subr.mxu0 0.0
    %914 = vmatpush1.msra.mxu0 0.0
    %915 = vmatprep.subr.mxu0 0.0
    %916 = vmatpush1.msra.mxu0 0.0
    %917 = vmatprep.subr.mxu0 0.0
    %918 = vmatpush1.msra.mxu0 0.0
    %919 = vmatprep.subr.mxu0 0.0
    %920 = vmatpush1.msra.mxu0 %v36
    %921 = vmatprep.subr.mxu0 0.0
    %922 = vmatpush1.msra.mxu0 %v35
    %923 = vmatprep.subr.mxu0 0.0
    %924 = vmatpush1.msra.mxu0 %v34
    %925 = vmatprep.subr.mxu0 0.0
    %926 = vmatpush1.msra.mxu0 %v33
    %927 = vmatprep.subr.mxu0 0.0
    %928 = vmatpush2.msra.mxu0 0.0
    %929 = vmatprep.subr.mxu0 0.0
    %930 = vmatpush2.msra.mxu0 0.0
    %931 = vmatprep.subr.mxu0 0.0
    %932 = vmatpush2.msra.mxu0 0.0
    %933 = vmatprep.subr.mxu0 0.0
    %934 = vmatpush2.msra.mxu0 0.0
    %935 = vmatprep.subr.mxu0 0.0
    %936 = vmatpush2.msra.mxu0 0.0
    %937 = vmatprep.subr.mxu0 0.0
    %938 = vmatpush2.msra.mxu0 0.0
    %939 = vmatprep.subr.mxu0 0.0
    %940 = vmatpush2.msra.mxu0 0.0
    %941 = vmatprep.subr.mxu0 0.0
    %942 = vmatpush2.msra.mxu0 0.0
    %943 = vmatprep.subr.mxu0 0.0
    %944 = vmatpush2.msra.mxu0 0.0
    %945 = vmatprep.subr.mxu0 0.0
    %946 = vmatpush2.msra.mxu0 0.0
    %947 = vmatprep.subr.mxu0 0.0
    %948 = vmatpush2.msra.mxu0 0.0
    %949 = vmatprep.subr.mxu0 0.0
    %950 = vmatpush2.msra.mxu0 0.0
    %951 = vmatprep.subr.mxu0 0.0
    %952 = vmatpush2.msra.mxu0 0.0
    %953 = vmatprep.subr.mxu0 0.0
    %954 = vmatpush2.msra.mxu0 0.0
    %955 = vmatprep.subr.mxu0 0.0
    %956 = vmatpush2.msra.mxu0 0.0
    %957 = vmatprep.subr.mxu0 0.0
    %958 = vmatpush2.msra.mxu0 0.0
    %959 = vmatprep.mubr.f32.mxu0 0.0
    %960 = vmatmul.mubr.f32.gmra.mxu0 %v893
    %v961 = vpop.f32.mrf.mxu0
    %v962 = vadd.f32 0.0, %v961
    %v963 = vpop.f32.mrf.mxu0
    %964 = vdwg.mxu0
    %v965 = vadd.f32 %v892, %v962
    %v966 = vxor.u32 %v965, 2147483648
    %v967 = vmul.f32 %v966, 1.442695
    %v968 = vpow.pop %v967
    %v969 = vadd.f32 %v968, 1.0
    %v970 = vrcp.pop %v969
    %v971 = vmul.f32 1.0, %v970
    %v972 = vtanh.pop %v965
    %v973 = vmul.f32 %v971, %v773
    %975 = vrot.lane.b32.xlu0 %v972, 64
    %v976 = vpop.permute.xlu0 %975
    %v978 = vmul.f32 %v971, %v976
    %980 = vrot.lane.b32.xlu0 %v978, 32
    %v981 = vpop.permute.xlu0 %980
    %v983 = vadd.f32 %v973, %v981
    %v984 = vtanh.pop %v983
    %986 = vrot.lane.b32.xlu0 %v984, 64
    %v987 = vpop.permute.xlu0 %986
    %v989 = vmul.f32 %v971, %v987
    %991 = vrot.lane.b32.xlu0 %v989, 32
    %v992 = vpop.permute.xlu0 %991
    %994 = vrot.lane.b32.xlu0 %v884, 64
    %v995 = vpop.permute.xlu0 %994
    %v997 = vsel %vm47, %v992, %v995
    %v999 = vsel %vm157, %v997, 0
    %1001 = vmatprep.subr.mxu0 0.0
    %1002 = vmatpush1.msra.mxu0 0.0
    %1003 = vmatprep.subr.mxu0 0.0
    %1004 = vmatpush1.msra.mxu0 0.0
    %1005 = vmatprep.subr.mxu0 0.0
    %1006 = vmatpush1.msra.mxu0 0.0
    %1007 = vmatprep.subr.mxu0 0.0
    %1008 = vmatpush1.msra.mxu0 0.0
    %1009 = vmatprep.subr.mxu0 0.0
    %1010 = vmatpush1.msra.mxu0 0.0
    %1011 = vmatprep.subr.mxu0 0.0
    %1012 = vmatpush1.msra.mxu0 0.0
    %1013 = vmatprep.subr.mxu0 0.0
    %1014 = vmatpush1.msra.mxu0 0.0
    %1015 = vmatprep.subr.mxu0 0.0
    %1016 = vmatpush1.msra.mxu0 0.0
    %1017 = vmatprep.subr.mxu0 0.0
    %1018 = vmatpush1.msra.mxu0 %v44
    %1019 = vmatprep.subr.mxu0 0.0
    %1020 = vmatpush1.msra.mxu0 %v43
    %1021 = vmatprep.subr.mxu0 0.0
    %1022 = vmatpush1.msra.mxu0 %v42
    %1023 = vmatprep.subr.mxu0 0.0
    %1024 = vmatpush1.msra.mxu0 %v41
    %1025 = vmatprep.subr.mxu0 0.0
    %1026 = vmatpush1.msra.mxu0 %v40
    %1027 = vmatprep.subr.mxu0 0.0
    %1028 = vmatpush1.msra.mxu0 %v39
    %1029 = vmatprep.subr.mxu0 0.0
    %1030 = vmatpush1.msra.mxu0 %v38
    %1031 = vmatprep.subr.mxu0 0.0
    %1032 = vmatpush1.msra.mxu0 %v37
    %1033 = vmatprep.subr.mxu0 0.0
    %1034 = vmatpush2.msra.mxu0 0.0
    %1035 = vmatprep.subr.mxu0 0.0
    %1036 = vmatpush2.msra.mxu0 0.0
    %1037 = vmatprep.subr.mxu0 0.0
    %1038 = vmatpush2.msra.mxu0 0.0
    %1039 = vmatprep.subr.mxu0 0.0
    %1040 = vmatpush2.msra.mxu0 0.0
    %1041 = vmatprep.subr.mxu0 0.0
    %1042 = vmatpush2.msra.mxu0 0.0
    %1043 = vmatprep.subr.mxu0 0.0
    %1044 = vmatpush2.msra.mxu0 0.0
    %1045 = vmatprep.subr.mxu0 0.0
    %1046 = vmatpush2.msra.mxu0 0.0
    %1047 = vmatprep.subr.mxu0 0.0
    %1048 = vmatpush2.msra.mxu0 0.0
    %1049 = vmatprep.subr.mxu0 0.0
    %1050 = vmatpush2.msra.mxu0 0.0
    %1051 = vmatprep.subr.mxu0 0.0
    %1052 = vmatpush2.msra.mxu0 0.0
    %1053 = vmatprep.subr.mxu0 0.0
    %1054 = vmatpush2.msra.mxu0 0.0
    %1055 = vmatprep.subr.mxu0 0.0
    %1056 = vmatpush2.msra.mxu0 0.0
    %1057 = vmatprep.subr.mxu0 0.0
    %1058 = vmatpush2.msra.mxu0 0.0
    %1059 = vmatprep.subr.mxu0 0.0
    %1060 = vmatpush2.msra.mxu0 0.0
    %1061 = vmatprep.subr.mxu0 0.0
    %1062 = vmatpush2.msra.mxu0 0.0
    %1063 = vmatprep.subr.mxu0 0.0
    %1064 = vmatpush2.msra.mxu0 0.0
    %1065 = vmatprep.mubr.f32.mxu0 0.0
    %1066 = vmatmul.mubr.f32.gmra.mxu0 %v999
    %v1067 = vpop.f32.mrf.mxu0
    %v1068 = vadd.f32 %v155, %v1067
    %v1069 = vpop.f32.mrf.mxu0
    %1070 = vdwg.mxu0
    %v1071 = vxor.u32 %v1068, 2147483648
    %v1072 = vmul.f32 %v1071, 1.442695
    %v1073 = vpow.pop %v1072
    %v1074 = vadd.f32 %v1073, 1.0
    %v1075 = vrcp.pop %v1074
    %v1076 = vmul.f32 1.0, %v1075
    %v1077 = vtanh.pop %v1068
    %v1078 = vmul.f32 %v1076, %v878
    %1080 = vrot.lane.b32.xlu0 %v1077, 64
    %v1081 = vpop.permute.xlu0 %1080
    %v1083 = vmul.f32 %v1076, %v1081
    %1085 = vrot.lane.b32.xlu0 %v1083, 32
    %v1086 = vpop.permute.xlu0 %1085
    %v1088 = vadd.f32 %v1078, %v1086
    %v1089 = vtanh.pop %v1088
    %1091 = vrot.lane.b32.xlu0 %v1089, 64
    %v1092 = vpop.permute.xlu0 %1091
    %v1094 = vmul.f32 %v1076, %v1092
    %1096 = vrot.lane.b32.xlu0 %v1094, 32
    %v1097 = vpop.permute.xlu0 %1096
    %s1099 = scalar_lea.vmem [#allocation2], 8
    %1100 = vst.msk [vmem:[%s1099] sm:$0x3] %vm259, %v1097
    %s1101 = scalar_lea.vmem %s0, 10
    %v1102 = vld [vmem:[%s1101] sm:$0x3]
    %v1103 = vsel %vm47, %v992, 0
    %1105 = vmatprep.subr.mxu0 0.0
    %1106 = vmatpush1.msra.mxu0 0.0
    %1107 = vmatprep.subr.mxu0 0.0
    %1108 = vmatpush1.msra.mxu0 0.0
    %1109 = vmatprep.subr.mxu0 0.0
    %1110 = vmatpush1.msra.mxu0 0.0
    %1111 = vmatprep.subr.mxu0 0.0
    %1112 = vmatpush1.msra.mxu0 0.0
    %1113 = vmatprep.subr.mxu0 0.0
    %1114 = vmatpush1.msra.mxu0 0.0
    %1115 = vmatprep.subr.mxu0 0.0
    %1116 = vmatpush1.msra.mxu0 0.0
    %1117 = vmatprep.subr.mxu0 0.0
    %1118 = vmatpush1.msra.mxu0 0.0
    %1119 = vmatprep.subr.mxu0 0.0
    %1120 = vmatpush1.msra.mxu0 0.0
    %1121 = vmatprep.subr.mxu0 0.0
    %1122 = vmatpush1.msra.mxu0 0.0
    %1123 = vmatprep.subr.mxu0 0.0
    %1124 = vmatpush1.msra.mxu0 0.0
    %1125 = vmatprep.subr.mxu0 0.0
    %1126 = vmatpush1.msra.mxu0 0.0
    %1127 = vmatprep.subr.mxu0 0.0
    %1128 = vmatpush1.msra.mxu0 0.0
    %1129 = vmatprep.subr.mxu0 0.0
    %1130 = vmatpush1.msra.mxu0 %v36
    %1131 = vmatprep.subr.mxu0 0.0
    %1132 = vmatpush1.msra.mxu0 %v35
    %1133 = vmatprep.subr.mxu0 0.0
    %1134 = vmatpush1.msra.mxu0 %v34
    %1135 = vmatprep.subr.mxu0 0.0
    %1136 = vmatpush1.msra.mxu0 %v33
    %1137 = vmatprep.subr.mxu0 0.0
    %1138 = vmatpush2.msra.mxu0 0.0
    %1139 = vmatprep.subr.mxu0 0.0
    %1140 = vmatpush2.msra.mxu0 0.0
    %1141 = vmatprep.subr.mxu0 0.0
    %1142 = vmatpush2.msra.mxu0 0.0
    %1143 = vmatprep.subr.mxu0 0.0
    %1144 = vmatpush2.msra.mxu0 0.0
    %1145 = vmatprep.subr.mxu0 0.0
    %1146 = vmatpush2.msra.mxu0 0.0
    %1147 = vmatprep.subr.mxu0 0.0
    %1148 = vmatpush2.msra.mxu0 0.0
    %1149 = vmatprep.subr.mxu0 0.0
    %1150 = vmatpush2.msra.mxu0 0.0
    %1151 = vmatprep.subr.mxu0 0.0
    %1152 = vmatpush2.msra.mxu0 0.0
    %1153 = vmatprep.subr.mxu0 0.0
    %1154 = vmatpush2.msra.mxu0 0.0
    %1155 = vmatprep.subr.mxu0 0.0
    %1156 = vmatpush2.msra.mxu0 0.0
    %1157 = vmatprep.subr.mxu0 0.0
    %1158 = vmatpush2.msra.mxu0 0.0
    %1159 = vmatprep.subr.mxu0 0.0
    %1160 = vmatpush2.msra.mxu0 0.0
    %1161 = vmatprep.subr.mxu0 0.0
    %1162 = vmatpush2.msra.mxu0 0.0
    %1163 = vmatprep.subr.mxu0 0.0
    %1164 = vmatpush2.msra.mxu0 0.0
    %1165 = vmatprep.subr.mxu0 0.0
    %1166 = vmatpush2.msra.mxu0 0.0
    %1167 = vmatprep.subr.mxu0 0.0
    %1168 = vmatpush2.msra.mxu0 0.0
    %1169 = vmatprep.mubr.f32.mxu0 0.0
    %1170 = vmatmul.mubr.f32.gmra.mxu0 %v1103
    %v1171 = vpop.f32.mrf.mxu0
    %v1172 = vadd.f32 0.0, %v1171
    %v1173 = vpop.f32.mrf.mxu0
    %1174 = vdwg.mxu0
    %v1175 = vadd.f32 %v1102, %v1172
    %v1176 = vxor.u32 %v1175, 2147483648
    %v1177 = vmul.f32 %v1176, 1.442695
    %v1178 = vpow.pop %v1177
    %v1179 = vadd.f32 %v1178, 1.0
    %v1180 = vrcp.pop %v1179
    %v1181 = vmul.f32 1.0, %v1180
    %v1182 = vtanh.pop %v1175
    %v1183 = vmul.f32 %v1181, %v983
    %1185 = vrot.lane.b32.xlu0 %v1182, 64
    %v1186 = vpop.permute.xlu0 %1185
    %v1188 = vmul.f32 %v1181, %v1186
    %1190 = vrot.lane.b32.xlu0 %v1188, 32
    %v1191 = vpop.permute.xlu0 %1190
    %v1193 = vadd.f32 %v1183, %v1191
    %v1194 = vtanh.pop %v1193
    %1196 = vrot.lane.b32.xlu0 %v1194, 64
    %v1197 = vpop.permute.xlu0 %1196
    %v1199 = vmul.f32 %v1181, %v1197
    %1201 = vrot.lane.b32.xlu0 %v1199, 32
    %v1202 = vpop.permute.xlu0 %1201
    %1204 = vrot.lane.b32.xlu0 %v1094, 64
    %v1205 = vpop.permute.xlu0 %1204
    %v1207 = vsel %vm47, %v1202, %v1205
    %v1209 = vsel %vm157, %v1207, 0
    %1211 = vmatprep.subr.mxu0 0.0
    %1212 = vmatpush1.msra.mxu0 0.0
    %1213 = vmatprep.subr.mxu0 0.0
    %1214 = vmatpush1.msra.mxu0 0.0
    %1215 = vmatprep.subr.mxu0 0.0
    %1216 = vmatpush1.msra.mxu0 0.0
    %1217 = vmatprep.subr.mxu0 0.0
    %1218 = vmatpush1.msra.mxu0 0.0
    %1219 = vmatprep.subr.mxu0 0.0
    %1220 = vmatpush1.msra.mxu0 0.0
    %1221 = vmatprep.subr.mxu0 0.0
    %1222 = vmatpush1.msra.mxu0 0.0
    %1223 = vmatprep.subr.mxu0 0.0
    %1224 = vmatpush1.msra.mxu0 0.0
    %1225 = vmatprep.subr.mxu0 0.0
    %1226 = vmatpush1.msra.mxu0 0.0
    %1227 = vmatprep.subr.mxu0 0.0
    %1228 = vmatpush1.msra.mxu0 %v44
    %1229 = vmatprep.subr.mxu0 0.0
    %1230 = vmatpush1.msra.mxu0 %v43
    %1231 = vmatprep.subr.mxu0 0.0
    %1232 = vmatpush1.msra.mxu0 %v42
    %1233 = vmatprep.subr.mxu0 0.0
    %1234 = vmatpush1.msra.mxu0 %v41
    %1235 = vmatprep.subr.mxu0 0.0
    %1236 = vmatpush1.msra.mxu0 %v40
    %1237 = vmatprep.subr.mxu0 0.0
    %1238 = vmatpush1.msra.mxu0 %v39
    %1239 = vmatprep.subr.mxu0 0.0
    %1240 = vmatpush1.msra.mxu0 %v38
    %1241 = vmatprep.subr.mxu0 0.0
    %1242 = vmatpush1.msra.mxu0 %v37
    %1243 = vmatprep.subr.mxu0 0.0
    %1244 = vmatpush2.msra.mxu0 0.0
    %1245 = vmatprep.subr.mxu0 0.0
    %1246 = vmatpush2.msra.mxu0 0.0
    %1247 = vmatprep.subr.mxu0 0.0
    %1248 = vmatpush2.msra.mxu0 0.0
    %1249 = vmatprep.subr.mxu0 0.0
    %1250 = vmatpush2.msra.mxu0 0.0
    %1251 = vmatprep.subr.mxu0 0.0
    %1252 = vmatpush2.msra.mxu0 0.0
    %1253 = vmatprep.subr.mxu0 0.0
    %1254 = vmatpush2.msra.mxu0 0.0
    %1255 = vmatprep.subr.mxu0 0.0
    %1256 = vmatpush2.msra.mxu0 0.0
    %1257 = vmatprep.subr.mxu0 0.0
    %1258 = vmatpush2.msra.mxu0 0.0
    %1259 = vmatprep.subr.mxu0 0.0
    %1260 = vmatpush2.msra.mxu0 0.0
    %1261 = vmatprep.subr.mxu0 0.0
    %1262 = vmatpush2.msra.mxu0 0.0
    %1263 = vmatprep.subr.mxu0 0.0
    %1264 = vmatpush2.msra.mxu0 0.0
    %1265 = vmatprep.subr.mxu0 0.0
    %1266 = vmatpush2.msra.mxu0 0.0
    %1267 = vmatprep.subr.mxu0 0.0
    %1268 = vmatpush2.msra.mxu0 0.0
    %1269 = vmatprep.subr.mxu0 0.0
    %1270 = vmatpush2.msra.mxu0 0.0
    %1271 = vmatprep.subr.mxu0 0.0
    %1272 = vmatpush2.msra.mxu0 0.0
    %1273 = vmatprep.subr.mxu0 0.0
    %1274 = vmatpush2.msra.mxu0 0.0
    %1275 = vmatprep.mubr.f32.mxu0 0.0
    %1276 = vmatmul.mubr.f32.gmra.mxu0 %v1209
    %v1277 = vpop.f32.mrf.mxu0
    %v1278 = vadd.f32 %v155, %v1277
    %v1279 = vpop.f32.mrf.mxu0
    %1280 = vdwg.mxu0
    %v1281 = vxor.u32 %v1278, 2147483648
    %v1282 = vmul.f32 %v1281, 1.442695
    %v1283 = vpow.pop %v1282
    %v1284 = vadd.f32 %v1283, 1.0
    %v1285 = vrcp.pop %v1284
    %v1286 = vmul.f32 1.0, %v1285
    %v1287 = vtanh.pop %v1278
    %v1288 = vmul.f32 %v1286, %v1088
    %1290 = vrot.lane.b32.xlu0 %v1287, 64
    %v1291 = vpop.permute.xlu0 %1290
    %v1293 = vmul.f32 %v1286, %v1291
    %1295 = vrot.lane.b32.xlu0 %v1293, 32
    %v1296 = vpop.permute.xlu0 %1295
    %v1298 = vadd.f32 %v1288, %v1296
    %v1299 = vtanh.pop %v1298
    %1301 = vrot.lane.b32.xlu0 %v1299, 64
    %v1302 = vpop.permute.xlu0 %1301
    %v1304 = vmul.f32 %v1286, %v1302
    %1306 = vrot.lane.b32.xlu0 %v1304, 32
    %v1307 = vpop.permute.xlu0 %1306
    %s1309 = scalar_lea.vmem [#allocation2], 10
    %1310 = vst.msk [vmem:[%s1309] sm:$0x3] %vm259, %v1307
    %s1311 = scalar_lea.vmem %s0, 12
    %v1312 = vld [vmem:[%s1311] sm:$0x3]
    %v1313 = vsel %vm47, %v1202, 0
    %1315 = vmatprep.subr.mxu0 0.0
    %1316 = vmatpush1.msra.mxu0 0.0
    %1317 = vmatprep.subr.mxu0 0.0
    %1318 = vmatpush1.msra.mxu0 0.0
    %1319 = vmatprep.subr.mxu0 0.0
    %1320 = vmatpush1.msra.mxu0 0.0
    %1321 = vmatprep.subr.mxu0 0.0
    %1322 = vmatpush1.msra.mxu0 0.0
    %1323 = vmatprep.subr.mxu0 0.0
    %1324 = vmatpush1.msra.mxu0 0.0
    %1325 = vmatprep.subr.mxu0 0.0
    %1326 = vmatpush1.msra.mxu0 0.0
    %1327 = vmatprep.subr.mxu0 0.0
    %1328 = vmatpush1.msra.mxu0 0.0
    %1329 = vmatprep.subr.mxu0 0.0
    %1330 = vmatpush1.msra.mxu0 0.0
    %1331 = vmatprep.subr.mxu0 0.0
    %1332 = vmatpush1.msra.mxu0 0.0
    %1333 = vmatprep.subr.mxu0 0.0
    %1334 = vmatpush1.msra.mxu0 0.0
    %1335 = vmatprep.subr.mxu0 0.0
    %1336 = vmatpush1.msra.mxu0 0.0
    %1337 = vmatprep.subr.mxu0 0.0
    %1338 = vmatpush1.msra.mxu0 0.0
    %1339 = vmatprep.subr.mxu0 0.0
    %1340 = vmatpush1.msra.mxu0 %v36
    %1341 = vmatprep.subr.mxu0 0.0
    %1342 = vmatpush1.msra.mxu0 %v35
    %1343 = vmatprep.subr.mxu0 0.0
    %1344 = vmatpush1.msra.mxu0 %v34
    %1345 = vmatprep.subr.mxu0 0.0
    %1346 = vmatpush1.msra.mxu0 %v33
    %1347 = vmatprep.subr.mxu0 0.0
    %1348 = vmatpush2.msra.mxu0 0.0
    %1349 = vmatprep.subr.mxu0 0.0
    %1350 = vmatpush2.msra.mxu0 0.0
    %1351 = vmatprep.subr.mxu0 0.0
    %1352 = vmatpush2.msra.mxu0 0.0
    %1353 = vmatprep.subr.mxu0 0.0
    %1354 = vmatpush2.msra.mxu0 0.0
    %1355 = vmatprep.subr.mxu0 0.0
    %1356 = vmatpush2.msra.mxu0 0.0
    %1357 = vmatprep.subr.mxu0 0.0
    %1358 = vmatpush2.msra.mxu0 0.0
    %1359 = vmatprep.subr.mxu0 0.0
    %1360 = vmatpush2.msra.mxu0 0.0
    %1361 = vmatprep.subr.mxu0 0.0
    %1362 = vmatpush2.msra.mxu0 0.0
    %1363 = vmatprep.subr.mxu0 0.0
    %1364 = vmatpush2.msra.mxu0 0.0
    %1365 = vmatprep.subr.mxu0 0.0
    %1366 = vmatpush2.msra.mxu0 0.0
    %1367 = vmatprep.subr.mxu0 0.0
    %1368 = vmatpush2.msra.mxu0 0.0
    %1369 = vmatprep.subr.mxu0 0.0
    %1370 = vmatpush2.msra.mxu0 0.0
    %1371 = vmatprep.subr.mxu0 0.0
    %1372 = vmatpush2.msra.mxu0 0.0
    %1373 = vmatprep.subr.mxu0 0.0
    %1374 = vmatpush2.msra.mxu0 0.0
    %1375 = vmatprep.subr.mxu0 0.0
    %1376 = vmatpush2.msra.mxu0 0.0
    %1377 = vmatprep.subr.mxu0 0.0
    %1378 = vmatpush2.msra.mxu0 0.0
    %1379 = vmatprep.mubr.f32.mxu0 0.0
    %1380 = vmatmul.mubr.f32.gmra.mxu0 %v1313
    %v1381 = vpop.f32.mrf.mxu0
    %v1382 = vadd.f32 0.0, %v1381
    %v1383 = vpop.f32.mrf.mxu0
    %1384 = vdwg.mxu0
    %v1385 = vadd.f32 %v1312, %v1382
    %v1386 = vxor.u32 %v1385, 2147483648
    %v1387 = vmul.f32 %v1386, 1.442695
    %v1388 = vpow.pop %v1387
    %v1389 = vadd.f32 %v1388, 1.0
    %v1390 = vrcp.pop %v1389
    %v1391 = vmul.f32 1.0, %v1390
    %v1392 = vtanh.pop %v1385
    %v1393 = vmul.f32 %v1391, %v1193
    %1395 = vrot.lane.b32.xlu0 %v1392, 64
    %v1396 = vpop.permute.xlu0 %1395
    %v1398 = vmul.f32 %v1391, %v1396
    %1400 = vrot.lane.b32.xlu0 %v1398, 32
    %v1401 = vpop.permute.xlu0 %1400
    %v1403 = vadd.f32 %v1393, %v1401
    %v1404 = vtanh.pop %v1403
    %1406 = vrot.lane.b32.xlu0 %v1404, 64
    %v1407 = vpop.permute.xlu0 %1406
    %v1409 = vmul.f32 %v1391, %v1407
    %1411 = vrot.lane.b32.xlu0 %v1409, 32
    %v1412 = vpop.permute.xlu0 %1411
    %1414 = vrot.lane.b32.xlu0 %v1304, 64
    %v1415 = vpop.permute.xlu0 %1414
    %v1417 = vsel %vm47, %v1412, %v1415
    %v1419 = vsel %vm157, %v1417, 0
    %1421 = vmatprep.subr.mxu0 0.0
    %1422 = vmatpush1.msra.mxu0 0.0
    %1423 = vmatprep.subr.mxu0 0.0
    %1424 = vmatpush1.msra.mxu0 0.0
    %1425 = vmatprep.subr.mxu0 0.0
    %1426 = vmatpush1.msra.mxu0 0.0
    %1427 = vmatprep.subr.mxu0 0.0
    %1428 = vmatpush1.msra.mxu0 0.0
    %1429 = vmatprep.subr.mxu0 0.0
    %1430 = vmatpush1.msra.mxu0 0.0
    %1431 = vmatprep.subr.mxu0 0.0
    %1432 = vmatpush1.msra.mxu0 0.0
    %1433 = vmatprep.subr.mxu0 0.0
    %1434 = vmatpush1.msra.mxu0 0.0
    %1435 = vmatprep.subr.mxu0 0.0
    %1436 = vmatpush1.msra.mxu0 0.0
    %1437 = vmatprep.subr.mxu0 0.0
    %1438 = vmatpush1.msra.mxu0 %v44
    %1439 = vmatprep.subr.mxu0 0.0
    %1440 = vmatpush1.msra.mxu0 %v43
    %1441 = vmatprep.subr.mxu0 0.0
    %1442 = vmatpush1.msra.mxu0 %v42
    %1443 = vmatprep.subr.mxu0 0.0
    %1444 = vmatpush1.msra.mxu0 %v41
    %1445 = vmatprep.subr.mxu0 0.0
    %1446 = vmatpush1.msra.mxu0 %v40
    %1447 = vmatprep.subr.mxu0 0.0
    %1448 = vmatpush1.msra.mxu0 %v39
    %1449 = vmatprep.subr.mxu0 0.0
    %1450 = vmatpush1.msra.mxu0 %v38
    %1451 = vmatprep.subr.mxu0 0.0
    %1452 = vmatpush1.msra.mxu0 %v37
    %1453 = vmatprep.subr.mxu0 0.0
    %1454 = vmatpush2.msra.mxu0 0.0
    %1455 = vmatprep.subr.mxu0 0.0
    %1456 = vmatpush2.msra.mxu0 0.0
    %1457 = vmatprep.subr.mxu0 0.0
    %1458 = vmatpush2.msra.mxu0 0.0
    %1459 = vmatprep.subr.mxu0 0.0
    %1460 = vmatpush2.msra.mxu0 0.0
    %1461 = vmatprep.subr.mxu0 0.0
    %1462 = vmatpush2.msra.mxu0 0.0
    %1463 = vmatprep.subr.mxu0 0.0
    %1464 = vmatpush2.msra.mxu0 0.0
    %1465 = vmatprep.subr.mxu0 0.0
    %1466 = vmatpush2.msra.mxu0 0.0
    %1467 = vmatprep.subr.mxu0 0.0
    %1468 = vmatpush2.msra.mxu0 0.0
    %1469 = vmatprep.subr.mxu0 0.0
    %1470 = vmatpush2.msra.mxu0 0.0
    %1471 = vmatprep.subr.mxu0 0.0
    %1472 = vmatpush2.msra.mxu0 0.0
    %1473 = vmatprep.subr.mxu0 0.0
    %1474 = vmatpush2.msra.mxu0 0.0
    %1475 = vmatprep.subr.mxu0 0.0
    %1476 = vmatpush2.msra.mxu0 0.0
    %1477 = vmatprep.subr.mxu0 0.0
    %1478 = vmatpush2.msra.mxu0 0.0
    %1479 = vmatprep.subr.mxu0 0.0
    %1480 = vmatpush2.msra.mxu0 0.0
    %1481 = vmatprep.subr.mxu0 0.0
    %1482 = vmatpush2.msra.mxu0 0.0
    %1483 = vmatprep.subr.mxu0 0.0
    %1484 = vmatpush2.msra.mxu0 0.0
    %1485 = vmatprep.mubr.f32.mxu0 0.0
    %1486 = vmatmul.mubr.f32.gmra.mxu0 %v1419
    %v1487 = vpop.f32.mrf.mxu0
    %v1488 = vadd.f32 %v155, %v1487
    %v1489 = vpop.f32.mrf.mxu0
    %1490 = vdwg.mxu0
    %v1491 = vxor.u32 %v1488, 2147483648
    %v1492 = vmul.f32 %v1491, 1.442695
    %v1493 = vpow.pop %v1492
    %v1494 = vadd.f32 %v1493, 1.0
    %v1495 = vrcp.pop %v1494
    %v1496 = vmul.f32 1.0, %v1495
    %v1497 = vtanh.pop %v1488
    %v1498 = vmul.f32 %v1496, %v1298
    %1500 = vrot.lane.b32.xlu0 %v1497, 64
    %v1501 = vpop.permute.xlu0 %1500
    %v1503 = vmul.f32 %v1496, %v1501
    %1505 = vrot.lane.b32.xlu0 %v1503, 32
    %v1506 = vpop.permute.xlu0 %1505
    %v1508 = vadd.f32 %v1498, %v1506
    %v1509 = vtanh.pop %v1508
    %1511 = vrot.lane.b32.xlu0 %v1509, 64
    %v1512 = vpop.permute.xlu0 %1511
    %v1514 = vmul.f32 %v1496, %v1512
    %1516 = vrot.lane.b32.xlu0 %v1514, 32
    %v1517 = vpop.permute.xlu0 %1516
    %s1519 = scalar_lea.vmem [#allocation2], 12
    %1520 = vst.msk [vmem:[%s1519] sm:$0x3] %vm259, %v1517
    %s1521 = scalar_lea.vmem %s0, 14
    %v1522 = vld [vmem:[%s1521] sm:$0x3]
    %v1523 = vsel %vm47, %v1412, 0
    %1525 = vmatprep.subr.mxu0 0.0
    %1526 = vmatpush1.msra.mxu0 0.0
    %1527 = vmatprep.subr.mxu0 0.0
    %1528 = vmatpush1.msra.mxu0 0.0
    %1529 = vmatprep.subr.mxu0 0.0
    %1530 = vmatpush1.msra.mxu0 0.0
    %1531 = vmatprep.subr.mxu0 0.0
    %1532 = vmatpush1.msra.mxu0 0.0
    %1533 = vmatprep.subr.mxu0 0.0
    %1534 = vmatpush1.msra.mxu0 0.0
    %1535 = vmatprep.subr.mxu0 0.0
    %1536 = vmatpush1.msra.mxu0 0.0
    %1537 = vmatprep.subr.mxu0 0.0
    %1538 = vmatpush1.msra.mxu0 0.0
    %1539 = vmatprep.subr.mxu0 0.0
    %1540 = vmatpush1.msra.mxu0 0.0
    %1541 = vmatprep.subr.mxu0 0.0
    %1542 = vmatpush1.msra.mxu0 0.0
    %1543 = vmatprep.subr.mxu0 0.0
    %1544 = vmatpush1.msra.mxu0 0.0
    %1545 = vmatprep.subr.mxu0 0.0
    %1546 = vmatpush1.msra.mxu0 0.0
    %1547 = vmatprep.subr.mxu0 0.0
    %1548 = vmatpush1.msra.mxu0 0.0
    %1549 = vmatprep.subr.mxu0 0.0
    %1550 = vmatpush1.msra.mxu0 %v36
    %1551 = vmatprep.subr.mxu0 0.0
    %1552 = vmatpush1.msra.mxu0 %v35
    %1553 = vmatprep.subr.mxu0 0.0
    %1554 = vmatpush1.msra.mxu0 %v34
    %1555 = vmatprep.subr.mxu0 0.0
    %1556 = vmatpush1.msra.mxu0 %v33
    %1557 = vmatprep.subr.mxu0 0.0
    %1558 = vmatpush2.msra.mxu0 0.0
    %1559 = vmatprep.subr.mxu0 0.0
    %1560 = vmatpush2.msra.mxu0 0.0
    %1561 = vmatprep.subr.mxu0 0.0
    %1562 = vmatpush2.msra.mxu0 0.0
    %1563 = vmatprep.subr.mxu0 0.0
    %1564 = vmatpush2.msra.mxu0 0.0
    %1565 = vmatprep.subr.mxu0 0.0
    %1566 = vmatpush2.msra.mxu0 0.0
    %1567 = vmatprep.subr.mxu0 0.0
    %1568 = vmatpush2.msra.mxu0 0.0
    %1569 = vmatprep.subr.mxu0 0.0
    %1570 = vmatpush2.msra.mxu0 0.0
    %1571 = vmatprep.subr.mxu0 0.0
    %1572 = vmatpush2.msra.mxu0 0.0
    %1573 = vmatprep.subr.mxu0 0.0
    %1574 = vmatpush2.msra.mxu0 0.0
    %1575 = vmatprep.subr.mxu0 0.0
    %1576 = vmatpush2.msra.mxu0 0.0
    %1577 = vmatprep.subr.mxu0 0.0
    %1578 = vmatpush2.msra.mxu0 0.0
    %1579 = vmatprep.subr.mxu0 0.0
    %1580 = vmatpush2.msra.mxu0 0.0
    %1581 = vmatprep.subr.mxu0 0.0
    %1582 = vmatpush2.msra.mxu0 0.0
    %1583 = vmatprep.subr.mxu0 0.0
    %1584 = vmatpush2.msra.mxu0 0.0
    %1585 = vmatprep.subr.mxu0 0.0
    %1586 = vmatpush2.msra.mxu0 0.0
    %1587 = vmatprep.subr.mxu0 0.0
    %1588 = vmatpush2.msra.mxu0 0.0
    %1589 = vmatprep.mubr.f32.mxu0 0.0
    %1590 = vmatmul.mubr.f32.gmra.mxu0 %v1523
    %v1591 = vpop.f32.mrf.mxu0
    %v1592 = vadd.f32 0.0, %v1591
    %v1593 = vpop.f32.mrf.mxu0
    %1594 = vdwg.mxu0
    %v1595 = vadd.f32 %v1522, %v1592
    %v1596 = vxor.u32 %v1595, 2147483648
    %v1597 = vmul.f32 %v1596, 1.442695
    %v1598 = vpow.pop %v1597
    %v1599 = vadd.f32 %v1598, 1.0
    %v1600 = vrcp.pop %v1599
    %v1601 = vmul.f32 1.0, %v1600
    %v1602 = vtanh.pop %v1595
    %v1603 = vmul.f32 %v1601, %v1403
    %1605 = vrot.lane.b32.xlu0 %v1602, 64
    %v1606 = vpop.permute.xlu0 %1605
    %v1608 = vmul.f32 %v1601, %v1606
    %1610 = vrot.lane.b32.xlu0 %v1608, 32
    %v1611 = vpop.permute.xlu0 %1610
    %v1613 = vadd.f32 %v1603, %v1611
    %v1614 = vtanh.pop %v1613
    %1616 = vrot.lane.b32.xlu0 %v1614, 64
    %v1617 = vpop.permute.xlu0 %1616
    %v1619 = vmul.f32 %v1601, %v1617
    %1621 = vrot.lane.b32.xlu0 %v1619, 32
    %v1622 = vpop.permute.xlu0 %1621
    %1624 = vrot.lane.b32.xlu0 %v1514, 64
    %v1625 = vpop.permute.xlu0 %1624
    %v1627 = vsel %vm47, %v1622, %v1625
    %v1629 = vsel %vm157, %v1627, 0
    %1631 = vmatprep.subr.mxu0 0.0
    %1632 = vmatpush1.msra.mxu0 0.0
    %1633 = vmatprep.subr.mxu0 0.0
    %1634 = vmatpush1.msra.mxu0 0.0
    %1635 = vmatprep.subr.mxu0 0.0
    %1636 = vmatpush1.msra.mxu0 0.0
    %1637 = vmatprep.subr.mxu0 0.0
    %1638 = vmatpush1.msra.mxu0 0.0
    %1639 = vmatprep.subr.mxu0 0.0
    %1640 = vmatpush1.msra.mxu0 0.0
    %1641 = vmatprep.subr.mxu0 0.0
    %1642 = vmatpush1.msra.mxu0 0.0
    %1643 = vmatprep.subr.mxu0 0.0
    %1644 = vmatpush1.msra.mxu0 0.0
    %1645 = vmatprep.subr.mxu0 0.0
    %1646 = vmatpush1.msra.mxu0 0.0
    %1647 = vmatprep.subr.mxu0 0.0
    %1648 = vmatpush1.msra.mxu0 %v44
    %1649 = vmatprep.subr.mxu0 0.0
    %1650 = vmatpush1.msra.mxu0 %v43
    %1651 = vmatprep.subr.mxu0 0.0
    %1652 = vmatpush1.msra.mxu0 %v42
    %1653 = vmatprep.subr.mxu0 0.0
    %1654 = vmatpush1.msra.mxu0 %v41
    %1655 = vmatprep.subr.mxu0 0.0
    %1656 = vmatpush1.msra.mxu0 %v40
    %1657 = vmatprep.subr.mxu0 0.0
    %1658 = vmatpush1.msra.mxu0 %v39
    %1659 = vmatprep.subr.mxu0 0.0
    %1660 = vmatpush1.msra.mxu0 %v38
    %1661 = vmatprep.subr.mxu0 0.0
    %1662 = vmatpush1.msra.mxu0 %v37
    %1663 = vmatprep.subr.mxu0 0.0
    %1664 = vmatpush2.msra.mxu0 0.0
    %1665 = vmatprep.subr.mxu0 0.0
    %1666 = vmatpush2.msra.mxu0 0.0
    %1667 = vmatprep.subr.mxu0 0.0
    %1668 = vmatpush2.msra.mxu0 0.0
    %1669 = vmatprep.subr.mxu0 0.0
    %1670 = vmatpush2.msra.mxu0 0.0
    %1671 = vmatprep.subr.mxu0 0.0
    %1672 = vmatpush2.msra.mxu0 0.0
    %1673 = vmatprep.subr.mxu0 0.0
    %1674 = vmatpush2.msra.mxu0 0.0
    %1675 = vmatprep.subr.mxu0 0.0
    %1676 = vmatpush2.msra.mxu0 0.0
    %1677 = vmatprep.subr.mxu0 0.0
    %1678 = vmatpush2.msra.mxu0 0.0
    %1679 = vmatprep.subr.mxu0 0.0
    %1680 = vmatpush2.msra.mxu0 0.0
    %1681 = vmatprep.subr.mxu0 0.0
    %1682 = vmatpush2.msra.mxu0 0.0
    %1683 = vmatprep.subr.mxu0 0.0
    %1684 = vmatpush2.msra.mxu0 0.0
    %1685 = vmatprep.subr.mxu0 0.0
    %1686 = vmatpush2.msra.mxu0 0.0
    %1687 = vmatprep.subr.mxu0 0.0
    %1688 = vmatpush2.msra.mxu0 0.0
    %1689 = vmatprep.subr.mxu0 0.0
    %1690 = vmatpush2.msra.mxu0 0.0
    %1691 = vmatprep.subr.mxu0 0.0
    %1692 = vmatpush2.msra.mxu0 0.0
    %1693 = vmatprep.subr.mxu0 0.0
    %1694 = vmatpush2.msra.mxu0 0.0
    %1695 = vmatprep.mubr.f32.mxu0 0.0
    %1696 = vmatmul.mubr.f32.gmra.mxu0 %v1629
    %v1697 = vpop.f32.mrf.mxu0
    %v1698 = vadd.f32 %v155, %v1697
    %v1699 = vpop.f32.mrf.mxu0
    %1700 = vdwg.mxu0
    %v1701 = vxor.u32 %v1698, 2147483648
    %v1702 = vmul.f32 %v1701, 1.442695
    %v1703 = vpow.pop %v1702
    %v1704 = vadd.f32 %v1703, 1.0
    %v1705 = vrcp.pop %v1704
    %v1706 = vmul.f32 1.0, %v1705
    %v1707 = vtanh.pop %v1698
    %v1708 = vmul.f32 %v1706, %v1508
    %1710 = vrot.lane.b32.xlu0 %v1707, 64
    %v1711 = vpop.permute.xlu0 %1710
    %v1713 = vmul.f32 %v1706, %v1711
    %1715 = vrot.lane.b32.xlu0 %v1713, 32
    %v1716 = vpop.permute.xlu0 %1715
    %v1718 = vadd.f32 %v1708, %v1716
    %v1719 = vtanh.pop %v1718
    %1721 = vrot.lane.b32.xlu0 %v1719, 64
    %v1722 = vpop.permute.xlu0 %1721
    %v1724 = vmul.f32 %v1706, %v1722
    %1726 = vrot.lane.b32.xlu0 %v1724, 32
    %v1727 = vpop.permute.xlu0 %1726
    %s1729 = scalar_lea.vmem [#allocation2], 14
    %1730 = vst.msk [vmem:[%s1729] sm:$0x3] %vm259, %v1727
    %v1731 = vld [vmem:[#allocation2] sm:$0x3]
    %v1732 = vld [vmem:[#allocation2 + $0x2] sm:$0x3]
    %v1733 = vld [vmem:[#allocation2 + $0x4] sm:$0x3]
    %v1734 = vld [vmem:[#allocation2 + $0x6] sm:$0x3]
    %v1735 = vld [vmem:[#allocation2 + $0x8] sm:$0x3]
    %v1736 = vld [vmem:[#allocation2 + $0xa] sm:$0x3]
    %v1737 = vld [vmem:[#allocation2 + $0xc] sm:$0x3]
    %v1738 = vld [vmem:[#allocation2 + $0xe] sm:$0x3]
    %v1739 = vld [vmem:[%s4] sm:$0x1]
    %v1741 = vlaneseq
    %v1742 = vshrl.u32 %v1741, 7
    %v1743 = vsub.s32 0, %v1742
    %v1744 = vrot.slane %v1739, %v1743
    %v1746 = vmul.f32 %v1731, %v1744
    %v1747 = vmul.f32 %v1732, %v1744
    %v1748 = vmul.f32 %v1733, %v1744
    %v1749 = vmul.f32 %v1734, %v1744
    %v1750 = vmul.f32 %v1735, %v1744
    %v1751 = vmul.f32 %v1736, %v1744
    %v1752 = vmul.f32 %v1737, %v1744
    %v1753 = vmul.f32 %v1738, %v1744
    %v1754 = vsel %vm259, %v1746, 0.0
    %1755 = vadd.xlane.f32.xlu0 %v1754
    %v1756 = vpop.xlane.xlu0 %1755
    %v1757 = vsel %vm259, %v1747, 0.0
    %1758 = vadd.xlane.f32.xlu0 %v1757
    %v1759 = vpop.xlane.xlu0 %1758
    %v1760 = vsel %vm259, %v1748, 0.0
    %1761 = vadd.xlane.f32.xlu0 %v1760
    %v1762 = vpop.xlane.xlu0 %1761
    %v1763 = vsel %vm259, %v1749, 0.0
    %1764 = vadd.xlane.f32.xlu0 %v1763
    %v1765 = vpop.xlane.xlu0 %1764
    %v1766 = vsel %vm259, %v1750, 0.0
    %1767 = vadd.xlane.f32.xlu0 %v1766
    %v1768 = vpop.xlane.xlu0 %1767
    %v1769 = vsel %vm259, %v1751, 0.0
    %1770 = vadd.xlane.f32.xlu0 %v1769
    %v1771 = vpop.xlane.xlu0 %1770
    %v1772 = vsel %vm259, %v1752, 0.0
    %1773 = vadd.xlane.f32.xlu0 %v1772
    %v1774 = vpop.xlane.xlu0 %1773
    %v1775 = vsel %vm259, %v1753, 0.0
    %1776 = vadd.xlane.f32.xlu0 %v1775
    %v1777 = vpop.xlane.xlu0 %1776
    %vm1778 = vcmask 1041408
    %v1779 = vsel %vm1778, %v1756, -inf
    %v1780 = vsel %vm1778, %v1759, -inf
    %v1781 = vsel %vm1778, %v1762, -inf
    %v1782 = vsel %vm1778, %v1765, -inf
    %v1783 = vsel %vm1778, %v1768, -inf
    %v1784 = vmax.f32 %v1779, %v1783
    %v1785 = vsel %vm1778, %v1771, -inf
    %v1786 = vmax.f32 %v1780, %v1785
    %v1787 = vsel %vm1778, %v1774, -inf
    %v1788 = vmax.f32 %v1781, %v1787
    %v1789 = vsel %vm1778, %v1777, -inf
    %v1790 = vmax.f32 %v1782, %v1789
    %v1791 = vmax.f32 %v1784, %v1786
    %v1792 = vmax.f32 %v1788, %v1790
    %v1793 = vmax.f32 %v1791, %v1792
    %v1794 = vsub.f32 %v1756, %v1793
    %v1795 = vsub.f32 %v1759, %v1793
    %v1796 = vsub.f32 %v1762, %v1793
    %v1797 = vsub.f32 %v1765, %v1793
    %v1798 = vsub.f32 %v1768, %v1793
    %v1799 = vsub.f32 %v1771, %v1793
    %v1800 = vsub.f32 %v1774, %v1793
    %v1801 = vsub.f32 %v1777, %v1793
    %v1802 = vmul.f32 %v1794, 1.442695
    %v1803 = vpow.pop %v1802
    %v1804 = vmul.f32 %v1795, 1.442695
    %v1805 = vpow.pop %v1804
    %v1806 = vmul.f32 %v1796, 1.442695
    %v1807 = vpow.pop %v1806
    %v1808 = vmul.f32 %v1797, 1.442695
    %v1809 = vpow.pop %v1808
    %v1810 = vmul.f32 %v1798, 1.442695
    %v1811 = vpow.pop %v1810
    %v1812 = vmul.f32 %v1799, 1.442695
    %v1813 = vpow.pop %v1812
    %v1814 = vmul.f32 %v1800, 1.442695
    %v1815 = vpow.pop %v1814
    %v1816 = vmul.f32 %v1801, 1.442695
    %v1817 = vpow.pop %v1816
    %v1818 = vsel %vm1778, %v1803, 0.0
    %v1819 = vsel %vm1778, %v1805, 0.0
    %v1820 = vadd.f32 %v1818, %v1819
    %v1821 = vsel %vm1778, %v1807, 0.0
    %v1822 = vadd.f32 %v1820, %v1821
    %v1823 = vsel %vm1778, %v1809, 0.0
    %v1824 = vadd.f32 %v1822, %v1823
    %v1825 = vsel %vm1778, %v1811, 0.0
    %v1826 = vadd.f32 %v1824, %v1825
    %v1827 = vsel %vm1778, %v1813, 0.0
    %v1828 = vadd.f32 %v1826, %v1827
    %v1829 = vsel %vm1778, %v1815, 0.0
    %v1830 = vadd.f32 %v1828, %v1829
    %v1831 = vsel %vm1778, %v1817, 0.0
    %v1832 = vadd.f32 %v1830, %v1831
    %v1833 = vrcp.pop %v1832
    %v1834 = vmul.f32 %v1803, %v1833
    %v1835 = vmul.f32 %v1805, %v1833
    %v1836 = vmul.f32 %v1807, %v1833
    %v1837 = vmul.f32 %v1809, %v1833
    %v1838 = vmul.f32 %v1811, %v1833
    %v1839 = vmul.f32 %v1813, %v1833
    %v1840 = vmul.f32 %v1815, %v1833
    %v1841 = vmul.f32 %v1817, %v1833
    %v1842 = vmul.f32 %v1731, %v1834
    %v1843 = vmul.f32 %v1732, %v1835
    %v1844 = vmul.f32 %v1733, %v1836
    %v1845 = vmul.f32 %v1734, %v1837
    %v1846 = vmul.f32 %v1735, %v1838
    %v1847 = vmul.f32 %v1736, %v1839
    %v1848 = vmul.f32 %v1737, %v1840
    %v1849 = vmul.f32 %v1738, %v1841
    %v1850 = vsel %vm259, %v1842, 0.0
    %v1851 = vsel %vm259, %v1843, 0.0
    %v1852 = vadd.f32 %v1850, %v1851
    %v1853 = vsel %vm259, %v1844, 0.0
    %v1854 = vadd.f32 %v1852, %v1853
    %v1855 = vsel %vm259, %v1845, 0.0
    %v1856 = vadd.f32 %v1854, %v1855
    %v1857 = vsel %vm259, %v1846, 0.0
    %v1858 = vadd.f32 %v1856, %v1857
    %v1859 = vsel %vm259, %v1847, 0.0
    %v1860 = vadd.f32 %v1858, %v1859
    %v1861 = vsel %vm259, %v1848, 0.0
    %v1862 = vadd.f32 %v1860, %v1861
    %v1863 = vsel %vm259, %v1849, 0.0
    %v1864 = vadd.f32 %v1862, %v1863
    %v1865 = vld [vmem:[%s7] sm:$0x1]
    %v1867 = vlaneseq
    %v1868 = vshrl.u32 %v1867, 7
    %v1869 = vsub.s32 0, %v1868
    %v1870 = vrot.slane %v1865, %v1869
    %v1872 = vsub.f32 %v1864, %v1870
    %v1873 = vld [vmem:[%s5] sm:$0x1]
    %v1875 = vlaneseq
    %v1876 = vshrl.u32 %v1875, 7
    %v1877 = vsub.s32 0, %v1876
    %v1878 = vrot.slane %v1873, %v1877
    %v1880 = vmul.f32 %v1872, %v1878
    %v1881 = vld [vmem:[%s8] sm:$0x1]
    %v1882 = vadd.f32 %v1881, 1e-05
    %v1883 = vrsqrt.pop %v1882
    %v1885 = vlaneseq
    %v1886 = vshrl.u32 %v1885, 7
    %v1887 = vsub.s32 0, %v1886
    %v1888 = vrot.slane %v1883, %v1887
    %v1890 = vmul.f32 %v1880, %v1888
    %v1891 = vld [vmem:[%s6] sm:$0x1]
    %v1893 = vlaneseq
    %v1894 = vshrl.u32 %v1893, 7
    %v1895 = vsub.s32 0, %v1894
    %v1896 = vrot.slane %v1891, %v1895
    %v1898 = vadd.f32 %v1890, %v1896
    %v1899 = vmax.f32 %v1898, 0.0
    %1900 = vst.msk [vmem:[#allocation3] sm:$0x3] %vm259, %v1899
    // Predicated region
    $region38: #{hcn_inertial_enc_forward.3} parent=1 // pred_check
      _
    $region39: #{hcn_inertial_enc_forward.3} parent=1 // pred_check_branch
      %1902 = sbr.rel (0) target = $region41
    $region40: #{hcn_inertial_enc_forward.3} parent=1 // pred_region
      %s1904 = ssub.s32 32, 32
      %1905 = vsyncadd [#allocation4], %s1904
      %s1907 = sshll.u32 [#allocation3], 4
      %s1908 = int_to_ptr.vmem [resolvable:$true] %s1907
      %1910 = dma.vmem_to_hbm [thread:$0]  %s1908, 32, %s9, [#allocation4]
    $region41: #{hcn_inertial_enc_forward.3} parent=1 // pred_fallthru
      _
    // Predicated region
    $region42: #{hcn_inertial_enc_forward.3} parent=1 // pred_check
      _
    $region43: #{hcn_inertial_enc_forward.3} parent=1 // pred_check_branch
      %1912 = sbr.rel (0) target = $region45
    $region44: #{hcn_inertial_enc_forward.3} parent=1 // pred_region
      %1913 = dma.done [#allocation4], 32
    $region45: #{hcn_inertial_enc_forward.3} parent=1 // pred_fallthru
      _
    %1914 = vsyncpa [#allocation4], 1

// kernel: hcn_inertial_enc_forward.2
$region0: #{hcn_inertial_enc_forward.2}
  #allocation0 [shape = 'u32[]', space=smem, size = 0x4, offset = 0x4, fixed_abs, tag = 'smem constant byte address 0x4 - core index']
  #allocation1 [shape = 'u32[144,128]{1,0:T(1,128)}', space=vmem, size = 0x12000, scoped, tag = 'internal scratch']
  #allocation2 [shape = 'f32[5,48,16]{2,1,0:T(8,128)}', space=vmem, size = 0x1e000, scoped, tag = 'scratch operand']
  #allocation3 [shape = 'f32[128,16]{1,0:T(8,128)}', space=vmem, size = 0x10000, scoped, tag = 'scratch operand']
  %s0 = inlined_call_operand.vmem [shape: f32[5,3,16], index: 0, kind: input, shape index: {}]
  %s1 = inlined_call_operand.vmem [shape: f32[48,3], index: 1, kind: input, shape index: {}]
  %s2 = inlined_call_operand.vmem [shape: f32[48,1], index: 2, kind: input, shape index: {}]
  %s3 = inlined_call_operand.vmem [shape: f32[72], index: 3, kind: input, shape index: {}]
  %s4 = inlined_call_operand.vmem [shape: f32[8], index: 4, kind: input, shape index: {}]
  %s5 = inlined_call_operand.vmem [shape: bf16[32,128], index: 5, kind: input, shape index: {}]
  %s6 = inlined_call_operand.vmem [shape: f32[32,1], index: 6, kind: input, shape index: {}]
  %s7 = inlined_call_operand.vmem [shape: bf16[32,128], index: 7, kind: input, shape index: {}]
  %s8 = inlined_call_operand.vmem [shape: f32[1,128], index: 8, kind: input, shape index: {}]
  %s9 = inlined_call_operand.vmem [shape: f32[16,128], index: 9, kind: output, shape index: {}]
  %s10 = sld [smem:[#allocation0]]
  $region54: #{hcn_inertial_enc_forward.2} parent=0
    _
  %s12 = ssub.s32 1, %s10
  %s13 = scalar_select 0, %s12, %s10
  $region1: #{hcn_inertial_enc_forward.2} parent=0
    #allocation4 [shape = 'u8[512]{0}', space=smem, size = 0x200, scoped, tag = 'input window, operand 3, single buffered']
    #allocation5 [shape = 's32[1]{0}', space=sflag, size = 0x4, scoped, tag = 'scoped memory for hcn_inertial_enc_forward.2']
    #allocation6 [shape = 'u8[512]{0}', space=smem, size = 0x200, scoped, tag = 'input window, operand 4, single buffered']
    #allocation7 [shape = 's32[1]{0}', space=sflag, size = 0x4, scoped, tag = 'scoped memory for hcn_inertial_enc_forward.2']
    %14 = vsyncpa [#allocation5], 0
    %15 = vsyncpa [#allocation7], 0
    // Predicated region
    $region2: #{hcn_inertial_enc_forward.2} parent=1 // pred_check
      _
    $region3: #{hcn_inertial_enc_forward.2} parent=1 // pred_check_branch
      %17 = sbr.rel (0) target = $region5
    $region4: #{hcn_inertial_enc_forward.2} parent=1 // pred_region
      _
    $region5: #{hcn_inertial_enc_forward.2} parent=1 // pred_fallthru
      _
    // Predicated region
    $region6: #{hcn_inertial_enc_forward.2} parent=1 // pred_check
      _
    $region7: #{hcn_inertial_enc_forward.2} parent=1 // pred_check_branch
      %19 = sbr.rel (0) target = $region9
    $region8: #{hcn_inertial_enc_forward.2} parent=1 // pred_region
      _
    $region9: #{hcn_inertial_enc_forward.2} parent=1 // pred_fallthru
      _
    // Predicated region
    $region10: #{hcn_inertial_enc_forward.2} parent=1 // pred_check
      _
    $region11: #{hcn_inertial_enc_forward.2} parent=1 // pred_check_branch
      %21 = sbr.rel (0) target = $region13
    $region12: #{hcn_inertial_enc_forward.2} parent=1 // pred_region
      _
    $region13: #{hcn_inertial_enc_forward.2} parent=1 // pred_fallthru
      _
    // Predicated region
    $region14: #{hcn_inertial_enc_forward.2} parent=1 // pred_check
      _
    $region15: #{hcn_inertial_enc_forward.2} parent=1 // pred_check_branch
      %23 = sbr.rel (0) target = $region17
    $region16: #{hcn_inertial_enc_forward.2} parent=1 // pred_region
      %s25 = ssub.s32 16, 16
      %26 = vsyncadd [#allocation5], %s25
      %s28 = sshll.u32 %s3, 4
      %s29 = int_to_ptr.vmem [resolvable:$true] %s28
      %31 = dma.vmem_to_smem %s29, 16, [#allocation4], [#allocation5]
    $region17: #{hcn_inertial_enc_forward.2} parent=1 // pred_fallthru
      _
    // Predicated region
    $region18: #{hcn_inertial_enc_forward.2} parent=1 // pred_check
      _
    $region19: #{hcn_inertial_enc_forward.2} parent=1 // pred_check_branch
      %33 = sbr.rel (0) target = $region21
    $region20: #{hcn_inertial_enc_forward.2} parent=1 // pred_region
      %s35 = ssub.s32 16, 16
      %36 = vsyncadd [#allocation7], %s35
      %s38 = sshll.u32 %s4, 4
      %s39 = int_to_ptr.vmem [resolvable:$true] %s38
      %41 = dma.vmem_to_smem %s39, 16, [#allocation6], [#allocation7]
    $region21: #{hcn_inertial_enc_forward.2} parent=1 // pred_fallthru
      _
    // Predicated region
    $region22: #{hcn_inertial_enc_forward.2} parent=1 // pred_check
      _
    $region23: #{hcn_inertial_enc_forward.2} parent=1 // pred_check_branch
      %43 = sbr.rel (0) target = $region25
    $region24: #{hcn_inertial_enc_forward.2} parent=1 // pred_region
      _
    $region25: #{hcn_inertial_enc_forward.2} parent=1 // pred_fallthru
      _
    // Predicated region
    $region26: #{hcn_inertial_enc_forward.2} parent=1 // pred_check
      _
    $region27: #{hcn_inertial_enc_forward.2} parent=1 // pred_check_branch
      %45 = sbr.rel (0) target = $region29
    $region28: #{hcn_inertial_enc_forward.2} parent=1 // pred_region
      _
    $region29: #{hcn_inertial_enc_forward.2} parent=1 // pred_fallthru
      _
    // Predicated region
    $region30: #{hcn_inertial_enc_forward.2} parent=1 // pred_check
      _
    $region31: #{hcn_inertial_enc_forward.2} parent=1 // pred_check_branch
      %47 = sbr.rel (0) target = $region33
    $region32: #{hcn_inertial_enc_forward.2} parent=1 // pred_region
      _
    $region33: #{hcn_inertial_enc_forward.2} parent=1 // pred_fallthru
      _
    // Predicated region
    $region34: #{hcn_inertial_enc_forward.2} parent=1 // pred_check
      _
    $region35: #{hcn_inertial_enc_forward.2} parent=1 // pred_check_branch
      %49 = sbr.rel (0) target = $region37
    $region36: #{hcn_inertial_enc_forward.2} parent=1 // pred_region
      _
    $region37: #{hcn_inertial_enc_forward.2} parent=1 // pred_fallthru
      _
    // Predicated region
    $region38: #{hcn_inertial_enc_forward.2} parent=1 // pred_check
      _
    $region39: #{hcn_inertial_enc_forward.2} parent=1 // pred_check_branch
      %51 = sbr.rel (0) target = $region41
    $region40: #{hcn_inertial_enc_forward.2} parent=1 // pred_region
      %52 = dma.done [#allocation5], 16
    $region41: #{hcn_inertial_enc_forward.2} parent=1 // pred_fallthru
      _
    // Predicated region
    $region42: #{hcn_inertial_enc_forward.2} parent=1 // pred_check
      _
    $region43: #{hcn_inertial_enc_forward.2} parent=1 // pred_check_branch
      %54 = sbr.rel (0) target = $region45
    $region44: #{hcn_inertial_enc_forward.2} parent=1 // pred_region
      %55 = dma.done [#allocation7], 16
    $region45: #{hcn_inertial_enc_forward.2} parent=1 // pred_fallthru
      _
    %56 = sfence
    %v58 = vld [vmem:[%s1] sm:$0xff]
    %v59 = vld [vmem:[%s1 + $0x8] sm:$0xff]
    %v60 = vld [vmem:[%s1 + $0x10] sm:$0xff]
    %v61 = vld [vmem:[%s1 + $0x18] sm:$0xff]
    %v62 = vld [vmem:[%s1 + $0x20] sm:$0xff]
    %v63 = vld [vmem:[%s1 + $0x28] sm:$0xff]
    %v64 = vld [vmem:[%s2] sm:$0xff]
    %v65 = vld [vmem:[%s2 + $0x8] sm:$0xff]
    %v66 = vld [vmem:[%s2 + $0x10] sm:$0xff]
    %v67 = vld [vmem:[%s2 + $0x18] sm:$0xff]
    %v68 = vld [vmem:[%s2 + $0x20] sm:$0xff]
    %v69 = vld [vmem:[%s2 + $0x28] sm:$0xff]
    %v70 = vld [vmem:[%s0] sm:$0x7]
    %72 = vset.pattern.permute.xlu0 0
    %73 = vperm.xlu0 %72, %v64
    %v74 = vpop.permute.xlu0 %73
    %77 = vset.pattern.permute.xlu0 0
    %78 = vperm.xlu0 %77, %v65
    %v79 = vpop.permute.xlu0 %78
    %82 = vset.pattern.permute.xlu0 0
    %83 = vperm.xlu0 %82, %v66
    %v84 = vpop.permute.xlu0 %83
    %87 = vset.pattern.permute.xlu0 0
    %88 = vperm.xlu0 %87, %v67
    %v89 = vpop.permute.xlu0 %88
    %92 = vset.pattern.permute.xlu0 0
    %93 = vperm.xlu0 %92, %v68
    %v94 = vpop.permute.xlu0 %93
    %97 = vset.pattern.permute.xlu0 0
    %98 = vperm.xlu0 %97, %v69
    %v99 = vpop.permute.xlu0 %98
    %vm101 = vcmask 23552
    %v103 = vsel %vm101, %v58, 0
    %v106 = vsel %vm101, %v59, 0
    %v109 = vsel %vm101, %v60, 0
    %v112 = vsel %vm101, %v61, 0
    %v115 = vsel %vm101, %v62, 0
    %v118 = vsel %vm101, %v63, 0
    %vm120 = vcmask 1042432
    %v122 = vsel %vm120, %v70, 0
    %124 = vmatprep.subr.mxu0 0.0
    %125 = vmatpush1.msra.mxu0 0.0
    %126 = vmatprep.subr.mxu0 0.0
    %127 = vmatpush1.msra.mxu0 0.0
    %128 = vmatprep.subr.mxu0 0.0
    %129 = vmatpush1.msra.mxu0 0.0
    %130 = vmatprep.subr.mxu0 0.0
    %131 = vmatpush1.msra.mxu0 0.0
    %132 = vmatprep.subr.mxu0 0.0
    %133 = vmatpush1.msra.mxu0 0.0
    %134 = vmatprep.subr.mxu0 0.0
    %135 = vmatpush1.msra.mxu0 0.0
    %136 = vmatprep.subr.mxu0 0.0
    %137 = vmatpush1.msra.mxu0 0.0
    %138 = vmatprep.subr.mxu0 0.0
    %139 = vmatpush1.msra.mxu0 0.0
    %140 = vmatprep.subr.mxu0 0.0
    %141 = vmatpush1.msra.mxu0 0.0
    %142 = vmatprep.subr.mxu0 0.0
    %143 = vmatpush1.msra.mxu0 0.0
    %144 = vmatprep.subr.mxu0 0.0
    %145 = vmatpush1.msra.mxu0 0.0
    %146 = vmatprep.subr.mxu0 0.0
    %147 = vmatpush1.msra.mxu0 0.0
    %148 = vmatprep.subr.mxu0 0.0
    %149 = vmatpush1.msra.mxu0 0.0
    %150 = vmatprep.subr.mxu0 0.0
    %151 = vmatpush1.msra.mxu0 0.0
    %152 = vmatprep.subr.mxu0 0.0
    %153 = vmatpush1.msra.mxu0 0.0
    %154 = vmatprep.subr.mxu0 0.0
    %155 = vmatpush1.msra.mxu0 %v122
    %156 = vmatprep.subr.mxu0 0.0
    %157 = vmatpush2.msra.mxu0 0.0
    %158 = vmatprep.subr.mxu0 0.0
    %159 = vmatpush2.msra.mxu0 0.0
    %160 = vmatprep.subr.mxu0 0.0
    %161 = vmatpush2.msra.mxu0 0.0
    %162 = vmatprep.subr.mxu0 0.0
    %163 = vmatpush2.msra.mxu0 0.0
    %164 = vmatprep.subr.mxu0 0.0
    %165 = vmatpush2.msra.mxu0 0.0
    %166 = vmatprep.subr.mxu0 0.0
    %167 = vmatpush2.msra.mxu0 0.0
    %168 = vmatprep.subr.mxu0 0.0
    %169 = vmatpush2.msra.mxu0 0.0
    %170 = vmatprep.subr.mxu0 0.0
    %171 = vmatpush2.msra.mxu0 0.0
    %172 = vmatprep.subr.mxu0 0.0
    %173 = vmatpush2.msra.mxu0 0.0
    %174 = vmatprep.subr.mxu0 0.0
    %175 = vmatpush2.msra.mxu0 0.0
    %176 = vmatprep.subr.mxu0 0.0
    %177 = vmatpush2.msra.mxu0 0.0
    %178 = vmatprep.subr.mxu0 0.0
    %179 = vmatpush2.msra.mxu0 0.0
    %180 = vmatprep.subr.mxu0 0.0
    %181 = vmatpush2.msra.mxu0 0.0
    %182 = vmatprep.subr.mxu0 0.0
    %183 = vmatpush2.msra.mxu0 0.0
    %184 = vmatprep.subr.mxu0 0.0
    %185 = vmatpush2.msra.mxu0 0.0
    %186 = vmatprep.subr.mxu0 0.0
    %187 = vmatpush2.msra.mxu0 0.0
    %188 = vmatprep.mubr.f32.mxu0 0.0
    %189 = vmatmul.mubr.f32.gmra.mxu0 %v103
    %v190 = vpop.f32.mrf.mxu0
    %v191 = vadd.f32 %v74, %v190
    %v192 = vpop.f32.mrf.mxu0
    %193 = vmatprep.mubr.f32.mxu0 0.0
    %194 = vmatmul.mubr.f32.gmra.mxu0 %v106
    %v195 = vpop.f32.mrf.mxu0
    %v196 = vadd.f32 %v79, %v195
    %v197 = vpop.f32.mrf.mxu0
    %198 = vmatprep.mubr.f32.mxu0 0.0
    %199 = vmatmul.mubr.f32.gmra.mxu0 %v109
    %v200 = vpop.f32.mrf.mxu0
    %v201 = vadd.f32 %v84, %v200
    %v202 = vpop.f32.mrf.mxu0
    %203 = vmatprep.mubr.f32.mxu0 0.0
    %204 = vmatmul.mubr.f32.gmra.mxu0 %v112
    %v205 = vpop.f32.mrf.mxu0
    %v206 = vadd.f32 %v89, %v205
    %v207 = vpop.f32.mrf.mxu0
    %208 = vmatprep.mubr.f32.mxu0 0.0
    %209 = vmatmul.mubr.f32.gmra.mxu0 %v115
    %v210 = vpop.f32.mrf.mxu0
    %v211 = vadd.f32 %v94, %v210
    %v212 = vpop.f32.mrf.mxu0
    %213 = vmatprep.mubr.f32.mxu0 0.0
    %214 = vmatmul.mubr.f32.gmra.mxu0 %v118
    %v215 = vpop.f32.mrf.mxu0
    %v216 = vadd.f32 %v99, %v215
    %v217 = vpop.f32.mrf.mxu0
    %218 = vdwg.mxu0
    %v219 = vmax.f32 %v191, 0.0
    %v220 = vmax.f32 %v196, 0.0
    %v221 = vmax.f32 %v201, 0.0
    %v222 = vmax.f32 %v206, 0.0
    %v223 = vmax.f32 %v211, 0.0
    %v224 = vmax.f32 %v216, 0.0
    %vm225 = vcmask 130048
    %226 = vst.msk [vmem:[#allocation2] sm:$0xff] %vm225, %v219
    %227 = vst.msk [vmem:[#allocation2 + $0x8] sm:$0xff] %vm225, %v220
    %228 = vst.msk [vmem:[#allocation2 + $0x10] sm:$0xff] %vm225, %v221
    %229 = vst.msk [vmem:[#allocation2 + $0x18] sm:$0xff] %vm225, %v222
    %230 = vst.msk [vmem:[#allocation2 + $0x20] sm:$0xff] %vm225, %v223
    %231 = vst.msk [vmem:[#allocation2 + $0x28] sm:$0xff] %vm225, %v224
    %s232 = scalar_lea.vmem %s0, 4
    %v233 = vld [vmem:[%s232] sm:$0x7]
    %v235 = vsel %vm120, %v233, 0
    %237 = vmatprep.subr.mxu0 0.0
    %238 = vmatpush1.msra.mxu0 0.0
    %239 = vmatprep.subr.mxu0 0.0
    %240 = vmatpush1.msra.mxu0 0.0
    %241 = vmatprep.subr.mxu0 0.0
    %242 = vmatpush1.msra.mxu0 0.0
    %243 = vmatprep.subr.mxu0 0.0
    %244 = vmatpush1.msra.mxu0 0.0
    %245 = vmatprep.subr.mxu0 0.0
    %246 = vmatpush1.msra.mxu0 0.0
    %247 = vmatprep.subr.mxu0 0.0
    %248 = vmatpush1.msra.mxu0 0.0
    %249 = vmatprep.subr.mxu0 0.0
    %250 = vmatpush1.msra.mxu0 0.0
    %251 = vmatprep.subr.mxu0 0.0
    %252 = vmatpush1.msra.mxu0 0.0
    %253 = vmatprep.subr.mxu0 0.0
    %254 = vmatpush1.msra.mxu0 0.0
    %255 = vmatprep.subr.mxu0 0.0
    %256 = vmatpush1.msra.mxu0 0.0
    %257 = vmatprep.subr.mxu0 0.0
    %258 = vmatpush1.msra.mxu0 0.0
    %259 = vmatprep.subr.mxu0 0.0
    %260 = vmatpush1.msra.mxu0 0.0
    %261 = vmatprep.subr.mxu0 0.0
    %262 = vmatpush1.msra.mxu0 0.0
    %263 = vmatprep.subr.mxu0 0.0
    %264 = vmatpush1.msra.mxu0 0.0
    %265 = vmatprep.subr.mxu0 0.0
    %266 = vmatpush1.msra.mxu0 0.0
    %267 = vmatprep.subr.mxu0 0.0
    %268 = vmatpush1.msra.mxu0 %v235
    %269 = vmatprep.subr.mxu0 0.0
    %270 = vmatpush2.msra.mxu0 0.0
    %271 = vmatprep.subr.mxu0 0.0
    %272 = vmatpush2.msra.mxu0 0.0
    %273 = vmatprep.subr.mxu0 0.0
    %274 = vmatpush2.msra.mxu0 0.0
    %275 = vmatprep.subr.mxu0 0.0
    %276 = vmatpush2.msra.mxu0 0.0
    %277 = vmatprep.subr.mxu0 0.0
    %278 = vmatpush2.msra.mxu0 0.0
    %279 = vmatprep.subr.mxu0 0.0
    %280 = vmatpush2.msra.mxu0 0.0
    %281 = vmatprep.subr.mxu0 0.0
    %282 = vmatpush2.msra.mxu0 0.0
    %283 = vmatprep.subr.mxu0 0.0
    %284 = vmatpush2.msra.mxu0 0.0
    %285 = vmatprep.subr.mxu0 0.0
    %286 = vmatpush2.msra.mxu0 0.0
    %287 = vmatprep.subr.mxu0 0.0
    %288 = vmatpush2.msra.mxu0 0.0
    %289 = vmatprep.subr.mxu0 0.0
    %290 = vmatpush2.msra.mxu0 0.0
    %291 = vmatprep.subr.mxu0 0.0
    %292 = vmatpush2.msra.mxu0 0.0
    %293 = vmatprep.subr.mxu0 0.0
    %294 = vmatpush2.msra.mxu0 0.0
    %295 = vmatprep.subr.mxu0 0.0
    %296 = vmatpush2.msra.mxu0 0.0
    %297 = vmatprep.subr.mxu0 0.0
    %298 = vmatpush2.msra.mxu0 0.0
    %299 = vmatprep.subr.mxu0 0.0
    %300 = vmatpush2.msra.mxu0 0.0
    %301 = vmatprep.mubr.f32.mxu0 0.0
    %302 = vmatmul.mubr.f32.gmra.mxu0 %v103
    %v303 = vpop.f32.mrf.mxu0
    %v304 = vadd.f32 %v74, %v303
    %v305 = vpop.f32.mrf.mxu0
    %306 = vmatprep.mubr.f32.mxu0 0.0
    %307 = vmatmul.mubr.f32.gmra.mxu0 %v106
    %v308 = vpop.f32.mrf.mxu0
    %v309 = vadd.f32 %v79, %v308
    %v310 = vpop.f32.mrf.mxu0
    %311 = vmatprep.mubr.f32.mxu0 0.0
    %312 = vmatmul.mubr.f32.gmra.mxu0 %v109
    %v313 = vpop.f32.mrf.mxu0
    %v314 = vadd.f32 %v84, %v313
    %v315 = vpop.f32.mrf.mxu0
    %316 = vmatprep.mubr.f32.mxu0 0.0
    %317 = vmatmul.mubr.f32.gmra.mxu0 %v112
    %v318 = vpop.f32.mrf.mxu0
    %v319 = vadd.f32 %v89, %v318
    %v320 = vpop.f32.mrf.mxu0
    %321 = vmatprep.mubr.f32.mxu0 0.0
    %322 = vmatmul.mubr.f32.gmra.mxu0 %v115
    %v323 = vpop.f32.mrf.mxu0
    %v324 = vadd.f32 %v94, %v323
    %v325 = vpop.f32.mrf.mxu0
    %326 = vmatprep.mubr.f32.mxu0 0.0
    %327 = vmatmul.mubr.f32.gmra.mxu0 %v118
    %v328 = vpop.f32.mrf.mxu0
    %v329 = vadd.f32 %v99, %v328
    %v330 = vpop.f32.mrf.mxu0
    %331 = vdwg.mxu0
    %v332 = vmax.f32 %v304, 0.0
    %v333 = vmax.f32 %v309, 0.0
    %v334 = vmax.f32 %v314, 0.0
    %v335 = vmax.f32 %v319, 0.0
    %v336 = vmax.f32 %v324, 0.0
    %v337 = vmax.f32 %v329, 0.0
    %s338 = scalar_lea.vmem [#allocation2], 48
    %339 = vst.msk [vmem:[%s338] sm:$0xff] %vm225, %v332
    %340 = vst.msk [vmem:[%s338 + $0x8] sm:$0xff] %vm225, %v333
    %341 = vst.msk [vmem:[%s338 + $0x10] sm:$0xff] %vm225, %v334
    %342 = vst.msk [vmem:[%s338 + $0x18] sm:$0xff] %vm225, %v335
    %343 = vst.msk [vmem:[%s338 + $0x20] sm:$0xff] %vm225, %v336
    %344 = vst.msk [vmem:[%s338 + $0x28] sm:$0xff] %vm225, %v337
    %s345 = scalar_lea.vmem %s0, 8
    %v346 = vld [vmem:[%s345] sm:$0x7]
    %v348 = vsel %vm120, %v346, 0
    %350 = vmatprep.subr.mxu0 0.0
    %351 = vmatpush1.msra.mxu0 0.0
    %352 = vmatprep.subr.mxu0 0.0
    %353 = vmatpush1.msra.mxu0 0.0
    %354 = vmatprep.subr.mxu0 0.0
    %355 = vmatpush1.msra.mxu0 0.0
    %356 = vmatprep.subr.mxu0 0.0
    %357 = vmatpush1.msra.mxu0 0.0
    %358 = vmatprep.subr.mxu0 0.0
    %359 = vmatpush1.msra.mxu0 0.0
    %360 = vmatprep.subr.mxu0 0.0
    %361 = vmatpush1.msra.mxu0 0.0
    %362 = vmatprep.subr.mxu0 0.0
    %363 = vmatpush1.msra.mxu0 0.0
    %364 = vmatprep.subr.mxu0 0.0
    %365 = vmatpush1.msra.mxu0 0.0
    %366 = vmatprep.subr.mxu0 0.0
    %367 = vmatpush1.msra.mxu0 0.0
    %368 = vmatprep.subr.mxu0 0.0
    %369 = vmatpush1.msra.mxu0 0.0
    %370 = vmatprep.subr.mxu0 0.0
    %371 = vmatpush1.msra.mxu0 0.0
    %372 = vmatprep.subr.mxu0 0.0
    %373 = vmatpush1.msra.mxu0 0.0
    %374 = vmatprep.subr.mxu0 0.0
    %375 = vmatpush1.msra.mxu0 0.0
    %376 = vmatprep.subr.mxu0 0.0
    %377 = vmatpush1.msra.mxu0 0.0
    %378 = vmatprep.subr.mxu0 0.0
    %379 = vmatpush1.msra.mxu0 0.0
    %380 = vmatprep.subr.mxu0 0.0
    %381 = vmatpush1.msra.mxu0 %v348
    %382 = vmatprep.subr.mxu0 0.0
    %383 = vmatpush2.msra.mxu0 0.0
    %384 = vmatprep.subr.mxu0 0.0
    %385 = vmatpush2.msra.mxu0 0.0
    %386 = vmatprep.subr.mxu0 0.0
    %387 = vmatpush2.msra.mxu0 0.0
    %388 = vmatprep.subr.mxu0 0.0
    %389 = vmatpush2.msra.mxu0 0.0
    %390 = vmatprep.subr.mxu0 0.0
    %391 = vmatpush2.msra.mxu0 0.0
    %392 = vmatprep.subr.mxu0 0.0
    %393 = vmatpush2.msra.mxu0 0.0
    %394 = vmatprep.subr.mxu0 0.0
    %395 = vmatpush2.msra.mxu0 0.0
    %396 = vmatprep.subr.mxu0 0.0
    %397 = vmatpush2.msra.mxu0 0.0
    %398 = vmatprep.subr.mxu0 0.0
    %399 = vmatpush2.msra.mxu0 0.0
    %400 = vmatprep.subr.mxu0 0.0
    %401 = vmatpush2.msra.mxu0 0.0
    %402 = vmatprep.subr.mxu0 0.0
    %403 = vmatpush2.msra.mxu0 0.0
    %404 = vmatprep.subr.mxu0 0.0
    %405 = vmatpush2.msra.mxu0 0.0
    %406 = vmatprep.subr.mxu0 0.0
    %407 = vmatpush2.msra.mxu0 0.0
    %408 = vmatprep.subr.mxu0 0.0
    %409 = vmatpush2.msra.mxu0 0.0
    %410 = vmatprep.subr.mxu0 0.0
    %411 = vmatpush2.msra.mxu0 0.0
    %412 = vmatprep.subr.mxu0 0.0
    %413 = vmatpush2.msra.mxu0 0.0
    %414 = vmatprep.mubr.f32.mxu0 0.0
    %415 = vmatmul.mubr.f32.gmra.mxu0 %v103
    %v416 = vpop.f32.mrf.mxu0
    %v417 = vadd.f32 %v74, %v416
    %v418 = vpop.f32.mrf.mxu0
    %419 = vmatprep.mubr.f32.mxu0 0.0
    %420 = vmatmul.mubr.f32.gmra.mxu0 %v106
    %v421 = vpop.f32.mrf.mxu0
    %v422 = vadd.f32 %v79, %v421
    %v423 = vpop.f32.mrf.mxu0
    %424 = vmatprep.mubr.f32.mxu0 0.0
    %425 = vmatmul.mubr.f32.gmra.mxu0 %v109
    %v426 = vpop.f32.mrf.mxu0
    %v427 = vadd.f32 %v84, %v426
    %v428 = vpop.f32.mrf.mxu0
    %429 = vmatprep.mubr.f32.mxu0 0.0
    %430 = vmatmul.mubr.f32.gmra.mxu0 %v112
    %v431 = vpop.f32.mrf.mxu0
    %v432 = vadd.f32 %v89, %v431
    %v433 = vpop.f32.mrf.mxu0
    %434 = vmatprep.mubr.f32.mxu0 0.0
    %435 = vmatmul.mubr.f32.gmra.mxu0 %v115
    %v436 = vpop.f32.mrf.mxu0
    %v437 = vadd.f32 %v94, %v436
    %v438 = vpop.f32.mrf.mxu0
    %439 = vmatprep.mubr.f32.mxu0 0.0
    %440 = vmatmul.mubr.f32.gmra.mxu0 %v118
    %v441 = vpop.f32.mrf.mxu0
    %v442 = vadd.f32 %v99, %v441
    %v443 = vpop.f32.mrf.mxu0
    %444 = vdwg.mxu0
    %v445 = vmax.f32 %v417, 0.0
    %v446 = vmax.f32 %v422, 0.0
    %v447 = vmax.f32 %v427, 0.0
    %v448 = vmax.f32 %v432, 0.0
    %v449 = vmax.f32 %v437, 0.0
    %v450 = vmax.f32 %v442, 0.0
    %s451 = scalar_lea.vmem [#allocation2], 96
    %452 = vst.msk [vmem:[%s451] sm:$0xff] %vm225, %v445
    %453 = vst.msk [vmem:[%s451 + $0x8] sm:$0xff] %vm225, %v446
    %454 = vst.msk [vmem:[%s451 + $0x10] sm:$0xff] %vm225, %v447
    %455 = vst.msk [vmem:[%s451 + $0x18] sm:$0xff] %vm225, %v448
    %456 = vst.msk [vmem:[%s451 + $0x20] sm:$0xff] %vm225, %v449
    %457 = vst.msk [vmem:[%s451 + $0x28] sm:$0xff] %vm225, %v450
    %s458 = scalar_lea.vmem %s0, 12
    %v459 = vld [vmem:[%s458] sm:$0x7]
    %v461 = vsel %vm120, %v459, 0
    %463 = vmatprep.subr.mxu0 0.0
    %464 = vmatpush1.msra.mxu0 0.0
    %465 = vmatprep.subr.mxu0 0.0
    %466 = vmatpush1.msra.mxu0 0.0
    %467 = vmatprep.subr.mxu0 0.0
    %468 = vmatpush1.msra.mxu0 0.0
    %469 = vmatprep.subr.mxu0 0.0
    %470 = vmatpush1.msra.mxu0 0.0
    %471 = vmatprep.subr.mxu0 0.0
    %472 = vmatpush1.msra.mxu0 0.0
    %473 = vmatprep.subr.mxu0 0.0
    %474 = vmatpush1.msra.mxu0 0.0
    %475 = vmatprep.subr.mxu0 0.0
    %476 = vmatpush1.msra.mxu0 0.0
    %477 = vmatprep.subr.mxu0 0.0
    %478 = vmatpush1.msra.mxu0 0.0
    %479 = vmatprep.subr.mxu0 0.0
    %480 = vmatpush1.msra.mxu0 0.0
    %481 = vmatprep.subr.mxu0 0.0
    %482 = vmatpush1.msra.mxu0 0.0
    %483 = vmatprep.subr.mxu0 0.0
    %484 = vmatpush1.msra.mxu0 0.0
    %485 = vmatprep.subr.mxu0 0.0
    %486 = vmatpush1.msra.mxu0 0.0
    %487 = vmatprep.subr.mxu0 0.0
    %488 = vmatpush1.msra.mxu0 0.0
    %489 = vmatprep.subr.mxu0 0.0
    %490 = vmatpush1.msra.mxu0 0.0
    %491 = vmatprep.subr.mxu0 0.0
    %492 = vmatpush1.msra.mxu0 0.0
    %493 = vmatprep.subr.mxu0 0.0
    %494 = vmatpush1.msra.mxu0 %v461
    %495 = vmatprep.subr.mxu0 0.0
    %496 = vmatpush2.msra.mxu0 0.0
    %497 = vmatprep.subr.mxu0 0.0
    %498 = vmatpush2.msra.mxu0 0.0
    %499 = vmatprep.subr.mxu0 0.0
    %500 = vmatpush2.msra.mxu0 0.0
    %501 = vmatprep.subr.mxu0 0.0
    %502 = vmatpush2.msra.mxu0 0.0
    %503 = vmatprep.subr.mxu0 0.0
    %504 = vmatpush2.msra.mxu0 0.0
    %505 = vmatprep.subr.mxu0 0.0
    %506 = vmatpush2.msra.mxu0 0.0
    %507 = vmatprep.subr.mxu0 0.0
    %508 = vmatpush2.msra.mxu0 0.0
    %509 = vmatprep.subr.mxu0 0.0
    %510 = vmatpush2.msra.mxu0 0.0
    %511 = vmatprep.subr.mxu0 0.0
    %512 = vmatpush2.msra.mxu0 0.0
    %513 = vmatprep.subr.mxu0 0.0
    %514 = vmatpush2.msra.mxu0 0.0
    %515 = vmatprep.subr.mxu0 0.0
    %516 = vmatpush2.msra.mxu0 0.0
    %517 = vmatprep.subr.mxu0 0.0
    %518 = vmatpush2.msra.mxu0 0.0
    %519 = vmatprep.subr.mxu0 0.0
    %520 = vmatpush2.msra.mxu0 0.0
    %521 = vmatprep.subr.mxu0 0.0
    %522 = vmatpush2.msra.mxu0 0.0
    %523 = vmatprep.subr.mxu0 0.0
    %524 = vmatpush2.msra.mxu0 0.0
    %525 = vmatprep.subr.mxu0 0.0
    %526 = vmatpush2.msra.mxu0 0.0
    %527 = vmatprep.mubr.f32.mxu0 0.0
    %528 = vmatmul.mubr.f32.gmra.mxu0 %v103
    %v529 = vpop.f32.mrf.mxu0
    %v530 = vadd.f32 %v74, %v529
    %v531 = vpop.f32.mrf.mxu0
    %532 = vmatprep.mubr.f32.mxu0 0.0
    %533 = vmatmul.mubr.f32.gmra.mxu0 %v106
    %v534 = vpop.f32.mrf.mxu0
    %v535 = vadd.f32 %v79, %v534
    %v536 = vpop.f32.mrf.mxu0
    %537 = vmatprep.mubr.f32.mxu0 0.0
    %538 = vmatmul.mubr.f32.gmra.mxu0 %v109
    %v539 = vpop.f32.mrf.mxu0
    %v540 = vadd.f32 %v84, %v539
    %v541 = vpop.f32.mrf.mxu0
    %542 = vmatprep.mubr.f32.mxu0 0.0
    %543 = vmatmul.mubr.f32.gmra.mxu0 %v112
    %v544 = vpop.f32.mrf.mxu0
    %v545 = vadd.f32 %v89, %v544
    %v546 = vpop.f32.mrf.mxu0
    %547 = vmatprep.mubr.f32.mxu0 0.0
    %548 = vmatmul.mubr.f32.gmra.mxu0 %v115
    %v549 = vpop.f32.mrf.mxu0
    %v550 = vadd.f32 %v94, %v549
    %v551 = vpop.f32.mrf.mxu0
    %552 = vmatprep.mubr.f32.mxu0 0.0
    %553 = vmatmul.mubr.f32.gmra.mxu0 %v118
    %v554 = vpop.f32.mrf.mxu0
    %v555 = vadd.f32 %v99, %v554
    %v556 = vpop.f32.mrf.mxu0
    %557 = vdwg.mxu0
    %v558 = vmax.f32 %v530, 0.0
    %v559 = vmax.f32 %v535, 0.0
    %v560 = vmax.f32 %v540, 0.0
    %v561 = vmax.f32 %v545, 0.0
    %v562 = vmax.f32 %v550, 0.0
    %v563 = vmax.f32 %v555, 0.0
    %s564 = scalar_lea.vmem [#allocation2], 144
    %565 = vst.msk [vmem:[%s564] sm:$0xff] %vm225, %v558
    %566 = vst.msk [vmem:[%s564 + $0x8] sm:$0xff] %vm225, %v559
    %567 = vst.msk [vmem:[%s564 + $0x10] sm:$0xff] %vm225, %v560
    %568 = vst.msk [vmem:[%s564 + $0x18] sm:$0xff] %vm225, %v561
    %569 = vst.msk [vmem:[%s564 + $0x20] sm:$0xff] %vm225, %v562
    %570 = vst.msk [vmem:[%s564 + $0x28] sm:$0xff] %vm225, %v563
    %s571 = scalar_lea.vmem %s0, 16
    %v572 = vld [vmem:[%s571] sm:$0x7]
    %v574 = vsel %vm120, %v572, 0
    %576 = vmatprep.subr.mxu0 0.0
    %577 = vmatpush1.msra.mxu0 0.0
    %578 = vmatprep.subr.mxu0 0.0
    %579 = vmatpush1.msra.mxu0 0.0
    %580 = vmatprep.subr.mxu0 0.0
    %581 = vmatpush1.msra.mxu0 0.0
    %582 = vmatprep.subr.mxu0 0.0
    %583 = vmatpush1.msra.mxu0 0.0
    %584 = vmatprep.subr.mxu0 0.0
    %585 = vmatpush1.msra.mxu0 0.0
    %586 = vmatprep.subr.mxu0 0.0
    %587 = vmatpush1.msra.mxu0 0.0
    %588 = vmatprep.subr.mxu0 0.0
    %589 = vmatpush1.msra.mxu0 0.0
    %590 = vmatprep.subr.mxu0 0.0
    %591 = vmatpush1.msra.mxu0 0.0
    %592 = vmatprep.subr.mxu0 0.0
    %593 = vmatpush1.msra.mxu0 0.0
    %594 = vmatprep.subr.mxu0 0.0
    %595 = vmatpush1.msra.mxu0 0.0
    %596 = vmatprep.subr.mxu0 0.0
    %597 = vmatpush1.msra.mxu0 0.0
    %598 = vmatprep.subr.mxu0 0.0
    %599 = vmatpush1.msra.mxu0 0.0
    %600 = vmatprep.subr.mxu0 0.0
    %601 = vmatpush1.msra.mxu0 0.0
    %602 = vmatprep.subr.mxu0 0.0
    %603 = vmatpush1.msra.mxu0 0.0
    %604 = vmatprep.subr.mxu0 0.0
    %605 = vmatpush1.msra.mxu0 0.0
    %606 = vmatprep.subr.mxu0 0.0
    %607 = vmatpush1.msra.mxu0 %v574
    %608 = vmatprep.subr.mxu0 0.0
    %609 = vmatpush2.msra.mxu0 0.0
    %610 = vmatprep.subr.mxu0 0.0
    %611 = vmatpush2.msra.mxu0 0.0
    %612 = vmatprep.subr.mxu0 0.0
    %613 = vmatpush2.msra.mxu0 0.0
    %614 = vmatprep.subr.mxu0 0.0
    %615 = vmatpush2.msra.mxu0 0.0
    %616 = vmatprep.subr.mxu0 0.0
    %617 = vmatpush2.msra.mxu0 0.0
    %618 = vmatprep.subr.mxu0 0.0
    %619 = vmatpush2.msra.mxu0 0.0
    %620 = vmatprep.subr.mxu0 0.0
    %621 = vmatpush2.msra.mxu0 0.0
    %622 = vmatprep.subr.mxu0 0.0
    %623 = vmatpush2.msra.mxu0 0.0
    %624 = vmatprep.subr.mxu0 0.0
    %625 = vmatpush2.msra.mxu0 0.0
    %626 = vmatprep.subr.mxu0 0.0
    %627 = vmatpush2.msra.mxu0 0.0
    %628 = vmatprep.subr.mxu0 0.0
    %629 = vmatpush2.msra.mxu0 0.0
    %630 = vmatprep.subr.mxu0 0.0
    %631 = vmatpush2.msra.mxu0 0.0
    %632 = vmatprep.subr.mxu0 0.0
    %633 = vmatpush2.msra.mxu0 0.0
    %634 = vmatprep.subr.mxu0 0.0
    %635 = vmatpush2.msra.mxu0 0.0
    %636 = vmatprep.subr.mxu0 0.0
    %637 = vmatpush2.msra.mxu0 0.0
    %638 = vmatprep.subr.mxu0 0.0
    %639 = vmatpush2.msra.mxu0 0.0
    %640 = vmatprep.mubr.f32.mxu0 0.0
    %641 = vmatmul.mubr.f32.gmra.mxu0 %v103
    %v642 = vpop.f32.mrf.mxu0
    %v643 = vadd.f32 %v74, %v642
    %v644 = vpop.f32.mrf.mxu0
    %645 = vmatprep.mubr.f32.mxu0 0.0
    %646 = vmatmul.mubr.f32.gmra.mxu0 %v106
    %v647 = vpop.f32.mrf.mxu0
    %v648 = vadd.f32 %v79, %v647
    %v649 = vpop.f32.mrf.mxu0
    %650 = vmatprep.mubr.f32.mxu0 0.0
    %651 = vmatmul.mubr.f32.gmra.mxu0 %v109
    %v652 = vpop.f32.mrf.mxu0
    %v653 = vadd.f32 %v84, %v652
    %v654 = vpop.f32.mrf.mxu0
    %655 = vmatprep.mubr.f32.mxu0 0.0
    %656 = vmatmul.mubr.f32.gmra.mxu0 %v112
    %v657 = vpop.f32.mrf.mxu0
    %v658 = vadd.f32 %v89, %v657
    %v659 = vpop.f32.mrf.mxu0
    %660 = vmatprep.mubr.f32.mxu0 0.0
    %661 = vmatmul.mubr.f32.gmra.mxu0 %v115
    %v662 = vpop.f32.mrf.mxu0
    %v663 = vadd.f32 %v94, %v662
    %v664 = vpop.f32.mrf.mxu0
    %665 = vmatprep.mubr.f32.mxu0 0.0
    %666 = vmatmul.mubr.f32.gmra.mxu0 %v118
    %v667 = vpop.f32.mrf.mxu0
    %v668 = vadd.f32 %v99, %v667
    %v669 = vpop.f32.mrf.mxu0
    %670 = vdwg.mxu0
    %v671 = vmax.f32 %v643, 0.0
    %v672 = vmax.f32 %v648, 0.0
    %v673 = vmax.f32 %v653, 0.0
    %v674 = vmax.f32 %v658, 0.0
    %v675 = vmax.f32 %v663, 0.0
    %v676 = vmax.f32 %v668, 0.0
    %s677 = scalar_lea.vmem [#allocation2], 192
    %678 = vst.msk [vmem:[%s677] sm:$0xff] %vm225, %v671
    %679 = vst.msk [vmem:[%s677 + $0x8] sm:$0xff] %vm225, %v672
    %680 = vst.msk [vmem:[%s677 + $0x10] sm:$0xff] %vm225, %v673
    %681 = vst.msk [vmem:[%s677 + $0x18] sm:$0xff] %vm225, %v674
    %682 = vst.msk [vmem:[%s677 + $0x20] sm:$0xff] %vm225, %v675
    %683 = vst.msk [vmem:[%s677 + $0x28] sm:$0xff] %vm225, %v676
    %s684 = sld [smem:[#allocation6]]
    %s685 = sld [smem:[#allocation4 + $0x3]]
    %v686 = vld [vmem:[#allocation2] sm:$0xff]
    %v687 = vld [vmem:[#allocation2 + $0x8] sm:$0xff]
    %v688 = vstv %s685
    %v689 = vmul.f32 %v686, %v688
    %v690 = vmul.f32 %v687, %v688
    %s691 = sld [smem:[#allocation4 + $0x4]]
    %v692 = vld [vmem:[#allocation2 + $0x10] sm:$0xff]
    %v693 = vld [vmem:[#allocation2 + $0x18] sm:$0xff]
    %v694 = vstv %s691
    %v695 = vmul.f32 %v692, %v694
    %v696 = vmul.f32 %v693, %v694
    %v697 = vadd.f32 %v689, %v695
    %v698 = vadd.f32 %v690, %v696
    %s699 = sld [smem:[#allocation4 + $0x5]]
    %v700 = vld [vmem:[#allocation2 + $0x20] sm:$0xff]
    %v701 = vld [vmem:[#allocation2 + $0x28] sm:$0xff]
    %v702 = vstv %s699
    %v703 = vmul.f32 %v700, %v702
    %v704 = vmul.f32 %v701, %v702
    %v705 = vadd.f32 %v697, %v703
    %v706 = vadd.f32 %v698, %v704
    %s707 = sld [smem:[#allocation4 + $0x6]]
    %v708 = vld [vmem:[%s338] sm:$0xff]
    %v709 = vld [vmem:[%s338 + $0x8] sm:$0xff]
    %v710 = vstv %s707
    %v711 = vmul.f32 %v708, %v710
    %v712 = vmul.f32 %v709, %v710
    %v713 = vadd.f32 %v705, %v711
    %v714 = vadd.f32 %v706, %v712
    %s715 = sld [smem:[#allocation4 + $0x7]]
    %v716 = vld [vmem:[%s338 + $0x10] sm:$0xff]
    %v717 = vld [vmem:[%s338 + $0x18] sm:$0xff]
    %v718 = vstv %s715
    %v719 = vmul.f32 %v716, %v718
    %v720 = vmul.f32 %v717, %v718
    %v721 = vadd.f32 %v713, %v719
    %v722 = vadd.f32 %v714, %v720
    %s723 = sld [smem:[#allocation4 + $0x8]]
    %v724 = vld [vmem:[%s338 + $0x20] sm:$0xff]
    %v725 = vld [vmem:[%s338 + $0x28] sm:$0xff]
    %v726 = vstv %s723
    %v727 = vmul.f32 %v724, %v726
    %v728 = vmul.f32 %v725, %v726
    %v729 = vadd.f32 %v721, %v727
    %v730 = vadd.f32 %v722, %v728
    %v731 = vstv %s684
    %v732 = vadd.f32 %v729, %v731
    %v733 = vadd.f32 %v730, %v731
    %s734 = sld [smem:[#allocation4]]
    %v735 = vstv %s734
    %v736 = vmul.f32 %v686, %v735
    %v737 = vmul.f32 %v687, %v735
    %s738 = sld [smem:[#allocation4 + $0x1]]
    %v739 = vstv %s738
    %v740 = vmul.f32 %v692, %v739
    %v741 = vmul.f32 %v693, %v739
    %v742 = vadd.f32 %v736, %v740
    %v743 = vadd.f32 %v737, %v741
    %s744 = sld [smem:[#allocation4 + $0x2]]
    %v745 = vstv %s744
    %v746 = vmul.f32 %v700, %v745
    %v747 = vmul.f32 %v701, %v745
    %v748 = vadd.f32 %v742, %v746
    %v749 = vadd.f32 %v743, %v747
    %v750 = vmul.f32 %v708, %v688
    %v751 = vmul.f32 %v709, %v688
    %v752 = vadd.f32 %v748, %v750
    %v753 = vadd.f32 %v749, %v751
    %v754 = vmul.f32 %v716, %v694
    %v755 = vmul.f32 %v717, %v694
    %v756 = vadd.f32 %v752, %v754
    %v757 = vadd.f32 %v753, %v755
    %v758 = vmul.f32 %v724, %v702
    %v759 = vmul.f32 %v725, %v702
    %v760 = vadd.f32 %v756, %v758
    %v761 = vadd.f32 %v757, %v759
    %v762 = vld [vmem:[%s451] sm:$0xff]
    %v763 = vld [vmem:[%s451 + $0x8] sm:$0xff]
    %v764 = vmul.f32 %v762, %v710
    %v765 = vmul.f32 %v763, %v710
    %v766 = vadd.f32 %v760, %v764
    %v767 = vadd.f32 %v761, %v765
    %v768 = vld [vmem:[%s451 + $0x10] sm:$0xff]
    %v769 = vld [vmem:[%s451 + $0x18] sm:$0xff]
    %v770 = vmul.f32 %v768, %v718
    %v771 = vmul.f32 %v769, %v718
    %v772 = vadd.f32 %v766, %v770
    %v773 = vadd.f32 %v767, %v771
    %v774 = vld [vmem:[%s451 + $0x20] sm:$0xff]
    %v775 = vld [vmem:[%s451 + $0x28] sm:$0xff]
    %v776 = vmul.f32 %v774, %v726
    %v777 = vmul.f32 %v775, %v726
    %v778 = vadd.f32 %v772, %v776
    %v779 = vadd.f32 %v773, %v777
    %v780 = vadd.f32 %v778, %v731
    %v781 = vadd.f32 %v779, %v731
    %v782 = vmax.f32 %v732, %v780
    %v783 = vmax.f32 %v733, %v781
    %v784 = vmax.f32 %v782, %v783
    %785 = vst.msk [vmem:[#allocation3] sm:$0xff] %vm225, %v784
    %s786 = sld [smem:[#allocation4]]
    %v787 = vld [vmem:[%s338] sm:$0xff]
    %v788 = vld [vmem:[%s338 + $0x8] sm:$0xff]
    %v789 = vstv %s786
    %v790 = vmul.f32 %v787, %v789
    %v791 = vmul.f32 %v788, %v789
    %s792 = sld [smem:[#allocation4 + $0x1]]
    %v793 = vld [vmem:[%s338 + $0x10] sm:$0xff]
    %v794 = vld [vmem:[%s338 + $0x18] sm:$0xff]
    %v795 = vstv %s792
    %v796 = vmul.f32 %v793, %v795
    %v797 = vmul.f32 %v794, %v795
    %v798 = vadd.f32 %v790, %v796
    %v799 = vadd.f32 %v791, %v797
    %s800 = sld [smem:[#allocation4 + $0x2]]
    %v801 = vld [vmem:[%s338 + $0x20] sm:$0xff]
    %v802 = vld [vmem:[%s338 + $0x28] sm:$0xff]
    %v803 = vstv %s800
    %v804 = vmul.f32 %v801, %v803
    %v805 = vmul.f32 %v802, %v803
    %v806 = vadd.f32 %v798, %v804
    %v807 = vadd.f32 %v799, %v805
    %s808 = sld [smem:[#allocation4 + $0x3]]
    %v809 = vld [vmem:[%s451] sm:$0xff]
    %v810 = vld [vmem:[%s451 + $0x8] sm:$0xff]
    %v811 = vstv %s808
    %v812 = vmul.f32 %v809, %v811
    %v813 = vmul.f32 %v810, %v811
    %v814 = vadd.f32 %v806, %v812
    %v815 = vadd.f32 %v807, %v813
    %s816 = sld [smem:[#allocation4 + $0x4]]
    %v817 = vld [vmem:[%s451 + $0x10] sm:$0xff]
    %v818 = vld [vmem:[%s451 + $0x18] sm:$0xff]
    %v819 = vstv %s816
    %v820 = vmul.f32 %v817, %v819
    %v821 = vmul.f32 %v818, %v819
    %v822 = vadd.f32 %v814, %v820
    %v823 = vadd.f32 %v815, %v821
    %s824 = sld [smem:[#allocation4 + $0x5]]
    %v825 = vld [vmem:[%s451 + $0x20] sm:$0xff]
    %v826 = vld [vmem:[%s451 + $0x28] sm:$0xff]
    %v827 = vstv %s824
    %v828 = vmul.f32 %v825, %v827
    %v829 = vmul.f32 %v826, %v827
    %v830 = vadd.f32 %v822, %v828
    %v831 = vadd.f32 %v823, %v829
    %s832 = sld [smem:[#allocation4 + $0x6]]
    %v833 = vld [vmem:[%s564] sm:$0xff]
    %v834 = vld [vmem:[%s564 + $0x8] sm:$0xff]
    %v835 = vstv %s832
    %v836 = vmul.f32 %v833, %v835
    %v837 = vmul.f32 %v834, %v835
    %v838 = vadd.f32 %v830, %v836
    %v839 = vadd.f32 %v831, %v837
    %s840 = sld [smem:[#allocation4 + $0x7]]
    %v841 = vld [vmem:[%s564 + $0x10] sm:$0xff]
    %v842 = vld [vmem:[%s564 + $0x18] sm:$0xff]
    %v843 = vstv %s840
    %v844 = vmul.f32 %v841, %v843
    %v845 = vmul.f32 %v842, %v843
    %v846 = vadd.f32 %v838, %v844
    %v847 = vadd.f32 %v839, %v845
    %s848 = sld [smem:[#allocation4 + $0x8]]
    %v849 = vld [vmem:[%s564 + $0x20] sm:$0xff]
    %v850 = vld [vmem:[%s564 + $0x28] sm:$0xff]
    %v851 = vstv %s848
    %v852 = vmul.f32 %v849, %v851
    %v853 = vmul.f32 %v850, %v851
    %v854 = vadd.f32 %v846, %v852
    %v855 = vadd.f32 %v847, %v853
    %v856 = vadd.f32 %v854, %v731
    %v857 = vadd.f32 %v855, %v731
    %v858 = vmul.f32 %v809, %v789
    %v859 = vmul.f32 %v810, %v789
    %v860 = vmul.f32 %v817, %v795
    %v861 = vmul.f32 %v818, %v795
    %v862 = vadd.f32 %v858, %v860
    %v863 = vadd.f32 %v859, %v861
    %v864 = vmul.f32 %v825, %v803
    %v865 = vmul.f32 %v826, %v803
    %v866 = vadd.f32 %v862, %v864
    %v867 = vadd.f32 %v863, %v865
    %v868 = vmul.f32 %v833, %v811
    %v869 = vmul.f32 %v834, %v811
    %v870 = vadd.f32 %v866, %v868
    %v871 = vadd.f32 %v867, %v869
    %v872 = vmul.f32 %v841, %v819
    %v873 = vmul.f32 %v842, %v819
    %v874 = vadd.f32 %v870, %v872
    %v875 = vadd.f32 %v871, %v873
    %v876 = vmul.f32 %v849, %v827
    %v877 = vmul.f32 %v850, %v827
    %v878 = vadd.f32 %v874, %v876
    %v879 = vadd.f32 %v875, %v877
    %v880 = vld [vmem:[%s677] sm:$0xff]
    %v881 = vld [vmem:[%s677 + $0x8] sm:$0xff]
    %v882 = vmul.f32 %v880, %v835
    %v883 = vmul.f32 %v881, %v835
    %v884 = vadd.f32 %v878, %v882
    %v885 = vadd.f32 %v879, %v883
    %v886 = vld [vmem:[%s677 + $0x10] sm:$0xff]
    %v887 = vld [vmem:[%s677 + $0x18] sm:$0xff]
    %v888 = vmul.f32 %v886, %v843
    %v889 = vmul.f32 %v887, %v843
    %v890 = vadd.f32 %v884, %v888
    %v891 = vadd.f32 %v885, %v889
    %v892 = vld [vmem:[%s677 + $0x20] sm:$0xff]
    %v893 = vld [vmem:[%s677 + $0x28] sm:$0xff]
    %v894 = vmul.f32 %v892, %v851
    %v895 = vmul.f32 %v893, %v851
    %v896 = vadd.f32 %v890, %v894
    %v897 = vadd.f32 %v891, %v895
    %v898 = vadd.f32 %v896, %v731
    %v899 = vadd.f32 %v897, %v731
    %v900 = vmax.f32 %v856, %v898
    %v901 = vmax.f32 %v857, %v899
    %v902 = vmax.f32 %v900, %v901
    %903 = vst.msk [vmem:[#allocation3 + $0x8] sm:$0xff] %vm225, %v902
    %s904 = sld [smem:[#allocation6 + $0x1]]
    %s905 = sld [smem:[#allocation4 + $0xc]]
    %v906 = vld [vmem:[#allocation2] sm:$0xff]
    %v907 = vld [vmem:[#allocation2 + $0x8] sm:$0xff]
    %v908 = vstv %s905
    %v909 = vmul.f32 %v906, %v908
    %v910 = vmul.f32 %v907, %v908
    %s911 = sld [smem:[#allocation4 + $0xd]]
    %v912 = vld [vmem:[#allocation2 + $0x10] sm:$0xff]
    %v913 = vld [vmem:[#allocation2 + $0x18] sm:$0xff]
    %v914 = vstv %s911
    %v915 = vmul.f32 %v912, %v914
    %v916 = vmul.f32 %v913, %v914
    %v917 = vadd.f32 %v909, %v915
    %v918 = vadd.f32 %v910, %v916
    %s919 = sld [smem:[#allocation4 + $0xe]]
    %v920 = vld [vmem:[#allocation2 + $0x20] sm:$0xff]
    %v921 = vld [vmem:[#allocation2 + $0x28] sm:$0xff]
    %v922 = vstv %s919
    %v923 = vmul.f32 %v920, %v922
    %v924 = vmul.f32 %v921, %v922
    %v925 = vadd.f32 %v917, %v923
    %v926 = vadd.f32 %v918, %v924
    %s927 = sld [smem:[#allocation4 + $0xf]]
    %v928 = vld [vmem:[%s338] sm:$0xff]
    %v929 = vld [vmem:[%s338 + $0x8] sm:$0xff]
    %v930 = vstv %s927
    %v931 = vmul.f32 %v928, %v930
    %v932 = vmul.f32 %v929, %v930
    %v933 = vadd.f32 %v925, %v931
    %v934 = vadd.f32 %v926, %v932
    %s935 = sld [smem:[#allocation4 + $0x10]]
    %v936 = vld [vmem:[%s338 + $0x10] sm:$0xff]
    %v937 = vld [vmem:[%s338 + $0x18] sm:$0xff]
    %v938 = vstv %s935
    %v939 = vmul.f32 %v936, %v938
    %v940 = vmul.f32 %v937, %v938
    %v941 = vadd.f32 %v933, %v939
    %v942 = vadd.f32 %v934, %v940
    %s943 = sld [smem:[#allocation4 + $0x11]]
    %v944 = vld [vmem:[%s338 + $0x20] sm:$0xff]
    %v945 = vld [vmem:[%s338 + $0x28] sm:$0xff]
    %v946 = vstv %s943
    %v947 = vmul.f32 %v944, %v946
    %v948 = vmul.f32 %v945, %v946
    %v949 = vadd.f32 %v941, %v947
    %v950 = vadd.f32 %v942, %v948
    %v951 = vstv %s904
    %v952 = vadd.f32 %v949, %v951
    %v953 = vadd.f32 %v950, %v951
    %s954 = sld [smem:[#allocation4 + $0x9]]
    %v955 = vstv %s954
    %v956 = vmul.f32 %v906, %v955
    %v957 = vmul.f32 %v907, %v955
    %s958 = sld [smem:[#allocation4 + $0xa]]
    %v959 = vstv %s958
    %v960 = vmul.f32 %v912, %v959
    %v961 = vmul.f32 %v913, %v959
    %v962 = vadd.f32 %v956, %v960
    %v963 = vadd.f32 %v957, %v961
    %s964 = sld [smem:[#allocation4 + $0xb]]
    %v965 = vstv %s964
    %v966 = vmul.f32 %v920, %v965
    %v967 = vmul.f32 %v921, %v965
    %v968 = vadd.f32 %v962, %v966
    %v969 = vadd.f32 %v963, %v967
    %v970 = vmul.f32 %v928, %v908
    %v971 = vmul.f32 %v929, %v908
    %v972 = vadd.f32 %v968, %v970
    %v973 = vadd.f32 %v969, %v971
    %v974 = vmul.f32 %v936, %v914
    %v975 = vmul.f32 %v937, %v914
    %v976 = vadd.f32 %v972, %v974
    %v977 = vadd.f32 %v973, %v975
    %v978 = vmul.f32 %v944, %v922
    %v979 = vmul.f32 %v945, %v922
    %v980 = vadd.f32 %v976, %v978
    %v981 = vadd.f32 %v977, %v979
    %v982 = vld [vmem:[%s451] sm:$0xff]
    %v983 = vld [vmem:[%s451 + $0x8] sm:$0xff]
    %v984 = vmul.f32 %v982, %v930
    %v985 = vmul.f32 %v983, %v930
    %v986 = vadd.f32 %v980, %v984
    %v987 = vadd.f32 %v981, %v985
    %v988 = vld [vmem:[%s451 + $0x10] sm:$0xff]
    %v989 = vld [vmem:[%s451 + $0x18] sm:$0xff]
    %v990 = vmul.f32 %v988, %v938
    %v991 = vmul.f32 %v989, %v938
    %v992 = vadd.f32 %v986, %v990
    %v993 = vadd.f32 %v987, %v991
    %v994 = vld [vmem:[%s451 + $0x20] sm:$0xff]
    %v995 = vld [vmem:[%s451 + $0x28] sm:$0xff]
    %v996 = vmul.f32 %v994, %v946
    %v997 = vmul.f32 %v995, %v946
    %v998 = vadd.f32 %v992, %v996
    %v999 = vadd.f32 %v993, %v997
    %v1000 = vadd.f32 %v998, %v951
    %v1001 = vadd.f32 %v999, %v951
    %v1002 = vmax.f32 %v952, %v1000
    %v1003 = vmax.f32 %v953, %v1001
    %v1004 = vmax.f32 %v1002, %v1003
    %1005 = vst.msk [vmem:[#allocation3 + $0x10] sm:$0xff] %vm225, %v1004
    %s1006 = sld [smem:[#allocation4 + $0x9]]
    %v1007 = vld [vmem:[%s338] sm:$0xff]
    %v1008 = vld [vmem:[%s338 + $0x8] sm:$0xff]
    %v1009 = vstv %s1006
    %v1010 = vmul.f32 %v1007, %v1009
    %v1011 = vmul.f32 %v1008, %v1009
    %s1012 = sld [smem:[#allocation4 + $0xa]]
    %v1013 = vld [vmem:[%s338 + $0x10] sm:$0xff]
    %v1014 = vld [vmem:[%s338 + $0x18] sm:$0xff]
    %v1015 = vstv %s1012
    %v1016 = vmul.f32 %v1013, %v1015
    %v1017 = vmul.f32 %v1014, %v1015
    %v1018 = vadd.f32 %v1010, %v1016
    %v1019 = vadd.f32 %v1011, %v1017
    %s1020 = sld [smem:[#allocation4 + $0xb]]
    %v1021 = vld [vmem:[%s338 + $0x20] sm:$0xff]
    %v1022 = vld [vmem:[%s338 + $0x28] sm:$0xff]
    %v1023 = vstv %s1020
    %v1024 = vmul.f32 %v1021, %v1023
    %v1025 = vmul.f32 %v1022, %v1023
    %v1026 = vadd.f32 %v1018, %v1024
    %v1027 = vadd.f32 %v1019, %v1025
    %s1028 = sld [smem:[#allocation4 + $0xc]]
    %v1029 = vld [vmem:[%s451] sm:$0xff]
    %v1030 = vld [vmem:[%s451 + $0x8] sm:$0xff]
    %v1031 = vstv %s1028
    %v1032 = vmul.f32 %v1029, %v1031
    %v1033 = vmul.f32 %v1030, %v1031
    %v1034 = vadd.f32 %v1026, %v1032
    %v1035 = vadd.f32 %v1027, %v1033
    %s1036 = sld [smem:[#allocation4 + $0xd]]
    %v1037 = vld [vmem:[%s451 + $0x10] sm:$0xff]
    %v1038 = vld [vmem:[%s451 + $0x18] sm:$0xff]
    %v1039 = vstv %s1036
    %v1040 = vmul.f32 %v1037, %v1039
    %v1041 = vmul.f32 %v1038, %v1039
    %v1042 = vadd.f32 %v1034, %v1040
    %v1043 = vadd.f32 %v1035, %v1041
    %s1044 = sld [smem:[#allocation4 + $0xe]]
    %v1045 = vld [vmem:[%s451 + $0x20] sm:$0xff]
    %v1046 = vld [vmem:[%s451 + $0x28] sm:$0xff]
    %v1047 = vstv %s1044
    %v1048 = vmul.f32 %v1045, %v1047
    %v1049 = vmul.f32 %v1046, %v1047
    %v1050 = vadd.f32 %v1042, %v1048
    %v1051 = vadd.f32 %v1043, %v1049
    %s1052 = sld [smem:[#allocation4 + $0xf]]
    %v1053 = vld [vmem:[%s564] sm:$0xff]
    %v1054 = vld [vmem:[%s564 + $0x8] sm:$0xff]
    %v1055 = vstv %s1052
    %v1056 = vmul.f32 %v1053, %v1055
    %v1057 = vmul.f32 %v1054, %v1055
    %v1058 = vadd.f32 %v1050, %v1056
    %v1059 = vadd.f32 %v1051, %v1057
    %s1060 = sld [smem:[#allocation4 + $0x10]]
    %v1061 = vld [vmem:[%s564 + $0x10] sm:$0xff]
    %v1062 = vld [vmem:[%s564 + $0x18] sm:$0xff]
    %v1063 = vstv %s1060
    %v1064 = vmul.f32 %v1061, %v1063
    %v1065 = vmul.f32 %v1062, %v1063
    %v1066 = vadd.f32 %v1058, %v1064
    %v1067 = vadd.f32 %v1059, %v1065
    %s1068 = sld [smem:[#allocation4 + $0x11]]
    %v1069 = vld [vmem:[%s564 + $0x20] sm:$0xff]
    %v1070 = vld [vmem:[%s564 + $0x28] sm:$0xff]
    %v1071 = vstv %s1068
    %v1072 = vmul.f32 %v1069, %v1071
    %v1073 = vmul.f32 %v1070, %v1071
    %v1074 = vadd.f32 %v1066, %v1072
    %v1075 = vadd.f32 %v1067, %v1073
    %v1076 = vadd.f32 %v1074, %v951
    %v1077 = vadd.f32 %v1075, %v951
    %v1078 = vmul.f32 %v1029, %v1009
    %v1079 = vmul.f32 %v1030, %v1009
    %v1080 = vmul.f32 %v1037, %v1015
    %v1081 = vmul.f32 %v1038, %v1015
    %v1082 = vadd.f32 %v1078, %v1080
    %v1083 = vadd.f32 %v1079, %v1081
    %v1084 = vmul.f32 %v1045, %v1023
    %v1085 = vmul.f32 %v1046, %v1023
    %v1086 = vadd.f32 %v1082, %v1084
    %v1087 = vadd.f32 %v1083, %v1085
    %v1088 = vmul.f32 %v1053, %v1031
    %v1089 = vmul.f32 %v1054, %v1031
    %v1090 = vadd.f32 %v1086, %v1088
    %v1091 = vadd.f32 %v1087, %v1089
    %v1092 = vmul.f32 %v1061, %v1039
    %v1093 = vmul.f32 %v1062, %v1039
    %v1094 = vadd.f32 %v1090, %v1092
    %v1095 = vadd.f32 %v1091, %v1093
    %v1096 = vmul.f32 %v1069, %v1047
    %v1097 = vmul.f32 %v1070, %v1047
    %v1098 = vadd.f32 %v1094, %v1096
    %v1099 = vadd.f32 %v1095, %v1097
    %v1100 = vld [vmem:[%s677] sm:$0xff]
    %v1101 = vld [vmem:[%s677 + $0x8] sm:$0xff]
    %v1102 = vmul.f32 %v1100, %v1055
    %v1103 = vmul.f32 %v1101, %v1055
    %v1104 = vadd.f32 %v1098, %v1102
    %v1105 = vadd.f32 %v1099, %v1103
    %v1106 = vld [vmem:[%s677 + $0x10] sm:$0xff]
    %v1107 = vld [vmem:[%s677 + $0x18] sm:$0xff]
    %v1108 = vmul.f32 %v1106, %v1063
    %v1109 = vmul.f32 %v1107, %v1063
    %v1110 = vadd.f32 %v1104, %v1108
    %v1111 = vadd.f32 %v1105, %v1109
    %v1112 = vld [vmem:[%s677 + $0x20] sm:$0xff]
    %v1113 = vld [vmem:[%s677 + $0x28] sm:$0xff]
    %v1114 = vmul.f32 %v1112, %v1071
    %v1115 = vmul.f32 %v1113, %v1071
    %v1116 = vadd.f32 %v1110, %v1114
    %v1117 = vadd.f32 %v1111, %v1115
    %v1118 = vadd.f32 %v1116, %v951
    %v1119 = vadd.f32 %v1117, %v951
    %v1120 = vmax.f32 %v1076, %v1118
    %v1121 = vmax.f32 %v1077, %v1119
    %v1122 = vmax.f32 %v1120, %v1121
    %1123 = vst.msk [vmem:[#allocation3 + $0x18] sm:$0xff] %vm225, %v1122
    %s1124 = sld [smem:[#allocation6 + $0x2]]
    %s1125 = sld [smem:[#allocation4 + $0x15]]
    %v1126 = vld [vmem:[#allocation2] sm:$0xff]
    %v1127 = vld [vmem:[#allocation2 + $0x8] sm:$0xff]
    %v1128 = vstv %s1125
    %v1129 = vmul.f32 %v1126, %v1128
    %v1130 = vmul.f32 %v1127, %v1128
    %s1131 = sld [smem:[#allocation4 + $0x16]]
    %v1132 = vld [vmem:[#allocation2 + $0x10] sm:$0xff]
    %v1133 = vld [vmem:[#allocation2 + $0x18] sm:$0xff]
    %v1134 = vstv %s1131
    %v1135 = vmul.f32 %v1132, %v1134
    %v1136 = vmul.f32 %v1133, %v1134
    %v1137 = vadd.f32 %v1129, %v1135
    %v1138 = vadd.f32 %v1130, %v1136
    %s1139 = sld [smem:[#allocation4 + $0x17]]
    %v1140 = vld [vmem:[#allocation2 + $0x20] sm:$0xff]
    %v1141 = vld [vmem:[#allocation2 + $0x28] sm:$0xff]
    %v1142 = vstv %s1139
    %v1143 = vmul.f32 %v1140, %v1142
    %v1144 = vmul.f32 %v1141, %v1142
    %v1145 = vadd.f32 %v1137, %v1143
    %v1146 = vadd.f32 %v1138, %v1144
    %s1147 = sld [smem:[#allocation4 + $0x18]]
    %v1148 = vld [vmem:[%s338] sm:$0xff]
    %v1149 = vld [vmem:[%s338 + $0x8] sm:$0xff]
    %v1150 = vstv %s1147
    %v1151 = vmul.f32 %v1148, %v1150
    %v1152 = vmul.f32 %v1149, %v1150
    %v1153 = vadd.f32 %v1145, %v1151
    %v1154 = vadd.f32 %v1146, %v1152
    %s1155 = sld [smem:[#allocation4 + $0x19]]
    %v1156 = vld [vmem:[%s338 + $0x10] sm:$0xff]
    %v1157 = vld [vmem:[%s338 + $0x18] sm:$0xff]
    %v1158 = vstv %s1155
    %v1159 = vmul.f32 %v1156, %v1158
    %v1160 = vmul.f32 %v1157, %v1158
    %v1161 = vadd.f32 %v1153, %v1159
    %v1162 = vadd.f32 %v1154, %v1160
    %s1163 = sld [smem:[#allocation4 + $0x1a]]
    %v1164 = vld [vmem:[%s338 + $0x20] sm:$0xff]
    %v1165 = vld [vmem:[%s338 + $0x28] sm:$0xff]
    %v1166 = vstv %s1163
    %v1167 = vmul.f32 %v1164, %v1166
    %v1168 = vmul.f32 %v1165, %v1166
    %v1169 = vadd.f32 %v1161, %v1167
    %v1170 = vadd.f32 %v1162, %v1168
    %v1171 = vstv %s1124
    %v1172 = vadd.f32 %v1169, %v1171
    %v1173 = vadd.f32 %v1170, %v1171
    %s1174 = sld [smem:[#allocation4 + $0x12]]
    %v1175 = vstv %s1174
    %v1176 = vmul.f32 %v1126, %v1175
    %v1177 = vmul.f32 %v1127, %v1175
    %s1178 = sld [smem:[#allocation4 + $0x13]]
    %v1179 = vstv %s1178
    %v1180 = vmul.f32 %v1132, %v1179
    %v1181 = vmul.f32 %v1133, %v1179
    %v1182 = vadd.f32 %v1176, %v1180
    %v1183 = vadd.f32 %v1177, %v1181
    %s1184 = sld [smem:[#allocation4 + $0x14]]
    %v1185 = vstv %s1184
    %v1186 = vmul.f32 %v1140, %v1185
    %v1187 = vmul.f32 %v1141, %v1185
    %v1188 = vadd.f32 %v1182, %v1186
    %v1189 = vadd.f32 %v1183, %v1187
    %v1190 = vmul.f32 %v1148, %v1128
    %v1191 = vmul.f32 %v1149, %v1128
    %v1192 = vadd.f32 %v1188, %v1190
    %v1193 = vadd.f32 %v1189, %v1191
    %v1194 = vmul.f32 %v1156, %v1134
    %v1195 = vmul.f32 %v1157, %v1134
    %v1196 = vadd.f32 %v1192, %v1194
    %v1197 = vadd.f32 %v1193, %v1195
    %v1198 = vmul.f32 %v1164, %v1142
    %v1199 = vmul.f32 %v1165, %v1142
    %v1200 = vadd.f32 %v1196, %v1198
    %v1201 = vadd.f32 %v1197, %v1199
    %v1202 = vld [vmem:[%s451] sm:$0xff]
    %v1203 = vld [vmem:[%s451 + $0x8] sm:$0xff]
    %v1204 = vmul.f32 %v1202, %v1150
    %v1205 = vmul.f32 %v1203, %v1150
    %v1206 = vadd.f32 %v1200, %v1204
    %v1207 = vadd.f32 %v1201, %v1205
    %v1208 = vld [vmem:[%s451 + $0x10] sm:$0xff]
    %v1209 = vld [vmem:[%s451 + $0x18] sm:$0xff]
    %v1210 = vmul.f32 %v1208, %v1158
    %v1211 = vmul.f32 %v1209, %v1158
    %v1212 = vadd.f32 %v1206, %v1210
    %v1213 = vadd.f32 %v1207, %v1211
    %v1214 = vld [vmem:[%s451 + $0x20] sm:$0xff]
    %v1215 = vld [vmem:[%s451 + $0x28] sm:$0xff]
    %v1216 = vmul.f32 %v1214, %v1166
    %v1217 = vmul.f32 %v1215, %v1166
    %v1218 = vadd.f32 %v1212, %v1216
    %v1219 = vadd.f32 %v1213, %v1217
    %v1220 = vadd.f32 %v1218, %v1171
    %v1221 = vadd.f32 %v1219, %v1171
    %v1222 = vmax.f32 %v1172, %v1220
    %v1223 = vmax.f32 %v1173, %v1221
    %v1224 = vmax.f32 %v1222, %v1223
    %1225 = vst.msk [vmem:[#allocation3 + $0x20] sm:$0xff] %vm225, %v1224
    %s1226 = sld [smem:[#allocation4 + $0x12]]
    %v1227 = vld [vmem:[%s338] sm:$0xff]
    %v1228 = vld [vmem:[%s338 + $0x8] sm:$0xff]
    %v1229 = vstv %s1226
    %v1230 = vmul.f32 %v1227, %v1229
    %v1231 = vmul.f32 %v1228, %v1229
    %s1232 = sld [smem:[#allocation4 + $0x13]]
    %v1233 = vld [vmem:[%s338 + $0x10] sm:$0xff]
    %v1234 = vld [vmem:[%s338 + $0x18] sm:$0xff]
    %v1235 = vstv %s1232
    %v1236 = vmul.f32 %v1233, %v1235
    %v1237 = vmul.f32 %v1234, %v1235
    %v1238 = vadd.f32 %v1230, %v1236
    %v1239 = vadd.f32 %v1231, %v1237
    %s1240 = sld [smem:[#allocation4 + $0x14]]
    %v1241 = vld [vmem:[%s338 + $0x20] sm:$0xff]
    %v1242 = vld [vmem:[%s338 + $0x28] sm:$0xff]
    %v1243 = vstv %s1240
    %v1244 = vmul.f32 %v1241, %v1243
    %v1245 = vmul.f32 %v1242, %v1243
    %v1246 = vadd.f32 %v1238, %v1244
    %v1247 = vadd.f32 %v1239, %v1245
    %s1248 = sld [smem:[#allocation4 + $0x15]]
    %v1249 = vld [vmem:[%s451] sm:$0xff]
    %v1250 = vld [vmem:[%s451 + $0x8] sm:$0xff]
    %v1251 = vstv %s1248
    %v1252 = vmul.f32 %v1249, %v1251
    %v1253 = vmul.f32 %v1250, %v1251
    %v1254 = vadd.f32 %v1246, %v1252
    %v1255 = vadd.f32 %v1247, %v1253
    %s1256 = sld [smem:[#allocation4 + $0x16]]
    %v1257 = vld [vmem:[%s451 + $0x10] sm:$0xff]
    %v1258 = vld [vmem:[%s451 + $0x18] sm:$0xff]
    %v1259 = vstv %s1256
    %v1260 = vmul.f32 %v1257, %v1259
    %v1261 = vmul.f32 %v1258, %v1259
    %v1262 = vadd.f32 %v1254, %v1260
    %v1263 = vadd.f32 %v1255, %v1261
    %s1264 = sld [smem:[#allocation4 + $0x17]]
    %v1265 = vld [vmem:[%s451 + $0x20] sm:$0xff]
    %v1266 = vld [vmem:[%s451 + $0x28] sm:$0xff]
    %v1267 = vstv %s1264
    %v1268 = vmul.f32 %v1265, %v1267
    %v1269 = vmul.f32 %v1266, %v1267
    %v1270 = vadd.f32 %v1262, %v1268
    %v1271 = vadd.f32 %v1263, %v1269
    %s1272 = sld [smem:[#allocation4 + $0x18]]
    %v1273 = vld [vmem:[%s564] sm:$0xff]
    %v1274 = vld [vmem:[%s564 + $0x8] sm:$0xff]
    %v1275 = vstv %s1272
    %v1276 = vmul.f32 %v1273, %v1275
    %v1277 = vmul.f32 %v1274, %v1275
    %v1278 = vadd.f32 %v1270, %v1276
    %v1279 = vadd.f32 %v1271, %v1277
    %s1280 = sld [smem:[#allocation4 + $0x19]]
    %v1281 = vld [vmem:[%s564 + $0x10] sm:$0xff]
    %v1282 = vld [vmem:[%s564 + $0x18] sm:$0xff]
    %v1283 = vstv %s1280
    %v1284 = vmul.f32 %v1281, %v1283
    %v1285 = vmul.f32 %v1282, %v1283
    %v1286 = vadd.f32 %v1278, %v1284
    %v1287 = vadd.f32 %v1279, %v1285
    %s1288 = sld [smem:[#allocation4 + $0x1a]]
    %v1289 = vld [vmem:[%s564 + $0x20] sm:$0xff]
    %v1290 = vld [vmem:[%s564 + $0x28] sm:$0xff]
    %v1291 = vstv %s1288
    %v1292 = vmul.f32 %v1289, %v1291
    %v1293 = vmul.f32 %v1290, %v1291
    %v1294 = vadd.f32 %v1286, %v1292
    %v1295 = vadd.f32 %v1287, %v1293
    %v1296 = vadd.f32 %v1294, %v1171
    %v1297 = vadd.f32 %v1295, %v1171
    %v1298 = vmul.f32 %v1249, %v1229
    %v1299 = vmul.f32 %v1250, %v1229
    %v1300 = vmul.f32 %v1257, %v1235
    %v1301 = vmul.f32 %v1258, %v1235
    %v1302 = vadd.f32 %v1298, %v1300
    %v1303 = vadd.f32 %v1299, %v1301
    %v1304 = vmul.f32 %v1265, %v1243
    %v1305 = vmul.f32 %v1266, %v1243
    %v1306 = vadd.f32 %v1302, %v1304
    %v1307 = vadd.f32 %v1303, %v1305
    %v1308 = vmul.f32 %v1273, %v1251
    %v1309 = vmul.f32 %v1274, %v1251
    %v1310 = vadd.f32 %v1306, %v1308
    %v1311 = vadd.f32 %v1307, %v1309
    %v1312 = vmul.f32 %v1281, %v1259
    %v1313 = vmul.f32 %v1282, %v1259
    %v1314 = vadd.f32 %v1310, %v1312
    %v1315 = vadd.f32 %v1311, %v1313
    %v1316 = vmul.f32 %v1289, %v1267
    %v1317 = vmul.f32 %v1290, %v1267
    %v1318 = vadd.f32 %v1314, %v1316
    %v1319 = vadd.f32 %v1315, %v1317
    %v1320 = vld [vmem:[%s677] sm:$0xff]
    %v1321 = vld [vmem:[%s677 + $0x8] sm:$0xff]
    %v1322 = vmul.f32 %v1320, %v1275
    %v1323 = vmul.f32 %v1321, %v1275
    %v1324 = vadd.f32 %v1318, %v1322
    %v1325 = vadd.f32 %v1319, %v1323
    %v1326 = vld [vmem:[%s677 + $0x10] sm:$0xff]
    %v1327 = vld [vmem:[%s677 + $0x18] sm:$0xff]
    %v1328 = vmul.f32 %v1326, %v1283
    %v1329 = vmul.f32 %v1327, %v1283
    %v1330 = vadd.f32 %v1324, %v1328
    %v1331 = vadd.f32 %v1325, %v1329
    %v1332 = vld [vmem:[%s677 + $0x20] sm:$0xff]
    %v1333 = vld [vmem:[%s677 + $0x28] sm:$0xff]
    %v1334 = vmul.f32 %v1332, %v1291
    %v1335 = vmul.f32 %v1333, %v1291
    %v1336 = vadd.f32 %v1330, %v1334
    %v1337 = vadd.f32 %v1331, %v1335
    %v1338 = vadd.f32 %v1336, %v1171
    %v1339 = vadd.f32 %v1337, %v1171
    %v1340 = vmax.f32 %v1296, %v1338
    %v1341 = vmax.f32 %v1297, %v1339
    %v1342 = vmax.f32 %v1340, %v1341
    %1343 = vst.msk [vmem:[#allocation3 + $0x28] sm:$0xff] %vm225, %v1342
    %s1344 = sld [smem:[#allocation6 + $0x3]]
    %s1345 = sld [smem:[#allocation4 + $0x1e]]
    %v1346 = vld [vmem:[#allocation2] sm:$0xff]
    %v1347 = vld [vmem:[#allocation2 + $0x8] sm:$0xff]
    %v1348 = vstv %s1345
    %v1349 = vmul.f32 %v1346, %v1348
    %v1350 = vmul.f32 %v1347, %v1348
    %s1351 = sld [smem:[#allocation4 + $0x1f]]
    %v1352 = vld [vmem:[#allocation2 + $0x10] sm:$0xff]
    %v1353 = vld [vmem:[#allocation2 + $0x18] sm:$0xff]
    %v1354 = vstv %s1351
    %v1355 = vmul.f32 %v1352, %v1354
    %v1356 = vmul.f32 %v1353, %v1354
    %v1357 = vadd.f32 %v1349, %v1355
    %v1358 = vadd.f32 %v1350, %v1356
    %s1359 = sld [smem:[#allocation4 + $0x20]]
    %v1360 = vld [vmem:[#allocation2 + $0x20] sm:$0xff]
    %v1361 = vld [vmem:[#allocation2 + $0x28] sm:$0xff]
    %v1362 = vstv %s1359
    %v1363 = vmul.f32 %v1360, %v1362
    %v1364 = vmul.f32 %v1361, %v1362
    %v1365 = vadd.f32 %v1357, %v1363
    %v1366 = vadd.f32 %v1358, %v1364
    %s1367 = sld [smem:[#allocation4 + $0x21]]
    %v1368 = vld [vmem:[%s338] sm:$0xff]
    %v1369 = vld [vmem:[%s338 + $0x8] sm:$0xff]
    %v1370 = vstv %s1367
    %v1371 = vmul.f32 %v1368, %v1370
    %v1372 = vmul.f32 %v1369, %v1370
    %v1373 = vadd.f32 %v1365, %v1371
    %v1374 = vadd.f32 %v1366, %v1372
    %s1375 = sld [smem:[#allocation4 + $0x22]]
    %v1376 = vld [vmem:[%s338 + $0x10] sm:$0xff]
    %v1377 = vld [vmem:[%s338 + $0x18] sm:$0xff]
    %v1378 = vstv %s1375
    %v1379 = vmul.f32 %v1376, %v1378
    %v1380 = vmul.f32 %v1377, %v1378
    %v1381 = vadd.f32 %v1373, %v1379
    %v1382 = vadd.f32 %v1374, %v1380
    %s1383 = sld [smem:[#allocation4 + $0x23]]
    %v1384 = vld [vmem:[%s338 + $0x20] sm:$0xff]
    %v1385 = vld [vmem:[%s338 + $0x28] sm:$0xff]
    %v1386 = vstv %s1383
    %v1387 = vmul.f32 %v1384, %v1386
    %v1388 = vmul.f32 %v1385, %v1386
    %v1389 = vadd.f32 %v1381, %v1387
    %v1390 = vadd.f32 %v1382, %v1388
    %v1391 = vstv %s1344
    %v1392 = vadd.f32 %v1389, %v1391
    %v1393 = vadd.f32 %v1390, %v1391
    %s1394 = sld [smem:[#allocation4 + $0x1b]]
    %v1395 = vstv %s1394
    %v1396 = vmul.f32 %v1346, %v1395
    %v1397 = vmul.f32 %v1347, %v1395
    %s1398 = sld [smem:[#allocation4 + $0x1c]]
    %v1399 = vstv %s1398
    %v1400 = vmul.f32 %v1352, %v1399
    %v1401 = vmul.f32 %v1353, %v1399
    %v1402 = vadd.f32 %v1396, %v1400
    %v1403 = vadd.f32 %v1397, %v1401
    %s1404 = sld [smem:[#allocation4 + $0x1d]]
    %v1405 = vstv %s1404
    %v1406 = vmul.f32 %v1360, %v1405
    %v1407 = vmul.f32 %v1361, %v1405
    %v1408 = vadd.f32 %v1402, %v1406
    %v1409 = vadd.f32 %v1403, %v1407
    %v1410 = vmul.f32 %v1368, %v1348
    %v1411 = vmul.f32 %v1369, %v1348
    %v1412 = vadd.f32 %v1408, %v1410
    %v1413 = vadd.f32 %v1409, %v1411
    %v1414 = vmul.f32 %v1376, %v1354
    %v1415 = vmul.f32 %v1377, %v1354
    %v1416 = vadd.f32 %v1412, %v1414
    %v1417 = vadd.f32 %v1413, %v1415
    %v1418 = vmul.f32 %v1384, %v1362
    %v1419 = vmul.f32 %v1385, %v1362
    %v1420 = vadd.f32 %v1416, %v1418
    %v1421 = vadd.f32 %v1417, %v1419
    %v1422 = vld [vmem:[%s451] sm:$0xff]
    %v1423 = vld [vmem:[%s451 + $0x8] sm:$0xff]
    %v1424 = vmul.f32 %v1422, %v1370
    %v1425 = vmul.f32 %v1423, %v1370
    %v1426 = vadd.f32 %v1420, %v1424
    %v1427 = vadd.f32 %v1421, %v1425
    %v1428 = vld [vmem:[%s451 + $0x10] sm:$0xff]
    %v1429 = vld [vmem:[%s451 + $0x18] sm:$0xff]
    %v1430 = vmul.f32 %v1428, %v1378
    %v1431 = vmul.f32 %v1429, %v1378
    %v1432 = vadd.f32 %v1426, %v1430
    %v1433 = vadd.f32 %v1427, %v1431
    %v1434 = vld [vmem:[%s451 + $0x20] sm:$0xff]
    %v1435 = vld [vmem:[%s451 + $0x28] sm:$0xff]
    %v1436 = vmul.f32 %v1434, %v1386
    %v1437 = vmul.f32 %v1435, %v1386
    %v1438 = vadd.f32 %v1432, %v1436
    %v1439 = vadd.f32 %v1433, %v1437
    %v1440 = vadd.f32 %v1438, %v1391
    %v1441 = vadd.f32 %v1439, %v1391
    %v1442 = vmax.f32 %v1392, %v1440
    %v1443 = vmax.f32 %v1393, %v1441
    %v1444 = vmax.f32 %v1442, %v1443
    %1445 = vst.msk [vmem:[#allocation3 + $0x30] sm:$0xff] %vm225, %v1444
    %s1446 = sld [smem:[#allocation4 + $0x1b]]
    %v1447 = vld [vmem:[%s338] sm:$0xff]
    %v1448 = vld [vmem:[%s338 + $0x8] sm:$0xff]
    %v1449 = vstv %s1446
    %v1450 = vmul.f32 %v1447, %v1449
    %v1451 = vmul.f32 %v1448, %v1449
    %s1452 = sld [smem:[#allocation4 + $0x1c]]
    %v1453 = vld [vmem:[%s338 + $0x10] sm:$0xff]
    %v1454 = vld [vmem:[%s338 + $0x18] sm:$0xff]
    %v1455 = vstv %s1452
    %v1456 = vmul.f32 %v1453, %v1455
    %v1457 = vmul.f32 %v1454, %v1455
    %v1458 = vadd.f32 %v1450, %v1456
    %v1459 = vadd.f32 %v1451, %v1457
    %s1460 = sld [smem:[#allocation4 + $0x1d]]
    %v1461 = vld [vmem:[%s338 + $0x20] sm:$0xff]
    %v1462 = vld [vmem:[%s338 + $0x28] sm:$0xff]
    %v1463 = vstv %s1460
    %v1464 = vmul.f32 %v1461, %v1463
    %v1465 = vmul.f32 %v1462, %v1463
    %v1466 = vadd.f32 %v1458, %v1464
    %v1467 = vadd.f32 %v1459, %v1465
    %s1468 = sld [smem:[#allocation4 + $0x1e]]
    %v1469 = vld [vmem:[%s451] sm:$0xff]
    %v1470 = vld [vmem:[%s451 + $0x8] sm:$0xff]
    %v1471 = vstv %s1468
    %v1472 = vmul.f32 %v1469, %v1471
    %v1473 = vmul.f32 %v1470, %v1471
    %v1474 = vadd.f32 %v1466, %v1472
    %v1475 = vadd.f32 %v1467, %v1473
    %s1476 = sld [smem:[#allocation4 + $0x1f]]
    %v1477 = vld [vmem:[%s451 + $0x10] sm:$0xff]
    %v1478 = vld [vmem:[%s451 + $0x18] sm:$0xff]
    %v1479 = vstv %s1476
    %v1480 = vmul.f32 %v1477, %v1479
    %v1481 = vmul.f32 %v1478, %v1479
    %v1482 = vadd.f32 %v1474, %v1480
    %v1483 = vadd.f32 %v1475, %v1481
    %s1484 = sld [smem:[#allocation4 + $0x20]]
    %v1485 = vld [vmem:[%s451 + $0x20] sm:$0xff]
    %v1486 = vld [vmem:[%s451 + $0x28] sm:$0xff]
    %v1487 = vstv %s1484
    %v1488 = vmul.f32 %v1485, %v1487
    %v1489 = vmul.f32 %v1486, %v1487
    %v1490 = vadd.f32 %v1482, %v1488
    %v1491 = vadd.f32 %v1483, %v1489
    %s1492 = sld [smem:[#allocation4 + $0x21]]
    %v1493 = vld [vmem:[%s564] sm:$0xff]
    %v1494 = vld [vmem:[%s564 + $0x8] sm:$0xff]
    %v1495 = vstv %s1492
    %v1496 = vmul.f32 %v1493, %v1495
    %v1497 = vmul.f32 %v1494, %v1495
    %v1498 = vadd.f32 %v1490, %v1496
    %v1499 = vadd.f32 %v1491, %v1497
    %s1500 = sld [smem:[#allocation4 + $0x22]]
    %v1501 = vld [vmem:[%s564 + $0x10] sm:$0xff]
    %v1502 = vld [vmem:[%s564 + $0x18] sm:$0xff]
    %v1503 = vstv %s1500
    %v1504 = vmul.f32 %v1501, %v1503
    %v1505 = vmul.f32 %v1502, %v1503
    %v1506 = vadd.f32 %v1498, %v1504
    %v1507 = vadd.f32 %v1499, %v1505
    %s1508 = sld [smem:[#allocation4 + $0x23]]
    %v1509 = vld [vmem:[%s564 + $0x20] sm:$0xff]
    %v1510 = vld [vmem:[%s564 + $0x28] sm:$0xff]
    %v1511 = vstv %s1508
    %v1512 = vmul.f32 %v1509, %v1511
    %v1513 = vmul.f32 %v1510, %v1511
    %v1514 = vadd.f32 %v1506, %v1512
    %v1515 = vadd.f32 %v1507, %v1513
    %v1516 = vadd.f32 %v1514, %v1391
    %v1517 = vadd.f32 %v1515, %v1391
    %v1518 = vmul.f32 %v1469, %v1449
    %v1519 = vmul.f32 %v1470, %v1449
    %v1520 = vmul.f32 %v1477, %v1455
    %v1521 = vmul.f32 %v1478, %v1455
    %v1522 = vadd.f32 %v1518, %v1520
    %v1523 = vadd.f32 %v1519, %v1521
    %v1524 = vmul.f32 %v1485, %v1463
    %v1525 = vmul.f32 %v1486, %v1463
    %v1526 = vadd.f32 %v1522, %v1524
    %v1527 = vadd.f32 %v1523, %v1525
    %v1528 = vmul.f32 %v1493, %v1471
    %v1529 = vmul.f32 %v1494, %v1471
    %v1530 = vadd.f32 %v1526, %v1528
    %v1531 = vadd.f32 %v1527, %v1529
    %v1532 = vmul.f32 %v1501, %v1479
    %v1533 = vmul.f32 %v1502, %v1479
    %v1534 = vadd.f32 %v1530, %v1532
    %v1535 = vadd.f32 %v1531, %v1533
    %v1536 = vmul.f32 %v1509, %v1487
    %v1537 = vmul.f32 %v1510, %v1487
    %v1538 = vadd.f32 %v1534, %v1536
    %v1539 = vadd.f32 %v1535, %v1537
    %v1540 = vld [vmem:[%s677] sm:$0xff]
    %v1541 = vld [vmem:[%s677 + $0x8] sm:$0xff]
    %v1542 = vmul.f32 %v1540, %v1495
    %v1543 = vmul.f32 %v1541, %v1495
    %v1544 = vadd.f32 %v1538, %v1542
    %v1545 = vadd.f32 %v1539, %v1543
    %v1546 = vld [vmem:[%s677 + $0x10] sm:$0xff]
    %v1547 = vld [vmem:[%s677 + $0x18] sm:$0xff]
    %v1548 = vmul.f32 %v1546, %v1503
    %v1549 = vmul.f32 %v1547, %v1503
    %v1550 = vadd.f32 %v1544, %v1548
    %v1551 = vadd.f32 %v1545, %v1549
    %v1552 = vld [vmem:[%s677 + $0x20] sm:$0xff]
    %v1553 = vld [vmem:[%s677 + $0x28] sm:$0xff]
    %v1554 = vmul.f32 %v1552, %v1511
    %v1555 = vmul.f32 %v1553, %v1511
    %v1556 = vadd.f32 %v1550, %v1554
    %v1557 = vadd.f32 %v1551, %v1555
    %v1558 = vadd.f32 %v1556, %v1391
    %v1559 = vadd.f32 %v1557, %v1391
    %v1560 = vmax.f32 %v1516, %v1558
    %v1561 = vmax.f32 %v1517, %v1559
    %v1562 = vmax.f32 %v1560, %v1561
    %1563 = vst.msk [vmem:[#allocation3 + $0x38] sm:$0xff] %vm225, %v1562
    %s1564 = sld [smem:[#allocation6 + $0x4]]
    %s1565 = sld [smem:[#allocation4 + $0x27]]
    %v1566 = vld [vmem:[#allocation2] sm:$0xff]
    %v1567 = vld [vmem:[#allocation2 + $0x8] sm:$0xff]
    %v1568 = vstv %s1565
    %v1569 = vmul.f32 %v1566, %v1568
    %v1570 = vmul.f32 %v1567, %v1568
    %s1571 = sld [smem:[#allocation4 + $0x28]]
    %v1572 = vld [vmem:[#allocation2 + $0x10] sm:$0xff]
    %v1573 = vld [vmem:[#allocation2 + $0x18] sm:$0xff]
    %v1574 = vstv %s1571
    %v1575 = vmul.f32 %v1572, %v1574
    %v1576 = vmul.f32 %v1573, %v1574
    %v1577 = vadd.f32 %v1569, %v1575
    %v1578 = vadd.f32 %v1570, %v1576
    %s1579 = sld [smem:[#allocation4 + $0x29]]
    %v1580 = vld [vmem:[#allocation2 + $0x20] sm:$0xff]
    %v1581 = vld [vmem:[#allocation2 + $0x28] sm:$0xff]
    %v1582 = vstv %s1579
    %v1583 = vmul.f32 %v1580, %v1582
    %v1584 = vmul.f32 %v1581, %v1582
    %v1585 = vadd.f32 %v1577, %v1583
    %v1586 = vadd.f32 %v1578, %v1584
    %s1587 = sld [smem:[#allocation4 + $0x2a]]
    %v1588 = vld [vmem:[%s338] sm:$0xff]
    %v1589 = vld [vmem:[%s338 + $0x8] sm:$0xff]
    %v1590 = vstv %s1587
    %v1591 = vmul.f32 %v1588, %v1590
    %v1592 = vmul.f32 %v1589, %v1590
    %v1593 = vadd.f32 %v1585, %v1591
    %v1594 = vadd.f32 %v1586, %v1592
    %s1595 = sld [smem:[#allocation4 + $0x2b]]
    %v1596 = vld [vmem:[%s338 + $0x10] sm:$0xff]
    %v1597 = vld [vmem:[%s338 + $0x18] sm:$0xff]
    %v1598 = vstv %s1595
    %v1599 = vmul.f32 %v1596, %v1598
    %v1600 = vmul.f32 %v1597, %v1598
    %v1601 = vadd.f32 %v1593, %v1599
    %v1602 = vadd.f32 %v1594, %v1600
    %s1603 = sld [smem:[#allocation4 + $0x2c]]
    %v1604 = vld [vmem:[%s338 + $0x20] sm:$0xff]
    %v1605 = vld [vmem:[%s338 + $0x28] sm:$0xff]
    %v1606 = vstv %s1603
    %v1607 = vmul.f32 %v1604, %v1606
    %v1608 = vmul.f32 %v1605, %v1606
    %v1609 = vadd.f32 %v1601, %v1607
    %v1610 = vadd.f32 %v1602, %v1608
    %v1611 = vstv %s1564
    %v1612 = vadd.f32 %v1609, %v1611
    %v1613 = vadd.f32 %v1610, %v1611
    %s1614 = sld [smem:[#allocation4 + $0x24]]
    %v1615 = vstv %s1614
    %v1616 = vmul.f32 %v1566, %v1615
    %v1617 = vmul.f32 %v1567, %v1615
    %s1618 = sld [smem:[#allocation4 + $0x25]]
    %v1619 = vstv %s1618
    %v1620 = vmul.f32 %v1572, %v1619
    %v1621 = vmul.f32 %v1573, %v1619
    %v1622 = vadd.f32 %v1616, %v1620
    %v1623 = vadd.f32 %v1617, %v1621
    %s1624 = sld [smem:[#allocation4 + $0x26]]
    %v1625 = vstv %s1624
    %v1626 = vmul.f32 %v1580, %v1625
    %v1627 = vmul.f32 %v1581, %v1625
    %v1628 = vadd.f32 %v1622, %v1626
    %v1629 = vadd.f32 %v1623, %v1627
    %v1630 = vmul.f32 %v1588, %v1568
    %v1631 = vmul.f32 %v1589, %v1568
    %v1632 = vadd.f32 %v1628, %v1630
    %v1633 = vadd.f32 %v1629, %v1631
    %v1634 = vmul.f32 %v1596, %v1574
    %v1635 = vmul.f32 %v1597, %v1574
    %v1636 = vadd.f32 %v1632, %v1634
    %v1637 = vadd.f32 %v1633, %v1635
    %v1638 = vmul.f32 %v1604, %v1582
    %v1639 = vmul.f32 %v1605, %v1582
    %v1640 = vadd.f32 %v1636, %v1638
    %v1641 = vadd.f32 %v1637, %v1639
    %v1642 = vld [vmem:[%s451] sm:$0xff]
    %v1643 = vld [vmem:[%s451 + $0x8] sm:$0xff]
    %v1644 = vmul.f32 %v1642, %v1590
    %v1645 = vmul.f32 %v1643, %v1590
    %v1646 = vadd.f32 %v1640, %v1644
    %v1647 = vadd.f32 %v1641, %v1645
    %v1648 = vld [vmem:[%s451 + $0x10] sm:$0xff]
    %v1649 = vld [vmem:[%s451 + $0x18] sm:$0xff]
    %v1650 = vmul.f32 %v1648, %v1598
    %v1651 = vmul.f32 %v1649, %v1598
    %v1652 = vadd.f32 %v1646, %v1650
    %v1653 = vadd.f32 %v1647, %v1651
    %v1654 = vld [vmem:[%s451 + $0x20] sm:$0xff]
    %v1655 = vld [vmem:[%s451 + $0x28] sm:$0xff]
    %v1656 = vmul.f32 %v1654, %v1606
    %v1657 = vmul.f32 %v1655, %v1606
    %v1658 = vadd.f32 %v1652, %v1656
    %v1659 = vadd.f32 %v1653, %v1657
    %v1660 = vadd.f32 %v1658, %v1611
    %v1661 = vadd.f32 %v1659, %v1611
    %v1662 = vmax.f32 %v1612, %v1660
    %v1663 = vmax.f32 %v1613, %v1661
    %v1664 = vmax.f32 %v1662, %v1663
    %1665 = vst.msk [vmem:[#allocation3 + $0x40] sm:$0xff] %vm225, %v1664
    %s1666 = sld [smem:[#allocation4 + $0x24]]
    %v1667 = vld [vmem:[%s338] sm:$0xff]
    %v1668 = vld [vmem:[%s338 + $0x8] sm:$0xff]
    %v1669 = vstv %s1666
    %v1670 = vmul.f32 %v1667, %v1669
    %v1671 = vmul.f32 %v1668, %v1669
    %s1672 = sld [smem:[#allocation4 + $0x25]]
    %v1673 = vld [vmem:[%s338 + $0x10] sm:$0xff]
    %v1674 = vld [vmem:[%s338 + $0x18] sm:$0xff]
    %v1675 = vstv %s1672
    %v1676 = vmul.f32 %v1673, %v1675
    %v1677 = vmul.f32 %v1674, %v1675
    %v1678 = vadd.f32 %v1670, %v1676
    %v1679 = vadd.f32 %v1671, %v1677
    %s1680 = sld [smem:[#allocation4 + $0x26]]
    %v1681 = vld [vmem:[%s338 + $0x20] sm:$0xff]
    %v1682 = vld [vmem:[%s338 + $0x28] sm:$0xff]
    %v1683 = vstv %s1680
    %v1684 = vmul.f32 %v1681, %v1683
    %v1685 = vmul.f32 %v1682, %v1683
    %v1686 = vadd.f32 %v1678, %v1684
    %v1687 = vadd.f32 %v1679, %v1685
    %s1688 = sld [smem:[#allocation4 + $0x27]]
    %v1689 = vld [vmem:[%s451] sm:$0xff]
    %v1690 = vld [vmem:[%s451 + $0x8] sm:$0xff]
    %v1691 = vstv %s1688
    %v1692 = vmul.f32 %v1689, %v1691
    %v1693 = vmul.f32 %v1690, %v1691
    %v1694 = vadd.f32 %v1686, %v1692
    %v1695 = vadd.f32 %v1687, %v1693
    %s1696 = sld [smem:[#allocation4 + $0x28]]
    %v1697 = vld [vmem:[%s451 + $0x10] sm:$0xff]
    %v1698 = vld [vmem:[%s451 + $0x18] sm:$0xff]
    %v1699 = vstv %s1696
    %v1700 = vmul.f32 %v1697, %v1699
    %v1701 = vmul.f32 %v1698, %v1699
    %v1702 = vadd.f32 %v1694, %v1700
    %v1703 = vadd.f32 %v1695, %v1701
    %s1704 = sld [smem:[#allocation4 + $0x29]]
    %v1705 = vld [vmem:[%s451 + $0x20] sm:$0xff]
    %v1706 = vld [vmem:[%s451 + $0x28] sm:$0xff]
    %v1707 = vstv %s1704
    %v1708 = vmul.f32 %v1705, %v1707
    %v1709 = vmul.f32 %v1706, %v1707
    %v1710 = vadd.f32 %v1702, %v1708
    %v1711 = vadd.f32 %v1703, %v1709
    %s1712 = sld [smem:[#allocation4 + $0x2a]]
    %v1713 = vld [vmem:[%s564] sm:$0xff]
    %v1714 = vld [vmem:[%s564 + $0x8] sm:$0xff]
    %v1715 = vstv %s1712
    %v1716 = vmul.f32 %v1713, %v1715
    %v1717 = vmul.f32 %v1714, %v1715
    %v1718 = vadd.f32 %v1710, %v1716
    %v1719 = vadd.f32 %v1711, %v1717
    %s1720 = sld [smem:[#allocation4 + $0x2b]]
    %v1721 = vld [vmem:[%s564 + $0x10] sm:$0xff]
    %v1722 = vld [vmem:[%s564 + $0x18] sm:$0xff]
    %v1723 = vstv %s1720
    %v1724 = vmul.f32 %v1721, %v1723
    %v1725 = vmul.f32 %v1722, %v1723
    %v1726 = vadd.f32 %v1718, %v1724
    %v1727 = vadd.f32 %v1719, %v1725
    %s1728 = sld [smem:[#allocation4 + $0x2c]]
    %v1729 = vld [vmem:[%s564 + $0x20] sm:$0xff]
    %v1730 = vld [vmem:[%s564 + $0x28] sm:$0xff]
    %v1731 = vstv %s1728
    %v1732 = vmul.f32 %v1729, %v1731
    %v1733 = vmul.f32 %v1730, %v1731
    %v1734 = vadd.f32 %v1726, %v1732
    %v1735 = vadd.f32 %v1727, %v1733
    %v1736 = vadd.f32 %v1734, %v1611
    %v1737 = vadd.f32 %v1735, %v1611
    %v1738 = vmul.f32 %v1689, %v1669
    %v1739 = vmul.f32 %v1690, %v1669
    %v1740 = vmul.f32 %v1697, %v1675
    %v1741 = vmul.f32 %v1698, %v1675
    %v1742 = vadd.f32 %v1738, %v1740
    %v1743 = vadd.f32 %v1739, %v1741
    %v1744 = vmul.f32 %v1705, %v1683
    %v1745 = vmul.f32 %v1706, %v1683
    %v1746 = vadd.f32 %v1742, %v1744
    %v1747 = vadd.f32 %v1743, %v1745
    %v1748 = vmul.f32 %v1713, %v1691
    %v1749 = vmul.f32 %v1714, %v1691
    %v1750 = vadd.f32 %v1746, %v1748
    %v1751 = vadd.f32 %v1747, %v1749
    %v1752 = vmul.f32 %v1721, %v1699
    %v1753 = vmul.f32 %v1722, %v1699
    %v1754 = vadd.f32 %v1750, %v1752
    %v1755 = vadd.f32 %v1751, %v1753
    %v1756 = vmul.f32 %v1729, %v1707
    %v1757 = vmul.f32 %v1730, %v1707
    %v1758 = vadd.f32 %v1754, %v1756
    %v1759 = vadd.f32 %v1755, %v1757
    %v1760 = vld [vmem:[%s677] sm:$0xff]
    %v1761 = vld [vmem:[%s677 + $0x8] sm:$0xff]
    %v1762 = vmul.f32 %v1760, %v1715
    %v1763 = vmul.f32 %v1761, %v1715
    %v1764 = vadd.f32 %v1758, %v1762
    %v1765 = vadd.f32 %v1759, %v1763
    %v1766 = vld [vmem:[%s677 + $0x10] sm:$0xff]
    %v1767 = vld [vmem:[%s677 + $0x18] sm:$0xff]
    %v1768 = vmul.f32 %v1766, %v1723
    %v1769 = vmul.f32 %v1767, %v1723
    %v1770 = vadd.f32 %v1764, %v1768
    %v1771 = vadd.f32 %v1765, %v1769
    %v1772 = vld [vmem:[%s677 + $0x20] sm:$0xff]
    %v1773 = vld [vmem:[%s677 + $0x28] sm:$0xff]
    %v1774 = vmul.f32 %v1772, %v1731
    %v1775 = vmul.f32 %v1773, %v1731
    %v1776 = vadd.f32 %v1770, %v1774
    %v1777 = vadd.f32 %v1771, %v1775
    %v1778 = vadd.f32 %v1776, %v1611
    %v1779 = vadd.f32 %v1777, %v1611
    %v1780 = vmax.f32 %v1736, %v1778
    %v1781 = vmax.f32 %v1737, %v1779
    %v1782 = vmax.f32 %v1780, %v1781
    %1783 = vst.msk [vmem:[#allocation3 + $0x48] sm:$0xff] %vm225, %v1782
    %s1784 = sld [smem:[#allocation6 + $0x5]]
    %s1785 = sld [smem:[#allocation4 + $0x30]]
    %v1786 = vld [vmem:[#allocation2] sm:$0xff]
    %v1787 = vld [vmem:[#allocation2 + $0x8] sm:$0xff]
    %v1788 = vstv %s1785
    %v1789 = vmul.f32 %v1786, %v1788
    %v1790 = vmul.f32 %v1787, %v1788
    %s1791 = sld [smem:[#allocation4 + $0x31]]
    %v1792 = vld [vmem:[#allocation2 + $0x10] sm:$0xff]
    %v1793 = vld [vmem:[#allocation2 + $0x18] sm:$0xff]
    %v1794 = vstv %s1791
    %v1795 = vmul.f32 %v1792, %v1794
    %v1796 = vmul.f32 %v1793, %v1794
    %v1797 = vadd.f32 %v1789, %v1795
    %v1798 = vadd.f32 %v1790, %v1796
    %s1799 = sld [smem:[#allocation4 + $0x32]]
    %v1800 = vld [vmem:[#allocation2 + $0x20] sm:$0xff]
    %v1801 = vld [vmem:[#allocation2 + $0x28] sm:$0xff]
    %v1802 = vstv %s1799
    %v1803 = vmul.f32 %v1800, %v1802
    %v1804 = vmul.f32 %v1801, %v1802
    %v1805 = vadd.f32 %v1797, %v1803
    %v1806 = vadd.f32 %v1798, %v1804
    %s1807 = sld [smem:[#allocation4 + $0x33]]
    %v1808 = vld [vmem:[%s338] sm:$0xff]
    %v1809 = vld [vmem:[%s338 + $0x8] sm:$0xff]
    %v1810 = vstv %s1807
    %v1811 = vmul.f32 %v1808, %v1810
    %v1812 = vmul.f32 %v1809, %v1810
    %v1813 = vadd.f32 %v1805, %v1811
    %v1814 = vadd.f32 %v1806, %v1812
    %s1815 = sld [smem:[#allocation4 + $0x34]]
    %v1816 = vld [vmem:[%s338 + $0x10] sm:$0xff]
    %v1817 = vld [vmem:[%s338 + $0x18] sm:$0xff]
    %v1818 = vstv %s1815
    %v1819 = vmul.f32 %v1816, %v1818
    %v1820 = vmul.f32 %v1817, %v1818
    %v1821 = vadd.f32 %v1813, %v1819
    %v1822 = vadd.f32 %v1814, %v1820
    %s1823 = sld [smem:[#allocation4 + $0x35]]
    %v1824 = vld [vmem:[%s338 + $0x20] sm:$0xff]
    %v1825 = vld [vmem:[%s338 + $0x28] sm:$0xff]
    %v1826 = vstv %s1823
    %v1827 = vmul.f32 %v1824, %v1826
    %v1828 = vmul.f32 %v1825, %v1826
    %v1829 = vadd.f32 %v1821, %v1827
    %v1830 = vadd.f32 %v1822, %v1828
    %v1831 = vstv %s1784
    %v1832 = vadd.f32 %v1829, %v1831
    %v1833 = vadd.f32 %v1830, %v1831
    %s1834 = sld [smem:[#allocation4 + $0x2d]]
    %v1835 = vstv %s1834
    %v1836 = vmul.f32 %v1786, %v1835
    %v1837 = vmul.f32 %v1787, %v1835
    %s1838 = sld [smem:[#allocation4 + $0x2e]]
    %v1839 = vstv %s1838
    %v1840 = vmul.f32 %v1792, %v1839
    %v1841 = vmul.f32 %v1793, %v1839
    %v1842 = vadd.f32 %v1836, %v1840
    %v1843 = vadd.f32 %v1837, %v1841
    %s1844 = sld [smem:[#allocation4 + $0x2f]]
    %v1845 = vstv %s1844
    %v1846 = vmul.f32 %v1800, %v1845
    %v1847 = vmul.f32 %v1801, %v1845
    %v1848 = vadd.f32 %v1842, %v1846
    %v1849 = vadd.f32 %v1843, %v1847
    %v1850 = vmul.f32 %v1808, %v1788
    %v1851 = vmul.f32 %v1809, %v1788
    %v1852 = vadd.f32 %v1848, %v1850
    %v1853 = vadd.f32 %v1849, %v1851
    %v1854 = vmul.f32 %v1816, %v1794
    %v1855 = vmul.f32 %v1817, %v1794
    %v1856 = vadd.f32 %v1852, %v1854
    %v1857 = vadd.f32 %v1853, %v1855
    %v1858 = vmul.f32 %v1824, %v1802
    %v1859 = vmul.f32 %v1825, %v1802
    %v1860 = vadd.f32 %v1856, %v1858
    %v1861 = vadd.f32 %v1857, %v1859
    %v1862 = vld [vmem:[%s451] sm:$0xff]
    %v1863 = vld [vmem:[%s451 + $0x8] sm:$0xff]
    %v1864 = vmul.f32 %v1862, %v1810
    %v1865 = vmul.f32 %v1863, %v1810
    %v1866 = vadd.f32 %v1860, %v1864
    %v1867 = vadd.f32 %v1861, %v1865
    %v1868 = vld [vmem:[%s451 + $0x10] sm:$0xff]
    %v1869 = vld [vmem:[%s451 + $0x18] sm:$0xff]
    %v1870 = vmul.f32 %v1868, %v1818
    %v1871 = vmul.f32 %v1869, %v1818
    %v1872 = vadd.f32 %v1866, %v1870
    %v1873 = vadd.f32 %v1867, %v1871
    %v1874 = vld [vmem:[%s451 + $0x20] sm:$0xff]
    %v1875 = vld [vmem:[%s451 + $0x28] sm:$0xff]
    %v1876 = vmul.f32 %v1874, %v1826
    %v1877 = vmul.f32 %v1875, %v1826
    %v1878 = vadd.f32 %v1872, %v1876
    %v1879 = vadd.f32 %v1873, %v1877
    %v1880 = vadd.f32 %v1878, %v1831
    %v1881 = vadd.f32 %v1879, %v1831
    %v1882 = vmax.f32 %v1832, %v1880
    %v1883 = vmax.f32 %v1833, %v1881
    %v1884 = vmax.f32 %v1882, %v1883
    %1885 = vst.msk [vmem:[#allocation3 + $0x50] sm:$0xff] %vm225, %v1884
    %s1886 = sld [smem:[#allocation4 + $0x2d]]
    %v1887 = vld [vmem:[%s338] sm:$0xff]
    %v1888 = vld [vmem:[%s338 + $0x8] sm:$0xff]
    %v1889 = vstv %s1886
    %v1890 = vmul.f32 %v1887, %v1889
    %v1891 = vmul.f32 %v1888, %v1889
    %s1892 = sld [smem:[#allocation4 + $0x2e]]
    %v1893 = vld [vmem:[%s338 + $0x10] sm:$0xff]
    %v1894 = vld [vmem:[%s338 + $0x18] sm:$0xff]
    %v1895 = vstv %s1892
    %v1896 = vmul.f32 %v1893, %v1895
    %v1897 = vmul.f32 %v1894, %v1895
    %v1898 = vadd.f32 %v1890, %v1896
    %v1899 = vadd.f32 %v1891, %v1897
    %s1900 = sld [smem:[#allocation4 + $0x2f]]
    %v1901 = vld [vmem:[%s338 + $0x20] sm:$0xff]
    %v1902 = vld [vmem:[%s338 + $0x28] sm:$0xff]
    %v1903 = vstv %s1900
    %v1904 = vmul.f32 %v1901, %v1903
    %v1905 = vmul.f32 %v1902, %v1903
    %v1906 = vadd.f32 %v1898, %v1904
    %v1907 = vadd.f32 %v1899, %v1905
    %s1908 = sld [smem:[#allocation4 + $0x30]]
    %v1909 = vld [vmem:[%s451] sm:$0xff]
    %v1910 = vld [vmem:[%s451 + $0x8] sm:$0xff]
    %v1911 = vstv %s1908
    %v1912 = vmul.f32 %v1909, %v1911
    %v1913 = vmul.f32 %v1910, %v1911
    %v1914 = vadd.f32 %v1906, %v1912
    %v1915 = vadd.f32 %v1907, %v1913
    %s1916 = sld [smem:[#allocation4 + $0x31]]
    %v1917 = vld [vmem:[%s451 + $0x10] sm:$0xff]
    %v1918 = vld [vmem:[%s451 + $0x18] sm:$0xff]
    %v1919 = vstv %s1916
    %v1920 = vmul.f32 %v1917, %v1919
    %v1921 = vmul.f32 %v1918, %v1919
    %v1922 = vadd.f32 %v1914, %v1920
    %v1923 = vadd.f32 %v1915, %v1921
    %s1924 = sld [smem:[#allocation4 + $0x32]]
    %v1925 = vld [vmem:[%s451 + $0x20] sm:$0xff]
    %v1926 = vld [vmem:[%s451 + $0x28] sm:$0xff]
    %v1927 = vstv %s1924
    %v1928 = vmul.f32 %v1925, %v1927
    %v1929 = vmul.f32 %v1926, %v1927
    %v1930 = vadd.f32 %v1922, %v1928
    %v1931 = vadd.f32 %v1923, %v1929
    %s1932 = sld [smem:[#allocation4 + $0x33]]
    %v1933 = vld [vmem:[%s564] sm:$0xff]
    %v1934 = vld [vmem:[%s564 + $0x8] sm:$0xff]
    %v1935 = vstv %s1932
    %v1936 = vmul.f32 %v1933, %v1935
    %v1937 = vmul.f32 %v1934, %v1935
    %v1938 = vadd.f32 %v1930, %v1936
    %v1939 = vadd.f32 %v1931, %v1937
    %s1940 = sld [smem:[#allocation4 + $0x34]]
    %v1941 = vld [vmem:[%s564 + $0x10] sm:$0xff]
    %v1942 = vld [vmem:[%s564 + $0x18] sm:$0xff]
    %v1943 = vstv %s1940
    %v1944 = vmul.f32 %v1941, %v1943
    %v1945 = vmul.f32 %v1942, %v1943
    %v1946 = vadd.f32 %v1938, %v1944
    %v1947 = vadd.f32 %v1939, %v1945
    %s1948 = sld [smem:[#allocation4 + $0x35]]
    %v1949 = vld [vmem:[%s564 + $0x20] sm:$0xff]
    %v1950 = vld [vmem:[%s564 + $0x28] sm:$0xff]
    %v1951 = vstv %s1948
    %v1952 = vmul.f32 %v1949, %v1951
    %v1953 = vmul.f32 %v1950, %v1951
    %v1954 = vadd.f32 %v1946, %v1952
    %v1955 = vadd.f32 %v1947, %v1953
    %v1956 = vadd.f32 %v1954, %v1831
    %v1957 = vadd.f32 %v1955, %v1831
    %v1958 = vmul.f32 %v1909, %v1889
    %v1959 = vmul.f32 %v1910, %v1889
    %v1960 = vmul.f32 %v1917, %v1895
    %v1961 = vmul.f32 %v1918, %v1895
    %v1962 = vadd.f32 %v1958, %v1960
    %v1963 = vadd.f32 %v1959, %v1961
    %v1964 = vmul.f32 %v1925, %v1903
    %v1965 = vmul.f32 %v1926, %v1903
    %v1966 = vadd.f32 %v1962, %v1964
    %v1967 = vadd.f32 %v1963, %v1965
    %v1968 = vmul.f32 %v1933, %v1911
    %v1969 = vmul.f32 %v1934, %v1911
    %v1970 = vadd.f32 %v1966, %v1968
    %v1971 = vadd.f32 %v1967, %v1969
    %v1972 = vmul.f32 %v1941, %v1919
    %v1973 = vmul.f32 %v1942, %v1919
    %v1974 = vadd.f32 %v1970, %v1972
    %v1975 = vadd.f32 %v1971, %v1973
    %v1976 = vmul.f32 %v1949, %v1927
    %v1977 = vmul.f32 %v1950, %v1927
    %v1978 = vadd.f32 %v1974, %v1976
    %v1979 = vadd.f32 %v1975, %v1977
    %v1980 = vld [vmem:[%s677] sm:$0xff]
    %v1981 = vld [vmem:[%s677 + $0x8] sm:$0xff]
    %v1982 = vmul.f32 %v1980, %v1935
    %v1983 = vmul.f32 %v1981, %v1935
    %v1984 = vadd.f32 %v1978, %v1982
    %v1985 = vadd.f32 %v1979, %v1983
    %v1986 = vld [vmem:[%s677 + $0x10] sm:$0xff]
    %v1987 = vld [vmem:[%s677 + $0x18] sm:$0xff]
    %v1988 = vmul.f32 %v1986, %v1943
    %v1989 = vmul.f32 %v1987, %v1943
    %v1990 = vadd.f32 %v1984, %v1988
    %v1991 = vadd.f32 %v1985, %v1989
    %v1992 = vld [vmem:[%s677 + $0x20] sm:$0xff]
    %v1993 = vld [vmem:[%s677 + $0x28] sm:$0xff]
    %v1994 = vmul.f32 %v1992, %v1951
    %v1995 = vmul.f32 %v1993, %v1951
    %v1996 = vadd.f32 %v1990, %v1994
    %v1997 = vadd.f32 %v1991, %v1995
    %v1998 = vadd.f32 %v1996, %v1831
    %v1999 = vadd.f32 %v1997, %v1831
    %v2000 = vmax.f32 %v1956, %v1998
    %v2001 = vmax.f32 %v1957, %v1999
    %v2002 = vmax.f32 %v2000, %v2001
    %2003 = vst.msk [vmem:[#allocation3 + $0x58] sm:$0xff] %vm225, %v2002
    %s2004 = sld [smem:[#allocation6 + $0x6]]
    %s2005 = sld [smem:[#allocation4 + $0x39]]
    %v2006 = vld [vmem:[#allocation2] sm:$0xff]
    %v2007 = vld [vmem:[#allocation2 + $0x8] sm:$0xff]
    %v2008 = vstv %s2005
    %v2009 = vmul.f32 %v2006, %v2008
    %v2010 = vmul.f32 %v2007, %v2008
    %s2011 = sld [smem:[#allocation4 + $0x3a]]
    %v2012 = vld [vmem:[#allocation2 + $0x10] sm:$0xff]
    %v2013 = vld [vmem:[#allocation2 + $0x18] sm:$0xff]
    %v2014 = vstv %s2011
    %v2015 = vmul.f32 %v2012, %v2014
    %v2016 = vmul.f32 %v2013, %v2014
    %v2017 = vadd.f32 %v2009, %v2015
    %v2018 = vadd.f32 %v2010, %v2016
    %s2019 = sld [smem:[#allocation4 + $0x3b]]
    %v2020 = vld [vmem:[#allocation2 + $0x20] sm:$0xff]
    %v2021 = vld [vmem:[#allocation2 + $0x28] sm:$0xff]
    %v2022 = vstv %s2019
    %v2023 = vmul.f32 %v2020, %v2022
    %v2024 = vmul.f32 %v2021, %v2022
    %v2025 = vadd.f32 %v2017, %v2023
    %v2026 = vadd.f32 %v2018, %v2024
    %s2027 = sld [smem:[#allocation4 + $0x3c]]
    %v2028 = vld [vmem:[%s338] sm:$0xff]
    %v2029 = vld [vmem:[%s338 + $0x8] sm:$0xff]
    %v2030 = vstv %s2027
    %v2031 = vmul.f32 %v2028, %v2030
    %v2032 = vmul.f32 %v2029, %v2030
    %v2033 = vadd.f32 %v2025, %v2031
    %v2034 = vadd.f32 %v2026, %v2032
    %s2035 = sld [smem:[#allocation4 + $0x3d]]
    %v2036 = vld [vmem:[%s338 + $0x10] sm:$0xff]
    %v2037 = vld [vmem:[%s338 + $0x18] sm:$0xff]
    %v2038 = vstv %s2035
    %v2039 = vmul.f32 %v2036, %v2038
    %v2040 = vmul.f32 %v2037, %v2038
    %v2041 = vadd.f32 %v2033, %v2039
    %v2042 = vadd.f32 %v2034, %v2040
    %s2043 = sld [smem:[#allocation4 + $0x3e]]
    %v2044 = vld [vmem:[%s338 + $0x20] sm:$0xff]
    %v2045 = vld [vmem:[%s338 + $0x28] sm:$0xff]
    %v2046 = vstv %s2043
    %v2047 = vmul.f32 %v2044, %v2046
    %v2048 = vmul.f32 %v2045, %v2046
    %v2049 = vadd.f32 %v2041, %v2047
    %v2050 = vadd.f32 %v2042, %v2048
    %v2051 = vstv %s2004
    %v2052 = vadd.f32 %v2049, %v2051
    %v2053 = vadd.f32 %v2050, %v2051
    %s2054 = sld [smem:[#allocation4 + $0x36]]
    %v2055 = vstv %s2054
    %v2056 = vmul.f32 %v2006, %v2055
    %v2057 = vmul.f32 %v2007, %v2055
    %s2058 = sld [smem:[#allocation4 + $0x37]]
    %v2059 = vstv %s2058
    %v2060 = vmul.f32 %v2012, %v2059
    %v2061 = vmul.f32 %v2013, %v2059
    %v2062 = vadd.f32 %v2056, %v2060
    %v2063 = vadd.f32 %v2057, %v2061
    %s2064 = sld [smem:[#allocation4 + $0x38]]
    %v2065 = vstv %s2064
    %v2066 = vmul.f32 %v2020, %v2065
    %v2067 = vmul.f32 %v2021, %v2065
    %v2068 = vadd.f32 %v2062, %v2066
    %v2069 = vadd.f32 %v2063, %v2067
    %v2070 = vmul.f32 %v2028, %v2008
    %v2071 = vmul.f32 %v2029, %v2008
    %v2072 = vadd.f32 %v2068, %v2070
    %v2073 = vadd.f32 %v2069, %v2071
    %v2074 = vmul.f32 %v2036, %v2014
    %v2075 = vmul.f32 %v2037, %v2014
    %v2076 = vadd.f32 %v2072, %v2074
    %v2077 = vadd.f32 %v2073, %v2075
    %v2078 = vmul.f32 %v2044, %v2022
    %v2079 = vmul.f32 %v2045, %v2022
    %v2080 = vadd.f32 %v2076, %v2078
    %v2081 = vadd.f32 %v2077, %v2079
    %v2082 = vld [vmem:[%s451] sm:$0xff]
    %v2083 = vld [vmem:[%s451 + $0x8] sm:$0xff]
    %v2084 = vmul.f32 %v2082, %v2030
    %v2085 = vmul.f32 %v2083, %v2030
    %v2086 = vadd.f32 %v2080, %v2084
    %v2087 = vadd.f32 %v2081, %v2085
    %v2088 = vld [vmem:[%s451 + $0x10] sm:$0xff]
    %v2089 = vld [vmem:[%s451 + $0x18] sm:$0xff]
    %v2090 = vmul.f32 %v2088, %v2038
    %v2091 = vmul.f32 %v2089, %v2038
    %v2092 = vadd.f32 %v2086, %v2090
    %v2093 = vadd.f32 %v2087, %v2091
    %v2094 = vld [vmem:[%s451 + $0x20] sm:$0xff]
    %v2095 = vld [vmem:[%s451 + $0x28] sm:$0xff]
    %v2096 = vmul.f32 %v2094, %v2046
    %v2097 = vmul.f32 %v2095, %v2046
    %v2098 = vadd.f32 %v2092, %v2096
    %v2099 = vadd.f32 %v2093, %v2097
    %v2100 = vadd.f32 %v2098, %v2051
    %v2101 = vadd.f32 %v2099, %v2051
    %v2102 = vmax.f32 %v2052, %v2100
    %v2103 = vmax.f32 %v2053, %v2101
    %v2104 = vmax.f32 %v2102, %v2103
    %2105 = vst.msk [vmem:[#allocation3 + $0x60] sm:$0xff] %vm225, %v2104
    %s2106 = sld [smem:[#allocation4 + $0x36]]
    %v2107 = vld [vmem:[%s338] sm:$0xff]
    %v2108 = vld [vmem:[%s338 + $0x8] sm:$0xff]
    %v2109 = vstv %s2106
    %v2110 = vmul.f32 %v2107, %v2109
    %v2111 = vmul.f32 %v2108, %v2109
    %s2112 = sld [smem:[#allocation4 + $0x37]]
    %v2113 = vld [vmem:[%s338 + $0x10] sm:$0xff]
    %v2114 = vld [vmem:[%s338 + $0x18] sm:$0xff]
    %v2115 = vstv %s2112
    %v2116 = vmul.f32 %v2113, %v2115
    %v2117 = vmul.f32 %v2114, %v2115
    %v2118 = vadd.f32 %v2110, %v2116
    %v2119 = vadd.f32 %v2111, %v2117
    %s2120 = sld [smem:[#allocation4 + $0x38]]
    %v2121 = vld [vmem:[%s338 + $0x20] sm:$0xff]
    %v2122 = vld [vmem:[%s338 + $0x28] sm:$0xff]
    %v2123 = vstv %s2120
    %v2124 = vmul.f32 %v2121, %v2123
    %v2125 = vmul.f32 %v2122, %v2123
    %v2126 = vadd.f32 %v2118, %v2124
    %v2127 = vadd.f32 %v2119, %v2125
    %s2128 = sld [smem:[#allocation4 + $0x39]]
    %v2129 = vld [vmem:[%s451] sm:$0xff]
    %v2130 = vld [vmem:[%s451 + $0x8] sm:$0xff]
    %v2131 = vstv %s2128
    %v2132 = vmul.f32 %v2129, %v2131
    %v2133 = vmul.f32 %v2130, %v2131
    %v2134 = vadd.f32 %v2126, %v2132
    %v2135 = vadd.f32 %v2127, %v2133
    %s2136 = sld [smem:[#allocation4 + $0x3a]]
    %v2137 = vld [vmem:[%s451 + $0x10] sm:$0xff]
    %v2138 = vld [vmem:[%s451 + $0x18] sm:$0xff]
    %v2139 = vstv %s2136
    %v2140 = vmul.f32 %v2137, %v2139
    %v2141 = vmul.f32 %v2138, %v2139
    %v2142 = vadd.f32 %v2134, %v2140
    %v2143 = vadd.f32 %v2135, %v2141
    %s2144 = sld [smem:[#allocation4 + $0x3b]]
    %v2145 = vld [vmem:[%s451 + $0x20] sm:$0xff]
    %v2146 = vld [vmem:[%s451 + $0x28] sm:$0xff]
    %v2147 = vstv %s2144
    %v2148 = vmul.f32 %v2145, %v2147
    %v2149 = vmul.f32 %v2146, %v2147
    %v2150 = vadd.f32 %v2142, %v2148
    %v2151 = vadd.f32 %v2143, %v2149
    %s2152 = sld [smem:[#allocation4 + $0x3c]]
    %v2153 = vld [vmem:[%s564] sm:$0xff]
    %v2154 = vld [vmem:[%s564 + $0x8] sm:$0xff]
    %v2155 = vstv %s2152
    %v2156 = vmul.f32 %v2153, %v2155
    %v2157 = vmul.f32 %v2154, %v2155
    %v2158 = vadd.f32 %v2150, %v2156
    %v2159 = vadd.f32 %v2151, %v2157
    %s2160 = sld [smem:[#allocation4 + $0x3d]]
    %v2161 = vld [vmem:[%s564 + $0x10] sm:$0xff]
    %v2162 = vld [vmem:[%s564 + $0x18] sm:$0xff]
    %v2163 = vstv %s2160
    %v2164 = vmul.f32 %v2161, %v2163
    %v2165 = vmul.f32 %v2162, %v2163
    %v2166 = vadd.f32 %v2158, %v2164
    %v2167 = vadd.f32 %v2159, %v2165
    %s2168 = sld [smem:[#allocation4 + $0x3e]]
    %v2169 = vld [vmem:[%s564 + $0x20] sm:$0xff]
    %v2170 = vld [vmem:[%s564 + $0x28] sm:$0xff]
    %v2171 = vstv %s2168
    %v2172 = vmul.f32 %v2169, %v2171
    %v2173 = vmul.f32 %v2170, %v2171
    %v2174 = vadd.f32 %v2166, %v2172
    %v2175 = vadd.f32 %v2167, %v2173
    %v2176 = vadd.f32 %v2174, %v2051
    %v2177 = vadd.f32 %v2175, %v2051
    %v2178 = vmul.f32 %v2129, %v2109
    %v2179 = vmul.f32 %v2130, %v2109
    %v2180 = vmul.f32 %v2137, %v2115
    %v2181 = vmul.f32 %v2138, %v2115
    %v2182 = vadd.f32 %v2178, %v2180
    %v2183 = vadd.f32 %v2179, %v2181
    %v2184 = vmul.f32 %v2145, %v2123
    %v2185 = vmul.f32 %v2146, %v2123
    %v2186 = vadd.f32 %v2182, %v2184
    %v2187 = vadd.f32 %v2183, %v2185
    %v2188 = vmul.f32 %v2153, %v2131
    %v2189 = vmul.f32 %v2154, %v2131
    %v2190 = vadd.f32 %v2186, %v2188
    %v2191 = vadd.f32 %v2187, %v2189
    %v2192 = vmul.f32 %v2161, %v2139
    %v2193 = vmul.f32 %v2162, %v2139
    %v2194 = vadd.f32 %v2190, %v2192
    %v2195 = vadd.f32 %v2191, %v2193
    %v2196 = vmul.f32 %v2169, %v2147
    %v2197 = vmul.f32 %v2170, %v2147
    %v2198 = vadd.f32 %v2194, %v2196
    %v2199 = vadd.f32 %v2195, %v2197
    %v2200 = vld [vmem:[%s677] sm:$0xff]
    %v2201 = vld [vmem:[%s677 + $0x8] sm:$0xff]
    %v2202 = vmul.f32 %v2200, %v2155
    %v2203 = vmul.f32 %v2201, %v2155
    %v2204 = vadd.f32 %v2198, %v2202
    %v2205 = vadd.f32 %v2199, %v2203
    %v2206 = vld [vmem:[%s677 + $0x10] sm:$0xff]
    %v2207 = vld [vmem:[%s677 + $0x18] sm:$0xff]
    %v2208 = vmul.f32 %v2206, %v2163
    %v2209 = vmul.f32 %v2207, %v2163
    %v2210 = vadd.f32 %v2204, %v2208
    %v2211 = vadd.f32 %v2205, %v2209
    %v2212 = vld [vmem:[%s677 + $0x20] sm:$0xff]
    %v2213 = vld [vmem:[%s677 + $0x28] sm:$0xff]
    %v2214 = vmul.f32 %v2212, %v2171
    %v2215 = vmul.f32 %v2213, %v2171
    %v2216 = vadd.f32 %v2210, %v2214
    %v2217 = vadd.f32 %v2211, %v2215
    %v2218 = vadd.f32 %v2216, %v2051
    %v2219 = vadd.f32 %v2217, %v2051
    %v2220 = vmax.f32 %v2176, %v2218
    %v2221 = vmax.f32 %v2177, %v2219
    %v2222 = vmax.f32 %v2220, %v2221
    %2223 = vst.msk [vmem:[#allocation3 + $0x68] sm:$0xff] %vm225, %v2222
    %s2224 = sld [smem:[#allocation6 + $0x7]]
    %s2225 = sld [smem:[#allocation4 + $0x42]]
    %v2226 = vld [vmem:[#allocation2] sm:$0xff]
    %v2227 = vld [vmem:[#allocation2 + $0x8] sm:$0xff]
    %v2228 = vstv %s2225
    %v2229 = vmul.f32 %v2226, %v2228
    %v2230 = vmul.f32 %v2227, %v2228
    %s2231 = sld [smem:[#allocation4 + $0x43]]
    %v2232 = vld [vmem:[#allocation2 + $0x10] sm:$0xff]
    %v2233 = vld [vmem:[#allocation2 + $0x18] sm:$0xff]
    %v2234 = vstv %s2231
    %v2235 = vmul.f32 %v2232, %v2234
    %v2236 = vmul.f32 %v2233, %v2234
    %v2237 = vadd.f32 %v2229, %v2235
    %v2238 = vadd.f32 %v2230, %v2236
    %s2239 = sld [smem:[#allocation4 + $0x44]]
    %v2240 = vld [vmem:[#allocation2 + $0x20] sm:$0xff]
    %v2241 = vld [vmem:[#allocation2 + $0x28] sm:$0xff]
    %v2242 = vstv %s2239
    %v2243 = vmul.f32 %v2240, %v2242
    %v2244 = vmul.f32 %v2241, %v2242
    %v2245 = vadd.f32 %v2237, %v2243
    %v2246 = vadd.f32 %v2238, %v2244
    %s2247 = sld [smem:[#allocation4 + $0x45]]
    %v2248 = vld [vmem:[%s338] sm:$0xff]
    %v2249 = vld [vmem:[%s338 + $0x8] sm:$0xff]
    %v2250 = vstv %s2247
    %v2251 = vmul.f32 %v2248, %v2250
    %v2252 = vmul.f32 %v2249, %v2250
    %v2253 = vadd.f32 %v2245, %v2251
    %v2254 = vadd.f32 %v2246, %v2252
    %s2255 = sld [smem:[#allocation4 + $0x46]]
    %v2256 = vld [vmem:[%s338 + $0x10] sm:$0xff]
    %v2257 = vld [vmem:[%s338 + $0x18] sm:$0xff]
    %v2258 = vstv %s2255
    %v2259 = vmul.f32 %v2256, %v2258
    %v2260 = vmul.f32 %v2257, %v2258
    %v2261 = vadd.f32 %v2253, %v2259
    %v2262 = vadd.f32 %v2254, %v2260
    %s2263 = sld [smem:[#allocation4 + $0x47]]
    %v2264 = vld [vmem:[%s338 + $0x20] sm:$0xff]
    %v2265 = vld [vmem:[%s338 + $0x28] sm:$0xff]
    %v2266 = vstv %s2263
    %v2267 = vmul.f32 %v2264, %v2266
    %v2268 = vmul.f32 %v2265, %v2266
    %v2269 = vadd.f32 %v2261, %v2267
    %v2270 = vadd.f32 %v2262, %v2268
    %v2271 = vstv %s2224
    %v2272 = vadd.f32 %v2269, %v2271
    %v2273 = vadd.f32 %v2270, %v2271
    %s2274 = sld [smem:[#allocation4 + $0x3f]]
    %v2275 = vstv %s2274
    %v2276 = vmul.f32 %v2226, %v2275
    %v2277 = vmul.f32 %v2227, %v2275
    %s2278 = sld [smem:[#allocation4 + $0x40]]
    %v2279 = vstv %s2278
    %v2280 = vmul.f32 %v2232, %v2279
    %v2281 = vmul.f32 %v2233, %v2279
    %v2282 = vadd.f32 %v2276, %v2280
    %v2283 = vadd.f32 %v2277, %v2281
    %s2284 = sld [smem:[#allocation4 + $0x41]]
    %v2285 = vstv %s2284
    %v2286 = vmul.f32 %v2240, %v2285
    %v2287 = vmul.f32 %v2241, %v2285
    %v2288 = vadd.f32 %v2282, %v2286
    %v2289 = vadd.f32 %v2283, %v2287
    %v2290 = vmul.f32 %v2248, %v2228
    %v2291 = vmul.f32 %v2249, %v2228
    %v2292 = vadd.f32 %v2288, %v2290
    %v2293 = vadd.f32 %v2289, %v2291
    %v2294 = vmul.f32 %v2256, %v2234
    %v2295 = vmul.f32 %v2257, %v2234
    %v2296 = vadd.f32 %v2292, %v2294
    %v2297 = vadd.f32 %v2293, %v2295
    %v2298 = vmul.f32 %v2264, %v2242
    %v2299 = vmul.f32 %v2265, %v2242
    %v2300 = vadd.f32 %v2296, %v2298
    %v2301 = vadd.f32 %v2297, %v2299
    %v2302 = vld [vmem:[%s451] sm:$0xff]
    %v2303 = vld [vmem:[%s451 + $0x8] sm:$0xff]
    %v2304 = vmul.f32 %v2302, %v2250
    %v2305 = vmul.f32 %v2303, %v2250
    %v2306 = vadd.f32 %v2300, %v2304
    %v2307 = vadd.f32 %v2301, %v2305
    %v2308 = vld [vmem:[%s451 + $0x10] sm:$0xff]
    %v2309 = vld [vmem:[%s451 + $0x18] sm:$0xff]
    %v2310 = vmul.f32 %v2308, %v2258
    %v2311 = vmul.f32 %v2309, %v2258
    %v2312 = vadd.f32 %v2306, %v2310
    %v2313 = vadd.f32 %v2307, %v2311
    %v2314 = vld [vmem:[%s451 + $0x20] sm:$0xff]
    %v2315 = vld [vmem:[%s451 + $0x28] sm:$0xff]
    %v2316 = vmul.f32 %v2314, %v2266
    %v2317 = vmul.f32 %v2315, %v2266
    %v2318 = vadd.f32 %v2312, %v2316
    %v2319 = vadd.f32 %v2313, %v2317
    %v2320 = vadd.f32 %v2318, %v2271
    %v2321 = vadd.f32 %v2319, %v2271
    %v2322 = vmax.f32 %v2272, %v2320
    %v2323 = vmax.f32 %v2273, %v2321
    %v2324 = vmax.f32 %v2322, %v2323
    %2325 = vst.msk [vmem:[#allocation3 + $0x70] sm:$0xff] %vm225, %v2324
    %s2326 = sld [smem:[#allocation4 + $0x3f]]
    %v2327 = vld [vmem:[%s338] sm:$0xff]
    %v2328 = vld [vmem:[%s338 + $0x8] sm:$0xff]
    %v2329 = vstv %s2326
    %v2330 = vmul.f32 %v2327, %v2329
    %v2331 = vmul.f32 %v2328, %v2329
    %s2332 = sld [smem:[#allocation4 + $0x40]]
    %v2333 = vld [vmem:[%s338 + $0x10] sm:$0xff]
    %v2334 = vld [vmem:[%s338 + $0x18] sm:$0xff]
    %v2335 = vstv %s2332
    %v2336 = vmul.f32 %v2333, %v2335
    %v2337 = vmul.f32 %v2334, %v2335
    %v2338 = vadd.f32 %v2330, %v2336
    %v2339 = vadd.f32 %v2331, %v2337
    %s2340 = sld [smem:[#allocation4 + $0x41]]
    %v2341 = vld [vmem:[%s338 + $0x20] sm:$0xff]
    %v2342 = vld [vmem:[%s338 + $0x28] sm:$0xff]
    %v2343 = vstv %s2340
    %v2344 = vmul.f32 %v2341, %v2343
    %v2345 = vmul.f32 %v2342, %v2343
    %v2346 = vadd.f32 %v2338, %v2344
    %v2347 = vadd.f32 %v2339, %v2345
    %s2348 = sld [smem:[#allocation4 + $0x42]]
    %v2349 = vld [vmem:[%s451] sm:$0xff]
    %v2350 = vld [vmem:[%s451 + $0x8] sm:$0xff]
    %v2351 = vstv %s2348
    %v2352 = vmul.f32 %v2349, %v2351
    %v2353 = vmul.f32 %v2350, %v2351
    %v2354 = vadd.f32 %v2346, %v2352
    %v2355 = vadd.f32 %v2347, %v2353
    %s2356 = sld [smem:[#allocation4 + $0x43]]
    %v2357 = vld [vmem:[%s451 + $0x10] sm:$0xff]
    %v2358 = vld [vmem:[%s451 + $0x18] sm:$0xff]
    %v2359 = vstv %s2356
    %v2360 = vmul.f32 %v2357, %v2359
    %v2361 = vmul.f32 %v2358, %v2359
    %v2362 = vadd.f32 %v2354, %v2360
    %v2363 = vadd.f32 %v2355, %v2361
    %s2364 = sld [smem:[#allocation4 + $0x44]]
    %v2365 = vld [vmem:[%s451 + $0x20] sm:$0xff]
    %v2366 = vld [vmem:[%s451 + $0x28] sm:$0xff]
    %v2367 = vstv %s2364
    %v2368 = vmul.f32 %v2365, %v2367
    %v2369 = vmul.f32 %v2366, %v2367
    %v2370 = vadd.f32 %v2362, %v2368
    %v2371 = vadd.f32 %v2363, %v2369
    %s2372 = sld [smem:[#allocation4 + $0x45]]
    %v2373 = vld [vmem:[%s564] sm:$0xff]
    %v2374 = vld [vmem:[%s564 + $0x8] sm:$0xff]
    %v2375 = vstv %s2372
    %v2376 = vmul.f32 %v2373, %v2375
    %v2377 = vmul.f32 %v2374, %v2375
    %v2378 = vadd.f32 %v2370, %v2376
    %v2379 = vadd.f32 %v2371, %v2377
    %s2380 = sld [smem:[#allocation4 + $0x46]]
    %v2381 = vld [vmem:[%s564 + $0x10] sm:$0xff]
    %v2382 = vld [vmem:[%s564 + $0x18] sm:$0xff]
    %v2383 = vstv %s2380
    %v2384 = vmul.f32 %v2381, %v2383
    %v2385 = vmul.f32 %v2382, %v2383
    %v2386 = vadd.f32 %v2378, %v2384
    %v2387 = vadd.f32 %v2379, %v2385
    %s2388 = sld [smem:[#allocation4 + $0x47]]
    %v2389 = vld [vmem:[%s564 + $0x20] sm:$0xff]
    %v2390 = vld [vmem:[%s564 + $0x28] sm:$0xff]
    %v2391 = vstv %s2388
    %v2392 = vmul.f32 %v2389, %v2391
    %v2393 = vmul.f32 %v2390, %v2391
    %v2394 = vadd.f32 %v2386, %v2392
    %v2395 = vadd.f32 %v2387, %v2393
    %v2396 = vadd.f32 %v2394, %v2271
    %v2397 = vadd.f32 %v2395, %v2271
    %v2398 = vmul.f32 %v2349, %v2329
    %v2399 = vmul.f32 %v2350, %v2329
    %v2400 = vmul.f32 %v2357, %v2335
    %v2401 = vmul.f32 %v2358, %v2335
    %v2402 = vadd.f32 %v2398, %v2400
    %v2403 = vadd.f32 %v2399, %v2401
    %v2404 = vmul.f32 %v2365, %v2343
    %v2405 = vmul.f32 %v2366, %v2343
    %v2406 = vadd.f32 %v2402, %v2404
    %v2407 = vadd.f32 %v2403, %v2405
    %v2408 = vmul.f32 %v2373, %v2351
    %v2409 = vmul.f32 %v2374, %v2351
    %v2410 = vadd.f32 %v2406, %v2408
    %v2411 = vadd.f32 %v2407, %v2409
    %v2412 = vmul.f32 %v2381, %v2359
    %v2413 = vmul.f32 %v2382, %v2359
    %v2414 = vadd.f32 %v2410, %v2412
    %v2415 = vadd.f32 %v2411, %v2413
    %v2416 = vmul.f32 %v2389, %v2367
    %v2417 = vmul.f32 %v2390, %v2367
    %v2418 = vadd.f32 %v2414, %v2416
    %v2419 = vadd.f32 %v2415, %v2417
    %v2420 = vld [vmem:[%s677] sm:$0xff]
    %v2421 = vld [vmem:[%s677 + $0x8] sm:$0xff]
    %v2422 = vmul.f32 %v2420, %v2375
    %v2423 = vmul.f32 %v2421, %v2375
    %v2424 = vadd.f32 %v2418, %v2422
    %v2425 = vadd.f32 %v2419, %v2423
    %v2426 = vld [vmem:[%s677 + $0x10] sm:$0xff]
    %v2427 = vld [vmem:[%s677 + $0x18] sm:$0xff]
    %v2428 = vmul.f32 %v2426, %v2383
    %v2429 = vmul.f32 %v2427, %v2383
    %v2430 = vadd.f32 %v2424, %v2428
    %v2431 = vadd.f32 %v2425, %v2429
    %v2432 = vld [vmem:[%s677 + $0x20] sm:$0xff]
    %v2433 = vld [vmem:[%s677 + $0x28] sm:$0xff]
    %v2434 = vmul.f32 %v2432, %v2391
    %v2435 = vmul.f32 %v2433, %v2391
    %v2436 = vadd.f32 %v2430, %v2434
    %v2437 = vadd.f32 %v2431, %v2435
    %v2438 = vadd.f32 %v2436, %v2271
    %v2439 = vadd.f32 %v2437, %v2271
    %v2440 = vmax.f32 %v2396, %v2438
    %v2441 = vmax.f32 %v2397, %v2439
    %v2442 = vmax.f32 %v2440, %v2441
    %2443 = vst.msk [vmem:[#allocation3 + $0x78] sm:$0xff] %vm225, %v2442
    %v2444 = vld [vmem:[%s5] sm:$0xf]
    %v2445 = vld [vmem:[%s5 + $0x4] sm:$0xf]
    %v2446 = vld [vmem:[%s5 + $0x8] sm:$0xf]
    %v2447 = vld [vmem:[%s5 + $0xc] sm:$0xf]
    %v2448 = vld [vmem:[#allocation3] sm:$0xff]
    %v2449 = vld [vmem:[#allocation3 + $0x8] sm:$0xff]
    %v2450 = vld [vmem:[#allocation3 + $0x10] sm:$0xff]
    %v2451 = vld [vmem:[#allocation3 + $0x18] sm:$0xff]
    %v2452 = vld [vmem:[#allocation3 + $0x20] sm:$0xff]
    %v2453 = vld [vmem:[#allocation3 + $0x28] sm:$0xff]
    %v2454 = vld [vmem:[#allocation3 + $0x30] sm:$0xff]
    %v2455 = vld [vmem:[#allocation3 + $0x38] sm:$0xff]
    %v2456 = vld [vmem:[#allocation3 + $0x40] sm:$0xff]
    %v2457 = vld [vmem:[#allocation3 + $0x48] sm:$0xff]
    %v2458 = vld [vmem:[#allocation3 + $0x50] sm:$0xff]
    %v2459 = vld [vmem:[#allocation3 + $0x58] sm:$0xff]
    %v2460 = vld [vmem:[#allocation3 + $0x60] sm:$0xff]
    %v2461 = vld [vmem:[#allocation3 + $0x68] sm:$0xff]
    %v2462 = vld [vmem:[#allocation3 + $0x70] sm:$0xff]
    %v2463 = vld [vmem:[#allocation3 + $0x78] sm:$0xff]
    %v2464 = vpack.c.bf16 %v2449, %v2448
    %v2465 = vpack.c.bf16 %v2451, %v2450
    %v2466 = vpack.c.bf16 %v2453, %v2452
    %v2467 = vpack.c.bf16 %v2455, %v2454
    %v2468 = vpack.c.bf16 %v2457, %v2456
    %v2469 = vpack.c.bf16 %v2459, %v2458
    %v2470 = vpack.c.bf16 %v2461, %v2460
    %v2471 = vpack.c.bf16 %v2463, %v2462
    %v2472 = vld [vmem:[%s6] sm:$0xff]
    %v2473 = vld [vmem:[%s6 + $0x8] sm:$0xff]
    %v2474 = vld [vmem:[%s6 + $0x10] sm:$0xff]
    %v2475 = vld [vmem:[%s6 + $0x18] sm:$0xff]
    %2477 = vset.pattern.permute.xlu0 0
    %2478 = vperm.xlu0 %2477, %v2472
    %v2479 = vpop.permute.xlu0 %2478
    %2482 = vset.pattern.permute.xlu0 0
    %2483 = vperm.xlu0 %2482, %v2473
    %v2484 = vpop.permute.xlu0 %2483
    %2487 = vset.pattern.permute.xlu0 0
    %2488 = vperm.xlu0 %2487, %v2474
    %v2489 = vpop.permute.xlu0 %2488
    %2492 = vset.pattern.permute.xlu0 0
    %2493 = vperm.xlu0 %2492, %v2475
    %v2494 = vpop.permute.xlu0 %2493
    %v2500 = vunpack.c.l.b16 %v2444
    %v2501 = vunpack.c.l.b16 %v2445
    %v2502 = vunpack.c.l.b16 %v2446
    %v2503 = vunpack.c.l.b16 %v2447
    %v2504 = vpack.c.b16 %v2501, %v2500
    %v2505 = vpack.c.b16 %v2503, %v2502
    %2508 = vmatprep.subr.bf16.mxu0 0
    %2509 = vmatpush1.bf16.msra.mxu0 %v2471
    %2510 = vmatprep.subr.bf16.mxu0 0
    %2511 = vmatpush1.bf16.msra.mxu0 %v2470
    %2512 = vmatprep.subr.bf16.mxu0 0
    %2513 = vmatpush1.bf16.msra.mxu0 %v2469
    %2514 = vmatprep.subr.bf16.mxu0 0
    %2515 = vmatpush1.bf16.msra.mxu0 %v2468
    %2516 = vmatprep.subr.bf16.mxu0 0
    %2517 = vmatpush1.bf16.msra.mxu0 %v2467
    %2518 = vmatprep.subr.bf16.mxu0 0
    %2519 = vmatpush1.bf16.msra.mxu0 %v2466
    %2520 = vmatprep.subr.bf16.mxu0 0
    %2521 = vmatpush1.bf16.msra.mxu0 %v2465
    %2522 = vmatprep.subr.bf16.mxu0 0
    %2523 = vmatpush1.bf16.msra.mxu0 %v2464
    %2524 = vmatprep.subr.bf16.mxu0 0
    %2525 = vmatpush2.bf16.msra.mxu0 0
    %2526 = vmatprep.subr.bf16.mxu0 0
    %2527 = vmatpush2.bf16.msra.mxu0 0
    %2528 = vmatprep.subr.bf16.mxu0 0
    %2529 = vmatpush2.bf16.msra.mxu0 0
    %2530 = vmatprep.subr.bf16.mxu0 0
    %2531 = vmatpush2.bf16.msra.mxu0 0
    %2532 = vmatprep.subr.bf16.mxu0 0
    %2533 = vmatpush2.bf16.msra.mxu0 0
    %2534 = vmatprep.subr.bf16.mxu0 0
    %2535 = vmatpush2.bf16.msra.mxu0 0
    %2536 = vmatprep.subr.bf16.mxu0 0
    %2537 = vmatpush2.bf16.msra.mxu0 0
    %2538 = vmatprep.subr.bf16.mxu0 0
    %2539 = vmatpush2.bf16.msra.mxu0 0
    %2540 = vmatprep.mubr.bf16.mxu0 0
    %2541 = vmatmul.mubr.bf16.gmra.mxu0 %v2504
    %v2542 = vpop.f32.mrf.mxu0
    %v2543 = vadd.f32 %v2479, %v2542
    %v2544 = vpop.f32.mrf.mxu0
    %v2545 = vpop.f32.mrf.mxu0
    %v2546 = vadd.f32 %v2484, %v2545
    %v2547 = vpop.f32.mrf.mxu0
    %2548 = vmatprep.mubr.bf16.mxu0 0
    %2549 = vmatmul.mubr.bf16.gmra.mxu0 %v2505
    %v2550 = vpop.f32.mrf.mxu0
    %v2551 = vadd.f32 %v2489, %v2550
    %v2552 = vpop.f32.mrf.mxu0
    %v2553 = vpop.f32.mrf.mxu0
    %v2554 = vadd.f32 %v2494, %v2553
    %v2555 = vpop.f32.mrf.mxu0
    %2556 = vdwg.mxu0
    %v2557 = vmax.f32 %v2543, 0.0
    %v2558 = vmax.f32 %v2546, 0.0
    %v2559 = vmax.f32 %v2551, 0.0
    %v2560 = vmax.f32 %v2554, 0.0
    %2561 = vxpose.xlu0.b32.start [1/16] %v2557, 128
    %2562 = vxpose.xlu0.b32.cont [2/16] %v2558, 128
    %2563 = vxpose.xlu0.b32.cont [3/16] %v2559, 128
    %2564 = vxpose.xlu0.b32.cont [4/16] %v2560, 128
    %2565 = vxpose.xlu0.b32.cont [5/16] 0.0, 128
    %2566 = vxpose.xlu0.b32.cont [6/16] 0.0, 128
    %2567 = vxpose.xlu0.b32.cont [7/16] 0.0, 128
    %2568 = vxpose.xlu0.b32.cont [8/16] 0.0, 128
    %2569 = vxpose.xlu0.b32.cont [9/16] 0.0, 128
    %2570 = vxpose.xlu0.b32.cont [10/16] 0.0, 128
    %2571 = vxpose.xlu0.b32.cont [11/16] 0.0, 128
    %2572 = vxpose.xlu0.b32.cont [12/16] 0.0, 128
    %2573 = vxpose.xlu0.b32.cont [13/16] 0.0, 128
    %2574 = vxpose.xlu0.b32.cont [14/16] 0.0, 128
    %2575 = vxpose.xlu0.b32.cont [15/16] 0.0, 128
    %2576 = vxpose.xlu0.b32.end [16/16] 0.0, 128
    %v2577 = vpop.trf.xlu0
    %v2578 = vpop.trf.xlu0
    %v2579 = vpop.trf.xlu0
    %v2580 = vpop.trf.xlu0
    %v2581 = vpop.trf.xlu0
    %v2582 = vpop.trf.xlu0
    %v2583 = vpop.trf.xlu0
    %v2584 = vpop.trf.xlu0
    %v2585 = vpop.trf.xlu0
    %v2586 = vpop.trf.xlu0
    %v2587 = vpop.trf.xlu0
    %v2588 = vpop.trf.xlu0
    %v2589 = vpop.trf.xlu0
    %v2590 = vpop.trf.xlu0
    %v2591 = vpop.trf.xlu0
    %v2592 = vpop.trf.xlu0
    %v2593 = vpack.c.bf16 %v2578, %v2577
    %v2594 = vld [vmem:[%s7] sm:$0xf]
    %v2595 = vld [vmem:[%s7 + $0x4] sm:$0xf]
    %v2596 = vld [vmem:[%s7 + $0x8] sm:$0xf]
    %v2597 = vld [vmem:[%s7 + $0xc] sm:$0xf]
    %v2598 = vld [vmem:[%s8] sm:$0x1]
    %v2600 = vlaneseq
    %v2601 = vshrl.u32 %v2600, 7
    %v2602 = vsub.s32 0, %v2601
    %v2603 = vrot.slane %v2598, %v2602
    %v2609 = vunpack.c.l.b16 %v2594
    %v2610 = vunpack.c.l.b16 %v2595
    %v2611 = vunpack.c.l.b16 %v2596
    %v2612 = vunpack.c.l.b16 %v2597
    %v2613 = vpack.c.b16 %v2610, %v2609
    %v2614 = vpack.c.b16 %v2612, %v2611
    %vm2617 = vcmask 261120
    %v2619 = vsel %vm2617, %v2593, 0
    %2621 = vmatprep.subr.bf16.mxu0 0
    %2622 = vmatpush1.bf16.msra.mxu0 0
    %2623 = vmatprep.subr.bf16.mxu0 0
    %2624 = vmatpush1.bf16.msra.mxu0 0
    %2625 = vmatprep.subr.bf16.mxu0 0
    %2626 = vmatpush1.bf16.msra.mxu0 0
    %2627 = vmatprep.subr.bf16.mxu0 0
    %2628 = vmatpush1.bf16.msra.mxu0 0
    %2629 = vmatprep.subr.bf16.mxu0 0
    %2630 = vmatpush1.bf16.msra.mxu0 0
    %2631 = vmatprep.subr.bf16.mxu0 0
    %2632 = vmatpush1.bf16.msra.mxu0 0
    %2633 = vmatprep.subr.bf16.mxu0 0
    %2634 = vmatpush1.bf16.msra.mxu0 %v2614
    %2635 = vmatprep.subr.bf16.mxu0 0
    %2636 = vmatpush1.bf16.msra.mxu0 %v2613
    %2637 = vmatprep.subr.bf16.mxu0 0
    %2638 = vmatpush2.bf16.msra.mxu0 0
    %2639 = vmatprep.subr.bf16.mxu0 0
    %2640 = vmatpush2.bf16.msra.mxu0 0
    %2641 = vmatprep.subr.bf16.mxu0 0
    %2642 = vmatpush2.bf16.msra.mxu0 0
    %2643 = vmatprep.subr.bf16.mxu0 0
    %2644 = vmatpush2.bf16.msra.mxu0 0
    %2645 = vmatprep.subr.bf16.mxu0 0
    %2646 = vmatpush2.bf16.msra.mxu0 0
    %2647 = vmatprep.subr.bf16.mxu0 0
    %2648 = vmatpush2.bf16.msra.mxu0 0
    %2649 = vmatprep.subr.bf16.mxu0 0
    %2650 = vmatpush2.bf16.msra.mxu0 0
    %2651 = vmatprep.subr.bf16.mxu0 0
    %2652 = vmatpush2.bf16.msra.mxu0 0
    %2653 = vmatprep.mubr.bf16.mxu0 0
    %2654 = vmatmul.mubr.bf16.gmra.mxu0 %v2619
    %v2655 = vpop.f32.mrf.mxu0
    %v2656 = vadd.f32 %v2603, %v2655
    %v2657 = vpop.f32.mrf.mxu0
    %v2658 = vpop.f32.mrf.mxu0
    %v2659 = vadd.f32 %v2603, %v2658
    %v2660 = vpop.f32.mrf.mxu0
    %2661 = vdwg.mxu0
    %2662 = vst [vmem:[%s9] sm:$0xff] %v2656
    %2663 = vst [vmem:[%s9 + $0x8] sm:$0xff] %v2659
    // Predicated region
    $region46: #{hcn_inertial_enc_forward.2} parent=1 // pred_check
      _
    $region47: #{hcn_inertial_enc_forward.2} parent=1 // pred_check_branch
      %2665 = sbr.rel (0) target = $region49
    $region48: #{hcn_inertial_enc_forward.2} parent=1 // pred_region
      _
    $region49: #{hcn_inertial_enc_forward.2} parent=1 // pred_fallthru
      _
    // Predicated region
    $region50: #{hcn_inertial_enc_forward.2} parent=1 // pred_check
      _
    $region51: #{hcn_inertial_enc_forward.2} parent=1 // pred_check_branch
      %2667 = sbr.rel (0) target = $region53
    $region52: #{hcn_inertial_enc_forward.2} parent=1 // pred_region
      _
    $region53: #{hcn_inertial_enc_forward.2} parent=1 // pred_fallthru
      _
    %2668 = vsyncpa [#allocation5], 1
    %2669 = vsyncpa [#allocation7], 1

</llo_original>
